<compile_context>
chip_gen: v6e
topology: v6e:2x2x1
jax: 0.10.0
libtpu: 0.0.40
codegen_flags: <defaults>
</compile_context>

<pallas_src>
import math

import jax
import jax.numpy as jnp
from jax.experimental import pallas as pl
from jax.experimental.pallas import tpu as pltpu

# ----------------------------- model dimensions ------------------------------
B = 2                # batch
T = 65               # board tokens: [cls/turn token] + 64 squares
T_PAD = 72           # padded to a multiple of 8 (pad tokens masked as attention keys)
BT_PAD = B * T_PAD   # flattened padded rows (144)
D = 64               # n_embd
N_HEAD = 2
DH = D // N_HEAD
N_LAYER = 2
MLP_H = 4 * D        # transformer MLP hidden (256)
POL_H = 128          # policy head fc1 hidden
N_MOVES = 1968       # policy head fc2 output (as in _init_weights)
N_MOVES_PAD = 2048   # lane-dense padded output width
VOCAB = 14           # piece vocab from fen_to_vector
VOCAB_PAD = 16
N_SPECIAL = 13       # 4 castling + 9 en-passant flags
N_SPECIAL_PAD = 16

# embed-slab row offsets
_E_WTE, _E_WPE, _E_WSP, _E_BSP = 0, 16, 160, 176
_EMB_ROWS = 184
_BIAS_ROWS = 24
_WM_LAYER_ROWS = 3 * D + D + MLP_H + MLP_H            # 768 rows per layer
_WM_ROWS = N_LAYER * _WM_LAYER_ROWS + POL_H           # + fc1^T


def _layernorm(x, w, b, eps=1e-5):
    mu = jnp.mean(x, axis=-1, keepdims=True)
    var = jnp.mean((x - mu) * (x - mu), axis=-1, keepdims=True)
    return (x - mu) * jax.lax.rsqrt(var + eps) * w + b


# --------------------------- fully-fused forward kernel -----------------------
def fused_chess_kernel(board_ref, sp_ref, emb_ref, bias_ref, wm_ref, b2_ref,
                       w2_hbm, out_ref, w2_vmem, w2_sem):
    f32 = jnp.float32
    bf16 = jnp.bfloat16
    dn_last = (((1,), (1,)), ((), ()))   # contract last axis of both operands (no K^T)

    # --- kick off the fc2 weight DMA; it completes behind the transformer blocks ---
    w2_copy = pltpu.make_async_copy(w2_hbm, w2_vmem, w2_sem)
    w2_copy.start()

    # ---- embedding: one-hot token lookup (MXU) + positional add ----
    ids = board_ref[...]                                               # (BT_PAD, 1) i32
    iota_v = jax.lax.broadcasted_iota(jnp.int32, (BT_PAD, VOCAB_PAD), 1)
    onehot = (ids == iota_v).astype(f32)
    wte = emb_ref[_E_WTE:_E_WTE + VOCAB_PAD, :]
    wpe = emb_ref[_E_WPE:_E_WPE + BT_PAD, :]
    x = jnp.dot(onehot, wte, preferred_element_type=f32) + wpe         # (BT_PAD, D) f32

    # ---- special-token projection scattered into each batch's CLS row ----
    wsp = emb_ref[_E_WSP:_E_WSP + N_SPECIAL_PAD, :]
    bsp = emb_ref[_E_BSP:_E_BSP + 1, :]
    sp_proj = jnp.dot(sp_ref[...], wsp, preferred_element_type=f32) + bsp   # (B, D)
    r_idx = jax.lax.broadcasted_iota(jnp.int32, (BT_PAD, B), 0)
    b_idx = jax.lax.broadcasted_iota(jnp.int32, (BT_PAD, B), 1)
    cls_scatter = (r_idx == b_idx * T_PAD).astype(f32)                 # 1 at CLS rows
    x = x + jnp.dot(cls_scatter, sp_proj, preferred_element_type=f32)

    # ---- key-padding mask (f32, applied after the score matmul) ----
    key_pos = jax.lax.broadcasted_iota(jnp.int32, (T_PAD, T_PAD), 1)
    key_bias = jnp.where(key_pos < T, 0.0, -1e30).astype(f32)

    scale = 1.0 / math.sqrt(DH)

    # ---- transformer blocks (statically unrolled, all weights VMEM-resident) ----
    for l in range(N_LAYER):
        bb = l * 8
        wb = l * _WM_LAYER_ROWS
        ln1w = bias_ref[bb + 0:bb + 1, 0:D]
        ln1b = bias_ref[bb + 1:bb + 2, 0:D]
        bqkv = bias_ref[bb + 2:bb + 3, 0:3 * D]
        bo   = bias_ref[bb + 3:bb + 4, 0:D]
        ln2w = bias_ref[bb + 4:bb + 5, 0:D]
        ln2b = bias_ref[bb + 5:bb + 6, 0:D]
        bfc  = bias_ref[bb + 6:bb + 7, 0:MLP_H]
        bpr  = bias_ref[bb + 7:bb + 8, 0:D]

        wqkvT = wm_ref[wb:wb + 3 * D, :]                         # (3D, D) bf16
        wo    = wm_ref[wb + 3 * D:wb + 4 * D, :]                 # (D, D)  bf16
        wfcT  = wm_ref[wb + 4 * D:wb + 4 * D + MLP_H, :]         # (MLP_H, D) bf16
        wpr   = wm_ref[wb + 4 * D + MLP_H:wb + 4 * D + 2 * MLP_H, :]  # (MLP_H, D) bf16

        # --- multi-head self-attention (pre-LN), per-batch aligned (72,72) scores ---
        h = _layernorm(x, ln1w, ln1b).astype(bf16)
        qkv = jax.lax.dot_general(h, wqkvT, dn_last,
                                  preferred_element_type=f32) + bqkv    # (BT_PAD, 3D) f32

        att_parts = []
        for b in range(B):                                   # static unroll over batch
            r0 = b * T_PAD
            acc_b = jnp.zeros((T_PAD, D), f32)
            for hh in range(N_HEAD):                         # static unroll over heads
                q = qkv[r0:r0 + T_PAD, hh * DH:(hh + 1) * DH].astype(bf16)
                k = qkv[r0:r0 + T_PAD, D + hh * DH:D + (hh + 1) * DH].astype(bf16)
                v = qkv[r0:r0 + T_PAD, 2 * D + hh * DH:2 * D + (hh + 1) * DH].astype(bf16)
                s = jax.lax.dot_general(q, k, dn_last,
                                        preferred_element_type=f32) * scale + key_bias
                s = s - jnp.max(s, axis=-1, keepdims=True)
                p = jnp.exp(s)
                p = p * pl.reciprocal(jnp.sum(p, axis=-1, keepdims=True), approx=True)
                o = jnp.dot(p.astype(bf16), v, preferred_element_type=f32)   # (T_PAD, DH)
                # per-head output projection, accumulated (no lane-axis concat)
                acc_b = acc_b + jnp.dot(o.astype(bf16), wo[hh * DH:(hh + 1) * DH, :],
                                        preferred_element_type=f32)
            att_parts.append(acc_b)
        x = x + jnp.concatenate(att_parts, axis=0) + bo

        # --- MLP (pre-LN) ---
        h2 = _layernorm(x, ln2w, ln2b).astype(bf16)
        h2 = jax.lax.dot_general(h2, wfcT, dn_last, preferred_element_type=f32) + bfc
        h2 = jax.nn.gelu(h2, approximate=True).astype(bf16)
        x = x + jnp.dot(h2, wpr, preferred_element_type=f32) + bpr

    # ---- policy head on CLS rows (gathered via a tiny one-hot matmul) ----
    lnfw = bias_ref[16:17, 0:D]
    lnfb = bias_ref[17:18, 0:D]
    b1   = bias_ref[18:19, 0:POL_H]
    w1T  = wm_ref[N_LAYER * _WM_LAYER_ROWS:N_LAYER * _WM_LAYER_ROWS + POL_H, :]

    g_r = jax.lax.broadcasted_iota(jnp.int32, (B, BT_PAD), 0)
    g_c = jax.lax.broadcasted_iota(jnp.int32, (B, BT_PAD), 1)
    cls_gather = (g_c == g_r * T_PAD).astype(f32)                      # (B, BT_PAD)
    cls = jnp.dot(cls_gather, x, preferred_element_type=f32)           # (B, D)

    ph = _layernorm(cls, lnfw, lnfb).astype(bf16)
    ph = jax.lax.dot_general(ph, w1T, dn_last, preferred_element_type=f32) + b1
    ph = jax.nn.gelu(ph, approximate=True).astype(bf16)

    # fc2: bf16 weight (overlapped DMA), f32 accumulation, lane-dense padded output
    w2_copy.wait()
    out_ref[...] = jnp.dot(ph, w2_vmem[...], preferred_element_type=jnp.float32) + b2_ref[...]


def _full_spec(shape):
    nd = len(shape)
    return pl.BlockSpec(shape, lambda i, _nd=nd: (0,) * _nd)


# ------------------------------ parameter init --------------------------------
def init_params(key):
    ks = iter(jax.random.split(key, 32))

    def unif(shape, a):
        return jax.random.uniform(next(ks), shape, jnp.float32, -a, a)

    p = {}
    a_emb = 1.0 / math.sqrt(D)
    p["wte"] = unif((VOCAB, D), a_emb)          # token embedding
    p["wpe"] = unif((T, D), a_emb)              # positional embedding
    p["wsp"] = unif((N_SPECIAL, D), 2.0 / math.sqrt(N_SPECIAL))  # special-token proj
    p["bsp"] = jnp.full((1, D), 0.01, jnp.float32)

    blocks = []
    for _ in range(N_LAYER):
        a_d = 1.0 / math.sqrt(D)
        a_h = 1.0 / math.sqrt(MLP_H)
        blocks.append([
            jnp.ones((1, D), jnp.float32),  jnp.zeros((1, D), jnp.float32),          # ln1 w,b
            unif((D, 3 * D), 2 * a_d),      jnp.full((1, 3 * D), 0.01, jnp.float32), # qkv
            unif((D, D), 2 * a_d),          jnp.full((1, D), 0.01, jnp.float32),     # out proj
            jnp.ones((1, D), jnp.float32),  jnp.zeros((1, D), jnp.float32),          # ln2 w,b
            unif((D, MLP_H), 2 * a_d),      jnp.full((1, MLP_H), 0.01, jnp.float32), # mlp fc
            unif((MLP_H, D), 2 * a_h),      jnp.full((1, D), 0.01, jnp.float32),     # mlp proj
        ])
    p["blocks"] = blocks

    a_d = 1.0 / math.sqrt(D)
    a_p = 1.0 / math.sqrt(POL_H)
    p["head"] = [
        jnp.ones((1, D), jnp.float32), jnp.zeros((1, D), jnp.float32),          # ln_f w,b
        unif((D, POL_H), 2 * a_d),     jnp.full((1, POL_H), 0.01, jnp.float32), # fc1
        unif((POL_H, N_MOVES), a_p),   jnp.zeros((1, N_MOVES), jnp.float32),    # fc2 (1968)
    ]
    return p


def prepare_inference_params(params):
    """Pack weights into a handful of contiguous slabs (done once, outside the hot path):
       embed slab f32, bias slab f32, bf16 matmul slab (zero padding waste, 64 lanes),
       f32 b2, and the bf16 fc2 weight padded to a lane-dense 2048 width."""
    f32 = jnp.float32

    # embed slab (184, 64) f32
    emb = jnp.zeros((_EMB_ROWS, D), f32)
    emb = emb.at[_E_WTE:_E_WTE + VOCAB, :].set(params["wte"])
    wpe_pad = jnp.zeros((T_PAD, D), f32).at[:T, :].set(params["wpe"])
    emb = emb.at[_E_WPE:_E_WPE + BT_PAD, :].set(jnp.tile(wpe_pad, (B, 1)))
    emb = emb.at[_E_WSP:_E_WSP + N_SPECIAL, :].set(params["wsp"])
    emb = emb.at[_E_BSP:_E_BSP + 1, :].set(params["bsp"])

    # bias slab (24, 256) f32 — one LN/bias vector per row, zero-padded to 256 lanes
    bias = jnp.zeros((_BIAS_ROWS, MLP_H), f32)

    def setrow(arr, r, vec):
        vec = jnp.asarray(vec, f32).reshape(1, -1)
        return arr.at[r:r + 1, :vec.shape[1]].set(vec)

    for l, blk in enumerate(params["blocks"]):
        ln1w, ln1b, _, bqkv, _, bo, ln2w, ln2b, _, bfc, _, bpr = blk
        base = l * 8
        for off, vec in enumerate([ln1w, ln1b, bqkv, bo, ln2w, ln2b, bfc, bpr]):
            bias = setrow(bias, base + off, vec)
    lnfw, lnfb, w1, b1, w2, b2 = params["head"]
    bias = setrow(bias, 16, lnfw)
    bias = setrow(bias, 17, lnfb)
    bias = setrow(bias, 18, b1)

    # bf16 matmul slab (1664, 64): wqkv^T | wo | wfc^T | wpr per layer, then fc1^T
    rows = []
    for blk in params["blocks"]:
        _, _, wqkv, _, wo, _, _, _, wfc, _, wpr, _ = blk
        rows.extend([wqkv.T, wo, wfc.T, wpr])
    rows.append(w1.T)
    wm = jnp.concatenate(rows, axis=0).astype(jnp.bfloat16)
    assert wm.shape == (_WM_ROWS, D)

    # fc2: bf16 weight padded 1968 -> 2048 (lane-dense), f32 bias
    w2p = jnp.zeros((POL_H, N_MOVES_PAD), jnp.bfloat16)
    w2p = w2p.at[:, :N_MOVES].set(w2.astype(jnp.bfloat16))
    b2p = jnp.zeros((1, N_MOVES_PAD), f32).at[:, :N_MOVES].set(b2)

    return dict(emb=emb, bias=bias, wm=wm, b2p=b2p, w2p=w2p)


# ------------------------------- full forward ---------------------------------
def chess_a_forward(board_state, special_tokens, packed):
    # host-side padding: T 65 -> 72 (pad tokens masked in-kernel), special 13 -> 16
    board_pad = jnp.zeros((B, T_PAD), jnp.int32).at[:, :T].set(board_state.astype(jnp.int32))
    board_flat = board_pad.reshape(BT_PAD, 1)
    sp = jnp.zeros((B, N_SPECIAL_PAD), jnp.float32).at[:, :N_SPECIAL].set(
        special_tokens.astype(jnp.float32))

    inputs = [board_flat, sp, packed["emb"], packed["bias"], packed["wm"], packed["b2p"],
              packed["w2p"]]
    in_specs = [_full_spec(a.shape) for a in inputs[:-1]]
    in_specs.append(pl.BlockSpec(memory_space=pl.ANY))      # fc2 weight stays in HBM

    out = pl.pallas_call(
        fused_chess_kernel,
        grid=(1,),
        in_specs=in_specs,
        out_specs=pl.BlockSpec((B, N_MOVES_PAD), lambda i: (0, 0)),
        out_shape=jax.ShapeDtypeStruct((B, N_MOVES_PAD), jnp.float32),
        scratch_shapes=[
            pltpu.VMEM((POL_H, N_MOVES_PAD), jnp.bfloat16),  # fc2 weight landing buffer
            pltpu.SemaphoreType.DMA(()),
        ],
        compiler_params=pltpu.CompilerParams(
            dimension_semantics=("arbitrary",)),
    )(*inputs)

    return out[:, :N_MOVES]                                  # (B, 1968)


# ----------------------------------- main --------------------------------------
if __name__ == "__main__":
    key = jax.random.PRNGKey(0)
    k_params, k_board, k_special = jax.random.split(key, 3)

    params = init_params(k_params)
    packed = prepare_inference_params(params)

    board_state_tensor = jax.random.randint(k_board, (B, T), 0, VOCAB, dtype=jnp.int32)
    special_token_tensor = jax.random.randint(
        k_special, (B, N_SPECIAL), 0, 2, dtype=jnp.int32)

    x_policy = chess_a_forward(board_state_tensor, special_token_tensor, packed)
    x_policy = jax.block_until_ready(x_policy)

    assert x_policy.shape == (B, N_MOVES)
    assert jnp.all(jnp.isfinite(x_policy))
    print("KERNEL_OK")
</pallas_src>

<mosaic_0001>
module attributes {stable_mosaic.version = 11 : i64} {
  func.func @fused_chess_kernel(%arg0: i32, %arg1: memref<144x1xi32, #tpu.memory_space<vmem>>, %arg2: memref<2x16xf32, #tpu.memory_space<vmem>>, %arg3: memref<184x64xf32, #tpu.memory_space<vmem>>, %arg4: memref<24x256xf32, #tpu.memory_space<vmem>>, %arg5: memref<1664x64xbf16, #tpu.memory_space<vmem>>, %arg6: memref<1x2048xf32, #tpu.memory_space<vmem>>, %arg7: memref<128x2048xbf16, #tpu.memory_space<any>>, %arg8: memref<2x2048xf32, #tpu.memory_space<vmem>>, %arg9: memref<128x2048xbf16, #tpu.memory_space<vmem>>, %arg10: memref<!tpu.dma_semaphore, #tpu.memory_space<semaphore_mem>>) attributes {dimension_semantics = [#tpu.dimension_semantics<arbitrary>], iteration_bounds = array<i64: 1>, scalar_prefetch = 0 : i64, scratch_operands = 2 : i64, tpu.core_type = #tpu.core_type<tc>, window_params = [{pipeline_mode = #tpu.pipeline_mode<synchronous>, transform_indices = @transform_0, window_bounds = array<i64: 144, 1>}, {pipeline_mode = #tpu.pipeline_mode<synchronous>, transform_indices = @transform_1, window_bounds = array<i64: 2, 16>}, {pipeline_mode = #tpu.pipeline_mode<synchronous>, transform_indices = @transform_2, window_bounds = array<i64: 184, 64>}, {pipeline_mode = #tpu.pipeline_mode<synchronous>, transform_indices = @transform_3, window_bounds = array<i64: 24, 256>}, {pipeline_mode = #tpu.pipeline_mode<synchronous>, transform_indices = @transform_4, window_bounds = array<i64: 1664, 64>}, {pipeline_mode = #tpu.pipeline_mode<synchronous>, transform_indices = @transform_5, window_bounds = array<i64: 1, 2048>}, {}, {pipeline_mode = #tpu.pipeline_mode<synchronous>, transform_indices = @transform_7, window_bounds = array<i64: 2, 2048>}]} {
    tpu.enqueue_dma source(%arg7 : memref<128x2048xbf16, #tpu.memory_space<any>>) target(%arg9 : memref<128x2048xbf16, #tpu.memory_space<vmem>>) target_semaphore(%arg10 : memref<!tpu.dma_semaphore, #tpu.memory_space<semaphore_mem>>)
    %c0 = arith.constant 0 : index
    %c0_0 = arith.constant 0 : index
    %0 = vector.load %arg1[%c0, %c0_0] : memref<144x1xi32, #tpu.memory_space<vmem>>, vector<144x1xi32>
    %1 = tpu.iota {dimensions = array<i32: 1>} : vector<144x16xi32>
    %2 = vector.broadcast %0 : vector<144x1xi32> to vector<144x16xi32>
    %3 = arith.cmpi eq, %2, %1 : vector<144x16xi32>
    %4 = arith.extui %3 : vector<144x16xi1> to vector<144x16xi32>
    %5 = arith.sitofp %4 : vector<144x16xi32> to vector<144x16xf32>
    %c0_1 = arith.constant 0 : index
    %c0_2 = arith.constant 0 : index
    %6 = vector.load %arg3[%c0_1, %c0_2] : memref<184x64xf32, #tpu.memory_space<vmem>>, vector<16x64xf32>
    %c16 = arith.constant 16 : index
    %c0_3 = arith.constant 0 : index
    %7 = vector.load %arg3[%c16, %c0_3] : memref<184x64xf32, #tpu.memory_space<vmem>>, vector<144x64xf32>
    %cst = arith.constant dense<0.000000e+00> : vector<144x64xf32>
    %8 = tpu.matmul %5, %6, %cst {dimension_numbers = #tpu.dot_dimension_numbers<[1], [0], [0], [1], [0, 0, 1, 1], [], []>} : vector<144x16xf32>, vector<16x64xf32>, vector<144x64xf32> -> vector<144x64xf32>
    %9 = arith.addf %8, %7 : vector<144x64xf32>
    %c160 = arith.constant 160 : index
    %c0_4 = arith.constant 0 : index
    %10 = vector.load %arg3[%c160, %c0_4] : memref<184x64xf32, #tpu.memory_space<vmem>>, vector<16x64xf32>
    %c176 = arith.constant 176 : index
    %c0_5 = arith.constant 0 : index
    %11 = vector.load %arg3[%c176, %c0_5] : memref<184x64xf32, #tpu.memory_space<vmem>>, vector<1x64xf32>
    %c0_6 = arith.constant 0 : index
    %c0_7 = arith.constant 0 : index
    %12 = vector.load %arg2[%c0_6, %c0_7] : memref<2x16xf32, #tpu.memory_space<vmem>>, vector<2x16xf32>
    %cst_8 = arith.constant dense<0.000000e+00> : vector<2x64xf32>
    %13 = tpu.matmul %12, %10, %cst_8 {dimension_numbers = #tpu.dot_dimension_numbers<[1], [0], [0], [1], [0, 0, 1, 1], [], []>} : vector<2x16xf32>, vector<16x64xf32>, vector<2x64xf32> -> vector<2x64xf32>
    %14 = vector.broadcast %11 : vector<1x64xf32> to vector<2x64xf32>
    %15 = arith.addf %13, %14 : vector<2x64xf32>
    %16 = tpu.iota {dimensions = array<i32: 0>} : vector<144x2xi32>
    %17 = tpu.iota {dimensions = array<i32: 1>} : vector<144x2xi32>
    %c72_i32 = arith.constant 72 : i32
    %18 = vector.broadcast %c72_i32 : i32 to vector<144x2xi32>
    %19 = arith.muli %17, %18 : vector<144x2xi32>
    %20 = arith.cmpi eq, %16, %19 : vector<144x2xi32>
    %21 = arith.extui %20 : vector<144x2xi1> to vector<144x2xi32>
    %22 = arith.sitofp %21 : vector<144x2xi32> to vector<144x2xf32>
    %cst_9 = arith.constant dense<0.000000e+00> : vector<144x64xf32>
    %23 = tpu.matmul %22, %15, %cst_9 {dimension_numbers = #tpu.dot_dimension_numbers<[1], [0], [0], [1], [0, 0, 1, 1], [], []>} : vector<144x2xf32>, vector<2x64xf32>, vector<144x64xf32> -> vector<144x64xf32>
    %24 = arith.addf %9, %23 : vector<144x64xf32>
    %25 = tpu.iota {dimensions = array<i32: 1>} : vector<72x72xi32>
    %c65_i32 = arith.constant 65 : i32
    %26 = vector.broadcast %c65_i32 : i32 to vector<72x72xi32>
    %27 = arith.cmpi slt, %25, %26 : vector<72x72xi32>
    %cst_10 = arith.constant 0.000000e+00 : f32
    %cst_11 = arith.constant -1.000000e+30 : f32
    %28 = vector.broadcast %cst_10 : f32 to vector<72x72xf32>
    %29 = vector.broadcast %cst_11 : f32 to vector<72x72xf32>
    %30 = arith.select %27, %28, %29 : vector<72x72xi1>, vector<72x72xf32>
    %c0_12 = arith.constant 0 : index
    %c0_13 = arith.constant 0 : index
    %31 = vector.load %arg4[%c0_12, %c0_13] : memref<24x256xf32, #tpu.memory_space<vmem>>, vector<1x64xf32>
    %c1 = arith.constant 1 : index
    %c0_14 = arith.constant 0 : index
    %32 = vector.load %arg4[%c1, %c0_14] : memref<24x256xf32, #tpu.memory_space<vmem>>, vector<1x64xf32>
    %c2 = arith.constant 2 : index
    %c0_15 = arith.constant 0 : index
    %33 = vector.load %arg4[%c2, %c0_15] : memref<24x256xf32, #tpu.memory_space<vmem>>, vector<1x192xf32>
    %c3 = arith.constant 3 : index
    %c0_16 = arith.constant 0 : index
    %34 = vector.load %arg4[%c3, %c0_16] : memref<24x256xf32, #tpu.memory_space<vmem>>, vector<1x64xf32>
    %c4 = arith.constant 4 : index
    %c0_17 = arith.constant 0 : index
    %35 = vector.load %arg4[%c4, %c0_17] : memref<24x256xf32, #tpu.memory_space<vmem>>, vector<1x64xf32>
    %c5 = arith.constant 5 : index
    %c0_18 = arith.constant 0 : index
    %36 = vector.load %arg4[%c5, %c0_18] : memref<24x256xf32, #tpu.memory_space<vmem>>, vector<1x64xf32>
    %c6 = arith.constant 6 : index
    %c0_19 = arith.constant 0 : index
    %37 = vector.load %arg4[%c6, %c0_19] : memref<24x256xf32, #tpu.memory_space<vmem>>, vector<1x256xf32>
    %c7 = arith.constant 7 : index
    %c0_20 = arith.constant 0 : index
    %38 = vector.load %arg4[%c7, %c0_20] : memref<24x256xf32, #tpu.memory_space<vmem>>, vector<1x64xf32>
    %c0_21 = arith.constant 0 : index
    %c0_22 = arith.constant 0 : index
    %39 = vector.load %arg5[%c0_21, %c0_22] : memref<1664x64xbf16, #tpu.memory_space<vmem>>, vector<192x64xbf16>
    %c192 = arith.constant 192 : index
    %c0_23 = arith.constant 0 : index
    %40 = vector.load %arg5[%c192, %c0_23] : memref<1664x64xbf16, #tpu.memory_space<vmem>>, vector<64x64xbf16>
    %c256 = arith.constant 256 : index
    %c0_24 = arith.constant 0 : index
    %41 = vector.load %arg5[%c256, %c0_24] : memref<1664x64xbf16, #tpu.memory_space<vmem>>, vector<256x64xbf16>
    %c512 = arith.constant 512 : index
    %c0_25 = arith.constant 0 : index
    %42 = vector.load %arg5[%c512, %c0_25] : memref<1664x64xbf16, #tpu.memory_space<vmem>>, vector<256x64xbf16>
    %cst_26 = arith.constant dense<0.000000e+00> : vector<144xf32>
    %43 = vector.multi_reduction <add>, %24, %cst_26 [1] : vector<144x64xf32> to vector<144xf32>
    %44 = vector.shape_cast %43 : vector<144xf32> to vector<144x1xf32>
    %cst_27 = arith.constant 6.400000e+01 : f32
    %45 = vector.broadcast %cst_27 : f32 to vector<144x1xf32>
    %46 = arith.divf %44, %45 : vector<144x1xf32>
    %47 = vector.broadcast %46 : vector<144x1xf32> to vector<144x64xf32>
    %48 = arith.subf %24, %47 : vector<144x64xf32>
    %49 = vector.broadcast %46 : vector<144x1xf32> to vector<144x64xf32>
    %50 = arith.subf %24, %49 : vector<144x64xf32>
    %51 = arith.mulf %48, %50 : vector<144x64xf32>
    %cst_28 = arith.constant dense<0.000000e+00> : vector<144xf32>
    %52 = vector.multi_reduction <add>, %51, %cst_28 [1] : vector<144x64xf32> to vector<144xf32>
    %53 = vector.shape_cast %52 : vector<144xf32> to vector<144x1xf32>
    %cst_29 = arith.constant 6.400000e+01 : f32
    %54 = vector.broadcast %cst_29 : f32 to vector<144x1xf32>
    %55 = arith.divf %53, %54 : vector<144x1xf32>
    %56 = vector.broadcast %46 : vector<144x1xf32> to vector<144x64xf32>
    %57 = arith.subf %24, %56 : vector<144x64xf32>
    %cst_30 = arith.constant 9.99999974E-6 : f32
    %58 = vector.broadcast %cst_30 : f32 to vector<144x1xf32>
    %59 = arith.addf %55, %58 : vector<144x1xf32>
    %60 = math.rsqrt %59 : vector<144x1xf32>
    %61 = vector.broadcast %60 : vector<144x1xf32> to vector<144x64xf32>
    %62 = arith.mulf %57, %61 : vector<144x64xf32>
    %63 = vector.broadcast %31 : vector<1x64xf32> to vector<144x64xf32>
    %64 = arith.mulf %62, %63 : vector<144x64xf32>
    %65 = vector.broadcast %32 : vector<1x64xf32> to vector<144x64xf32>
    %66 = arith.addf %64, %65 : vector<144x64xf32>
    %67 = arith.truncf %66 : vector<144x64xf32> to vector<144x64xbf16>
    %cst_31 = arith.constant dense<0.000000e+00> : vector<144x192xf32>
    %68 = tpu.matmul %67, %39, %cst_31 {dimension_numbers = #tpu.dot_dimension_numbers<[1], [1], [0], [0], [0, 0, 1, 0], [], []>} : vector<144x64xbf16>, vector<192x64xbf16>, vector<144x192xf32> -> vector<144x192xf32>
    %69 = vector.broadcast %33 : vector<1x192xf32> to vector<144x192xf32>
    %70 = arith.addf %68, %69 : vector<144x192xf32>
    %cst_32 = arith.constant 0.000000e+00 : f32
    %71 = vector.broadcast %cst_32 : f32 to vector<72x64xf32>
    %72 = vector.extract_strided_slice %70 {offsets = [0, 0], sizes = [72, 32], strides = [1, 1]} : vector<144x192xf32> to vector<72x32xf32>
    %73 = arith.truncf %72 : vector<72x32xf32> to vector<72x32xbf16>
    %74 = vector.extract_strided_slice %70 {offsets = [0, 64], sizes = [72, 32], strides = [1, 1]} : vector<144x192xf32> to vector<72x32xf32>
    %75 = arith.truncf %74 : vector<72x32xf32> to vector<72x32xbf16>
    %76 = vector.extract_strided_slice %70 {offsets = [0, 128], sizes = [72, 32], strides = [1, 1]} : vector<144x192xf32> to vector<72x32xf32>
    %77 = arith.truncf %76 : vector<72x32xf32> to vector<72x32xbf16>
    %cst_33 = arith.constant dense<0.000000e+00> : vector<72x72xf32>
    %78 = tpu.matmul %73, %75, %cst_33 {dimension_numbers = #tpu.dot_dimension_numbers<[1], [1], [0], [0], [0, 0, 1, 0], [], []>} : vector<72x32xbf16>, vector<72x32xbf16>, vector<72x72xf32> -> vector<72x72xf32>
    %cst_34 = arith.constant 0.176776692 : f32
    %79 = vector.broadcast %cst_34 : f32 to vector<72x72xf32>
    %80 = arith.mulf %78, %79 : vector<72x72xf32>
    %81 = arith.addf %80, %30 : vector<72x72xf32>
    %cst_35 = arith.constant dense<0xFF800000> : vector<72xf32>
    %82 = vector.multi_reduction <maximumf>, %81, %cst_35 [1] : vector<72x72xf32> to vector<72xf32>
    %83 = vector.shape_cast %82 : vector<72xf32> to vector<72x1xf32>
    %84 = vector.broadcast %83 : vector<72x1xf32> to vector<72x72xf32>
    %85 = arith.subf %81, %84 : vector<72x72xf32>
    %86 = math.exp %85 : vector<72x72xf32>
    %cst_36 = arith.constant dense<0.000000e+00> : vector<72xf32>
    %87 = vector.multi_reduction <add>, %86, %cst_36 [1] : vector<72x72xf32> to vector<72xf32>
    %88 = vector.shape_cast %87 : vector<72xf32> to vector<72x1xf32>
    %89 = tpu.reciprocal %88 {approx = true} : vector<72x1xf32> -> vector<72x1xf32>
    %90 = vector.broadcast %89 : vector<72x1xf32> to vector<72x72xf32>
    %91 = arith.mulf %86, %90 : vector<72x72xf32>
    %92 = arith.truncf %91 : vector<72x72xf32> to vector<72x72xbf16>
    %cst_37 = arith.constant dense<0.000000e+00> : vector<72x32xf32>
    %93 = tpu.matmul %92, %77, %cst_37 {dimension_numbers = #tpu.dot_dimension_numbers<[1], [0], [0], [1], [0, 0, 1, 1], [], []>} : vector<72x72xbf16>, vector<72x32xbf16>, vector<72x32xf32> -> vector<72x32xf32>
    %94 = arith.truncf %93 : vector<72x32xf32> to vector<72x32xbf16>
    %95 = vector.extract_strided_slice %40 {offsets = [0, 0], sizes = [32, 64], strides = [1, 1]} : vector<64x64xbf16> to vector<32x64xbf16>
    %cst_38 = arith.constant dense<0.000000e+00> : vector<72x64xf32>
    %96 = tpu.matmul %94, %95, %cst_38 {dimension_numbers = #tpu.dot_dimension_numbers<[1], [0], [0], [1], [0, 0, 1, 1], [], []>} : vector<72x32xbf16>, vector<32x64xbf16>, vector<72x64xf32> -> vector<72x64xf32>
    %97 = arith.addf %71, %96 : vector<72x64xf32>
    %98 = vector.extract_strided_slice %70 {offsets = [0, 32], sizes = [72, 32], strides = [1, 1]} : vector<144x192xf32> to vector<72x32xf32>
    %99 = arith.truncf %98 : vector<72x32xf32> to vector<72x32xbf16>
    %100 = vector.extract_strided_slice %70 {offsets = [0, 96], sizes = [72, 32], strides = [1, 1]} : vector<144x192xf32> to vector<72x32xf32>
    %101 = arith.truncf %100 : vector<72x32xf32> to vector<72x32xbf16>
    %102 = vector.extract_strided_slice %70 {offsets = [0, 160], sizes = [72, 32], strides = [1, 1]} : vector<144x192xf32> to vector<72x32xf32>
    %103 = arith.truncf %102 : vector<72x32xf32> to vector<72x32xbf16>
    %cst_39 = arith.constant dense<0.000000e+00> : vector<72x72xf32>
    %104 = tpu.matmul %99, %101, %cst_39 {dimension_numbers = #tpu.dot_dimension_numbers<[1], [1], [0], [0], [0, 0, 1, 0], [], []>} : vector<72x32xbf16>, vector<72x32xbf16>, vector<72x72xf32> -> vector<72x72xf32>
    %cst_40 = arith.constant 0.176776692 : f32
    %105 = vector.broadcast %cst_40 : f32 to vector<72x72xf32>
    %106 = arith.mulf %104, %105 : vector<72x72xf32>
    %107 = arith.addf %106, %30 : vector<72x72xf32>
    %cst_41 = arith.constant dense<0xFF800000> : vector<72xf32>
    %108 = vector.multi_reduction <maximumf>, %107, %cst_41 [1] : vector<72x72xf32> to vector<72xf32>
    %109 = vector.shape_cast %108 : vector<72xf32> to vector<72x1xf32>
    %110 = vector.broadcast %109 : vector<72x1xf32> to vector<72x72xf32>
    %111 = arith.subf %107, %110 : vector<72x72xf32>
    %112 = math.exp %111 : vector<72x72xf32>
    %cst_42 = arith.constant dense<0.000000e+00> : vector<72xf32>
    %113 = vector.multi_reduction <add>, %112, %cst_42 [1] : vector<72x72xf32> to vector<72xf32>
    %114 = vector.shape_cast %113 : vector<72xf32> to vector<72x1xf32>
    %115 = tpu.reciprocal %114 {approx = true} : vector<72x1xf32> -> vector<72x1xf32>
    %116 = vector.broadcast %115 : vector<72x1xf32> to vector<72x72xf32>
    %117 = arith.mulf %112, %116 : vector<72x72xf32>
    %118 = arith.truncf %117 : vector<72x72xf32> to vector<72x72xbf16>
    %cst_43 = arith.constant dense<0.000000e+00> : vector<72x32xf32>
    %119 = tpu.matmul %118, %103, %cst_43 {dimension_numbers = #tpu.dot_dimension_numbers<[1], [0], [0], [1], [0, 0, 1, 1], [], []>} : vector<72x72xbf16>, vector<72x32xbf16>, vector<72x32xf32> -> vector<72x32xf32>
    %120 = arith.truncf %119 : vector<72x32xf32> to vector<72x32xbf16>
    %121 = vector.extract_strided_slice %40 {offsets = [32, 0], sizes = [32, 64], strides = [1, 1]} : vector<64x64xbf16> to vector<32x64xbf16>
    %cst_44 = arith.constant dense<0.000000e+00> : vector<72x64xf32>
    %122 = tpu.matmul %120, %121, %cst_44 {dimension_numbers = #tpu.dot_dimension_numbers<[1], [0], [0], [1], [0, 0, 1, 1], [], []>} : vector<72x32xbf16>, vector<32x64xbf16>, vector<72x64xf32> -> vector<72x64xf32>
    %123 = arith.addf %97, %122 : vector<72x64xf32>
    %cst_45 = arith.constant 0.000000e+00 : f32
    %124 = vector.broadcast %cst_45 : f32 to vector<72x64xf32>
    %125 = vector.extract_strided_slice %70 {offsets = [72, 0], sizes = [72, 32], strides = [1, 1]} : vector<144x192xf32> to vector<72x32xf32>
    %126 = arith.truncf %125 : vector<72x32xf32> to vector<72x32xbf16>
    %127 = vector.extract_strided_slice %70 {offsets = [72, 64], sizes = [72, 32], strides = [1, 1]} : vector<144x192xf32> to vector<72x32xf32>
    %128 = arith.truncf %127 : vector<72x32xf32> to vector<72x32xbf16>
    %129 = vector.extract_strided_slice %70 {offsets = [72, 128], sizes = [72, 32], strides = [1, 1]} : vector<144x192xf32> to vector<72x32xf32>
    %130 = arith.truncf %129 : vector<72x32xf32> to vector<72x32xbf16>
    %cst_46 = arith.constant dense<0.000000e+00> : vector<72x72xf32>
    %131 = tpu.matmul %126, %128, %cst_46 {dimension_numbers = #tpu.dot_dimension_numbers<[1], [1], [0], [0], [0, 0, 1, 0], [], []>} : vector<72x32xbf16>, vector<72x32xbf16>, vector<72x72xf32> -> vector<72x72xf32>
    %cst_47 = arith.constant 0.176776692 : f32
    %132 = vector.broadcast %cst_47 : f32 to vector<72x72xf32>
    %133 = arith.mulf %131, %132 : vector<72x72xf32>
    %134 = arith.addf %133, %30 : vector<72x72xf32>
    %cst_48 = arith.constant dense<0xFF800000> : vector<72xf32>
    %135 = vector.multi_reduction <maximumf>, %134, %cst_48 [1] : vector<72x72xf32> to vector<72xf32>
    %136 = vector.shape_cast %135 : vector<72xf32> to vector<72x1xf32>
    %137 = vector.broadcast %136 : vector<72x1xf32> to vector<72x72xf32>
    %138 = arith.subf %134, %137 : vector<72x72xf32>
    %139 = math.exp %138 : vector<72x72xf32>
    %cst_49 = arith.constant dense<0.000000e+00> : vector<72xf32>
    %140 = vector.multi_reduction <add>, %139, %cst_49 [1] : vector<72x72xf32> to vector<72xf32>
    %141 = vector.shape_cast %140 : vector<72xf32> to vector<72x1xf32>
    %142 = tpu.reciprocal %141 {approx = true} : vector<72x1xf32> -> vector<72x1xf32>
    %143 = vector.broadcast %142 : vector<72x1xf32> to vector<72x72xf32>
    %144 = arith.mulf %139, %143 : vector<72x72xf32>
    %145 = arith.truncf %144 : vector<72x72xf32> to vector<72x72xbf16>
    %cst_50 = arith.constant dense<0.000000e+00> : vector<72x32xf32>
    %146 = tpu.matmul %145, %130, %cst_50 {dimension_numbers = #tpu.dot_dimension_numbers<[1], [0], [0], [1], [0, 0, 1, 1], [], []>} : vector<72x72xbf16>, vector<72x32xbf16>, vector<72x32xf32> -> vector<72x32xf32>
    %147 = arith.truncf %146 : vector<72x32xf32> to vector<72x32xbf16>
    %148 = vector.extract_strided_slice %40 {offsets = [0, 0], sizes = [32, 64], strides = [1, 1]} : vector<64x64xbf16> to vector<32x64xbf16>
    %cst_51 = arith.constant dense<0.000000e+00> : vector<72x64xf32>
    %149 = tpu.matmul %147, %148, %cst_51 {dimension_numbers = #tpu.dot_dimension_numbers<[1], [0], [0], [1], [0, 0, 1, 1], [], []>} : vector<72x32xbf16>, vector<32x64xbf16>, vector<72x64xf32> -> vector<72x64xf32>
    %150 = arith.addf %124, %149 : vector<72x64xf32>
    %151 = vector.extract_strided_slice %70 {offsets = [72, 32], sizes = [72, 32], strides = [1, 1]} : vector<144x192xf32> to vector<72x32xf32>
    %152 = arith.truncf %151 : vector<72x32xf32> to vector<72x32xbf16>
    %153 = vector.extract_strided_slice %70 {offsets = [72, 96], sizes = [72, 32], strides = [1, 1]} : vector<144x192xf32> to vector<72x32xf32>
    %154 = arith.truncf %153 : vector<72x32xf32> to vector<72x32xbf16>
    %155 = vector.extract_strided_slice %70 {offsets = [72, 160], sizes = [72, 32], strides = [1, 1]} : vector<144x192xf32> to vector<72x32xf32>
    %156 = arith.truncf %155 : vector<72x32xf32> to vector<72x32xbf16>
    %cst_52 = arith.constant dense<0.000000e+00> : vector<72x72xf32>
    %157 = tpu.matmul %152, %154, %cst_52 {dimension_numbers = #tpu.dot_dimension_numbers<[1], [1], [0], [0], [0, 0, 1, 0], [], []>} : vector<72x32xbf16>, vector<72x32xbf16>, vector<72x72xf32> -> vector<72x72xf32>
    %cst_53 = arith.constant 0.176776692 : f32
    %158 = vector.broadcast %cst_53 : f32 to vector<72x72xf32>
    %159 = arith.mulf %157, %158 : vector<72x72xf32>
    %160 = arith.addf %159, %30 : vector<72x72xf32>
    %cst_54 = arith.constant dense<0xFF800000> : vector<72xf32>
    %161 = vector.multi_reduction <maximumf>, %160, %cst_54 [1] : vector<72x72xf32> to vector<72xf32>
    %162 = vector.shape_cast %161 : vector<72xf32> to vector<72x1xf32>
    %163 = vector.broadcast %162 : vector<72x1xf32> to vector<72x72xf32>
    %164 = arith.subf %160, %163 : vector<72x72xf32>
    %165 = math.exp %164 : vector<72x72xf32>
    %cst_55 = arith.constant dense<0.000000e+00> : vector<72xf32>
    %166 = vector.multi_reduction <add>, %165, %cst_55 [1] : vector<72x72xf32> to vector<72xf32>
    %167 = vector.shape_cast %166 : vector<72xf32> to vector<72x1xf32>
    %168 = tpu.reciprocal %167 {approx = true} : vector<72x1xf32> -> vector<72x1xf32>
    %169 = vector.broadcast %168 : vector<72x1xf32> to vector<72x72xf32>
    %170 = arith.mulf %165, %169 : vector<72x72xf32>
    %171 = arith.truncf %170 : vector<72x72xf32> to vector<72x72xbf16>
    %cst_56 = arith.constant dense<0.000000e+00> : vector<72x32xf32>
    %172 = tpu.matmul %171, %156, %cst_56 {dimension_numbers = #tpu.dot_dimension_numbers<[1], [0], [0], [1], [0, 0, 1, 1], [], []>} : vector<72x72xbf16>, vector<72x32xbf16>, vector<72x32xf32> -> vector<72x32xf32>
    %173 = arith.truncf %172 : vector<72x32xf32> to vector<72x32xbf16>
    %174 = vector.extract_strided_slice %40 {offsets = [32, 0], sizes = [32, 64], strides = [1, 1]} : vector<64x64xbf16> to vector<32x64xbf16>
    %cst_57 = arith.constant dense<0.000000e+00> : vector<72x64xf32>
    %175 = tpu.matmul %173, %174, %cst_57 {dimension_numbers = #tpu.dot_dimension_numbers<[1], [0], [0], [1], [0, 0, 1, 1], [], []>} : vector<72x32xbf16>, vector<32x64xbf16>, vector<72x64xf32> -> vector<72x64xf32>
    %176 = arith.addf %150, %175 : vector<72x64xf32>
    %177 = tpu.concatenate %123, %176 in 0 : vector<72x64xf32>, vector<72x64xf32> -> vector<144x64xf32>
    %178 = arith.addf %24, %177 : vector<144x64xf32>
    %179 = vector.broadcast %34 : vector<1x64xf32> to vector<144x64xf32>
    %180 = arith.addf %178, %179 : vector<144x64xf32>
    %cst_58 = arith.constant dense<0.000000e+00> : vector<144xf32>
    %181 = vector.multi_reduction <add>, %180, %cst_58 [1] : vector<144x64xf32> to vector<144xf32>
    %182 = vector.shape_cast %181 : vector<144xf32> to vector<144x1xf32>
    %cst_59 = arith.constant 6.400000e+01 : f32
    %183 = vector.broadcast %cst_59 : f32 to vector<144x1xf32>
    %184 = arith.divf %182, %183 : vector<144x1xf32>
    %185 = vector.broadcast %184 : vector<144x1xf32> to vector<144x64xf32>
    %186 = arith.subf %180, %185 : vector<144x64xf32>
    %187 = vector.broadcast %184 : vector<144x1xf32> to vector<144x64xf32>
    %188 = arith.subf %180, %187 : vector<144x64xf32>
    %189 = arith.mulf %186, %188 : vector<144x64xf32>
    %cst_60 = arith.constant dense<0.000000e+00> : vector<144xf32>
    %190 = vector.multi_reduction <add>, %189, %cst_60 [1] : vector<144x64xf32> to vector<144xf32>
    %191 = vector.shape_cast %190 : vector<144xf32> to vector<144x1xf32>
    %cst_61 = arith.constant 6.400000e+01 : f32
    %192 = vector.broadcast %cst_61 : f32 to vector<144x1xf32>
    %193 = arith.divf %191, %192 : vector<144x1xf32>
    %194 = vector.broadcast %184 : vector<144x1xf32> to vector<144x64xf32>
    %195 = arith.subf %180, %194 : vector<144x64xf32>
    %cst_62 = arith.constant 9.99999974E-6 : f32
    %196 = vector.broadcast %cst_62 : f32 to vector<144x1xf32>
    %197 = arith.addf %193, %196 : vector<144x1xf32>
    %198 = math.rsqrt %197 : vector<144x1xf32>
    %199 = vector.broadcast %198 : vector<144x1xf32> to vector<144x64xf32>
    %200 = arith.mulf %195, %199 : vector<144x64xf32>
    %201 = vector.broadcast %35 : vector<1x64xf32> to vector<144x64xf32>
    %202 = arith.mulf %200, %201 : vector<144x64xf32>
    %203 = vector.broadcast %36 : vector<1x64xf32> to vector<144x64xf32>
    %204 = arith.addf %202, %203 : vector<144x64xf32>
    %205 = arith.truncf %204 : vector<144x64xf32> to vector<144x64xbf16>
    %cst_63 = arith.constant dense<0.000000e+00> : vector<144x256xf32>
    %206 = tpu.matmul %205, %41, %cst_63 {dimension_numbers = #tpu.dot_dimension_numbers<[1], [1], [0], [0], [0, 0, 1, 0], [], []>} : vector<144x64xbf16>, vector<256x64xbf16>, vector<144x256xf32> -> vector<144x256xf32>
    %207 = vector.broadcast %37 : vector<1x256xf32> to vector<144x256xf32>
    %208 = arith.addf %206, %207 : vector<144x256xf32>
    %209 = arith.mulf %208, %208 : vector<144x256xf32>
    %210 = arith.mulf %208, %209 : vector<144x256xf32>
    %cst_64 = arith.constant 4.471500e-02 : f32
    %211 = vector.broadcast %cst_64 : f32 to vector<144x256xf32>
    %212 = arith.mulf %211, %210 : vector<144x256xf32>
    %213 = arith.addf %208, %212 : vector<144x256xf32>
    %cst_65 = arith.constant 0.797884583 : f32
    %214 = vector.broadcast %cst_65 : f32 to vector<144x256xf32>
    %215 = arith.mulf %214, %213 : vector<144x256xf32>
    %216 = math.tanh %215 : vector<144x256xf32>
    %cst_66 = arith.constant 1.000000e+00 : f32
    %217 = vector.broadcast %cst_66 : f32 to vector<144x256xf32>
    %218 = arith.addf %217, %216 : vector<144x256xf32>
    %cst_67 = arith.constant 5.000000e-01 : f32
    %219 = vector.broadcast %cst_67 : f32 to vector<144x256xf32>
    %220 = arith.mulf %219, %218 : vector<144x256xf32>
    %221 = arith.mulf %208, %220 : vector<144x256xf32>
    %222 = arith.truncf %221 : vector<144x256xf32> to vector<144x256xbf16>
    %cst_68 = arith.constant dense<0.000000e+00> : vector<144x64xf32>
    %223 = tpu.matmul %222, %42, %cst_68 {dimension_numbers = #tpu.dot_dimension_numbers<[1], [0], [0], [1], [0, 0, 1, 1], [], []>} : vector<144x256xbf16>, vector<256x64xbf16>, vector<144x64xf32> -> vector<144x64xf32>
    %224 = arith.addf %180, %223 : vector<144x64xf32>
    %225 = vector.broadcast %38 : vector<1x64xf32> to vector<144x64xf32>
    %226 = arith.addf %224, %225 : vector<144x64xf32>
    %c8 = arith.constant 8 : index
    %c0_69 = arith.constant 0 : index
    %227 = vector.load %arg4[%c8, %c0_69] : memref<24x256xf32, #tpu.memory_space<vmem>>, vector<1x64xf32>
    %c9 = arith.constant 9 : index
    %c0_70 = arith.constant 0 : index
    %228 = vector.load %arg4[%c9, %c0_70] : memref<24x256xf32, #tpu.memory_space<vmem>>, vector<1x64xf32>
    %c10 = arith.constant 10 : index
    %c0_71 = arith.constant 0 : index
    %229 = vector.load %arg4[%c10, %c0_71] : memref<24x256xf32, #tpu.memory_space<vmem>>, vector<1x192xf32>
    %c11 = arith.constant 11 : index
    %c0_72 = arith.constant 0 : index
    %230 = vector.load %arg4[%c11, %c0_72] : memref<24x256xf32, #tpu.memory_space<vmem>>, vector<1x64xf32>
    %c12 = arith.constant 12 : index
    %c0_73 = arith.constant 0 : index
    %231 = vector.load %arg4[%c12, %c0_73] : memref<24x256xf32, #tpu.memory_space<vmem>>, vector<1x64xf32>
    %c13 = arith.constant 13 : index
    %c0_74 = arith.constant 0 : index
    %232 = vector.load %arg4[%c13, %c0_74] : memref<24x256xf32, #tpu.memory_space<vmem>>, vector<1x64xf32>
    %c14 = arith.constant 14 : index
    %c0_75 = arith.constant 0 : index
    %233 = vector.load %arg4[%c14, %c0_75] : memref<24x256xf32, #tpu.memory_space<vmem>>, vector<1x256xf32>
    %c15 = arith.constant 15 : index
    %c0_76 = arith.constant 0 : index
    %234 = vector.load %arg4[%c15, %c0_76] : memref<24x256xf32, #tpu.memory_space<vmem>>, vector<1x64xf32>
    %c768 = arith.constant 768 : index
    %c0_77 = arith.constant 0 : index
    %235 = vector.load %arg5[%c768, %c0_77] : memref<1664x64xbf16, #tpu.memory_space<vmem>>, vector<192x64xbf16>
    %c960 = arith.constant 960 : index
    %c0_78 = arith.constant 0 : index
    %236 = vector.load %arg5[%c960, %c0_78] : memref<1664x64xbf16, #tpu.memory_space<vmem>>, vector<64x64xbf16>
    %c1024 = arith.constant 1024 : index
    %c0_79 = arith.constant 0 : index
    %237 = vector.load %arg5[%c1024, %c0_79] : memref<1664x64xbf16, #tpu.memory_space<vmem>>, vector<256x64xbf16>
    %c1280 = arith.constant 1280 : index
    %c0_80 = arith.constant 0 : index
    %238 = vector.load %arg5[%c1280, %c0_80] : memref<1664x64xbf16, #tpu.memory_space<vmem>>, vector<256x64xbf16>
    %cst_81 = arith.constant dense<0.000000e+00> : vector<144xf32>
    %239 = vector.multi_reduction <add>, %226, %cst_81 [1] : vector<144x64xf32> to vector<144xf32>
    %240 = vector.shape_cast %239 : vector<144xf32> to vector<144x1xf32>
    %cst_82 = arith.constant 6.400000e+01 : f32
    %241 = vector.broadcast %cst_82 : f32 to vector<144x1xf32>
    %242 = arith.divf %240, %241 : vector<144x1xf32>
    %243 = vector.broadcast %242 : vector<144x1xf32> to vector<144x64xf32>
    %244 = arith.subf %226, %243 : vector<144x64xf32>
    %245 = vector.broadcast %242 : vector<144x1xf32> to vector<144x64xf32>
    %246 = arith.subf %226, %245 : vector<144x64xf32>
    %247 = arith.mulf %244, %246 : vector<144x64xf32>
    %cst_83 = arith.constant dense<0.000000e+00> : vector<144xf32>
    %248 = vector.multi_reduction <add>, %247, %cst_83 [1] : vector<144x64xf32> to vector<144xf32>
    %249 = vector.shape_cast %248 : vector<144xf32> to vector<144x1xf32>
    %cst_84 = arith.constant 6.400000e+01 : f32
    %250 = vector.broadcast %cst_84 : f32 to vector<144x1xf32>
    %251 = arith.divf %249, %250 : vector<144x1xf32>
    %252 = vector.broadcast %242 : vector<144x1xf32> to vector<144x64xf32>
    %253 = arith.subf %226, %252 : vector<144x64xf32>
    %cst_85 = arith.constant 9.99999974E-6 : f32
    %254 = vector.broadcast %cst_85 : f32 to vector<144x1xf32>
    %255 = arith.addf %251, %254 : vector<144x1xf32>
    %256 = math.rsqrt %255 : vector<144x1xf32>
    %257 = vector.broadcast %256 : vector<144x1xf32> to vector<144x64xf32>
    %258 = arith.mulf %253, %257 : vector<144x64xf32>
    %259 = vector.broadcast %227 : vector<1x64xf32> to vector<144x64xf32>
    %260 = arith.mulf %258, %259 : vector<144x64xf32>
    %261 = vector.broadcast %228 : vector<1x64xf32> to vector<144x64xf32>
    %262 = arith.addf %260, %261 : vector<144x64xf32>
    %263 = arith.truncf %262 : vector<144x64xf32> to vector<144x64xbf16>
    %cst_86 = arith.constant dense<0.000000e+00> : vector<144x192xf32>
    %264 = tpu.matmul %263, %235, %cst_86 {dimension_numbers = #tpu.dot_dimension_numbers<[1], [1], [0], [0], [0, 0, 1, 0], [], []>} : vector<144x64xbf16>, vector<192x64xbf16>, vector<144x192xf32> -> vector<144x192xf32>
    %265 = vector.broadcast %229 : vector<1x192xf32> to vector<144x192xf32>
    %266 = arith.addf %264, %265 : vector<144x192xf32>
    %cst_87 = arith.constant 0.000000e+00 : f32
    %267 = vector.broadcast %cst_87 : f32 to vector<72x64xf32>
    %268 = vector.extract_strided_slice %266 {offsets = [0, 0], sizes = [72, 32], strides = [1, 1]} : vector<144x192xf32> to vector<72x32xf32>
    %269 = arith.truncf %268 : vector<72x32xf32> to vector<72x32xbf16>
    %270 = vector.extract_strided_slice %266 {offsets = [0, 64], sizes = [72, 32], strides = [1, 1]} : vector<144x192xf32> to vector<72x32xf32>
    %271 = arith.truncf %270 : vector<72x32xf32> to vector<72x32xbf16>
    %272 = vector.extract_strided_slice %266 {offsets = [0, 128], sizes = [72, 32], strides = [1, 1]} : vector<144x192xf32> to vector<72x32xf32>
    %273 = arith.truncf %272 : vector<72x32xf32> to vector<72x32xbf16>
    %cst_88 = arith.constant dense<0.000000e+00> : vector<72x72xf32>
    %274 = tpu.matmul %269, %271, %cst_88 {dimension_numbers = #tpu.dot_dimension_numbers<[1], [1], [0], [0], [0, 0, 1, 0], [], []>} : vector<72x32xbf16>, vector<72x32xbf16>, vector<72x72xf32> -> vector<72x72xf32>
    %cst_89 = arith.constant 0.176776692 : f32
    %275 = vector.broadcast %cst_89 : f32 to vector<72x72xf32>
    %276 = arith.mulf %274, %275 : vector<72x72xf32>
    %277 = arith.addf %276, %30 : vector<72x72xf32>
    %cst_90 = arith.constant dense<0xFF800000> : vector<72xf32>
    %278 = vector.multi_reduction <maximumf>, %277, %cst_90 [1] : vector<72x72xf32> to vector<72xf32>
    %279 = vector.shape_cast %278 : vector<72xf32> to vector<72x1xf32>
    %280 = vector.broadcast %279 : vector<72x1xf32> to vector<72x72xf32>
    %281 = arith.subf %277, %280 : vector<72x72xf32>
    %282 = math.exp %281 : vector<72x72xf32>
    %cst_91 = arith.constant dense<0.000000e+00> : vector<72xf32>
    %283 = vector.multi_reduction <add>, %282, %cst_91 [1] : vector<72x72xf32> to vector<72xf32>
    %284 = vector.shape_cast %283 : vector<72xf32> to vector<72x1xf32>
    %285 = tpu.reciprocal %284 {approx = true} : vector<72x1xf32> -> vector<72x1xf32>
    %286 = vector.broadcast %285 : vector<72x1xf32> to vector<72x72xf32>
    %287 = arith.mulf %282, %286 : vector<72x72xf32>
    %288 = arith.truncf %287 : vector<72x72xf32> to vector<72x72xbf16>
    %cst_92 = arith.constant dense<0.000000e+00> : vector<72x32xf32>
    %289 = tpu.matmul %288, %273, %cst_92 {dimension_numbers = #tpu.dot_dimension_numbers<[1], [0], [0], [1], [0, 0, 1, 1], [], []>} : vector<72x72xbf16>, vector<72x32xbf16>, vector<72x32xf32> -> vector<72x32xf32>
    %290 = arith.truncf %289 : vector<72x32xf32> to vector<72x32xbf16>
    %291 = vector.extract_strided_slice %236 {offsets = [0, 0], sizes = [32, 64], strides = [1, 1]} : vector<64x64xbf16> to vector<32x64xbf16>
    %cst_93 = arith.constant dense<0.000000e+00> : vector<72x64xf32>
    %292 = tpu.matmul %290, %291, %cst_93 {dimension_numbers = #tpu.dot_dimension_numbers<[1], [0], [0], [1], [0, 0, 1, 1], [], []>} : vector<72x32xbf16>, vector<32x64xbf16>, vector<72x64xf32> -> vector<72x64xf32>
    %293 = arith.addf %267, %292 : vector<72x64xf32>
    %294 = vector.extract_strided_slice %266 {offsets = [0, 32], sizes = [72, 32], strides = [1, 1]} : vector<144x192xf32> to vector<72x32xf32>
    %295 = arith.truncf %294 : vector<72x32xf32> to vector<72x32xbf16>
    %296 = vector.extract_strided_slice %266 {offsets = [0, 96], sizes = [72, 32], strides = [1, 1]} : vector<144x192xf32> to vector<72x32xf32>
    %297 = arith.truncf %296 : vector<72x32xf32> to vector<72x32xbf16>
    %298 = vector.extract_strided_slice %266 {offsets = [0, 160], sizes = [72, 32], strides = [1, 1]} : vector<144x192xf32> to vector<72x32xf32>
    %299 = arith.truncf %298 : vector<72x32xf32> to vector<72x32xbf16>
    %cst_94 = arith.constant dense<0.000000e+00> : vector<72x72xf32>
    %300 = tpu.matmul %295, %297, %cst_94 {dimension_numbers = #tpu.dot_dimension_numbers<[1], [1], [0], [0], [0, 0, 1, 0], [], []>} : vector<72x32xbf16>, vector<72x32xbf16>, vector<72x72xf32> -> vector<72x72xf32>
    %cst_95 = arith.constant 0.176776692 : f32
    %301 = vector.broadcast %cst_95 : f32 to vector<72x72xf32>
    %302 = arith.mulf %300, %301 : vector<72x72xf32>
    %303 = arith.addf %302, %30 : vector<72x72xf32>
    %cst_96 = arith.constant dense<0xFF800000> : vector<72xf32>
    %304 = vector.multi_reduction <maximumf>, %303, %cst_96 [1] : vector<72x72xf32> to vector<72xf32>
    %305 = vector.shape_cast %304 : vector<72xf32> to vector<72x1xf32>
    %306 = vector.broadcast %305 : vector<72x1xf32> to vector<72x72xf32>
    %307 = arith.subf %303, %306 : vector<72x72xf32>
    %308 = math.exp %307 : vector<72x72xf32>
    %cst_97 = arith.constant dense<0.000000e+00> : vector<72xf32>
    %309 = vector.multi_reduction <add>, %308, %cst_97 [1] : vector<72x72xf32> to vector<72xf32>
    %310 = vector.shape_cast %309 : vector<72xf32> to vector<72x1xf32>
    %311 = tpu.reciprocal %310 {approx = true} : vector<72x1xf32> -> vector<72x1xf32>
    %312 = vector.broadcast %311 : vector<72x1xf32> to vector<72x72xf32>
    %313 = arith.mulf %308, %312 : vector<72x72xf32>
    %314 = arith.truncf %313 : vector<72x72xf32> to vector<72x72xbf16>
    %cst_98 = arith.constant dense<0.000000e+00> : vector<72x32xf32>
    %315 = tpu.matmul %314, %299, %cst_98 {dimension_numbers = #tpu.dot_dimension_numbers<[1], [0], [0], [1], [0, 0, 1, 1], [], []>} : vector<72x72xbf16>, vector<72x32xbf16>, vector<72x32xf32> -> vector<72x32xf32>
    %316 = arith.truncf %315 : vector<72x32xf32> to vector<72x32xbf16>
    %317 = vector.extract_strided_slice %236 {offsets = [32, 0], sizes = [32, 64], strides = [1, 1]} : vector<64x64xbf16> to vector<32x64xbf16>
    %cst_99 = arith.constant dense<0.000000e+00> : vector<72x64xf32>
    %318 = tpu.matmul %316, %317, %cst_99 {dimension_numbers = #tpu.dot_dimension_numbers<[1], [0], [0], [1], [0, 0, 1, 1], [], []>} : vector<72x32xbf16>, vector<32x64xbf16>, vector<72x64xf32> -> vector<72x64xf32>
    %319 = arith.addf %293, %318 : vector<72x64xf32>
    %cst_100 = arith.constant 0.000000e+00 : f32
    %320 = vector.broadcast %cst_100 : f32 to vector<72x64xf32>
    %321 = vector.extract_strided_slice %266 {offsets = [72, 0], sizes = [72, 32], strides = [1, 1]} : vector<144x192xf32> to vector<72x32xf32>
    %322 = arith.truncf %321 : vector<72x32xf32> to vector<72x32xbf16>
    %323 = vector.extract_strided_slice %266 {offsets = [72, 64], sizes = [72, 32], strides = [1, 1]} : vector<144x192xf32> to vector<72x32xf32>
    %324 = arith.truncf %323 : vector<72x32xf32> to vector<72x32xbf16>
    %325 = vector.extract_strided_slice %266 {offsets = [72, 128], sizes = [72, 32], strides = [1, 1]} : vector<144x192xf32> to vector<72x32xf32>
    %326 = arith.truncf %325 : vector<72x32xf32> to vector<72x32xbf16>
    %cst_101 = arith.constant dense<0.000000e+00> : vector<72x72xf32>
    %327 = tpu.matmul %322, %324, %cst_101 {dimension_numbers = #tpu.dot_dimension_numbers<[1], [1], [0], [0], [0, 0, 1, 0], [], []>} : vector<72x32xbf16>, vector<72x32xbf16>, vector<72x72xf32> -> vector<72x72xf32>
    %cst_102 = arith.constant 0.176776692 : f32
    %328 = vector.broadcast %cst_102 : f32 to vector<72x72xf32>
    %329 = arith.mulf %327, %328 : vector<72x72xf32>
    %330 = arith.addf %329, %30 : vector<72x72xf32>
    %cst_103 = arith.constant dense<0xFF800000> : vector<72xf32>
    %331 = vector.multi_reduction <maximumf>, %330, %cst_103 [1] : vector<72x72xf32> to vector<72xf32>
    %332 = vector.shape_cast %331 : vector<72xf32> to vector<72x1xf32>
    %333 = vector.broadcast %332 : vector<72x1xf32> to vector<72x72xf32>
    %334 = arith.subf %330, %333 : vector<72x72xf32>
    %335 = math.exp %334 : vector<72x72xf32>
    %cst_104 = arith.constant dense<0.000000e+00> : vector<72xf32>
    %336 = vector.multi_reduction <add>, %335, %cst_104 [1] : vector<72x72xf32> to vector<72xf32>
    %337 = vector.shape_cast %336 : vector<72xf32> to vector<72x1xf32>
    %338 = tpu.reciprocal %337 {approx = true} : vector<72x1xf32> -> vector<72x1xf32>
    %339 = vector.broadcast %338 : vector<72x1xf32> to vector<72x72xf32>
    %340 = arith.mulf %335, %339 : vector<72x72xf32>
    %341 = arith.truncf %340 : vector<72x72xf32> to vector<72x72xbf16>
    %cst_105 = arith.constant dense<0.000000e+00> : vector<72x32xf32>
    %342 = tpu.matmul %341, %326, %cst_105 {dimension_numbers = #tpu.dot_dimension_numbers<[1], [0], [0], [1], [0, 0, 1, 1], [], []>} : vector<72x72xbf16>, vector<72x32xbf16>, vector<72x32xf32> -> vector<72x32xf32>
    %343 = arith.truncf %342 : vector<72x32xf32> to vector<72x32xbf16>
    %344 = vector.extract_strided_slice %236 {offsets = [0, 0], sizes = [32, 64], strides = [1, 1]} : vector<64x64xbf16> to vector<32x64xbf16>
    %cst_106 = arith.constant dense<0.000000e+00> : vector<72x64xf32>
    %345 = tpu.matmul %343, %344, %cst_106 {dimension_numbers = #tpu.dot_dimension_numbers<[1], [0], [0], [1], [0, 0, 1, 1], [], []>} : vector<72x32xbf16>, vector<32x64xbf16>, vector<72x64xf32> -> vector<72x64xf32>
    %346 = arith.addf %320, %345 : vector<72x64xf32>
    %347 = vector.extract_strided_slice %266 {offsets = [72, 32], sizes = [72, 32], strides = [1, 1]} : vector<144x192xf32> to vector<72x32xf32>
    %348 = arith.truncf %347 : vector<72x32xf32> to vector<72x32xbf16>
    %349 = vector.extract_strided_slice %266 {offsets = [72, 96], sizes = [72, 32], strides = [1, 1]} : vector<144x192xf32> to vector<72x32xf32>
    %350 = arith.truncf %349 : vector<72x32xf32> to vector<72x32xbf16>
    %351 = vector.extract_strided_slice %266 {offsets = [72, 160], sizes = [72, 32], strides = [1, 1]} : vector<144x192xf32> to vector<72x32xf32>
    %352 = arith.truncf %351 : vector<72x32xf32> to vector<72x32xbf16>
    %cst_107 = arith.constant dense<0.000000e+00> : vector<72x72xf32>
    %353 = tpu.matmul %348, %350, %cst_107 {dimension_numbers = #tpu.dot_dimension_numbers<[1], [1], [0], [0], [0, 0, 1, 0], [], []>} : vector<72x32xbf16>, vector<72x32xbf16>, vector<72x72xf32> -> vector<72x72xf32>
    %cst_108 = arith.constant 0.176776692 : f32
    %354 = vector.broadcast %cst_108 : f32 to vector<72x72xf32>
    %355 = arith.mulf %353, %354 : vector<72x72xf32>
    %356 = arith.addf %355, %30 : vector<72x72xf32>
    %cst_109 = arith.constant dense<0xFF800000> : vector<72xf32>
    %357 = vector.multi_reduction <maximumf>, %356, %cst_109 [1] : vector<72x72xf32> to vector<72xf32>
    %358 = vector.shape_cast %357 : vector<72xf32> to vector<72x1xf32>
    %359 = vector.broadcast %358 : vector<72x1xf32> to vector<72x72xf32>
    %360 = arith.subf %356, %359 : vector<72x72xf32>
    %361 = math.exp %360 : vector<72x72xf32>
    %cst_110 = arith.constant dense<0.000000e+00> : vector<72xf32>
    %362 = vector.multi_reduction <add>, %361, %cst_110 [1] : vector<72x72xf32> to vector<72xf32>
    %363 = vector.shape_cast %362 : vector<72xf32> to vector<72x1xf32>
    %364 = tpu.reciprocal %363 {approx = true} : vector<72x1xf32> -> vector<72x1xf32>
    %365 = vector.broadcast %364 : vector<72x1xf32> to vector<72x72xf32>
    %366 = arith.mulf %361, %365 : vector<72x72xf32>
    %367 = arith.truncf %366 : vector<72x72xf32> to vector<72x72xbf16>
    %cst_111 = arith.constant dense<0.000000e+00> : vector<72x32xf32>
    %368 = tpu.matmul %367, %352, %cst_111 {dimension_numbers = #tpu.dot_dimension_numbers<[1], [0], [0], [1], [0, 0, 1, 1], [], []>} : vector<72x72xbf16>, vector<72x32xbf16>, vector<72x32xf32> -> vector<72x32xf32>
    %369 = arith.truncf %368 : vector<72x32xf32> to vector<72x32xbf16>
    %370 = vector.extract_strided_slice %236 {offsets = [32, 0], sizes = [32, 64], strides = [1, 1]} : vector<64x64xbf16> to vector<32x64xbf16>
    %cst_112 = arith.constant dense<0.000000e+00> : vector<72x64xf32>
    %371 = tpu.matmul %369, %370, %cst_112 {dimension_numbers = #tpu.dot_dimension_numbers<[1], [0], [0], [1], [0, 0, 1, 1], [], []>} : vector<72x32xbf16>, vector<32x64xbf16>, vector<72x64xf32> -> vector<72x64xf32>
    %372 = arith.addf %346, %371 : vector<72x64xf32>
    %373 = tpu.concatenate %319, %372 in 0 : vector<72x64xf32>, vector<72x64xf32> -> vector<144x64xf32>
    %374 = arith.addf %226, %373 : vector<144x64xf32>
    %375 = vector.broadcast %230 : vector<1x64xf32> to vector<144x64xf32>
    %376 = arith.addf %374, %375 : vector<144x64xf32>
    %cst_113 = arith.constant dense<0.000000e+00> : vector<144xf32>
    %377 = vector.multi_reduction <add>, %376, %cst_113 [1] : vector<144x64xf32> to vector<144xf32>
    %378 = vector.shape_cast %377 : vector<144xf32> to vector<144x1xf32>
    %cst_114 = arith.constant 6.400000e+01 : f32
    %379 = vector.broadcast %cst_114 : f32 to vector<144x1xf32>
    %380 = arith.divf %378, %379 : vector<144x1xf32>
    %381 = vector.broadcast %380 : vector<144x1xf32> to vector<144x64xf32>
    %382 = arith.subf %376, %381 : vector<144x64xf32>
    %383 = vector.broadcast %380 : vector<144x1xf32> to vector<144x64xf32>
    %384 = arith.subf %376, %383 : vector<144x64xf32>
    %385 = arith.mulf %382, %384 : vector<144x64xf32>
    %cst_115 = arith.constant dense<0.000000e+00> : vector<144xf32>
    %386 = vector.multi_reduction <add>, %385, %cst_115 [1] : vector<144x64xf32> to vector<144xf32>
    %387 = vector.shape_cast %386 : vector<144xf32> to vector<144x1xf32>
    %cst_116 = arith.constant 6.400000e+01 : f32
    %388 = vector.broadcast %cst_116 : f32 to vector<144x1xf32>
    %389 = arith.divf %387, %388 : vector<144x1xf32>
    %390 = vector.broadcast %380 : vector<144x1xf32> to vector<144x64xf32>
    %391 = arith.subf %376, %390 : vector<144x64xf32>
    %cst_117 = arith.constant 9.99999974E-6 : f32
    %392 = vector.broadcast %cst_117 : f32 to vector<144x1xf32>
    %393 = arith.addf %389, %392 : vector<144x1xf32>
    %394 = math.rsqrt %393 : vector<144x1xf32>
    %395 = vector.broadcast %394 : vector<144x1xf32> to vector<144x64xf32>
    %396 = arith.mulf %391, %395 : vector<144x64xf32>
    %397 = vector.broadcast %231 : vector<1x64xf32> to vector<144x64xf32>
    %398 = arith.mulf %396, %397 : vector<144x64xf32>
    %399 = vector.broadcast %232 : vector<1x64xf32> to vector<144x64xf32>
    %400 = arith.addf %398, %399 : vector<144x64xf32>
    %401 = arith.truncf %400 : vector<144x64xf32> to vector<144x64xbf16>
    %cst_118 = arith.constant dense<0.000000e+00> : vector<144x256xf32>
    %402 = tpu.matmul %401, %237, %cst_118 {dimension_numbers = #tpu.dot_dimension_numbers<[1], [1], [0], [0], [0, 0, 1, 0], [], []>} : vector<144x64xbf16>, vector<256x64xbf16>, vector<144x256xf32> -> vector<144x256xf32>
    %403 = vector.broadcast %233 : vector<1x256xf32> to vector<144x256xf32>
    %404 = arith.addf %402, %403 : vector<144x256xf32>
    %405 = arith.mulf %404, %404 : vector<144x256xf32>
    %406 = arith.mulf %404, %405 : vector<144x256xf32>
    %cst_119 = arith.constant 4.471500e-02 : f32
    %407 = vector.broadcast %cst_119 : f32 to vector<144x256xf32>
    %408 = arith.mulf %407, %406 : vector<144x256xf32>
    %409 = arith.addf %404, %408 : vector<144x256xf32>
    %cst_120 = arith.constant 0.797884583 : f32
    %410 = vector.broadcast %cst_120 : f32 to vector<144x256xf32>
    %411 = arith.mulf %410, %409 : vector<144x256xf32>
    %412 = math.tanh %411 : vector<144x256xf32>
    %cst_121 = arith.constant 1.000000e+00 : f32
    %413 = vector.broadcast %cst_121 : f32 to vector<144x256xf32>
    %414 = arith.addf %413, %412 : vector<144x256xf32>
    %cst_122 = arith.constant 5.000000e-01 : f32
    %415 = vector.broadcast %cst_122 : f32 to vector<144x256xf32>
    %416 = arith.mulf %415, %414 : vector<144x256xf32>
    %417 = arith.mulf %404, %416 : vector<144x256xf32>
    %418 = arith.truncf %417 : vector<144x256xf32> to vector<144x256xbf16>
    %cst_123 = arith.constant dense<0.000000e+00> : vector<144x64xf32>
    %419 = tpu.matmul %418, %238, %cst_123 {dimension_numbers = #tpu.dot_dimension_numbers<[1], [0], [0], [1], [0, 0, 1, 1], [], []>} : vector<144x256xbf16>, vector<256x64xbf16>, vector<144x64xf32> -> vector<144x64xf32>
    %420 = arith.addf %376, %419 : vector<144x64xf32>
    %421 = vector.broadcast %234 : vector<1x64xf32> to vector<144x64xf32>
    %422 = arith.addf %420, %421 : vector<144x64xf32>
    %c16_124 = arith.constant 16 : index
    %c0_125 = arith.constant 0 : index
    %423 = vector.load %arg4[%c16_124, %c0_125] : memref<24x256xf32, #tpu.memory_space<vmem>>, vector<1x64xf32>
    %c17 = arith.constant 17 : index
    %c0_126 = arith.constant 0 : index
    %424 = vector.load %arg4[%c17, %c0_126] : memref<24x256xf32, #tpu.memory_space<vmem>>, vector<1x64xf32>
    %c18 = arith.constant 18 : index
    %c0_127 = arith.constant 0 : index
    %425 = vector.load %arg4[%c18, %c0_127] : memref<24x256xf32, #tpu.memory_space<vmem>>, vector<1x128xf32>
    %c1536 = arith.constant 1536 : index
    %c0_128 = arith.constant 0 : index
    %426 = vector.load %arg5[%c1536, %c0_128] : memref<1664x64xbf16, #tpu.memory_space<vmem>>, vector<128x64xbf16>
    %427 = tpu.iota {dimensions = array<i32: 0>} : vector<2x144xi32>
    %428 = tpu.iota {dimensions = array<i32: 1>} : vector<2x144xi32>
    %c72_i32_129 = arith.constant 72 : i32
    %429 = vector.broadcast %c72_i32_129 : i32 to vector<2x144xi32>
    %430 = arith.muli %427, %429 : vector<2x144xi32>
    %431 = arith.cmpi eq, %428, %430 : vector<2x144xi32>
    %432 = arith.extui %431 : vector<2x144xi1> to vector<2x144xi32>
    %433 = arith.sitofp %432 : vector<2x144xi32> to vector<2x144xf32>
    %cst_130 = arith.constant dense<0.000000e+00> : vector<2x64xf32>
    %434 = tpu.matmul %433, %422, %cst_130 {dimension_numbers = #tpu.dot_dimension_numbers<[1], [0], [0], [1], [0, 0, 1, 1], [], []>} : vector<2x144xf32>, vector<144x64xf32>, vector<2x64xf32> -> vector<2x64xf32>
    %cst_131 = arith.constant dense<0.000000e+00> : vector<2xf32>
    %435 = vector.multi_reduction <add>, %434, %cst_131 [1] : vector<2x64xf32> to vector<2xf32>
    %436 = vector.shape_cast %435 : vector<2xf32> to vector<2x1xf32>
    %cst_132 = arith.constant 6.400000e+01 : f32
    %437 = vector.broadcast %cst_132 : f32 to vector<2x1xf32>
    %438 = arith.divf %436, %437 : vector<2x1xf32>
    %439 = vector.broadcast %438 : vector<2x1xf32> to vector<2x64xf32>
    %440 = arith.subf %434, %439 : vector<2x64xf32>
    %441 = vector.broadcast %438 : vector<2x1xf32> to vector<2x64xf32>
    %442 = arith.subf %434, %441 : vector<2x64xf32>
    %443 = arith.mulf %440, %442 : vector<2x64xf32>
    %cst_133 = arith.constant dense<0.000000e+00> : vector<2xf32>
    %444 = vector.multi_reduction <add>, %443, %cst_133 [1] : vector<2x64xf32> to vector<2xf32>
    %445 = vector.shape_cast %444 : vector<2xf32> to vector<2x1xf32>
    %cst_134 = arith.constant 6.400000e+01 : f32
    %446 = vector.broadcast %cst_134 : f32 to vector<2x1xf32>
    %447 = arith.divf %445, %446 : vector<2x1xf32>
    %448 = vector.broadcast %438 : vector<2x1xf32> to vector<2x64xf32>
    %449 = arith.subf %434, %448 : vector<2x64xf32>
    %cst_135 = arith.constant 9.99999974E-6 : f32
    %450 = vector.broadcast %cst_135 : f32 to vector<2x1xf32>
    %451 = arith.addf %447, %450 : vector<2x1xf32>
    %452 = math.rsqrt %451 : vector<2x1xf32>
    %453 = vector.broadcast %452 : vector<2x1xf32> to vector<2x64xf32>
    %454 = arith.mulf %449, %453 : vector<2x64xf32>
    %455 = vector.broadcast %423 : vector<1x64xf32> to vector<2x64xf32>
    %456 = arith.mulf %454, %455 : vector<2x64xf32>
    %457 = vector.broadcast %424 : vector<1x64xf32> to vector<2x64xf32>
    %458 = arith.addf %456, %457 : vector<2x64xf32>
    %459 = arith.truncf %458 : vector<2x64xf32> to vector<2x64xbf16>
    %cst_136 = arith.constant dense<0.000000e+00> : vector<2x128xf32>
    %460 = tpu.matmul %459, %426, %cst_136 {dimension_numbers = #tpu.dot_dimension_numbers<[1], [1], [0], [0], [0, 0, 1, 0], [], []>} : vector<2x64xbf16>, vector<128x64xbf16>, vector<2x128xf32> -> vector<2x128xf32>
    %461 = vector.broadcast %425 : vector<1x128xf32> to vector<2x128xf32>
    %462 = arith.addf %460, %461 : vector<2x128xf32>
    %463 = arith.mulf %462, %462 : vector<2x128xf32>
    %464 = arith.mulf %462, %463 : vector<2x128xf32>
    %cst_137 = arith.constant 4.471500e-02 : f32
    %465 = vector.broadcast %cst_137 : f32 to vector<2x128xf32>
    %466 = arith.mulf %465, %464 : vector<2x128xf32>
    %467 = arith.addf %462, %466 : vector<2x128xf32>
    %cst_138 = arith.constant 0.797884583 : f32
    %468 = vector.broadcast %cst_138 : f32 to vector<2x128xf32>
    %469 = arith.mulf %468, %467 : vector<2x128xf32>
    %470 = math.tanh %469 : vector<2x128xf32>
    %cst_139 = arith.constant 1.000000e+00 : f32
    %471 = vector.broadcast %cst_139 : f32 to vector<2x128xf32>
    %472 = arith.addf %471, %470 : vector<2x128xf32>
    %cst_140 = arith.constant 5.000000e-01 : f32
    %473 = vector.broadcast %cst_140 : f32 to vector<2x128xf32>
    %474 = arith.mulf %473, %472 : vector<2x128xf32>
    %475 = arith.mulf %462, %474 : vector<2x128xf32>
    %476 = arith.truncf %475 : vector<2x128xf32> to vector<2x128xbf16>
    tpu.wait_dma2 semaphore(%arg10 : memref<!tpu.dma_semaphore, #tpu.memory_space<semaphore_mem>>) src(%arg7 : memref<128x2048xbf16, #tpu.memory_space<any>>) dst(%arg9 : memref<128x2048xbf16, #tpu.memory_space<vmem>>)
    %c0_141 = arith.constant 0 : index
    %c0_142 = arith.constant 0 : index
    %477 = vector.load %arg9[%c0_141, %c0_142] : memref<128x2048xbf16, #tpu.memory_space<vmem>>, vector<128x2048xbf16>
    %cst_143 = arith.constant dense<0.000000e+00> : vector<2x2048xf32>
    %478 = tpu.matmul %476, %477, %cst_143 {dimension_numbers = #tpu.dot_dimension_numbers<[1], [0], [0], [1], [0, 0, 1, 1], [], []>} : vector<2x128xbf16>, vector<128x2048xbf16>, vector<2x2048xf32> -> vector<2x2048xf32>
    %c0_144 = arith.constant 0 : index
    %c0_145 = arith.constant 0 : index
    %479 = vector.load %arg6[%c0_144, %c0_145] : memref<1x2048xf32, #tpu.memory_space<vmem>>, vector<1x2048xf32>
    %480 = vector.broadcast %479 : vector<1x2048xf32> to vector<2x2048xf32>
    %481 = arith.addf %478, %480 : vector<2x2048xf32>
    %c0_146 = arith.constant 0 : index
    %c0_147 = arith.constant 0 : index
    %482 = vector.load %arg8[%c0_146, %c0_147] : memref<2x2048xf32, #tpu.memory_space<vmem>>, vector<2x2048xf32>
    tpu.vector_store %arg8[%c0_146, %c0_147], %481 {strides = array<i32>} : memref<2x2048xf32, #tpu.memory_space<vmem>>, vector<2x2048xf32>,
    return
  }
  func.func @transform_0(%arg0: i32) -> (i32, i32) {
    %c0_i32 = arith.constant 0 : i32
    %c0_i32_0 = arith.constant 0 : i32
    %c0_i32_1 = arith.constant 0 : i32
    return %c0_i32, %c0_i32_0 : i32, i32
  }
  func.func @transform_1(%arg0: i32) -> (i32, i32) {
    %c0_i32 = arith.constant 0 : i32
    %c0_i32_0 = arith.constant 0 : i32
    %c0_i32_1 = arith.constant 0 : i32
    return %c0_i32, %c0_i32_0 : i32, i32
  }
  func.func @transform_2(%arg0: i32) -> (i32, i32) {
    %c0_i32 = arith.constant 0 : i32
    %c0_i32_0 = arith.constant 0 : i32
    %c0_i32_1 = arith.constant 0 : i32
    return %c0_i32, %c0_i32_0 : i32, i32
  }
  func.func @transform_3(%arg0: i32) -> (i32, i32) {
    %c0_i32 = arith.constant 0 : i32
    %c0_i32_0 = arith.constant 0 : i32
    %c0_i32_1 = arith.constant 0 : i32
    return %c0_i32, %c0_i32_0 : i32, i32
  }
  func.func @transform_4(%arg0: i32) -> (i32, i32) {
    %c0_i32 = arith.constant 0 : i32
    %c0_i32_0 = arith.constant 0 : i32
    %c0_i32_1 = arith.constant 0 : i32
    return %c0_i32, %c0_i32_0 : i32, i32
  }
  func.func @transform_5(%arg0: i32) -> (i32, i32) {
    %c0_i32 = arith.constant 0 : i32
    %c0_i32_0 = arith.constant 0 : i32
    %c0_i32_1 = arith.constant 0 : i32
    return %c0_i32, %c0_i32_0 : i32, i32
  }
  func.func @transform_7(%arg0: i32) -> (i32, i32) {
    %c0_i32 = arith.constant 0 : i32
    %c0_i32_0 = arith.constant 0 : i32
    %c0_i32_1 = arith.constant 0 : i32
    return %c0_i32, %c0_i32_0 : i32, i32
  }
}

</mosaic_0001>

<llo_original>
// kernel: tpu_custom_call.1
$region0: #{tpu_custom_call.1}
  #allocation0 [shape = 'u32[]', space=smem, size = 0x4, offset = 0x4, fixed_abs, tag = 'smem constant byte address 0x4 - core index']
  #allocation1 [shape = 'u32[144,128]{1,0:T(1,128)}', space=vmem, size = 0x12000, scoped, tag = 'internal scratch']
  #allocation2 [shape = 'bf16[128,2048]{1,0:T(8,128)(2,1)}', space=vmem, size = 0x80000, scoped, tag = 'scratch operand']
  #allocation3 [shape = 's32[1]{0}', space=sflag, size = 0x4, scoped, tag = 'scratch operand']
  #allocation6 [shape = 's32[]', space=sflag, size = 0x4, offset = 0, fixed_abs, tag = 'sflag constant byte address 0x0 - dummy sync flag']
  %s0 = inlined_call_operand.vmem [shape: s32[144,1], index: 0, kind: input, shape index: {}]
  %s1 = inlined_call_operand.vmem [shape: f32[2,16], index: 1, kind: input, shape index: {}]
  %s2 = inlined_call_operand.vmem [shape: f32[184,64], index: 2, kind: input, shape index: {}]
  %s3 = inlined_call_operand.vmem [shape: f32[24,256], index: 3, kind: input, shape index: {}]
  %s4 = inlined_call_operand.vmem [shape: bf16[1664,64], index: 4, kind: input, shape index: {}]
  %s5 = inlined_call_operand.vmem [shape: f32[1,2048], index: 5, kind: input, shape index: {}]
  %s6 = inlined_call_operand.vmem [shape: bf16[128,2048], index: 6, kind: input, shape index: {}]
  %s7 = inlined_call_operand.hbm [shape: f32[2,2048], index: 7, kind: output, shape index: {}]
  %s8 = sld [smem:[#allocation0]]
  $region68: #{tpu_custom_call.1} parent=0
    _
  %s10 = ssub.s32 1, %s8
  %s11 = scalar_select 0, %s10, %s8
  $region1: #{tpu_custom_call.1} parent=0
    #allocation4 [shape = 'u8[16384]{0}', space=vmem, size = 0x4000, scoped, tag = 'output window, operand 0, single buffered']
    #allocation5 [shape = 's32[1]{0}', space=sflag, size = 0x4, scoped, tag = 'scoped memory for tpu_custom_call.1']
    %12 = vsyncpa [#allocation5], 0
    // Predicated region
    $region2: #{tpu_custom_call.1} parent=1 // pred_check
      _
    $region3: #{tpu_custom_call.1} parent=1 // pred_check_branch
      %14 = sbr.rel (0) target = $region5
    $region4: #{tpu_custom_call.1} parent=1 // pred_region
      _
    $region5: #{tpu_custom_call.1} parent=1 // pred_fallthru
      _
    // Predicated region
    $region6: #{tpu_custom_call.1} parent=1 // pred_check
      _
    $region7: #{tpu_custom_call.1} parent=1 // pred_check_branch
      %16 = sbr.rel (0) target = $region9
    $region8: #{tpu_custom_call.1} parent=1 // pred_region
      _
    $region9: #{tpu_custom_call.1} parent=1 // pred_fallthru
      _
    // Predicated region
    $region10: #{tpu_custom_call.1} parent=1 // pred_check
      _
    $region11: #{tpu_custom_call.1} parent=1 // pred_check_branch
      %18 = sbr.rel (0) target = $region13
    $region12: #{tpu_custom_call.1} parent=1 // pred_region
      _
    $region13: #{tpu_custom_call.1} parent=1 // pred_fallthru
      _
    // Predicated region
    $region14: #{tpu_custom_call.1} parent=1 // pred_check
      _
    $region15: #{tpu_custom_call.1} parent=1 // pred_check_branch
      %20 = sbr.rel (0) target = $region17
    $region16: #{tpu_custom_call.1} parent=1 // pred_region
      _
    $region17: #{tpu_custom_call.1} parent=1 // pred_fallthru
      _
    // Predicated region
    $region18: #{tpu_custom_call.1} parent=1 // pred_check
      _
    $region19: #{tpu_custom_call.1} parent=1 // pred_check_branch
      %22 = sbr.rel (0) target = $region21
    $region20: #{tpu_custom_call.1} parent=1 // pred_region
      _
    $region21: #{tpu_custom_call.1} parent=1 // pred_fallthru
      _
    // Predicated region
    $region22: #{tpu_custom_call.1} parent=1 // pred_check
      _
    $region23: #{tpu_custom_call.1} parent=1 // pred_check_branch
      %24 = sbr.rel (0) target = $region25
    $region24: #{tpu_custom_call.1} parent=1 // pred_region
      _
    $region25: #{tpu_custom_call.1} parent=1 // pred_fallthru
      _
    %p27 = scmp.lt.u32.totalorder 1024, 8
    %p28 = pneg %p27
    // Predicated region
    $region26: #{tpu_custom_call.1} parent=1 // pred_check
      _
    $region27: #{tpu_custom_call.1} parent=1 // pred_check_branch
      %30 = sbr.rel (%p27) target = $region29
    $region28: #{tpu_custom_call.1} parent=1 // pred_region
      %s46 = sand.u32 1024, 7
      %p47 = scmp.eq.s32.totalorder %s46, 0
      // Predicated region
      $region41: #{tpu_custom_call.1} parent=28 // pred_check
        %p48 = pneg %p47
      $region42: #{tpu_custom_call.1} parent=28 // pred_check_branch
        %50 = sbr.rel (%p48) target = $region44
      $region43: #{tpu_custom_call.1} parent=28 // pred_region
        loop: start=0, step=1, limit=1
        $region45: #{tpu_custom_call.1} parent=43 // loop_pre_header
          _
        $region46: #{tpu_custom_call.1} parent=43 // loop_header
          %s52 = sphi 0, %s56
          %p53 = scmp.ge.s32.totalorder %s52, 1
          %s57 = sphi %s6, %s6
          %s58 = sphi [#allocation2], [#allocation2]
        $region47: #{tpu_custom_call.1} parent=43 // loop_header_branch
          %55 = sbr.rel (%p53) target = $region51
        $region48: #{tpu_custom_call.1} parent=43 // loop_body
          %v59 = vld [vmem:[%s57] sm:$0xff]
          %60 = vst [vmem:[%s58] sm:$0xff] %v59
          %v61 = vld [vmem:[%s57 + $0x8] sm:$0xff]
          %62 = vst [vmem:[%s58 + $0x8] sm:$0xff] %v61
          %v63 = vld [vmem:[%s57 + $0x10] sm:$0xff]
          %64 = vst [vmem:[%s58 + $0x10] sm:$0xff] %v63
          %v65 = vld [vmem:[%s57 + $0x18] sm:$0xff]
          %66 = vst [vmem:[%s58 + $0x18] sm:$0xff] %v65
          %v67 = vld [vmem:[%s57 + $0x20] sm:$0xff]
          %68 = vst [vmem:[%s58 + $0x20] sm:$0xff] %v67
          %v69 = vld [vmem:[%s57 + $0x28] sm:$0xff]
          %70 = vst [vmem:[%s58 + $0x28] sm:$0xff] %v69
          %v71 = vld [vmem:[%s57 + $0x30] sm:$0xff]
          %72 = vst [vmem:[%s58 + $0x30] sm:$0xff] %v71
          %v73 = vld [vmem:[%s57 + $0x38] sm:$0xff]
          %74 = vst [vmem:[%s58 + $0x38] sm:$0xff] %v73
          %v75 = vld [vmem:[%s57 + $0x40] sm:$0xff]
          %76 = vst [vmem:[%s58 + $0x40] sm:$0xff] %v75
          %v77 = vld [vmem:[%s57 + $0x48] sm:$0xff]
          %78 = vst [vmem:[%s58 + $0x48] sm:$0xff] %v77
          %v79 = vld [vmem:[%s57 + $0x50] sm:$0xff]
          %80 = vst [vmem:[%s58 + $0x50] sm:$0xff] %v79
          %v81 = vld [vmem:[%s57 + $0x58] sm:$0xff]
          %82 = vst [vmem:[%s58 + $0x58] sm:$0xff] %v81
          %v83 = vld [vmem:[%s57 + $0x60] sm:$0xff]
          %84 = vst [vmem:[%s58 + $0x60] sm:$0xff] %v83
          %v85 = vld [vmem:[%s57 + $0x68] sm:$0xff]
          %86 = vst [vmem:[%s58 + $0x68] sm:$0xff] %v85
          %v87 = vld [vmem:[%s57 + $0x70] sm:$0xff]
          %88 = vst [vmem:[%s58 + $0x70] sm:$0xff] %v87
          %v89 = vld [vmem:[%s57 + $0x78] sm:$0xff]
          %90 = vst [vmem:[%s58 + $0x78] sm:$0xff] %v89
          %v91 = vld [vmem:[%s57 + $0x80] sm:$0xff]
          %92 = vst [vmem:[%s58 + $0x80] sm:$0xff] %v91
          %v93 = vld [vmem:[%s57 + $0x88] sm:$0xff]
          %94 = vst [vmem:[%s58 + $0x88] sm:$0xff] %v93
          %v95 = vld [vmem:[%s57 + $0x90] sm:$0xff]
          %96 = vst [vmem:[%s58 + $0x90] sm:$0xff] %v95
          %v97 = vld [vmem:[%s57 + $0x98] sm:$0xff]
          %98 = vst [vmem:[%s58 + $0x98] sm:$0xff] %v97
          %v99 = vld [vmem:[%s57 + $0xa0] sm:$0xff]
          %100 = vst [vmem:[%s58 + $0xa0] sm:$0xff] %v99
          %v101 = vld [vmem:[%s57 + $0xa8] sm:$0xff]
          %102 = vst [vmem:[%s58 + $0xa8] sm:$0xff] %v101
          %v103 = vld [vmem:[%s57 + $0xb0] sm:$0xff]
          %104 = vst [vmem:[%s58 + $0xb0] sm:$0xff] %v103
          %v105 = vld [vmem:[%s57 + $0xb8] sm:$0xff]
          %106 = vst [vmem:[%s58 + $0xb8] sm:$0xff] %v105
          %v107 = vld [vmem:[%s57 + $0xc0] sm:$0xff]
          %108 = vst [vmem:[%s58 + $0xc0] sm:$0xff] %v107
          %v109 = vld [vmem:[%s57 + $0xc8] sm:$0xff]
          %110 = vst [vmem:[%s58 + $0xc8] sm:$0xff] %v109
          %v111 = vld [vmem:[%s57 + $0xd0] sm:$0xff]
          %112 = vst [vmem:[%s58 + $0xd0] sm:$0xff] %v111
          %v113 = vld [vmem:[%s57 + $0xd8] sm:$0xff]
          %114 = vst [vmem:[%s58 + $0xd8] sm:$0xff] %v113
          %v115 = vld [vmem:[%s57 + $0xe0] sm:$0xff]
          %116 = vst [vmem:[%s58 + $0xe0] sm:$0xff] %v115
          %v117 = vld [vmem:[%s57 + $0xe8] sm:$0xff]
          %118 = vst [vmem:[%s58 + $0xe8] sm:$0xff] %v117
          %v119 = vld [vmem:[%s57 + $0xf0] sm:$0xff]
          %120 = vst [vmem:[%s58 + $0xf0] sm:$0xff] %v119
          %v121 = vld [vmem:[%s57 + $0xf8] sm:$0xff]
          %122 = vst [vmem:[%s58 + $0xf8] sm:$0xff] %v121
          %v123 = vld [vmem:[%s57 + $0x100] sm:$0xff]
          %124 = vst [vmem:[%s58 + $0x100] sm:$0xff] %v123
          %v125 = vld [vmem:[%s57 + $0x108] sm:$0xff]
          %126 = vst [vmem:[%s58 + $0x108] sm:$0xff] %v125
          %v127 = vld [vmem:[%s57 + $0x110] sm:$0xff]
          %128 = vst [vmem:[%s58 + $0x110] sm:$0xff] %v127
          %v129 = vld [vmem:[%s57 + $0x118] sm:$0xff]
          %130 = vst [vmem:[%s58 + $0x118] sm:$0xff] %v129
          %v131 = vld [vmem:[%s57 + $0x120] sm:$0xff]
          %132 = vst [vmem:[%s58 + $0x120] sm:$0xff] %v131
          %v133 = vld [vmem:[%s57 + $0x128] sm:$0xff]
          %134 = vst [vmem:[%s58 + $0x128] sm:$0xff] %v133
          %v135 = vld [vmem:[%s57 + $0x130] sm:$0xff]
          %136 = vst [vmem:[%s58 + $0x130] sm:$0xff] %v135
          %v137 = vld [vmem:[%s57 + $0x138] sm:$0xff]
          %138 = vst [vmem:[%s58 + $0x138] sm:$0xff] %v137
          %v139 = vld [vmem:[%s57 + $0x140] sm:$0xff]
          %140 = vst [vmem:[%s58 + $0x140] sm:$0xff] %v139
          %v141 = vld [vmem:[%s57 + $0x148] sm:$0xff]
          %142 = vst [vmem:[%s58 + $0x148] sm:$0xff] %v141
          %v143 = vld [vmem:[%s57 + $0x150] sm:$0xff]
          %144 = vst [vmem:[%s58 + $0x150] sm:$0xff] %v143
          %v145 = vld [vmem:[%s57 + $0x158] sm:$0xff]
          %146 = vst [vmem:[%s58 + $0x158] sm:$0xff] %v145
          %v147 = vld [vmem:[%s57 + $0x160] sm:$0xff]
          %148 = vst [vmem:[%s58 + $0x160] sm:$0xff] %v147
          %v149 = vld [vmem:[%s57 + $0x168] sm:$0xff]
          %150 = vst [vmem:[%s58 + $0x168] sm:$0xff] %v149
          %v151 = vld [vmem:[%s57 + $0x170] sm:$0xff]
          %152 = vst [vmem:[%s58 + $0x170] sm:$0xff] %v151
          %v153 = vld [vmem:[%s57 + $0x178] sm:$0xff]
          %154 = vst [vmem:[%s58 + $0x178] sm:$0xff] %v153
          %v155 = vld [vmem:[%s57 + $0x180] sm:$0xff]
          %156 = vst [vmem:[%s58 + $0x180] sm:$0xff] %v155
          %v157 = vld [vmem:[%s57 + $0x188] sm:$0xff]
          %158 = vst [vmem:[%s58 + $0x188] sm:$0xff] %v157
          %v159 = vld [vmem:[%s57 + $0x190] sm:$0xff]
          %160 = vst [vmem:[%s58 + $0x190] sm:$0xff] %v159
          %v161 = vld [vmem:[%s57 + $0x198] sm:$0xff]
          %162 = vst [vmem:[%s58 + $0x198] sm:$0xff] %v161
          %v163 = vld [vmem:[%s57 + $0x1a0] sm:$0xff]
          %164 = vst [vmem:[%s58 + $0x1a0] sm:$0xff] %v163
          %v165 = vld [vmem:[%s57 + $0x1a8] sm:$0xff]
          %166 = vst [vmem:[%s58 + $0x1a8] sm:$0xff] %v165
          %v167 = vld [vmem:[%s57 + $0x1b0] sm:$0xff]
          %168 = vst [vmem:[%s58 + $0x1b0] sm:$0xff] %v167
          %v169 = vld [vmem:[%s57 + $0x1b8] sm:$0xff]
          %170 = vst [vmem:[%s58 + $0x1b8] sm:$0xff] %v169
          %v171 = vld [vmem:[%s57 + $0x1c0] sm:$0xff]
          %172 = vst [vmem:[%s58 + $0x1c0] sm:$0xff] %v171
          %v173 = vld [vmem:[%s57 + $0x1c8] sm:$0xff]
          %174 = vst [vmem:[%s58 + $0x1c8] sm:$0xff] %v173
          %v175 = vld [vmem:[%s57 + $0x1d0] sm:$0xff]
          %176 = vst [vmem:[%s58 + $0x1d0] sm:$0xff] %v175
          %v177 = vld [vmem:[%s57 + $0x1d8] sm:$0xff]
          %178 = vst [vmem:[%s58 + $0x1d8] sm:$0xff] %v177
          %v179 = vld [vmem:[%s57 + $0x1e0] sm:$0xff]
          %180 = vst [vmem:[%s58 + $0x1e0] sm:$0xff] %v179
          %v181 = vld [vmem:[%s57 + $0x1e8] sm:$0xff]
          %182 = vst [vmem:[%s58 + $0x1e8] sm:$0xff] %v181
          %v183 = vld [vmem:[%s57 + $0x1f0] sm:$0xff]
          %184 = vst [vmem:[%s58 + $0x1f0] sm:$0xff] %v183
          %v185 = vld [vmem:[%s57 + $0x1f8] sm:$0xff]
          %186 = vst [vmem:[%s58 + $0x1f8] sm:$0xff] %v185
          %v187 = vld [vmem:[%s57 + $0x200] sm:$0xff]
          %188 = vst [vmem:[%s58 + $0x200] sm:$0xff] %v187
          %v189 = vld [vmem:[%s57 + $0x208] sm:$0xff]
          %190 = vst [vmem:[%s58 + $0x208] sm:$0xff] %v189
          %v191 = vld [vmem:[%s57 + $0x210] sm:$0xff]
          %192 = vst [vmem:[%s58 + $0x210] sm:$0xff] %v191
          %v193 = vld [vmem:[%s57 + $0x218] sm:$0xff]
          %194 = vst [vmem:[%s58 + $0x218] sm:$0xff] %v193
          %v195 = vld [vmem:[%s57 + $0x220] sm:$0xff]
          %196 = vst [vmem:[%s58 + $0x220] sm:$0xff] %v195
          %v197 = vld [vmem:[%s57 + $0x228] sm:$0xff]
          %198 = vst [vmem:[%s58 + $0x228] sm:$0xff] %v197
          %v199 = vld [vmem:[%s57 + $0x230] sm:$0xff]
          %200 = vst [vmem:[%s58 + $0x230] sm:$0xff] %v199
          %v201 = vld [vmem:[%s57 + $0x238] sm:$0xff]
          %202 = vst [vmem:[%s58 + $0x238] sm:$0xff] %v201
          %v203 = vld [vmem:[%s57 + $0x240] sm:$0xff]
          %204 = vst [vmem:[%s58 + $0x240] sm:$0xff] %v203
          %v205 = vld [vmem:[%s57 + $0x248] sm:$0xff]
          %206 = vst [vmem:[%s58 + $0x248] sm:$0xff] %v205
          %v207 = vld [vmem:[%s57 + $0x250] sm:$0xff]
          %208 = vst [vmem:[%s58 + $0x250] sm:$0xff] %v207
          %v209 = vld [vmem:[%s57 + $0x258] sm:$0xff]
          %210 = vst [vmem:[%s58 + $0x258] sm:$0xff] %v209
          %v211 = vld [vmem:[%s57 + $0x260] sm:$0xff]
          %212 = vst [vmem:[%s58 + $0x260] sm:$0xff] %v211
          %v213 = vld [vmem:[%s57 + $0x268] sm:$0xff]
          %214 = vst [vmem:[%s58 + $0x268] sm:$0xff] %v213
          %v215 = vld [vmem:[%s57 + $0x270] sm:$0xff]
          %216 = vst [vmem:[%s58 + $0x270] sm:$0xff] %v215
          %v217 = vld [vmem:[%s57 + $0x278] sm:$0xff]
          %218 = vst [vmem:[%s58 + $0x278] sm:$0xff] %v217
          %v219 = vld [vmem:[%s57 + $0x280] sm:$0xff]
          %220 = vst [vmem:[%s58 + $0x280] sm:$0xff] %v219
          %v221 = vld [vmem:[%s57 + $0x288] sm:$0xff]
          %222 = vst [vmem:[%s58 + $0x288] sm:$0xff] %v221
          %v223 = vld [vmem:[%s57 + $0x290] sm:$0xff]
          %224 = vst [vmem:[%s58 + $0x290] sm:$0xff] %v223
          %v225 = vld [vmem:[%s57 + $0x298] sm:$0xff]
          %226 = vst [vmem:[%s58 + $0x298] sm:$0xff] %v225
          %v227 = vld [vmem:[%s57 + $0x2a0] sm:$0xff]
          %228 = vst [vmem:[%s58 + $0x2a0] sm:$0xff] %v227
          %v229 = vld [vmem:[%s57 + $0x2a8] sm:$0xff]
          %230 = vst [vmem:[%s58 + $0x2a8] sm:$0xff] %v229
          %v231 = vld [vmem:[%s57 + $0x2b0] sm:$0xff]
          %232 = vst [vmem:[%s58 + $0x2b0] sm:$0xff] %v231
          %v233 = vld [vmem:[%s57 + $0x2b8] sm:$0xff]
          %234 = vst [vmem:[%s58 + $0x2b8] sm:$0xff] %v233
          %v235 = vld [vmem:[%s57 + $0x2c0] sm:$0xff]
          %236 = vst [vmem:[%s58 + $0x2c0] sm:$0xff] %v235
          %v237 = vld [vmem:[%s57 + $0x2c8] sm:$0xff]
          %238 = vst [vmem:[%s58 + $0x2c8] sm:$0xff] %v237
          %v239 = vld [vmem:[%s57 + $0x2d0] sm:$0xff]
          %240 = vst [vmem:[%s58 + $0x2d0] sm:$0xff] %v239
          %v241 = vld [vmem:[%s57 + $0x2d8] sm:$0xff]
          %242 = vst [vmem:[%s58 + $0x2d8] sm:$0xff] %v241
          %v243 = vld [vmem:[%s57 + $0x2e0] sm:$0xff]
          %244 = vst [vmem:[%s58 + $0x2e0] sm:$0xff] %v243
          %v245 = vld [vmem:[%s57 + $0x2e8] sm:$0xff]
          %246 = vst [vmem:[%s58 + $0x2e8] sm:$0xff] %v245
          %v247 = vld [vmem:[%s57 + $0x2f0] sm:$0xff]
          %248 = vst [vmem:[%s58 + $0x2f0] sm:$0xff] %v247
          %v249 = vld [vmem:[%s57 + $0x2f8] sm:$0xff]
          %250 = vst [vmem:[%s58 + $0x2f8] sm:$0xff] %v249
          %v251 = vld [vmem:[%s57 + $0x300] sm:$0xff]
          %252 = vst [vmem:[%s58 + $0x300] sm:$0xff] %v251
          %v253 = vld [vmem:[%s57 + $0x308] sm:$0xff]
          %254 = vst [vmem:[%s58 + $0x308] sm:$0xff] %v253
          %v255 = vld [vmem:[%s57 + $0x310] sm:$0xff]
          %256 = vst [vmem:[%s58 + $0x310] sm:$0xff] %v255
          %v257 = vld [vmem:[%s57 + $0x318] sm:$0xff]
          %258 = vst [vmem:[%s58 + $0x318] sm:$0xff] %v257
          %v259 = vld [vmem:[%s57 + $0x320] sm:$0xff]
          %260 = vst [vmem:[%s58 + $0x320] sm:$0xff] %v259
          %v261 = vld [vmem:[%s57 + $0x328] sm:$0xff]
          %262 = vst [vmem:[%s58 + $0x328] sm:$0xff] %v261
          %v263 = vld [vmem:[%s57 + $0x330] sm:$0xff]
          %264 = vst [vmem:[%s58 + $0x330] sm:$0xff] %v263
          %v265 = vld [vmem:[%s57 + $0x338] sm:$0xff]
          %266 = vst [vmem:[%s58 + $0x338] sm:$0xff] %v265
          %v267 = vld [vmem:[%s57 + $0x340] sm:$0xff]
          %268 = vst [vmem:[%s58 + $0x340] sm:$0xff] %v267
          %v269 = vld [vmem:[%s57 + $0x348] sm:$0xff]
          %270 = vst [vmem:[%s58 + $0x348] sm:$0xff] %v269
          %v271 = vld [vmem:[%s57 + $0x350] sm:$0xff]
          %272 = vst [vmem:[%s58 + $0x350] sm:$0xff] %v271
          %v273 = vld [vmem:[%s57 + $0x358] sm:$0xff]
          %274 = vst [vmem:[%s58 + $0x358] sm:$0xff] %v273
          %v275 = vld [vmem:[%s57 + $0x360] sm:$0xff]
          %276 = vst [vmem:[%s58 + $0x360] sm:$0xff] %v275
          %v277 = vld [vmem:[%s57 + $0x368] sm:$0xff]
          %278 = vst [vmem:[%s58 + $0x368] sm:$0xff] %v277
          %v279 = vld [vmem:[%s57 + $0x370] sm:$0xff]
          %280 = vst [vmem:[%s58 + $0x370] sm:$0xff] %v279
          %v281 = vld [vmem:[%s57 + $0x378] sm:$0xff]
          %282 = vst [vmem:[%s58 + $0x378] sm:$0xff] %v281
          %v283 = vld [vmem:[%s57 + $0x380] sm:$0xff]
          %284 = vst [vmem:[%s58 + $0x380] sm:$0xff] %v283
          %v285 = vld [vmem:[%s57 + $0x388] sm:$0xff]
          %286 = vst [vmem:[%s58 + $0x388] sm:$0xff] %v285
          %v287 = vld [vmem:[%s57 + $0x390] sm:$0xff]
          %288 = vst [vmem:[%s58 + $0x390] sm:$0xff] %v287
          %v289 = vld [vmem:[%s57 + $0x398] sm:$0xff]
          %290 = vst [vmem:[%s58 + $0x398] sm:$0xff] %v289
          %v291 = vld [vmem:[%s57 + $0x3a0] sm:$0xff]
          %292 = vst [vmem:[%s58 + $0x3a0] sm:$0xff] %v291
          %v293 = vld [vmem:[%s57 + $0x3a8] sm:$0xff]
          %294 = vst [vmem:[%s58 + $0x3a8] sm:$0xff] %v293
          %v295 = vld [vmem:[%s57 + $0x3b0] sm:$0xff]
          %296 = vst [vmem:[%s58 + $0x3b0] sm:$0xff] %v295
          %v297 = vld [vmem:[%s57 + $0x3b8] sm:$0xff]
          %298 = vst [vmem:[%s58 + $0x3b8] sm:$0xff] %v297
          %v299 = vld [vmem:[%s57 + $0x3c0] sm:$0xff]
          %300 = vst [vmem:[%s58 + $0x3c0] sm:$0xff] %v299
          %v301 = vld [vmem:[%s57 + $0x3c8] sm:$0xff]
          %302 = vst [vmem:[%s58 + $0x3c8] sm:$0xff] %v301
          %v303 = vld [vmem:[%s57 + $0x3d0] sm:$0xff]
          %304 = vst [vmem:[%s58 + $0x3d0] sm:$0xff] %v303
          %v305 = vld [vmem:[%s57 + $0x3d8] sm:$0xff]
          %306 = vst [vmem:[%s58 + $0x3d8] sm:$0xff] %v305
          %v307 = vld [vmem:[%s57 + $0x3e0] sm:$0xff]
          %308 = vst [vmem:[%s58 + $0x3e0] sm:$0xff] %v307
          %v309 = vld [vmem:[%s57 + $0x3e8] sm:$0xff]
          %310 = vst [vmem:[%s58 + $0x3e8] sm:$0xff] %v309
          %v311 = vld [vmem:[%s57 + $0x3f0] sm:$0xff]
          %312 = vst [vmem:[%s58 + $0x3f0] sm:$0xff] %v311
          %v313 = vld [vmem:[%s57 + $0x3f8] sm:$0xff]
          %314 = vst [vmem:[%s58 + $0x3f8] sm:$0xff] %v313
        $region49: #{tpu_custom_call.1} parent=43 // loop_footer
          %s56 = sadd.s32 1, %s52
        $region50: #{tpu_custom_call.1} parent=43 // loop_footer_branch
          %51 = sbr.rel target = $region46
        $region51: #{tpu_custom_call.1} parent=43 // loop_exit
          _
      $region44: #{tpu_custom_call.1} parent=28 // pred_fallthru
        _
      %p315 = pneg %p47
      // Predicated region
      $region52: #{tpu_custom_call.1} parent=28 // pred_check
        _
      $region53: #{tpu_custom_call.1} parent=28 // pred_check_branch
        %317 = sbr.rel (%p47) target = $region55
      $region54: #{tpu_custom_call.1} parent=28 // pred_region
        %s318 = sand.u32 1024, 7
      $region55: #{tpu_custom_call.1} parent=28 // pred_fallthru
        _
    $region29: #{tpu_custom_call.1} parent=1 // pred_fallthru
      _
    // Predicated region
    $region30: #{tpu_custom_call.1} parent=1 // pred_check
      %p31 = pneg %p27
    $region31: #{tpu_custom_call.1} parent=1 // pred_check_branch
      %33 = sbr.rel (%p31) target = $region33
    $region32: #{tpu_custom_call.1} parent=1 // pred_region
      %s34 = sshll.u32 1, 1024
      %s35 = ssub.s32 %s34, 1
      loop: start=0, step=1, limit=1
      $region34: #{tpu_custom_call.1} parent=32 // loop_pre_header
        _
      $region35: #{tpu_custom_call.1} parent=32 // loop_header
        %s37 = sphi 0, %s41
        %p38 = scmp.ge.s32.totalorder %s37, 1
        %s42 = sphi %s6, %s6
        %s43 = sphi [#allocation2], [#allocation2]
      $region36: #{tpu_custom_call.1} parent=32 // loop_header_branch
        %40 = sbr.rel (%p38) target = $region40
      $region37: #{tpu_custom_call.1} parent=32 // loop_body
        %v44 = vld [vmem:[%s42] sm:%s35]
        %45 = vst [vmem:[%s43] sm:%s35] %v44
      $region38: #{tpu_custom_call.1} parent=32 // loop_footer
        %s41 = sadd.s32 1, %s37
      $region39: #{tpu_custom_call.1} parent=32 // loop_footer_branch
        %36 = sbr.rel target = $region35
      $region40: #{tpu_custom_call.1} parent=32 // loop_exit
        _
    $region33: #{tpu_custom_call.1} parent=1 // pred_fallthru
      _
    // Predicated region
    $region56: #{tpu_custom_call.1} parent=1 // pred_check
      _
    $region57: #{tpu_custom_call.1} parent=1 // pred_check_branch
      %321 = sbr.rel (0) target = $region59
    $region58: #{tpu_custom_call.1} parent=1 // pred_region
      %322 = vsyncadd [#allocation3], 16384
    $region59: #{tpu_custom_call.1} parent=1 // pred_fallthru
      _
    %v323 = vld [vmem:[%s0] sm:$0xff]
    %v324 = vld [vmem:[%s0 + $0x8] sm:$0xff]
    %v325 = vld [vmem:[%s0 + $0x10] sm:$0xff]
    %v326 = vld [vmem:[%s0 + $0x18] sm:$0xff]
    %v327 = vld [vmem:[%s0 + $0x20] sm:$0xff]
    %v328 = vld [vmem:[%s0 + $0x28] sm:$0xff]
    %v329 = vld [vmem:[%s0 + $0x30] sm:$0xff]
    %v330 = vld [vmem:[%s0 + $0x38] sm:$0xff]
    %v331 = vld [vmem:[%s0 + $0x40] sm:$0xff]
    %v332 = vld [vmem:[%s0 + $0x48] sm:$0xff]
    %v333 = vld [vmem:[%s0 + $0x50] sm:$0xff]
    %v334 = vld [vmem:[%s0 + $0x58] sm:$0xff]
    %v335 = vld [vmem:[%s0 + $0x60] sm:$0xff]
    %v336 = vld [vmem:[%s0 + $0x68] sm:$0xff]
    %v337 = vld [vmem:[%s0 + $0x70] sm:$0xff]
    %v338 = vld [vmem:[%s0 + $0x78] sm:$0xff]
    %v339 = vld [vmem:[%s0 + $0x80] sm:$0xff]
    %v340 = vld [vmem:[%s0 + $0x88] sm:$0xff]
    %v341 = vlaneseq
    %v342 = vand.u32 %v341, 127
    %343 = vset.pattern.permute.xlu0 0
    %344 = vperm.xlu0 %343, %v323
    %v345 = vpop.permute.xlu0 %344
    %346 = vset.pattern.permute.xlu0 0
    %347 = vperm.xlu0 %346, %v324
    %v348 = vpop.permute.xlu0 %347
    %349 = vset.pattern.permute.xlu0 0
    %350 = vperm.xlu0 %349, %v325
    %v351 = vpop.permute.xlu0 %350
    %352 = vset.pattern.permute.xlu0 0
    %353 = vperm.xlu0 %352, %v326
    %v354 = vpop.permute.xlu0 %353
    %355 = vset.pattern.permute.xlu0 0
    %356 = vperm.xlu0 %355, %v327
    %v357 = vpop.permute.xlu0 %356
    %358 = vset.pattern.permute.xlu0 0
    %359 = vperm.xlu0 %358, %v328
    %v360 = vpop.permute.xlu0 %359
    %361 = vset.pattern.permute.xlu0 0
    %362 = vperm.xlu0 %361, %v329
    %v363 = vpop.permute.xlu0 %362
    %364 = vset.pattern.permute.xlu0 0
    %365 = vperm.xlu0 %364, %v330
    %v366 = vpop.permute.xlu0 %365
    %367 = vset.pattern.permute.xlu0 0
    %368 = vperm.xlu0 %367, %v331
    %v369 = vpop.permute.xlu0 %368
    %370 = vset.pattern.permute.xlu0 0
    %371 = vperm.xlu0 %370, %v332
    %v372 = vpop.permute.xlu0 %371
    %373 = vset.pattern.permute.xlu0 0
    %374 = vperm.xlu0 %373, %v333
    %v375 = vpop.permute.xlu0 %374
    %376 = vset.pattern.permute.xlu0 0
    %377 = vperm.xlu0 %376, %v334
    %v378 = vpop.permute.xlu0 %377
    %379 = vset.pattern.permute.xlu0 0
    %380 = vperm.xlu0 %379, %v335
    %v381 = vpop.permute.xlu0 %380
    %382 = vset.pattern.permute.xlu0 0
    %383 = vperm.xlu0 %382, %v336
    %v384 = vpop.permute.xlu0 %383
    %385 = vset.pattern.permute.xlu0 0
    %386 = vperm.xlu0 %385, %v337
    %v387 = vpop.permute.xlu0 %386
    %388 = vset.pattern.permute.xlu0 0
    %389 = vperm.xlu0 %388, %v338
    %v390 = vpop.permute.xlu0 %389
    %391 = vset.pattern.permute.xlu0 0
    %392 = vperm.xlu0 %391, %v339
    %v393 = vpop.permute.xlu0 %392
    %394 = vset.pattern.permute.xlu0 0
    %395 = vperm.xlu0 %394, %v340
    %v396 = vpop.permute.xlu0 %395
    %vm397 = vcmp.eq.s32.totalorder %v345, %v342
    %vm398 = vcmp.eq.s32.totalorder %v348, %v342
    %vm399 = vcmp.eq.s32.totalorder %v351, %v342
    %vm400 = vcmp.eq.s32.totalorder %v354, %v342
    %vm401 = vcmp.eq.s32.totalorder %v357, %v342
    %vm402 = vcmp.eq.s32.totalorder %v360, %v342
    %vm403 = vcmp.eq.s32.totalorder %v363, %v342
    %vm404 = vcmp.eq.s32.totalorder %v366, %v342
    %vm405 = vcmp.eq.s32.totalorder %v369, %v342
    %vm406 = vcmp.eq.s32.totalorder %v372, %v342
    %vm407 = vcmp.eq.s32.totalorder %v375, %v342
    %vm408 = vcmp.eq.s32.totalorder %v378, %v342
    %vm409 = vcmp.eq.s32.totalorder %v381, %v342
    %vm410 = vcmp.eq.s32.totalorder %v384, %v342
    %vm411 = vcmp.eq.s32.totalorder %v387, %v342
    %vm412 = vcmp.eq.s32.totalorder %v390, %v342
    %vm413 = vcmp.eq.s32.totalorder %v393, %v342
    %vm414 = vcmp.eq.s32.totalorder %v396, %v342
    %v415 = vsel %vm397, 1, 0
    %v416 = vsel %vm398, 1, 0
    %v417 = vsel %vm399, 1, 0
    %v418 = vsel %vm400, 1, 0
    %v419 = vsel %vm401, 1, 0
    %v420 = vsel %vm402, 1, 0
    %v421 = vsel %vm403, 1, 0
    %v422 = vsel %vm404, 1, 0
    %v423 = vsel %vm405, 1, 0
    %v424 = vsel %vm406, 1, 0
    %v425 = vsel %vm407, 1, 0
    %v426 = vsel %vm408, 1, 0
    %v427 = vsel %vm409, 1, 0
    %v428 = vsel %vm410, 1, 0
    %v429 = vsel %vm411, 1, 0
    %v430 = vsel %vm412, 1, 0
    %v431 = vsel %vm413, 1, 0
    %v432 = vsel %vm414, 1, 0
    %v433 = vcvt.s32.f32 %v415
    %v434 = vcvt.s32.f32 %v416
    %v435 = vcvt.s32.f32 %v417
    %v436 = vcvt.s32.f32 %v418
    %v437 = vcvt.s32.f32 %v419
    %v438 = vcvt.s32.f32 %v420
    %v439 = vcvt.s32.f32 %v421
    %v440 = vcvt.s32.f32 %v422
    %v441 = vcvt.s32.f32 %v423
    %v442 = vcvt.s32.f32 %v424
    %v443 = vcvt.s32.f32 %v425
    %v444 = vcvt.s32.f32 %v426
    %v445 = vcvt.s32.f32 %v427
    %v446 = vcvt.s32.f32 %v428
    %v447 = vcvt.s32.f32 %v429
    %v448 = vcvt.s32.f32 %v430
    %v449 = vcvt.s32.f32 %v431
    %v450 = vcvt.s32.f32 %v432
    %v451 = vld [vmem:[%s2] sm:$0xff]
    %v452 = vld [vmem:[%s2 + $0x8] sm:$0xff]
    %v453 = vld [vmem:[%s2 + $0x10] sm:$0xff]
    %v454 = vld [vmem:[%s2 + $0x18] sm:$0xff]
    %v455 = vld [vmem:[%s2 + $0x20] sm:$0xff]
    %v456 = vld [vmem:[%s2 + $0x28] sm:$0xff]
    %v457 = vld [vmem:[%s2 + $0x30] sm:$0xff]
    %v458 = vld [vmem:[%s2 + $0x38] sm:$0xff]
    %v459 = vld [vmem:[%s2 + $0x40] sm:$0xff]
    %v460 = vld [vmem:[%s2 + $0x48] sm:$0xff]
    %v461 = vld [vmem:[%s2 + $0x50] sm:$0xff]
    %v462 = vld [vmem:[%s2 + $0x58] sm:$0xff]
    %v463 = vld [vmem:[%s2 + $0x60] sm:$0xff]
    %v464 = vld [vmem:[%s2 + $0x68] sm:$0xff]
    %v465 = vld [vmem:[%s2 + $0x70] sm:$0xff]
    %v466 = vld [vmem:[%s2 + $0x78] sm:$0xff]
    %v467 = vld [vmem:[%s2 + $0x80] sm:$0xff]
    %v468 = vld [vmem:[%s2 + $0x88] sm:$0xff]
    %v469 = vld [vmem:[%s2 + $0x90] sm:$0xff]
    %v470 = vld [vmem:[%s2 + $0x98] sm:$0xff]
    %vm471 = vcmask 130048
    %v473 = vsel %vm471, %v433, 0
    %v476 = vsel %vm471, %v434, 0
    %v479 = vsel %vm471, %v435, 0
    %v482 = vsel %vm471, %v436, 0
    %v485 = vsel %vm471, %v437, 0
    %v488 = vsel %vm471, %v438, 0
    %v491 = vsel %vm471, %v439, 0
    %v494 = vsel %vm471, %v440, 0
    %v497 = vsel %vm471, %v441, 0
    %v500 = vsel %vm471, %v442, 0
    %v503 = vsel %vm471, %v443, 0
    %v506 = vsel %vm471, %v444, 0
    %v509 = vsel %vm471, %v445, 0
    %v512 = vsel %vm471, %v446, 0
    %v515 = vsel %vm471, %v447, 0
    %v518 = vsel %vm471, %v448, 0
    %v521 = vsel %vm471, %v449, 0
    %v524 = vsel %vm471, %v450, 0
    %526 = vmatprep.subr.mxu0 0.0
    %527 = vmatpush1.msra.mxu0 0.0
    %528 = vmatprep.subr.mxu0 0.0
    %529 = vmatpush1.msra.mxu0 0.0
    %530 = vmatprep.subr.mxu0 0.0
    %531 = vmatpush1.msra.mxu0 0.0
    %532 = vmatprep.subr.mxu0 0.0
    %533 = vmatpush1.msra.mxu0 0.0
    %534 = vmatprep.subr.mxu0 0.0
    %535 = vmatpush1.msra.mxu0 0.0
    %536 = vmatprep.subr.mxu0 0.0
    %537 = vmatpush1.msra.mxu0 0.0
    %538 = vmatprep.subr.mxu0 0.0
    %539 = vmatpush1.msra.mxu0 0.0
    %540 = vmatprep.subr.mxu0 0.0
    %541 = vmatpush1.msra.mxu0 0.0
    %542 = vmatprep.subr.mxu0 0.0
    %543 = vmatpush1.msra.mxu0 0.0
    %544 = vmatprep.subr.mxu0 0.0
    %545 = vmatpush1.msra.mxu0 0.0
    %546 = vmatprep.subr.mxu0 0.0
    %547 = vmatpush1.msra.mxu0 0.0
    %548 = vmatprep.subr.mxu0 0.0
    %549 = vmatpush1.msra.mxu0 0.0
    %550 = vmatprep.subr.mxu0 0.0
    %551 = vmatpush1.msra.mxu0 0.0
    %552 = vmatprep.subr.mxu0 0.0
    %553 = vmatpush1.msra.mxu0 0.0
    %554 = vmatprep.subr.mxu0 0.0
    %555 = vmatpush1.msra.mxu0 %v452
    %556 = vmatprep.subr.mxu0 0.0
    %557 = vmatpush1.msra.mxu0 %v451
    %558 = vmatprep.subr.mxu0 0.0
    %559 = vmatpush2.msra.mxu0 0.0
    %560 = vmatprep.subr.mxu0 0.0
    %561 = vmatpush2.msra.mxu0 0.0
    %562 = vmatprep.subr.mxu0 0.0
    %563 = vmatpush2.msra.mxu0 0.0
    %564 = vmatprep.subr.mxu0 0.0
    %565 = vmatpush2.msra.mxu0 0.0
    %566 = vmatprep.subr.mxu0 0.0
    %567 = vmatpush2.msra.mxu0 0.0
    %568 = vmatprep.subr.mxu0 0.0
    %569 = vmatpush2.msra.mxu0 0.0
    %570 = vmatprep.subr.mxu0 0.0
    %571 = vmatpush2.msra.mxu0 0.0
    %572 = vmatprep.subr.mxu0 0.0
    %573 = vmatpush2.msra.mxu0 0.0
    %574 = vmatprep.subr.mxu0 0.0
    %575 = vmatpush2.msra.mxu0 0.0
    %576 = vmatprep.subr.mxu0 0.0
    %577 = vmatpush2.msra.mxu0 0.0
    %578 = vmatprep.subr.mxu0 0.0
    %579 = vmatpush2.msra.mxu0 0.0
    %580 = vmatprep.subr.mxu0 0.0
    %581 = vmatpush2.msra.mxu0 0.0
    %582 = vmatprep.subr.mxu0 0.0
    %583 = vmatpush2.msra.mxu0 0.0
    %584 = vmatprep.subr.mxu0 0.0
    %585 = vmatpush2.msra.mxu0 0.0
    %586 = vmatprep.subr.mxu0 0.0
    %587 = vmatpush2.msra.mxu0 0.0
    %588 = vmatprep.subr.mxu0 0.0
    %589 = vmatpush2.msra.mxu0 0.0
    %590 = vmatprep.mubr.f32.mxu0 0.0
    %591 = vmatmul.mubr.f32.gmra.mxu0 %v473
    %v592 = vpop.f32.mrf.mxu0
    %v593 = vadd.f32 %v453, %v592
    %v594 = vpop.f32.mrf.mxu0
    %595 = vmatprep.mubr.f32.mxu0 0.0
    %596 = vmatmul.mubr.f32.gmra.mxu0 %v476
    %v597 = vpop.f32.mrf.mxu0
    %v598 = vadd.f32 %v454, %v597
    %v599 = vpop.f32.mrf.mxu0
    %600 = vmatprep.mubr.f32.mxu0 0.0
    %601 = vmatmul.mubr.f32.gmra.mxu0 %v479
    %v602 = vpop.f32.mrf.mxu0
    %v603 = vadd.f32 %v455, %v602
    %v604 = vpop.f32.mrf.mxu0
    %605 = vmatprep.mubr.f32.mxu0 0.0
    %606 = vmatmul.mubr.f32.gmra.mxu0 %v482
    %v607 = vpop.f32.mrf.mxu0
    %v608 = vadd.f32 %v456, %v607
    %v609 = vpop.f32.mrf.mxu0
    %610 = vmatprep.mubr.f32.mxu0 0.0
    %611 = vmatmul.mubr.f32.gmra.mxu0 %v485
    %v612 = vpop.f32.mrf.mxu0
    %v613 = vadd.f32 %v457, %v612
    %v614 = vpop.f32.mrf.mxu0
    %615 = vmatprep.mubr.f32.mxu0 0.0
    %616 = vmatmul.mubr.f32.gmra.mxu0 %v488
    %v617 = vpop.f32.mrf.mxu0
    %v618 = vadd.f32 %v458, %v617
    %v619 = vpop.f32.mrf.mxu0
    %620 = vmatprep.mubr.f32.mxu0 0.0
    %621 = vmatmul.mubr.f32.gmra.mxu0 %v491
    %v622 = vpop.f32.mrf.mxu0
    %v623 = vadd.f32 %v459, %v622
    %v624 = vpop.f32.mrf.mxu0
    %625 = vmatprep.mubr.f32.mxu0 0.0
    %626 = vmatmul.mubr.f32.gmra.mxu0 %v494
    %v627 = vpop.f32.mrf.mxu0
    %v628 = vadd.f32 %v460, %v627
    %v629 = vpop.f32.mrf.mxu0
    %630 = vmatprep.mubr.f32.mxu0 0.0
    %631 = vmatmul.mubr.f32.gmra.mxu0 %v497
    %v632 = vpop.f32.mrf.mxu0
    %v633 = vadd.f32 %v461, %v632
    %v634 = vpop.f32.mrf.mxu0
    %635 = vmatprep.mubr.f32.mxu0 0.0
    %636 = vmatmul.mubr.f32.gmra.mxu0 %v500
    %v637 = vpop.f32.mrf.mxu0
    %v638 = vadd.f32 %v462, %v637
    %v639 = vpop.f32.mrf.mxu0
    %640 = vmatprep.mubr.f32.mxu0 0.0
    %641 = vmatmul.mubr.f32.gmra.mxu0 %v503
    %v642 = vpop.f32.mrf.mxu0
    %v643 = vadd.f32 %v463, %v642
    %v644 = vpop.f32.mrf.mxu0
    %645 = vmatprep.mubr.f32.mxu0 0.0
    %646 = vmatmul.mubr.f32.gmra.mxu0 %v506
    %v647 = vpop.f32.mrf.mxu0
    %v648 = vadd.f32 %v464, %v647
    %v649 = vpop.f32.mrf.mxu0
    %650 = vmatprep.mubr.f32.mxu0 0.0
    %651 = vmatmul.mubr.f32.gmra.mxu0 %v509
    %v652 = vpop.f32.mrf.mxu0
    %v653 = vadd.f32 %v465, %v652
    %v654 = vpop.f32.mrf.mxu0
    %655 = vmatprep.mubr.f32.mxu0 0.0
    %656 = vmatmul.mubr.f32.gmra.mxu0 %v512
    %v657 = vpop.f32.mrf.mxu0
    %v658 = vadd.f32 %v466, %v657
    %v659 = vpop.f32.mrf.mxu0
    %660 = vmatprep.mubr.f32.mxu0 0.0
    %661 = vmatmul.mubr.f32.gmra.mxu0 %v515
    %v662 = vpop.f32.mrf.mxu0
    %v663 = vadd.f32 %v467, %v662
    %v664 = vpop.f32.mrf.mxu0
    %665 = vmatprep.mubr.f32.mxu0 0.0
    %666 = vmatmul.mubr.f32.gmra.mxu0 %v518
    %v667 = vpop.f32.mrf.mxu0
    %v668 = vadd.f32 %v468, %v667
    %v669 = vpop.f32.mrf.mxu0
    %670 = vmatprep.mubr.f32.mxu0 0.0
    %671 = vmatmul.mubr.f32.gmra.mxu0 %v521
    %v672 = vpop.f32.mrf.mxu0
    %v673 = vadd.f32 %v469, %v672
    %v674 = vpop.f32.mrf.mxu0
    %675 = vmatprep.mubr.f32.mxu0 0.0
    %676 = vmatmul.mubr.f32.gmra.mxu0 %v524
    %v677 = vpop.f32.mrf.mxu0
    %v678 = vadd.f32 %v470, %v677
    %v679 = vpop.f32.mrf.mxu0
    %680 = vdwg.mxu0
    %v681 = vld [vmem:[%s2 + $0xa0] sm:$0xff]
    %v682 = vld [vmem:[%s2 + $0xa8] sm:$0xff]
    %v683 = vld [vmem:[%s2 + $0xb0] sm:$0x1]
    %v684 = vld [vmem:[%s1] sm:$0x3]
    %v685 = vlaneseq
    %v686 = vshrl.u32 %v685, 7
    %v687 = vsub.s32 0, %v686
    %v688 = vrot.slane %v683, %v687
    %v690 = vsel %vm471, %v684, 0
    %692 = vmatprep.subr.mxu0 0.0
    %693 = vmatpush1.msra.mxu0 0.0
    %694 = vmatprep.subr.mxu0 0.0
    %695 = vmatpush1.msra.mxu0 0.0
    %696 = vmatprep.subr.mxu0 0.0
    %697 = vmatpush1.msra.mxu0 0.0
    %698 = vmatprep.subr.mxu0 0.0
    %699 = vmatpush1.msra.mxu0 0.0
    %700 = vmatprep.subr.mxu0 0.0
    %701 = vmatpush1.msra.mxu0 0.0
    %702 = vmatprep.subr.mxu0 0.0
    %703 = vmatpush1.msra.mxu0 0.0
    %704 = vmatprep.subr.mxu0 0.0
    %705 = vmatpush1.msra.mxu0 0.0
    %706 = vmatprep.subr.mxu0 0.0
    %707 = vmatpush1.msra.mxu0 0.0
    %708 = vmatprep.subr.mxu0 0.0
    %709 = vmatpush1.msra.mxu0 0.0
    %710 = vmatprep.subr.mxu0 0.0
    %711 = vmatpush1.msra.mxu0 0.0
    %712 = vmatprep.subr.mxu0 0.0
    %713 = vmatpush1.msra.mxu0 0.0
    %714 = vmatprep.subr.mxu0 0.0
    %715 = vmatpush1.msra.mxu0 0.0
    %716 = vmatprep.subr.mxu0 0.0
    %717 = vmatpush1.msra.mxu0 0.0
    %718 = vmatprep.subr.mxu0 0.0
    %719 = vmatpush1.msra.mxu0 0.0
    %720 = vmatprep.subr.mxu0 0.0
    %721 = vmatpush1.msra.mxu0 %v682
    %722 = vmatprep.subr.mxu0 0.0
    %723 = vmatpush1.msra.mxu0 %v681
    %724 = vmatprep.subr.mxu0 0.0
    %725 = vmatpush2.msra.mxu0 0.0
    %726 = vmatprep.subr.mxu0 0.0
    %727 = vmatpush2.msra.mxu0 0.0
    %728 = vmatprep.subr.mxu0 0.0
    %729 = vmatpush2.msra.mxu0 0.0
    %730 = vmatprep.subr.mxu0 0.0
    %731 = vmatpush2.msra.mxu0 0.0
    %732 = vmatprep.subr.mxu0 0.0
    %733 = vmatpush2.msra.mxu0 0.0
    %734 = vmatprep.subr.mxu0 0.0
    %735 = vmatpush2.msra.mxu0 0.0
    %736 = vmatprep.subr.mxu0 0.0
    %737 = vmatpush2.msra.mxu0 0.0
    %738 = vmatprep.subr.mxu0 0.0
    %739 = vmatpush2.msra.mxu0 0.0
    %740 = vmatprep.subr.mxu0 0.0
    %741 = vmatpush2.msra.mxu0 0.0
    %742 = vmatprep.subr.mxu0 0.0
    %743 = vmatpush2.msra.mxu0 0.0
    %744 = vmatprep.subr.mxu0 0.0
    %745 = vmatpush2.msra.mxu0 0.0
    %746 = vmatprep.subr.mxu0 0.0
    %747 = vmatpush2.msra.mxu0 0.0
    %748 = vmatprep.subr.mxu0 0.0
    %749 = vmatpush2.msra.mxu0 0.0
    %750 = vmatprep.subr.mxu0 0.0
    %751 = vmatpush2.msra.mxu0 0.0
    %752 = vmatprep.subr.mxu0 0.0
    %753 = vmatpush2.msra.mxu0 0.0
    %754 = vmatprep.subr.mxu0 0.0
    %755 = vmatpush2.msra.mxu0 0.0
    %756 = vmatprep.mubr.f32.mxu0 0.0
    %757 = vmatmul.mubr.f32.gmra.mxu0 %v690
    %v758 = vpop.f32.mrf.mxu0
    %v759 = vadd.f32 %v688, %v758
    %v760 = vpop.f32.mrf.mxu0
    %761 = vdwg.mxu0
    %v762 = vlaneseq
    %v763 = vshrl.u32 %v762, 7
    %v764 = vadd.s32 %v763, 8
    %v765 = vadd.s32 %v763, 16
    %v766 = vadd.s32 %v763, 24
    %v767 = vadd.s32 %v763, 32
    %v768 = vadd.s32 %v763, 40
    %v769 = vadd.s32 %v763, 48
    %v770 = vadd.s32 %v763, 56
    %v771 = vadd.s32 %v763, 64
    %v772 = vadd.s32 %v763, 72
    %v773 = vadd.s32 %v763, 80
    %v774 = vadd.s32 %v763, 88
    %v775 = vadd.s32 %v763, 96
    %v776 = vadd.s32 %v763, 104
    %v777 = vadd.s32 %v763, 112
    %v778 = vadd.s32 %v763, 120
    %v779 = vadd.s32 %v763, 128
    %v780 = vadd.s32 %v763, 136
    %v781 = vmul.u32 %v342, 72
    %vm782 = vcmp.eq.s32.totalorder %v763, %v781
    %vm783 = vcmp.eq.s32.totalorder %v764, %v781
    %vm784 = vcmp.eq.s32.totalorder %v765, %v781
    %vm785 = vcmp.eq.s32.totalorder %v766, %v781
    %vm786 = vcmp.eq.s32.totalorder %v767, %v781
    %vm787 = vcmp.eq.s32.totalorder %v768, %v781
    %vm788 = vcmp.eq.s32.totalorder %v769, %v781
    %vm789 = vcmp.eq.s32.totalorder %v770, %v781
    %vm790 = vcmp.eq.s32.totalorder %v771, %v781
    %vm791 = vcmp.eq.s32.totalorder %v772, %v781
    %vm792 = vcmp.eq.s32.totalorder %v773, %v781
    %vm793 = vcmp.eq.s32.totalorder %v774, %v781
    %vm794 = vcmp.eq.s32.totalorder %v775, %v781
    %vm795 = vcmp.eq.s32.totalorder %v776, %v781
    %vm796 = vcmp.eq.s32.totalorder %v777, %v781
    %vm797 = vcmp.eq.s32.totalorder %v778, %v781
    %vm798 = vcmp.eq.s32.totalorder %v779, %v781
    %vm799 = vcmp.eq.s32.totalorder %v780, %v781
    %v800 = vsel %vm782, 1, 0
    %v801 = vsel %vm783, 1, 0
    %v802 = vsel %vm784, 1, 0
    %v803 = vsel %vm785, 1, 0
    %v804 = vsel %vm786, 1, 0
    %v805 = vsel %vm787, 1, 0
    %v806 = vsel %vm788, 1, 0
    %v807 = vsel %vm789, 1, 0
    %v808 = vsel %vm790, 1, 0
    %v809 = vsel %vm791, 1, 0
    %v810 = vsel %vm792, 1, 0
    %v811 = vsel %vm793, 1, 0
    %v812 = vsel %vm794, 1, 0
    %v813 = vsel %vm795, 1, 0
    %v814 = vsel %vm796, 1, 0
    %v815 = vsel %vm797, 1, 0
    %v816 = vsel %vm798, 1, 0
    %v817 = vsel %vm799, 1, 0
    %v818 = vcvt.s32.f32 %v800
    %v819 = vcvt.s32.f32 %v801
    %v820 = vcvt.s32.f32 %v802
    %v821 = vcvt.s32.f32 %v803
    %v822 = vcvt.s32.f32 %v804
    %v823 = vcvt.s32.f32 %v805
    %v824 = vcvt.s32.f32 %v806
    %v825 = vcvt.s32.f32 %v807
    %v826 = vcvt.s32.f32 %v808
    %v827 = vcvt.s32.f32 %v809
    %v828 = vcvt.s32.f32 %v810
    %v829 = vcvt.s32.f32 %v811
    %v830 = vcvt.s32.f32 %v812
    %v831 = vcvt.s32.f32 %v813
    %v832 = vcvt.s32.f32 %v814
    %v833 = vcvt.s32.f32 %v815
    %v834 = vcvt.s32.f32 %v816
    %v835 = vcvt.s32.f32 %v817
    %vm836 = vcmask 15360
    %v838 = vsel %vm836, %v818, 0
    %v841 = vsel %vm836, %v819, 0
    %v844 = vsel %vm836, %v820, 0
    %v847 = vsel %vm836, %v821, 0
    %v850 = vsel %vm836, %v822, 0
    %v853 = vsel %vm836, %v823, 0
    %v856 = vsel %vm836, %v824, 0
    %v859 = vsel %vm836, %v825, 0
    %v862 = vsel %vm836, %v826, 0
    %v865 = vsel %vm836, %v827, 0
    %v868 = vsel %vm836, %v828, 0
    %v871 = vsel %vm836, %v829, 0
    %v874 = vsel %vm836, %v830, 0
    %v877 = vsel %vm836, %v831, 0
    %v880 = vsel %vm836, %v832, 0
    %v883 = vsel %vm836, %v833, 0
    %v886 = vsel %vm836, %v834, 0
    %v889 = vsel %vm836, %v835, 0
    %vm891 = vcmask 1041408
    %v893 = vsel %vm891, %v759, 0
    %895 = vmatprep.subr.mxu0 0.0
    %896 = vmatpush1.msra.mxu0 0.0
    %897 = vmatprep.subr.mxu0 0.0
    %898 = vmatpush1.msra.mxu0 0.0
    %899 = vmatprep.subr.mxu0 0.0
    %900 = vmatpush1.msra.mxu0 0.0
    %901 = vmatprep.subr.mxu0 0.0
    %902 = vmatpush1.msra.mxu0 0.0
    %903 = vmatprep.subr.mxu0 0.0
    %904 = vmatpush1.msra.mxu0 0.0
    %905 = vmatprep.subr.mxu0 0.0
    %906 = vmatpush1.msra.mxu0 0.0
    %907 = vmatprep.subr.mxu0 0.0
    %908 = vmatpush1.msra.mxu0 0.0
    %909 = vmatprep.subr.mxu0 0.0
    %910 = vmatpush1.msra.mxu0 0.0
    %911 = vmatprep.subr.mxu0 0.0
    %912 = vmatpush1.msra.mxu0 0.0
    %913 = vmatprep.subr.mxu0 0.0
    %914 = vmatpush1.msra.mxu0 0.0
    %915 = vmatprep.subr.mxu0 0.0
    %916 = vmatpush1.msra.mxu0 0.0
    %917 = vmatprep.subr.mxu0 0.0
    %918 = vmatpush1.msra.mxu0 0.0
    %919 = vmatprep.subr.mxu0 0.0
    %920 = vmatpush1.msra.mxu0 0.0
    %921 = vmatprep.subr.mxu0 0.0
    %922 = vmatpush1.msra.mxu0 0.0
    %923 = vmatprep.subr.mxu0 0.0
    %924 = vmatpush1.msra.mxu0 0.0
    %925 = vmatprep.subr.mxu0 0.0
    %926 = vmatpush1.msra.mxu0 %v893
    %927 = vmatprep.subr.mxu0 0.0
    %928 = vmatpush2.msra.mxu0 0.0
    %929 = vmatprep.subr.mxu0 0.0
    %930 = vmatpush2.msra.mxu0 0.0
    %931 = vmatprep.subr.mxu0 0.0
    %932 = vmatpush2.msra.mxu0 0.0
    %933 = vmatprep.subr.mxu0 0.0
    %934 = vmatpush2.msra.mxu0 0.0
    %935 = vmatprep.subr.mxu0 0.0
    %936 = vmatpush2.msra.mxu0 0.0
    %937 = vmatprep.subr.mxu0 0.0
    %938 = vmatpush2.msra.mxu0 0.0
    %939 = vmatprep.subr.mxu0 0.0
    %940 = vmatpush2.msra.mxu0 0.0
    %941 = vmatprep.subr.mxu0 0.0
    %942 = vmatpush2.msra.mxu0 0.0
    %943 = vmatprep.subr.mxu0 0.0
    %944 = vmatpush2.msra.mxu0 0.0
    %945 = vmatprep.subr.mxu0 0.0
    %946 = vmatpush2.msra.mxu0 0.0
    %947 = vmatprep.subr.mxu0 0.0
    %948 = vmatpush2.msra.mxu0 0.0
    %949 = vmatprep.subr.mxu0 0.0
    %950 = vmatpush2.msra.mxu0 0.0
    %951 = vmatprep.subr.mxu0 0.0
    %952 = vmatpush2.msra.mxu0 0.0
    %953 = vmatprep.subr.mxu0 0.0
    %954 = vmatpush2.msra.mxu0 0.0
    %955 = vmatprep.subr.mxu0 0.0
    %956 = vmatpush2.msra.mxu0 0.0
    %957 = vmatprep.subr.mxu0 0.0
    %958 = vmatpush2.msra.mxu0 0.0
    %959 = vmatprep.mubr.f32.mxu0 0.0
    %960 = vmatmul.mubr.f32.gmra.mxu0 %v838
    %v961 = vpop.f32.mrf.mxu0
    %v962 = vadd.f32 0.0, %v961
    %v963 = vpop.f32.mrf.mxu0
    %964 = vmatprep.mubr.f32.mxu0 0.0
    %965 = vmatmul.mubr.f32.gmra.mxu0 %v841
    %v966 = vpop.f32.mrf.mxu0
    %v967 = vadd.f32 0.0, %v966
    %v968 = vpop.f32.mrf.mxu0
    %969 = vmatprep.mubr.f32.mxu0 0.0
    %970 = vmatmul.mubr.f32.gmra.mxu0 %v844
    %v971 = vpop.f32.mrf.mxu0
    %v972 = vadd.f32 0.0, %v971
    %v973 = vpop.f32.mrf.mxu0
    %974 = vmatprep.mubr.f32.mxu0 0.0
    %975 = vmatmul.mubr.f32.gmra.mxu0 %v847
    %v976 = vpop.f32.mrf.mxu0
    %v977 = vadd.f32 0.0, %v976
    %v978 = vpop.f32.mrf.mxu0
    %979 = vmatprep.mubr.f32.mxu0 0.0
    %980 = vmatmul.mubr.f32.gmra.mxu0 %v850
    %v981 = vpop.f32.mrf.mxu0
    %v982 = vadd.f32 0.0, %v981
    %v983 = vpop.f32.mrf.mxu0
    %984 = vmatprep.mubr.f32.mxu0 0.0
    %985 = vmatmul.mubr.f32.gmra.mxu0 %v853
    %v986 = vpop.f32.mrf.mxu0
    %v987 = vadd.f32 0.0, %v986
    %v988 = vpop.f32.mrf.mxu0
    %989 = vmatprep.mubr.f32.mxu0 0.0
    %990 = vmatmul.mubr.f32.gmra.mxu0 %v856
    %v991 = vpop.f32.mrf.mxu0
    %v992 = vadd.f32 0.0, %v991
    %v993 = vpop.f32.mrf.mxu0
    %994 = vmatprep.mubr.f32.mxu0 0.0
    %995 = vmatmul.mubr.f32.gmra.mxu0 %v859
    %v996 = vpop.f32.mrf.mxu0
    %v997 = vadd.f32 0.0, %v996
    %v998 = vpop.f32.mrf.mxu0
    %999 = vmatprep.mubr.f32.mxu0 0.0
    %1000 = vmatmul.mubr.f32.gmra.mxu0 %v862
    %v1001 = vpop.f32.mrf.mxu0
    %v1002 = vadd.f32 0.0, %v1001
    %v1003 = vpop.f32.mrf.mxu0
    %1004 = vmatprep.mubr.f32.mxu0 0.0
    %1005 = vmatmul.mubr.f32.gmra.mxu0 %v865
    %v1006 = vpop.f32.mrf.mxu0
    %v1007 = vadd.f32 0.0, %v1006
    %v1008 = vpop.f32.mrf.mxu0
    %1009 = vmatprep.mubr.f32.mxu0 0.0
    %1010 = vmatmul.mubr.f32.gmra.mxu0 %v868
    %v1011 = vpop.f32.mrf.mxu0
    %v1012 = vadd.f32 0.0, %v1011
    %v1013 = vpop.f32.mrf.mxu0
    %1014 = vmatprep.mubr.f32.mxu0 0.0
    %1015 = vmatmul.mubr.f32.gmra.mxu0 %v871
    %v1016 = vpop.f32.mrf.mxu0
    %v1017 = vadd.f32 0.0, %v1016
    %v1018 = vpop.f32.mrf.mxu0
    %1019 = vmatprep.mubr.f32.mxu0 0.0
    %1020 = vmatmul.mubr.f32.gmra.mxu0 %v874
    %v1021 = vpop.f32.mrf.mxu0
    %v1022 = vadd.f32 0.0, %v1021
    %v1023 = vpop.f32.mrf.mxu0
    %1024 = vmatprep.mubr.f32.mxu0 0.0
    %1025 = vmatmul.mubr.f32.gmra.mxu0 %v877
    %v1026 = vpop.f32.mrf.mxu0
    %v1027 = vadd.f32 0.0, %v1026
    %v1028 = vpop.f32.mrf.mxu0
    %1029 = vmatprep.mubr.f32.mxu0 0.0
    %1030 = vmatmul.mubr.f32.gmra.mxu0 %v880
    %v1031 = vpop.f32.mrf.mxu0
    %v1032 = vadd.f32 0.0, %v1031
    %v1033 = vpop.f32.mrf.mxu0
    %1034 = vmatprep.mubr.f32.mxu0 0.0
    %1035 = vmatmul.mubr.f32.gmra.mxu0 %v883
    %v1036 = vpop.f32.mrf.mxu0
    %v1037 = vadd.f32 0.0, %v1036
    %v1038 = vpop.f32.mrf.mxu0
    %1039 = vmatprep.mubr.f32.mxu0 0.0
    %1040 = vmatmul.mubr.f32.gmra.mxu0 %v886
    %v1041 = vpop.f32.mrf.mxu0
    %v1042 = vadd.f32 0.0, %v1041
    %v1043 = vpop.f32.mrf.mxu0
    %1044 = vmatprep.mubr.f32.mxu0 0.0
    %1045 = vmatmul.mubr.f32.gmra.mxu0 %v889
    %v1046 = vpop.f32.mrf.mxu0
    %v1047 = vadd.f32 0.0, %v1046
    %v1048 = vpop.f32.mrf.mxu0
    %1049 = vdwg.mxu0
    %v1050 = vadd.f32 %v593, %v962
    %v1051 = vadd.f32 %v598, %v967
    %v1052 = vadd.f32 %v603, %v972
    %v1053 = vadd.f32 %v608, %v977
    %v1054 = vadd.f32 %v613, %v982
    %v1055 = vadd.f32 %v618, %v987
    %v1056 = vadd.f32 %v623, %v992
    %v1057 = vadd.f32 %v628, %v997
    %v1058 = vadd.f32 %v633, %v1002
    %v1059 = vadd.f32 %v638, %v1007
    %v1060 = vadd.f32 %v643, %v1012
    %v1061 = vadd.f32 %v648, %v1017
    %v1062 = vadd.f32 %v653, %v1022
    %v1063 = vadd.f32 %v658, %v1027
    %v1064 = vadd.f32 %v663, %v1032
    %v1065 = vadd.f32 %v668, %v1037
    %v1066 = vadd.f32 %v673, %v1042
    %v1067 = vadd.f32 %v678, %v1047
    %vm1068 = vcmp.lt.s32.totalorder %v342, 65
    %v1069 = vsel %vm1068, 0.0, -1e+30
    %v1070 = vld [vmem:[%s3] ss:$0 sm:$0xff]
    %v1071 = vld [vmem:[%s3 + $0x1] ss:$0 sm:$0xff]
    %s1072 = scalar_lea.vmem %s3, 2
    %v1073 = vld [vmem:[%s1072] ss:$8 sm:$0x3]
    %v1074 = vld [vmem:[%s3 + $0x3] ss:$0 sm:$0xff]
    %v1075 = vld [vmem:[%s3 + $0x4] ss:$0 sm:$0xff]
    %v1076 = vld [vmem:[%s3 + $0x5] ss:$0 sm:$0xff]
    %s1077 = scalar_lea.vmem %s3, 6
    %v1078 = vld [vmem:[%s1077] ss:$8 sm:$0x3]
    %v1079 = vld [vmem:[%s3 + $0x7] ss:$0 sm:$0xff]
    %v1080 = vld [vmem:[%s4] sm:$0xf]
    %v1081 = vld [vmem:[%s4 + $0x4] sm:$0xf]
    %v1082 = vld [vmem:[%s4 + $0x8] sm:$0xf]
    %v1083 = vld [vmem:[%s4 + $0xc] sm:$0xf]
    %v1084 = vld [vmem:[%s4 + $0x10] sm:$0xf]
    %v1085 = vld [vmem:[%s4 + $0x14] sm:$0xf]
    %v1086 = vld [vmem:[%s4 + $0x18] sm:$0xf]
    %v1087 = vld [vmem:[%s4 + $0x1c] sm:$0xf]
    %v1088 = vld [vmem:[%s4 + $0x20] sm:$0xf]
    %v1089 = vld [vmem:[%s4 + $0x24] sm:$0xf]
    %v1090 = vld [vmem:[%s4 + $0x28] sm:$0xf]
    %v1091 = vld [vmem:[%s4 + $0x2c] sm:$0xf]
    %v1092 = vld [vmem:[%s4 + $0x30] sm:$0xf]
    %v1093 = vld [vmem:[%s4 + $0x34] sm:$0xf]
    %v1094 = vld [vmem:[%s4 + $0x38] sm:$0xf]
    %v1095 = vld [vmem:[%s4 + $0x3c] sm:$0xf]
    %v1096 = vld [vmem:[%s4 + $0x40] sm:$0xf]
    %v1097 = vld [vmem:[%s4 + $0x44] sm:$0xf]
    %v1098 = vld [vmem:[%s4 + $0x48] sm:$0xf]
    %v1099 = vld [vmem:[%s4 + $0x4c] sm:$0xf]
    %v1100 = vld [vmem:[%s4 + $0x50] sm:$0xf]
    %v1101 = vld [vmem:[%s4 + $0x54] sm:$0xf]
    %v1102 = vld [vmem:[%s4 + $0x58] sm:$0xf]
    %v1103 = vld [vmem:[%s4 + $0x5c] sm:$0xf]
    %v1104 = vld [vmem:[%s4 + $0x60] sm:$0xf]
    %v1105 = vld [vmem:[%s4 + $0x64] sm:$0xf]
    %v1106 = vld [vmem:[%s4 + $0x68] sm:$0xf]
    %v1107 = vld [vmem:[%s4 + $0x6c] sm:$0xf]
    %v1108 = vld [vmem:[%s4 + $0x70] sm:$0xf]
    %v1109 = vld [vmem:[%s4 + $0x74] sm:$0xf]
    %v1110 = vld [vmem:[%s4 + $0x78] sm:$0xf]
    %v1111 = vld [vmem:[%s4 + $0x7c] sm:$0xf]
    %v1112 = vld [vmem:[%s4 + $0x80] sm:$0xf]
    %v1113 = vld [vmem:[%s4 + $0x84] sm:$0xf]
    %v1114 = vld [vmem:[%s4 + $0x88] sm:$0xf]
    %v1115 = vld [vmem:[%s4 + $0x8c] sm:$0xf]
    %v1116 = vld [vmem:[%s4 + $0x90] sm:$0xf]
    %v1117 = vld [vmem:[%s4 + $0x94] sm:$0xf]
    %v1118 = vld [vmem:[%s4 + $0x98] sm:$0xf]
    %v1119 = vld [vmem:[%s4 + $0x9c] sm:$0xf]
    %v1120 = vld [vmem:[%s4 + $0xa0] sm:$0xf]
    %v1121 = vld [vmem:[%s4 + $0xa4] sm:$0xf]
    %v1122 = vld [vmem:[%s4 + $0xa8] sm:$0xf]
    %v1123 = vld [vmem:[%s4 + $0xac] sm:$0xf]
    %v1124 = vld [vmem:[%s4 + $0xb0] sm:$0xf]
    %v1125 = vld [vmem:[%s4 + $0xb4] sm:$0xf]
    %v1126 = vld [vmem:[%s4 + $0xb8] sm:$0xf]
    %v1127 = vld [vmem:[%s4 + $0xbc] sm:$0xf]
    %v1128 = vld [vmem:[%s4 + $0xc0] sm:$0xf]
    %v1129 = vld [vmem:[%s4 + $0xc4] sm:$0xf]
    %v1130 = vld [vmem:[%s4 + $0xc8] sm:$0xf]
    %v1131 = vld [vmem:[%s4 + $0xcc] sm:$0xf]
    %v1132 = vld [vmem:[%s4 + $0xd0] sm:$0xf]
    %v1133 = vld [vmem:[%s4 + $0xd4] sm:$0xf]
    %v1134 = vld [vmem:[%s4 + $0xd8] sm:$0xf]
    %v1135 = vld [vmem:[%s4 + $0xdc] sm:$0xf]
    %v1136 = vld [vmem:[%s4 + $0xe0] sm:$0xf]
    %v1137 = vld [vmem:[%s4 + $0xe4] sm:$0xf]
    %v1138 = vld [vmem:[%s4 + $0xe8] sm:$0xf]
    %v1139 = vld [vmem:[%s4 + $0xec] sm:$0xf]
    %v1140 = vld [vmem:[%s4 + $0xf0] sm:$0xf]
    %v1141 = vld [vmem:[%s4 + $0xf4] sm:$0xf]
    %v1142 = vld [vmem:[%s4 + $0xf8] sm:$0xf]
    %v1143 = vld [vmem:[%s4 + $0xfc] sm:$0xf]
    %v1144 = vld [vmem:[%s4 + $0x100] sm:$0xf]
    %v1145 = vld [vmem:[%s4 + $0x104] sm:$0xf]
    %v1146 = vld [vmem:[%s4 + $0x108] sm:$0xf]
    %v1147 = vld [vmem:[%s4 + $0x10c] sm:$0xf]
    %v1148 = vld [vmem:[%s4 + $0x110] sm:$0xf]
    %v1149 = vld [vmem:[%s4 + $0x114] sm:$0xf]
    %v1150 = vld [vmem:[%s4 + $0x118] sm:$0xf]
    %v1151 = vld [vmem:[%s4 + $0x11c] sm:$0xf]
    %v1152 = vld [vmem:[%s4 + $0x120] sm:$0xf]
    %v1153 = vld [vmem:[%s4 + $0x124] sm:$0xf]
    %v1154 = vld [vmem:[%s4 + $0x128] sm:$0xf]
    %v1155 = vld [vmem:[%s4 + $0x12c] sm:$0xf]
    %v1156 = vld [vmem:[%s4 + $0x130] sm:$0xf]
    %v1157 = vld [vmem:[%s4 + $0x134] sm:$0xf]
    %v1158 = vld [vmem:[%s4 + $0x138] sm:$0xf]
    %v1159 = vld [vmem:[%s4 + $0x13c] sm:$0xf]
    %v1160 = vld [vmem:[%s4 + $0x140] sm:$0xf]
    %v1161 = vld [vmem:[%s4 + $0x144] sm:$0xf]
    %v1162 = vld [vmem:[%s4 + $0x148] sm:$0xf]
    %v1163 = vld [vmem:[%s4 + $0x14c] sm:$0xf]
    %v1164 = vld [vmem:[%s4 + $0x150] sm:$0xf]
    %v1165 = vld [vmem:[%s4 + $0x154] sm:$0xf]
    %v1166 = vld [vmem:[%s4 + $0x158] sm:$0xf]
    %v1167 = vld [vmem:[%s4 + $0x15c] sm:$0xf]
    %v1168 = vld [vmem:[%s4 + $0x160] sm:$0xf]
    %v1169 = vld [vmem:[%s4 + $0x164] sm:$0xf]
    %v1170 = vld [vmem:[%s4 + $0x168] sm:$0xf]
    %v1171 = vld [vmem:[%s4 + $0x16c] sm:$0xf]
    %v1172 = vld [vmem:[%s4 + $0x170] sm:$0xf]
    %v1173 = vld [vmem:[%s4 + $0x174] sm:$0xf]
    %v1174 = vld [vmem:[%s4 + $0x178] sm:$0xf]
    %v1175 = vld [vmem:[%s4 + $0x17c] sm:$0xf]
    %vm1176 = vcmask 523264
    %v1177 = vsel %vm1176, %v1050, 0.0
    %1178 = vadd.xlane.f32.xlu0 %v1177
    %v1179 = vpop.xlane.xlu0 %1178
    %v1180 = vsel %vm1176, %v1051, 0.0
    %1181 = vadd.xlane.f32.xlu0 %v1180
    %v1182 = vpop.xlane.xlu0 %1181
    %v1183 = vsel %vm1176, %v1052, 0.0
    %1184 = vadd.xlane.f32.xlu0 %v1183
    %v1185 = vpop.xlane.xlu0 %1184
    %v1186 = vsel %vm1176, %v1053, 0.0
    %1187 = vadd.xlane.f32.xlu0 %v1186
    %v1188 = vpop.xlane.xlu0 %1187
    %v1189 = vsel %vm1176, %v1054, 0.0
    %1190 = vadd.xlane.f32.xlu0 %v1189
    %v1191 = vpop.xlane.xlu0 %1190
    %v1192 = vsel %vm1176, %v1055, 0.0
    %1193 = vadd.xlane.f32.xlu0 %v1192
    %v1194 = vpop.xlane.xlu0 %1193
    %v1195 = vsel %vm1176, %v1056, 0.0
    %1196 = vadd.xlane.f32.xlu0 %v1195
    %v1197 = vpop.xlane.xlu0 %1196
    %v1198 = vsel %vm1176, %v1057, 0.0
    %1199 = vadd.xlane.f32.xlu0 %v1198
    %v1200 = vpop.xlane.xlu0 %1199
    %v1201 = vsel %vm1176, %v1058, 0.0
    %1202 = vadd.xlane.f32.xlu0 %v1201
    %v1203 = vpop.xlane.xlu0 %1202
    %v1204 = vsel %vm1176, %v1059, 0.0
    %1205 = vadd.xlane.f32.xlu0 %v1204
    %v1206 = vpop.xlane.xlu0 %1205
    %v1207 = vsel %vm1176, %v1060, 0.0
    %1208 = vadd.xlane.f32.xlu0 %v1207
    %v1209 = vpop.xlane.xlu0 %1208
    %v1210 = vsel %vm1176, %v1061, 0.0
    %1211 = vadd.xlane.f32.xlu0 %v1210
    %v1212 = vpop.xlane.xlu0 %1211
    %v1213 = vsel %vm1176, %v1062, 0.0
    %1214 = vadd.xlane.f32.xlu0 %v1213
    %v1215 = vpop.xlane.xlu0 %1214
    %v1216 = vsel %vm1176, %v1063, 0.0
    %1217 = vadd.xlane.f32.xlu0 %v1216
    %v1218 = vpop.xlane.xlu0 %1217
    %v1219 = vsel %vm1176, %v1064, 0.0
    %1220 = vadd.xlane.f32.xlu0 %v1219
    %v1221 = vpop.xlane.xlu0 %1220
    %v1222 = vsel %vm1176, %v1065, 0.0
    %1223 = vadd.xlane.f32.xlu0 %v1222
    %v1224 = vpop.xlane.xlu0 %1223
    %v1225 = vsel %vm1176, %v1066, 0.0
    %1226 = vadd.xlane.f32.xlu0 %v1225
    %v1227 = vpop.xlane.xlu0 %1226
    %v1228 = vsel %vm1176, %v1067, 0.0
    %1229 = vadd.xlane.f32.xlu0 %v1228
    %v1230 = vpop.xlane.xlu0 %1229
    %v1231 = vrcp.pop 64.0
    %v1232 = vmul.f32 %v1179, %v1231
    %v1233 = vmul.f32 %v1182, %v1231
    %v1234 = vmul.f32 %v1185, %v1231
    %v1235 = vmul.f32 %v1188, %v1231
    %v1236 = vmul.f32 %v1191, %v1231
    %v1237 = vmul.f32 %v1194, %v1231
    %v1238 = vmul.f32 %v1197, %v1231
    %v1239 = vmul.f32 %v1200, %v1231
    %v1240 = vmul.f32 %v1203, %v1231
    %v1241 = vmul.f32 %v1206, %v1231
    %v1242 = vmul.f32 %v1209, %v1231
    %v1243 = vmul.f32 %v1212, %v1231
    %v1244 = vmul.f32 %v1215, %v1231
    %v1245 = vmul.f32 %v1218, %v1231
    %v1246 = vmul.f32 %v1221, %v1231
    %v1247 = vmul.f32 %v1224, %v1231
    %v1248 = vmul.f32 %v1227, %v1231
    %v1249 = vmul.f32 %v1230, %v1231
    %v1250 = vsub.f32 %v1050, %v1232
    %v1251 = vsub.f32 %v1051, %v1233
    %v1252 = vsub.f32 %v1052, %v1234
    %v1253 = vsub.f32 %v1053, %v1235
    %v1254 = vsub.f32 %v1054, %v1236
    %v1255 = vsub.f32 %v1055, %v1237
    %v1256 = vsub.f32 %v1056, %v1238
    %v1257 = vsub.f32 %v1057, %v1239
    %v1258 = vsub.f32 %v1058, %v1240
    %v1259 = vsub.f32 %v1059, %v1241
    %v1260 = vsub.f32 %v1060, %v1242
    %v1261 = vsub.f32 %v1061, %v1243
    %v1262 = vsub.f32 %v1062, %v1244
    %v1263 = vsub.f32 %v1063, %v1245
    %v1264 = vsub.f32 %v1064, %v1246
    %v1265 = vsub.f32 %v1065, %v1247
    %v1266 = vsub.f32 %v1066, %v1248
    %v1267 = vsub.f32 %v1067, %v1249
    %v1268 = vmul.f32 %v1250, %v1250
    %v1269 = vmul.f32 %v1251, %v1251
    %v1270 = vmul.f32 %v1252, %v1252
    %v1271 = vmul.f32 %v1253, %v1253
    %v1272 = vmul.f32 %v1254, %v1254
    %v1273 = vmul.f32 %v1255, %v1255
    %v1274 = vmul.f32 %v1256, %v1256
    %v1275 = vmul.f32 %v1257, %v1257
    %v1276 = vmul.f32 %v1258, %v1258
    %v1277 = vmul.f32 %v1259, %v1259
    %v1278 = vmul.f32 %v1260, %v1260
    %v1279 = vmul.f32 %v1261, %v1261
    %v1280 = vmul.f32 %v1262, %v1262
    %v1281 = vmul.f32 %v1263, %v1263
    %v1282 = vmul.f32 %v1264, %v1264
    %v1283 = vmul.f32 %v1265, %v1265
    %v1284 = vmul.f32 %v1266, %v1266
    %v1285 = vmul.f32 %v1267, %v1267
    %v1286 = vsel %vm1176, %v1268, 0.0
    %1287 = vadd.xlane.f32.xlu0 %v1286
    %v1288 = vpop.xlane.xlu0 %1287
    %v1289 = vsel %vm1176, %v1269, 0.0
    %1290 = vadd.xlane.f32.xlu0 %v1289
    %v1291 = vpop.xlane.xlu0 %1290
    %v1292 = vsel %vm1176, %v1270, 0.0
    %1293 = vadd.xlane.f32.xlu0 %v1292
    %v1294 = vpop.xlane.xlu0 %1293
    %v1295 = vsel %vm1176, %v1271, 0.0
    %1296 = vadd.xlane.f32.xlu0 %v1295
    %v1297 = vpop.xlane.xlu0 %1296
    %v1298 = vsel %vm1176, %v1272, 0.0
    %1299 = vadd.xlane.f32.xlu0 %v1298
    %v1300 = vpop.xlane.xlu0 %1299
    %v1301 = vsel %vm1176, %v1273, 0.0
    %1302 = vadd.xlane.f32.xlu0 %v1301
    %v1303 = vpop.xlane.xlu0 %1302
    %v1304 = vsel %vm1176, %v1274, 0.0
    %1305 = vadd.xlane.f32.xlu0 %v1304
    %v1306 = vpop.xlane.xlu0 %1305
    %v1307 = vsel %vm1176, %v1275, 0.0
    %1308 = vadd.xlane.f32.xlu0 %v1307
    %v1309 = vpop.xlane.xlu0 %1308
    %v1310 = vsel %vm1176, %v1276, 0.0
    %1311 = vadd.xlane.f32.xlu0 %v1310
    %v1312 = vpop.xlane.xlu0 %1311
    %v1313 = vsel %vm1176, %v1277, 0.0
    %1314 = vadd.xlane.f32.xlu0 %v1313
    %v1315 = vpop.xlane.xlu0 %1314
    %v1316 = vsel %vm1176, %v1278, 0.0
    %1317 = vadd.xlane.f32.xlu0 %v1316
    %v1318 = vpop.xlane.xlu0 %1317
    %v1319 = vsel %vm1176, %v1279, 0.0
    %1320 = vadd.xlane.f32.xlu0 %v1319
    %v1321 = vpop.xlane.xlu0 %1320
    %v1322 = vsel %vm1176, %v1280, 0.0
    %1323 = vadd.xlane.f32.xlu0 %v1322
    %v1324 = vpop.xlane.xlu0 %1323
    %v1325 = vsel %vm1176, %v1281, 0.0
    %1326 = vadd.xlane.f32.xlu0 %v1325
    %v1327 = vpop.xlane.xlu0 %1326
    %v1328 = vsel %vm1176, %v1282, 0.0
    %1329 = vadd.xlane.f32.xlu0 %v1328
    %v1330 = vpop.xlane.xlu0 %1329
    %v1331 = vsel %vm1176, %v1283, 0.0
    %1332 = vadd.xlane.f32.xlu0 %v1331
    %v1333 = vpop.xlane.xlu0 %1332
    %v1334 = vsel %vm1176, %v1284, 0.0
    %1335 = vadd.xlane.f32.xlu0 %v1334
    %v1336 = vpop.xlane.xlu0 %1335
    %v1337 = vsel %vm1176, %v1285, 0.0
    %1338 = vadd.xlane.f32.xlu0 %v1337
    %v1339 = vpop.xlane.xlu0 %1338
    %v1340 = vmul.f32 %v1288, %v1231
    %v1341 = vmul.f32 %v1291, %v1231
    %v1342 = vmul.f32 %v1294, %v1231
    %v1343 = vmul.f32 %v1297, %v1231
    %v1344 = vmul.f32 %v1300, %v1231
    %v1345 = vmul.f32 %v1303, %v1231
    %v1346 = vmul.f32 %v1306, %v1231
    %v1347 = vmul.f32 %v1309, %v1231
    %v1348 = vmul.f32 %v1312, %v1231
    %v1349 = vmul.f32 %v1315, %v1231
    %v1350 = vmul.f32 %v1318, %v1231
    %v1351 = vmul.f32 %v1321, %v1231
    %v1352 = vmul.f32 %v1324, %v1231
    %v1353 = vmul.f32 %v1327, %v1231
    %v1354 = vmul.f32 %v1330, %v1231
    %v1355 = vmul.f32 %v1333, %v1231
    %v1356 = vmul.f32 %v1336, %v1231
    %v1357 = vmul.f32 %v1339, %v1231
    %v1358 = vadd.f32 %v1340, 1e-05
    %v1359 = vadd.f32 %v1341, 1e-05
    %v1360 = vadd.f32 %v1342, 1e-05
    %v1361 = vadd.f32 %v1343, 1e-05
    %v1362 = vadd.f32 %v1344, 1e-05
    %v1363 = vadd.f32 %v1345, 1e-05
    %v1364 = vadd.f32 %v1346, 1e-05
    %v1365 = vadd.f32 %v1347, 1e-05
    %v1366 = vadd.f32 %v1348, 1e-05
    %v1367 = vadd.f32 %v1349, 1e-05
    %v1368 = vadd.f32 %v1350, 1e-05
    %v1369 = vadd.f32 %v1351, 1e-05
    %v1370 = vadd.f32 %v1352, 1e-05
    %v1371 = vadd.f32 %v1353, 1e-05
    %v1372 = vadd.f32 %v1354, 1e-05
    %v1373 = vadd.f32 %v1355, 1e-05
    %v1374 = vadd.f32 %v1356, 1e-05
    %v1375 = vadd.f32 %v1357, 1e-05
    %v1376 = vrsqrt.pop %v1358
    %v1377 = vrsqrt.pop %v1359
    %v1378 = vrsqrt.pop %v1360
    %v1379 = vrsqrt.pop %v1361
    %v1380 = vrsqrt.pop %v1362
    %v1381 = vrsqrt.pop %v1363
    %v1382 = vrsqrt.pop %v1364
    %v1383 = vrsqrt.pop %v1365
    %v1384 = vrsqrt.pop %v1366
    %v1385 = vrsqrt.pop %v1367
    %v1386 = vrsqrt.pop %v1368
    %v1387 = vrsqrt.pop %v1369
    %v1388 = vrsqrt.pop %v1370
    %v1389 = vrsqrt.pop %v1371
    %v1390 = vrsqrt.pop %v1372
    %v1391 = vrsqrt.pop %v1373
    %v1392 = vrsqrt.pop %v1374
    %v1393 = vrsqrt.pop %v1375
    %v1394 = vmul.f32 %v1250, %v1376
    %v1395 = vmul.f32 %v1251, %v1377
    %v1396 = vmul.f32 %v1252, %v1378
    %v1397 = vmul.f32 %v1253, %v1379
    %v1398 = vmul.f32 %v1254, %v1380
    %v1399 = vmul.f32 %v1255, %v1381
    %v1400 = vmul.f32 %v1256, %v1382
    %v1401 = vmul.f32 %v1257, %v1383
    %v1402 = vmul.f32 %v1258, %v1384
    %v1403 = vmul.f32 %v1259, %v1385
    %v1404 = vmul.f32 %v1260, %v1386
    %v1405 = vmul.f32 %v1261, %v1387
    %v1406 = vmul.f32 %v1262, %v1388
    %v1407 = vmul.f32 %v1263, %v1389
    %v1408 = vmul.f32 %v1264, %v1390
    %v1409 = vmul.f32 %v1265, %v1391
    %v1410 = vmul.f32 %v1266, %v1392
    %v1411 = vmul.f32 %v1267, %v1393
    %v1412 = vmul.f32 %v1394, %v1070
    %v1413 = vmul.f32 %v1395, %v1070
    %v1414 = vmul.f32 %v1396, %v1070
    %v1415 = vmul.f32 %v1397, %v1070
    %v1416 = vmul.f32 %v1398, %v1070
    %v1417 = vmul.f32 %v1399, %v1070
    %v1418 = vmul.f32 %v1400, %v1070
    %v1419 = vmul.f32 %v1401, %v1070
    %v1420 = vmul.f32 %v1402, %v1070
    %v1421 = vmul.f32 %v1403, %v1070
    %v1422 = vmul.f32 %v1404, %v1070
    %v1423 = vmul.f32 %v1405, %v1070
    %v1424 = vmul.f32 %v1406, %v1070
    %v1425 = vmul.f32 %v1407, %v1070
    %v1426 = vmul.f32 %v1408, %v1070
    %v1427 = vmul.f32 %v1409, %v1070
    %v1428 = vmul.f32 %v1410, %v1070
    %v1429 = vmul.f32 %v1411, %v1070
    %v1430 = vadd.f32 %v1412, %v1071
    %v1431 = vadd.f32 %v1413, %v1071
    %v1432 = vadd.f32 %v1414, %v1071
    %v1433 = vadd.f32 %v1415, %v1071
    %v1434 = vadd.f32 %v1416, %v1071
    %v1435 = vadd.f32 %v1417, %v1071
    %v1436 = vadd.f32 %v1418, %v1071
    %v1437 = vadd.f32 %v1419, %v1071
    %v1438 = vadd.f32 %v1420, %v1071
    %v1439 = vadd.f32 %v1421, %v1071
    %v1440 = vadd.f32 %v1422, %v1071
    %v1441 = vadd.f32 %v1423, %v1071
    %v1442 = vadd.f32 %v1424, %v1071
    %v1443 = vadd.f32 %v1425, %v1071
    %v1444 = vadd.f32 %v1426, %v1071
    %v1445 = vadd.f32 %v1427, %v1071
    %v1446 = vadd.f32 %v1428, %v1071
    %v1447 = vadd.f32 %v1429, %v1071
    %v1448 = vpack.c.bf16 %v1431, %v1430
    %v1449 = vpack.c.bf16 %v1433, %v1432
    %v1450 = vpack.c.bf16 %v1435, %v1434
    %v1451 = vpack.c.bf16 %v1437, %v1436
    %v1452 = vpack.c.bf16 %v1439, %v1438
    %v1453 = vpack.c.bf16 %v1441, %v1440
    %v1454 = vpack.c.bf16 %v1443, %v1442
    %v1455 = vpack.c.bf16 %v1445, %v1444
    %v1456 = vpack.c.bf16 %v1447, %v1446
    %v1458 = vlaneseq
    %v1459 = vshrl.u32 %v1458, 7
    %v1460 = vsub.s32 0, %v1459
    %v1461 = vrot.slane %v1073, %v1460
    %v1462 = vlaneseq
    %v1463 = vshrl.u32 %v1462, 7
    %v1464 = vsub.s32 1, %v1463
    %v1465 = vrot.slane %v1073, %v1464
    %v1492 = vunpack.c.l.b16 %v1080
    %v1493 = vunpack.c.l.b16 %v1081
    %v1494 = vunpack.c.l.b16 %v1082
    %v1495 = vunpack.c.l.b16 %v1083
    %v1496 = vunpack.c.l.b16 %v1084
    %v1497 = vunpack.c.l.b16 %v1085
    %v1498 = vunpack.c.l.b16 %v1086
    %v1499 = vunpack.c.l.b16 %v1087
    %v1500 = vunpack.c.l.b16 %v1088
    %v1501 = vunpack.c.l.b16 %v1089
    %v1502 = vunpack.c.l.b16 %v1090
    %v1503 = vunpack.c.l.b16 %v1091
    %v1504 = vunpack.c.l.b16 %v1092
    %v1505 = vunpack.c.l.b16 %v1093
    %v1506 = vunpack.c.l.b16 %v1094
    %v1507 = vunpack.c.l.b16 %v1095
    %v1508 = vunpack.c.l.b16 %v1096
    %v1509 = vunpack.c.l.b16 %v1097
    %v1510 = vunpack.c.l.b16 %v1098
    %v1511 = vunpack.c.l.b16 %v1099
    %v1512 = vunpack.c.l.b16 %v1100
    %v1513 = vunpack.c.l.b16 %v1101
    %v1514 = vunpack.c.l.b16 %v1102
    %v1515 = vunpack.c.l.b16 %v1103
    %v1516 = vpack.c.b16 %v1493, %v1492
    %v1517 = vpack.c.b16 %v1495, %v1494
    %v1518 = vpack.c.b16 %v1497, %v1496
    %v1519 = vpack.c.b16 %v1499, %v1498
    %v1520 = vpack.c.b16 %v1501, %v1500
    %v1521 = vpack.c.b16 %v1503, %v1502
    %v1522 = vpack.c.b16 %v1505, %v1504
    %v1523 = vpack.c.b16 %v1507, %v1506
    %v1524 = vpack.c.b16 %v1509, %v1508
    %v1525 = vpack.c.b16 %v1511, %v1510
    %v1526 = vpack.c.b16 %v1513, %v1512
    %v1527 = vpack.c.b16 %v1515, %v1514
    %v1529 = vsel %vm1176, %v1448, 0
    %v1532 = vsel %vm1176, %v1449, 0
    %v1535 = vsel %vm1176, %v1450, 0
    %v1538 = vsel %vm1176, %v1451, 0
    %v1541 = vsel %vm1176, %v1452, 0
    %v1544 = vsel %vm1176, %v1453, 0
    %v1547 = vsel %vm1176, %v1454, 0
    %v1550 = vsel %vm1176, %v1455, 0
    %v1553 = vsel %vm1176, %v1456, 0
    %v1556 = vsel %vm1176, %v1516, 0
    %v1559 = vsel %vm1176, %v1517, 0
    %v1562 = vsel %vm1176, %v1518, 0
    %v1565 = vsel %vm1176, %v1519, 0
    %v1568 = vsel %vm1176, %v1520, 0
    %v1571 = vsel %vm1176, %v1521, 0
    %v1574 = vsel %vm1176, %v1522, 0
    %v1577 = vsel %vm1176, %v1523, 0
    %v1580 = vsel %vm1176, %v1524, 0
    %v1583 = vsel %vm1176, %v1525, 0
    %v1586 = vsel %vm1176, %v1526, 0
    %v1589 = vsel %vm1176, %v1527, 0
    %1591 = vmatprep.subr.bf16.mxu0 0
    %1592 = vmatpush1.bf16.xpose.msra.mxu0 %v1577
    %1593 = vmatprep.subr.bf16.mxu0 0
    %1594 = vmatpush1.bf16.xpose.msra.mxu0 %v1574
    %1595 = vmatprep.subr.bf16.mxu0 0
    %1596 = vmatpush1.bf16.xpose.msra.mxu0 %v1571
    %1597 = vmatprep.subr.bf16.mxu0 0
    %1598 = vmatpush1.bf16.xpose.msra.mxu0 %v1568
    %1599 = vmatprep.subr.bf16.mxu0 0
    %1600 = vmatpush1.bf16.xpose.msra.mxu0 %v1565
    %1601 = vmatprep.subr.bf16.mxu0 0
    %1602 = vmatpush1.bf16.xpose.msra.mxu0 %v1562
    %1603 = vmatprep.subr.bf16.mxu0 0
    %1604 = vmatpush1.bf16.xpose.msra.mxu0 %v1559
    %1605 = vmatprep.subr.bf16.mxu0 0
    %1606 = vmatpush1.bf16.xpose.msra.mxu0 %v1556
    %1607 = vmatprep.subr.bf16.mxu0 0
    %1608 = vmatpush2.bf16.xpose.msra.mxu0 0
    %1609 = vmatprep.subr.bf16.mxu0 0
    %1610 = vmatpush2.bf16.xpose.msra.mxu0 0
    %1611 = vmatprep.subr.bf16.mxu0 0
    %1612 = vmatpush2.bf16.xpose.msra.mxu0 0
    %1613 = vmatprep.subr.bf16.mxu0 0
    %1614 = vmatpush2.bf16.xpose.msra.mxu0 0
    %1615 = vmatprep.subr.bf16.mxu0 0
    %1616 = vmatpush2.bf16.xpose.msra.mxu0 %v1589
    %1617 = vmatprep.subr.bf16.mxu0 0
    %1618 = vmatpush2.bf16.xpose.msra.mxu0 %v1586
    %1619 = vmatprep.subr.bf16.mxu0 0
    %1620 = vmatpush2.bf16.xpose.msra.mxu0 %v1583
    %1621 = vmatprep.subr.bf16.mxu0 0
    %1622 = vmatpush2.bf16.xpose.msra.mxu0 %v1580
    %1623 = vmatprep.mubr.bf16.mxu0 0
    %1624 = vmatmul.mubr.bf16.gmra.mxu0 %v1529
    %v1625 = vpop.f32.mrf.mxu0
    %v1626 = vadd.f32 %v1461, %v1625
    %v1627 = vpop.f32.mrf.mxu0
    %v1628 = vadd.f32 %v1465, %v1627
    %v1629 = vpop.f32.mrf.mxu0
    %v1630 = vadd.f32 %v1461, %v1629
    %v1631 = vpop.f32.mrf.mxu0
    %v1632 = vadd.f32 %v1465, %v1631
    %1633 = vmatprep.mubr.bf16.mxu0 0
    %1634 = vmatmul.mubr.bf16.gmra.mxu0 %v1532
    %v1635 = vpop.f32.mrf.mxu0
    %v1636 = vadd.f32 %v1461, %v1635
    %v1637 = vpop.f32.mrf.mxu0
    %v1638 = vadd.f32 %v1465, %v1637
    %v1639 = vpop.f32.mrf.mxu0
    %v1640 = vadd.f32 %v1461, %v1639
    %v1641 = vpop.f32.mrf.mxu0
    %v1642 = vadd.f32 %v1465, %v1641
    %1643 = vmatprep.mubr.bf16.mxu0 0
    %1644 = vmatmul.mubr.bf16.gmra.mxu0 %v1535
    %v1645 = vpop.f32.mrf.mxu0
    %v1646 = vadd.f32 %v1461, %v1645
    %v1647 = vpop.f32.mrf.mxu0
    %v1648 = vadd.f32 %v1465, %v1647
    %v1649 = vpop.f32.mrf.mxu0
    %v1650 = vadd.f32 %v1461, %v1649
    %v1651 = vpop.f32.mrf.mxu0
    %v1652 = vadd.f32 %v1465, %v1651
    %1653 = vmatprep.mubr.bf16.mxu0 0
    %1654 = vmatmul.mubr.bf16.gmra.mxu0 %v1538
    %v1655 = vpop.f32.mrf.mxu0
    %v1656 = vadd.f32 %v1461, %v1655
    %v1657 = vpop.f32.mrf.mxu0
    %v1658 = vadd.f32 %v1465, %v1657
    %v1659 = vpop.f32.mrf.mxu0
    %v1660 = vadd.f32 %v1461, %v1659
    %v1661 = vpop.f32.mrf.mxu0
    %v1662 = vadd.f32 %v1465, %v1661
    %1663 = vmatprep.mubr.bf16.mxu0 0
    %1664 = vmatmul.mubr.bf16.gmra.mxu0 %v1541
    %v1665 = vpop.f32.mrf.mxu0
    %v1666 = vadd.f32 %v1461, %v1665
    %v1667 = vpop.f32.mrf.mxu0
    %v1668 = vadd.f32 %v1465, %v1667
    %v1669 = vpop.f32.mrf.mxu0
    %v1670 = vadd.f32 %v1461, %v1669
    %v1671 = vpop.f32.mrf.mxu0
    %v1672 = vadd.f32 %v1465, %v1671
    %1673 = vmatprep.mubr.bf16.mxu0 0
    %1674 = vmatmul.mubr.bf16.gmra.mxu0 %v1544
    %v1675 = vpop.f32.mrf.mxu0
    %v1676 = vadd.f32 %v1461, %v1675
    %v1677 = vpop.f32.mrf.mxu0
    %v1678 = vadd.f32 %v1465, %v1677
    %v1679 = vpop.f32.mrf.mxu0
    %v1680 = vadd.f32 %v1461, %v1679
    %v1681 = vpop.f32.mrf.mxu0
    %v1682 = vadd.f32 %v1465, %v1681
    %1683 = vmatprep.mubr.bf16.mxu0 0
    %1684 = vmatmul.mubr.bf16.gmra.mxu0 %v1547
    %v1685 = vpop.f32.mrf.mxu0
    %v1686 = vadd.f32 %v1461, %v1685
    %v1687 = vpop.f32.mrf.mxu0
    %v1688 = vadd.f32 %v1465, %v1687
    %v1689 = vpop.f32.mrf.mxu0
    %v1690 = vadd.f32 %v1461, %v1689
    %v1691 = vpop.f32.mrf.mxu0
    %v1692 = vadd.f32 %v1465, %v1691
    %1693 = vmatprep.mubr.bf16.mxu0 0
    %1694 = vmatmul.mubr.bf16.gmra.mxu0 %v1550
    %v1695 = vpop.f32.mrf.mxu0
    %v1696 = vadd.f32 %v1461, %v1695
    %v1697 = vpop.f32.mrf.mxu0
    %v1698 = vadd.f32 %v1465, %v1697
    %v1699 = vpop.f32.mrf.mxu0
    %v1700 = vadd.f32 %v1461, %v1699
    %v1701 = vpop.f32.mrf.mxu0
    %v1702 = vadd.f32 %v1465, %v1701
    %1703 = vmatprep.mubr.bf16.mxu0 0
    %1704 = vmatmul.mubr.bf16.gmra.mxu0 %v1553
    %v1705 = vpop.f32.mrf.mxu0
    %v1706 = vadd.f32 %v1461, %v1705
    %v1707 = vpop.f32.mrf.mxu0
    %v1708 = vadd.f32 %v1465, %v1707
    %v1709 = vpop.f32.mrf.mxu0
    %v1710 = vadd.f32 %v1461, %v1709
    %v1711 = vpop.f32.mrf.mxu0
    %v1712 = vadd.f32 %v1465, %v1711
    %1713 = vdwg.mxu0
    %v1714 = vpack.c.bf16 %v1630, %v1626
    %v1715 = vpack.c.bf16 %v1640, %v1636
    %v1716 = vpack.c.bf16 %v1650, %v1646
    %v1717 = vpack.c.bf16 %v1660, %v1656
    %v1718 = vpack.c.bf16 %v1666, %v1666
    %v1719 = vpack.c.bf16 %v1632, %v1628
    %v1720 = vpack.c.bf16 %v1642, %v1638
    %v1721 = vpack.c.bf16 %v1652, %v1648
    %v1722 = vpack.c.bf16 %v1662, %v1658
    %v1723 = vpack.c.bf16 %v1668, %v1668
    %1729 = vrot.lane.b32.xlu0 %v1714, 64
    %v1730 = vpop.permute.xlu0 %1729
    %1731 = vrot.lane.b32.xlu0 %v1715, 64
    %v1732 = vpop.permute.xlu0 %1731
    %1733 = vrot.lane.b32.xlu0 %v1716, 64
    %v1734 = vpop.permute.xlu0 %1733
    %1735 = vrot.lane.b32.xlu0 %v1717, 64
    %v1736 = vpop.permute.xlu0 %1735
    %1737 = vrot.lane.b32.xlu0 %v1718, 64
    %v1738 = vpop.permute.xlu0 %1737
    %vm1739 = vcmask 261120
    %v1741 = vsel %vm1739, %v1714, 0
    %v1744 = vsel %vm1739, %v1715, 0
    %v1747 = vsel %vm1739, %v1716, 0
    %v1750 = vsel %vm1739, %v1717, 0
    %v1753 = vsel %vm1739, %v1718, 0
    %v1756 = vsel %vm1739, %v1730, 0
    %v1759 = vsel %vm1739, %v1732, 0
    %v1762 = vsel %vm1739, %v1734, 0
    %v1765 = vsel %vm1739, %v1736, 0
    %v1768 = vsel %vm1739, %v1738, 0
    %1770 = vmatprep.subr.bf16.mxu0 0
    %1771 = vmatpush1.bf16.xpose.msra.mxu0 0
    %1772 = vmatprep.subr.bf16.mxu0 0
    %1773 = vmatpush1.bf16.xpose.msra.mxu0 0
    %1774 = vmatprep.subr.bf16.mxu0 0
    %1775 = vmatpush1.bf16.xpose.msra.mxu0 0
    %1776 = vmatprep.subr.bf16.mxu0 0
    %1777 = vmatpush1.bf16.xpose.msra.mxu0 %v1768
    %1778 = vmatprep.subr.bf16.mxu0 0
    %1779 = vmatpush1.bf16.xpose.msra.mxu0 %v1765
    %1780 = vmatprep.subr.bf16.mxu0 0
    %1781 = vmatpush1.bf16.xpose.msra.mxu0 %v1762
    %1782 = vmatprep.subr.bf16.mxu0 0
    %1783 = vmatpush1.bf16.xpose.msra.mxu0 %v1759
    %1784 = vmatprep.subr.bf16.mxu0 0
    %1785 = vmatpush1.bf16.xpose.msra.mxu0 %v1756
    %1786 = vmatprep.subr.bf16.mxu0 0
    %1787 = vmatpush2.bf16.xpose.msra.mxu0 0
    %1788 = vmatprep.subr.bf16.mxu0 0
    %1789 = vmatpush2.bf16.xpose.msra.mxu0 0
    %1790 = vmatprep.subr.bf16.mxu0 0
    %1791 = vmatpush2.bf16.xpose.msra.mxu0 0
    %1792 = vmatprep.subr.bf16.mxu0 0
    %1793 = vmatpush2.bf16.xpose.msra.mxu0 0
    %1794 = vmatprep.subr.bf16.mxu0 0
    %1795 = vmatpush2.bf16.xpose.msra.mxu0 0
    %1796 = vmatprep.subr.bf16.mxu0 0
    %1797 = vmatpush2.bf16.xpose.msra.mxu0 0
    %1798 = vmatprep.subr.bf16.mxu0 0
    %1799 = vmatpush2.bf16.xpose.msra.mxu0 0
    %1800 = vmatprep.subr.bf16.mxu0 0
    %1801 = vmatpush2.bf16.xpose.msra.mxu0 0
    %1802 = vmatprep.mubr.bf16.mxu0 0
    %1803 = vmatmul.mubr.bf16.gmra.mxu0 %v1741
    %v1804 = vpop.f32.mrf.mxu0
    %v1805 = vadd.f32 0.0, %v1804
    %v1806 = vpop.f32.mrf.mxu0
    %v1807 = vpop.f32.mrf.mxu0
    %v1808 = vadd.f32 0.0, %v1807
    %v1809 = vpop.f32.mrf.mxu0
    %1810 = vmatprep.mubr.bf16.mxu0 0
    %1811 = vmatmul.mubr.bf16.gmra.mxu0 %v1744
    %v1812 = vpop.f32.mrf.mxu0
    %v1813 = vadd.f32 0.0, %v1812
    %v1814 = vpop.f32.mrf.mxu0
    %v1815 = vpop.f32.mrf.mxu0
    %v1816 = vadd.f32 0.0, %v1815
    %v1817 = vpop.f32.mrf.mxu0
    %1818 = vmatprep.mubr.bf16.mxu0 0
    %1819 = vmatmul.mubr.bf16.gmra.mxu0 %v1747
    %v1820 = vpop.f32.mrf.mxu0
    %v1821 = vadd.f32 0.0, %v1820
    %v1822 = vpop.f32.mrf.mxu0
    %v1823 = vpop.f32.mrf.mxu0
    %v1824 = vadd.f32 0.0, %v1823
    %v1825 = vpop.f32.mrf.mxu0
    %1826 = vmatprep.mubr.bf16.mxu0 0
    %1827 = vmatmul.mubr.bf16.gmra.mxu0 %v1750
    %v1828 = vpop.f32.mrf.mxu0
    %v1829 = vadd.f32 0.0, %v1828
    %v1830 = vpop.f32.mrf.mxu0
    %v1831 = vpop.f32.mrf.mxu0
    %v1832 = vadd.f32 0.0, %v1831
    %v1833 = vpop.f32.mrf.mxu0
    %1834 = vmatprep.mubr.bf16.mxu0 0
    %1835 = vmatmul.mubr.bf16.gmra.mxu0 %v1753
    %v1836 = vpop.f32.mrf.mxu0
    %v1837 = vadd.f32 0.0, %v1836
    %v1838 = vpop.f32.mrf.mxu0
    %v1839 = vpop.f32.mrf.mxu0
    %v1840 = vpop.f32.mrf.mxu0
    %1841 = vdwg.mxu0
    %v1842 = vmul.f32 %v1805, 0.17677669
    %v1843 = vmul.f32 %v1808, 0.17677669
    %v1844 = vmul.f32 %v1813, 0.17677669
    %v1845 = vmul.f32 %v1816, 0.17677669
    %v1846 = vmul.f32 %v1821, 0.17677669
    %v1847 = vmul.f32 %v1824, 0.17677669
    %v1848 = vmul.f32 %v1829, 0.17677669
    %v1849 = vmul.f32 %v1832, 0.17677669
    %v1850 = vmul.f32 %v1837, 0.17677669
    %v1851 = vadd.f32 %v1842, %v1069
    %v1852 = vadd.f32 %v1843, %v1069
    %v1853 = vadd.f32 %v1844, %v1069
    %v1854 = vadd.f32 %v1845, %v1069
    %v1855 = vadd.f32 %v1846, %v1069
    %v1856 = vadd.f32 %v1847, %v1069
    %v1857 = vadd.f32 %v1848, %v1069
    %v1858 = vadd.f32 %v1849, %v1069
    %v1859 = vadd.f32 %v1850, %v1069
    %vm1860 = vcmask 588800
    %v1861 = vsel %vm1860, %v1851, -inf
    %1862 = vmax.xlane.f32.xlu0 %v1861
    %v1863 = vpop.xlane.xlu0 %1862
    %v1864 = vsel %vm1860, %v1852, -inf
    %1865 = vmax.xlane.f32.xlu0 %v1864
    %v1866 = vpop.xlane.xlu0 %1865
    %v1867 = vsel %vm1860, %v1853, -inf
    %1868 = vmax.xlane.f32.xlu0 %v1867
    %v1869 = vpop.xlane.xlu0 %1868
    %v1870 = vsel %vm1860, %v1854, -inf
    %1871 = vmax.xlane.f32.xlu0 %v1870
    %v1872 = vpop.xlane.xlu0 %1871
    %v1873 = vsel %vm1860, %v1855, -inf
    %1874 = vmax.xlane.f32.xlu0 %v1873
    %v1875 = vpop.xlane.xlu0 %1874
    %v1876 = vsel %vm1860, %v1856, -inf
    %1877 = vmax.xlane.f32.xlu0 %v1876
    %v1878 = vpop.xlane.xlu0 %1877
    %v1879 = vsel %vm1860, %v1857, -inf
    %1880 = vmax.xlane.f32.xlu0 %v1879
    %v1881 = vpop.xlane.xlu0 %1880
    %v1882 = vsel %vm1860, %v1858, -inf
    %1883 = vmax.xlane.f32.xlu0 %v1882
    %v1884 = vpop.xlane.xlu0 %1883
    %v1885 = vsel %vm1860, %v1859, -inf
    %1886 = vmax.xlane.f32.xlu0 %v1885
    %v1887 = vpop.xlane.xlu0 %1886
    %v1888 = vsub.f32 %v1851, %v1863
    %v1889 = vsub.f32 %v1852, %v1866
    %v1890 = vsub.f32 %v1853, %v1869
    %v1891 = vsub.f32 %v1854, %v1872
    %v1892 = vsub.f32 %v1855, %v1875
    %v1893 = vsub.f32 %v1856, %v1878
    %v1894 = vsub.f32 %v1857, %v1881
    %v1895 = vsub.f32 %v1858, %v1884
    %v1896 = vsub.f32 %v1859, %v1887
    %v1897 = vmul.f32 %v1888, 1.442695
    %v1898 = vpow.pop %v1897
    %v1899 = vmul.f32 %v1889, 1.442695
    %v1900 = vpow.pop %v1899
    %v1901 = vmul.f32 %v1890, 1.442695
    %v1902 = vpow.pop %v1901
    %v1903 = vmul.f32 %v1891, 1.442695
    %v1904 = vpow.pop %v1903
    %v1905 = vmul.f32 %v1892, 1.442695
    %v1906 = vpow.pop %v1905
    %v1907 = vmul.f32 %v1893, 1.442695
    %v1908 = vpow.pop %v1907
    %v1909 = vmul.f32 %v1894, 1.442695
    %v1910 = vpow.pop %v1909
    %v1911 = vmul.f32 %v1895, 1.442695
    %v1912 = vpow.pop %v1911
    %v1913 = vmul.f32 %v1896, 1.442695
    %v1914 = vpow.pop %v1913
    %v1915 = vsel %vm1860, %v1898, 0.0
    %1916 = vadd.xlane.f32.xlu0 %v1915
    %v1917 = vpop.xlane.xlu0 %1916
    %v1918 = vsel %vm1860, %v1900, 0.0
    %1919 = vadd.xlane.f32.xlu0 %v1918
    %v1920 = vpop.xlane.xlu0 %1919
    %v1921 = vsel %vm1860, %v1902, 0.0
    %1922 = vadd.xlane.f32.xlu0 %v1921
    %v1923 = vpop.xlane.xlu0 %1922
    %v1924 = vsel %vm1860, %v1904, 0.0
    %1925 = vadd.xlane.f32.xlu0 %v1924
    %v1926 = vpop.xlane.xlu0 %1925
    %v1927 = vsel %vm1860, %v1906, 0.0
    %1928 = vadd.xlane.f32.xlu0 %v1927
    %v1929 = vpop.xlane.xlu0 %1928
    %v1930 = vsel %vm1860, %v1908, 0.0
    %1931 = vadd.xlane.f32.xlu0 %v1930
    %v1932 = vpop.xlane.xlu0 %1931
    %v1933 = vsel %vm1860, %v1910, 0.0
    %1934 = vadd.xlane.f32.xlu0 %v1933
    %v1935 = vpop.xlane.xlu0 %1934
    %v1936 = vsel %vm1860, %v1912, 0.0
    %1937 = vadd.xlane.f32.xlu0 %v1936
    %v1938 = vpop.xlane.xlu0 %1937
    %v1939 = vsel %vm1860, %v1914, 0.0
    %1940 = vadd.xlane.f32.xlu0 %v1939
    %v1941 = vpop.xlane.xlu0 %1940
    %v1942 = vrcp.pop %v1917
    %v1943 = vrcp.pop %v1920
    %v1944 = vrcp.pop %v1923
    %v1945 = vrcp.pop %v1926
    %v1946 = vrcp.pop %v1929
    %v1947 = vrcp.pop %v1932
    %v1948 = vrcp.pop %v1935
    %v1949 = vrcp.pop %v1938
    %v1950 = vrcp.pop %v1941
    %v1951 = vmul.f32 %v1898, %v1942
    %v1952 = vmul.f32 %v1900, %v1943
    %v1953 = vmul.f32 %v1902, %v1944
    %v1954 = vmul.f32 %v1904, %v1945
    %v1955 = vmul.f32 %v1906, %v1946
    %v1956 = vmul.f32 %v1908, %v1947
    %v1957 = vmul.f32 %v1910, %v1948
    %v1958 = vmul.f32 %v1912, %v1949
    %v1959 = vmul.f32 %v1914, %v1950
    %v1960 = vpack.c.bf16 %v1952, %v1951
    %v1961 = vpack.c.bf16 %v1954, %v1953
    %v1962 = vpack.c.bf16 %v1956, %v1955
    %v1963 = vpack.c.bf16 %v1958, %v1957
    %v1964 = vpack.c.bf16 %v1959, %v1959
    %v1966 = vsel %vm1860, %v1960, 0
    %v1969 = vsel %vm1860, %v1961, 0
    %v1972 = vsel %vm1860, %v1962, 0
    %v1975 = vsel %vm1860, %v1963, 0
    %v1978 = vsel %vm1860, %v1964, 0
    %vm1980 = vcmask 1043456
    %v1982 = vsel %vm1980, %v1723, 0
    %1984 = vmatprep.subr.bf16.mxu0 0
    %1985 = vmatpush1.bf16.msra.mxu0 0
    %1986 = vmatprep.subr.bf16.mxu0 0
    %1987 = vmatpush1.bf16.msra.mxu0 0
    %1988 = vmatprep.subr.bf16.mxu0 0
    %1989 = vmatpush1.bf16.msra.mxu0 0
    %1990 = vmatprep.subr.bf16.mxu0 0
    %1991 = vmatpush1.bf16.msra.mxu0 %v1982
    %1992 = vmatprep.subr.bf16.mxu0 0
    %1993 = vmatpush1.bf16.msra.mxu0 %v1722
    %1994 = vmatprep.subr.bf16.mxu0 0
    %1995 = vmatpush1.bf16.msra.mxu0 %v1721
    %1996 = vmatprep.subr.bf16.mxu0 0
    %1997 = vmatpush1.bf16.msra.mxu0 %v1720
    %1998 = vmatprep.subr.bf16.mxu0 0
    %1999 = vmatpush1.bf16.msra.mxu0 %v1719
    %2000 = vmatprep.subr.bf16.mxu0 0
    %2001 = vmatpush2.bf16.msra.mxu0 0
    %2002 = vmatprep.subr.bf16.mxu0 0
    %2003 = vmatpush2.bf16.msra.mxu0 0
    %2004 = vmatprep.subr.bf16.mxu0 0
    %2005 = vmatpush2.bf16.msra.mxu0 0
    %2006 = vmatprep.subr.bf16.mxu0 0
    %2007 = vmatpush2.bf16.msra.mxu0 0
    %2008 = vmatprep.subr.bf16.mxu0 0
    %2009 = vmatpush2.bf16.msra.mxu0 0
    %2010 = vmatprep.subr.bf16.mxu0 0
    %2011 = vmatpush2.bf16.msra.mxu0 0
    %2012 = vmatprep.subr.bf16.mxu0 0
    %2013 = vmatpush2.bf16.msra.mxu0 0
    %2014 = vmatprep.subr.bf16.mxu0 0
    %2015 = vmatpush2.bf16.msra.mxu0 0
    %2016 = vmatprep.mubr.bf16.mxu0 0
    %2017 = vmatmul.mubr.bf16.gmra.mxu0 %v1966
    %v2018 = vpop.f32.mrf.mxu0
    %v2019 = vadd.f32 0.0, %v2018
    %v2020 = vpop.f32.mrf.mxu0
    %v2021 = vpop.f32.mrf.mxu0
    %v2022 = vadd.f32 0.0, %v2021
    %v2023 = vpop.f32.mrf.mxu0
    %2024 = vmatprep.mubr.bf16.mxu0 0
    %2025 = vmatmul.mubr.bf16.gmra.mxu0 %v1969
    %v2026 = vpop.f32.mrf.mxu0
    %v2027 = vadd.f32 0.0, %v2026
    %v2028 = vpop.f32.mrf.mxu0
    %v2029 = vpop.f32.mrf.mxu0
    %v2030 = vadd.f32 0.0, %v2029
    %v2031 = vpop.f32.mrf.mxu0
    %2032 = vmatprep.mubr.bf16.mxu0 0
    %2033 = vmatmul.mubr.bf16.gmra.mxu0 %v1972
    %v2034 = vpop.f32.mrf.mxu0
    %v2035 = vadd.f32 0.0, %v2034
    %v2036 = vpop.f32.mrf.mxu0
    %v2037 = vpop.f32.mrf.mxu0
    %v2038 = vadd.f32 0.0, %v2037
    %v2039 = vpop.f32.mrf.mxu0
    %2040 = vmatprep.mubr.bf16.mxu0 0
    %2041 = vmatmul.mubr.bf16.gmra.mxu0 %v1975
    %v2042 = vpop.f32.mrf.mxu0
    %v2043 = vadd.f32 0.0, %v2042
    %v2044 = vpop.f32.mrf.mxu0
    %v2045 = vpop.f32.mrf.mxu0
    %v2046 = vadd.f32 0.0, %v2045
    %v2047 = vpop.f32.mrf.mxu0
    %2048 = vmatprep.mubr.bf16.mxu0 0
    %2049 = vmatmul.mubr.bf16.gmra.mxu0 %v1978
    %v2050 = vpop.f32.mrf.mxu0
    %v2051 = vadd.f32 0.0, %v2050
    %v2052 = vpop.f32.mrf.mxu0
    %v2053 = vpop.f32.mrf.mxu0
    %v2054 = vpop.f32.mrf.mxu0
    %2055 = vdwg.mxu0
    %v2056 = vpack.c.bf16 %v2022, %v2019
    %v2057 = vpack.c.bf16 %v2030, %v2027
    %v2058 = vpack.c.bf16 %v2038, %v2035
    %v2059 = vpack.c.bf16 %v2046, %v2043
    %v2060 = vpack.c.bf16 %v2051, %v2051
    %2061 = vrot.lane.b32.xlu0 %v1714, 96
    %v2062 = vpop.permute.xlu0 %2061
    %2063 = vrot.lane.b32.xlu0 %v1715, 96
    %v2064 = vpop.permute.xlu0 %2063
    %2065 = vrot.lane.b32.xlu0 %v1716, 96
    %v2066 = vpop.permute.xlu0 %2065
    %2067 = vrot.lane.b32.xlu0 %v1717, 96
    %v2068 = vpop.permute.xlu0 %2067
    %2069 = vrot.lane.b32.xlu0 %v1718, 96
    %v2070 = vpop.permute.xlu0 %2069
    %2071 = vrot.lane.b32.xlu0 %v1714, 32
    %v2072 = vpop.permute.xlu0 %2071
    %2073 = vrot.lane.b32.xlu0 %v1715, 32
    %v2074 = vpop.permute.xlu0 %2073
    %2075 = vrot.lane.b32.xlu0 %v1716, 32
    %v2076 = vpop.permute.xlu0 %2075
    %2077 = vrot.lane.b32.xlu0 %v1717, 32
    %v2078 = vpop.permute.xlu0 %2077
    %2079 = vrot.lane.b32.xlu0 %v1718, 32
    %v2080 = vpop.permute.xlu0 %2079
    %v2082 = vsel %vm1739, %v2062, 0
    %v2085 = vsel %vm1739, %v2064, 0
    %v2088 = vsel %vm1739, %v2066, 0
    %v2091 = vsel %vm1739, %v2068, 0
    %v2094 = vsel %vm1739, %v2070, 0
    %v2097 = vsel %vm1739, %v2072, 0
    %v2100 = vsel %vm1739, %v2074, 0
    %v2103 = vsel %vm1739, %v2076, 0
    %v2106 = vsel %vm1739, %v2078, 0
    %v2109 = vsel %vm1739, %v2080, 0
    %2111 = vmatprep.subr.bf16.mxu0 0
    %2112 = vmatpush1.bf16.xpose.msra.mxu0 0
    %2113 = vmatprep.subr.bf16.mxu0 0
    %2114 = vmatpush1.bf16.xpose.msra.mxu0 0
    %2115 = vmatprep.subr.bf16.mxu0 0
    %2116 = vmatpush1.bf16.xpose.msra.mxu0 0
    %2117 = vmatprep.subr.bf16.mxu0 0
    %2118 = vmatpush1.bf16.xpose.msra.mxu0 %v2109
    %2119 = vmatprep.subr.bf16.mxu0 0
    %2120 = vmatpush1.bf16.xpose.msra.mxu0 %v2106
    %2121 = vmatprep.subr.bf16.mxu0 0
    %2122 = vmatpush1.bf16.xpose.msra.mxu0 %v2103
    %2123 = vmatprep.subr.bf16.mxu0 0
    %2124 = vmatpush1.bf16.xpose.msra.mxu0 %v2100
    %2125 = vmatprep.subr.bf16.mxu0 0
    %2126 = vmatpush1.bf16.xpose.msra.mxu0 %v2097
    %2127 = vmatprep.subr.bf16.mxu0 0
    %2128 = vmatpush2.bf16.xpose.msra.mxu0 0
    %2129 = vmatprep.subr.bf16.mxu0 0
    %2130 = vmatpush2.bf16.xpose.msra.mxu0 0
    %2131 = vmatprep.subr.bf16.mxu0 0
    %2132 = vmatpush2.bf16.xpose.msra.mxu0 0
    %2133 = vmatprep.subr.bf16.mxu0 0
    %2134 = vmatpush2.bf16.xpose.msra.mxu0 0
    %2135 = vmatprep.subr.bf16.mxu0 0
    %2136 = vmatpush2.bf16.xpose.msra.mxu0 0
    %2137 = vmatprep.subr.bf16.mxu0 0
    %2138 = vmatpush2.bf16.xpose.msra.mxu0 0
    %2139 = vmatprep.subr.bf16.mxu0 0
    %2140 = vmatpush2.bf16.xpose.msra.mxu0 0
    %2141 = vmatprep.subr.bf16.mxu0 0
    %2142 = vmatpush2.bf16.xpose.msra.mxu0 0
    %2143 = vmatprep.mubr.bf16.mxu0 0
    %2144 = vmatmul.mubr.bf16.gmra.mxu0 %v2082
    %v2145 = vpop.f32.mrf.mxu0
    %v2146 = vadd.f32 0.0, %v2145
    %v2147 = vpop.f32.mrf.mxu0
    %v2148 = vpop.f32.mrf.mxu0
    %v2149 = vadd.f32 0.0, %v2148
    %v2150 = vpop.f32.mrf.mxu0
    %2151 = vmatprep.mubr.bf16.mxu0 0
    %2152 = vmatmul.mubr.bf16.gmra.mxu0 %v2085
    %v2153 = vpop.f32.mrf.mxu0
    %v2154 = vadd.f32 0.0, %v2153
    %v2155 = vpop.f32.mrf.mxu0
    %v2156 = vpop.f32.mrf.mxu0
    %v2157 = vadd.f32 0.0, %v2156
    %v2158 = vpop.f32.mrf.mxu0
    %2159 = vmatprep.mubr.bf16.mxu0 0
    %2160 = vmatmul.mubr.bf16.gmra.mxu0 %v2088
    %v2161 = vpop.f32.mrf.mxu0
    %v2162 = vadd.f32 0.0, %v2161
    %v2163 = vpop.f32.mrf.mxu0
    %v2164 = vpop.f32.mrf.mxu0
    %v2165 = vadd.f32 0.0, %v2164
    %v2166 = vpop.f32.mrf.mxu0
    %2167 = vmatprep.mubr.bf16.mxu0 0
    %2168 = vmatmul.mubr.bf16.gmra.mxu0 %v2091
    %v2169 = vpop.f32.mrf.mxu0
    %v2170 = vadd.f32 0.0, %v2169
    %v2171 = vpop.f32.mrf.mxu0
    %v2172 = vpop.f32.mrf.mxu0
    %v2173 = vadd.f32 0.0, %v2172
    %v2174 = vpop.f32.mrf.mxu0
    %2175 = vmatprep.mubr.bf16.mxu0 0
    %2176 = vmatmul.mubr.bf16.gmra.mxu0 %v2094
    %v2177 = vpop.f32.mrf.mxu0
    %v2178 = vadd.f32 0.0, %v2177
    %v2179 = vpop.f32.mrf.mxu0
    %v2180 = vpop.f32.mrf.mxu0
    %v2181 = vpop.f32.mrf.mxu0
    %2182 = vdwg.mxu0
    %v2183 = vmul.f32 %v2146, 0.17677669
    %v2184 = vmul.f32 %v2149, 0.17677669
    %v2185 = vmul.f32 %v2154, 0.17677669
    %v2186 = vmul.f32 %v2157, 0.17677669
    %v2187 = vmul.f32 %v2162, 0.17677669
    %v2188 = vmul.f32 %v2165, 0.17677669
    %v2189 = vmul.f32 %v2170, 0.17677669
    %v2190 = vmul.f32 %v2173, 0.17677669
    %v2191 = vmul.f32 %v2178, 0.17677669
    %v2192 = vadd.f32 %v2183, %v1069
    %v2193 = vadd.f32 %v2184, %v1069
    %v2194 = vadd.f32 %v2185, %v1069
    %v2195 = vadd.f32 %v2186, %v1069
    %v2196 = vadd.f32 %v2187, %v1069
    %v2197 = vadd.f32 %v2188, %v1069
    %v2198 = vadd.f32 %v2189, %v1069
    %v2199 = vadd.f32 %v2190, %v1069
    %v2200 = vadd.f32 %v2191, %v1069
    %v2201 = vsel %vm1860, %v2192, -inf
    %2202 = vmax.xlane.f32.xlu0 %v2201
    %v2203 = vpop.xlane.xlu0 %2202
    %v2204 = vsel %vm1860, %v2193, -inf
    %2205 = vmax.xlane.f32.xlu0 %v2204
    %v2206 = vpop.xlane.xlu0 %2205
    %v2207 = vsel %vm1860, %v2194, -inf
    %2208 = vmax.xlane.f32.xlu0 %v2207
    %v2209 = vpop.xlane.xlu0 %2208
    %v2210 = vsel %vm1860, %v2195, -inf
    %2211 = vmax.xlane.f32.xlu0 %v2210
    %v2212 = vpop.xlane.xlu0 %2211
    %v2213 = vsel %vm1860, %v2196, -inf
    %2214 = vmax.xlane.f32.xlu0 %v2213
    %v2215 = vpop.xlane.xlu0 %2214
    %v2216 = vsel %vm1860, %v2197, -inf
    %2217 = vmax.xlane.f32.xlu0 %v2216
    %v2218 = vpop.xlane.xlu0 %2217
    %v2219 = vsel %vm1860, %v2198, -inf
    %2220 = vmax.xlane.f32.xlu0 %v2219
    %v2221 = vpop.xlane.xlu0 %2220
    %v2222 = vsel %vm1860, %v2199, -inf
    %2223 = vmax.xlane.f32.xlu0 %v2222
    %v2224 = vpop.xlane.xlu0 %2223
    %v2225 = vsel %vm1860, %v2200, -inf
    %2226 = vmax.xlane.f32.xlu0 %v2225
    %v2227 = vpop.xlane.xlu0 %2226
    %v2228 = vsub.f32 %v2192, %v2203
    %v2229 = vsub.f32 %v2193, %v2206
    %v2230 = vsub.f32 %v2194, %v2209
    %v2231 = vsub.f32 %v2195, %v2212
    %v2232 = vsub.f32 %v2196, %v2215
    %v2233 = vsub.f32 %v2197, %v2218
    %v2234 = vsub.f32 %v2198, %v2221
    %v2235 = vsub.f32 %v2199, %v2224
    %v2236 = vsub.f32 %v2200, %v2227
    %v2237 = vmul.f32 %v2228, 1.442695
    %v2238 = vpow.pop %v2237
    %v2239 = vmul.f32 %v2229, 1.442695
    %v2240 = vpow.pop %v2239
    %v2241 = vmul.f32 %v2230, 1.442695
    %v2242 = vpow.pop %v2241
    %v2243 = vmul.f32 %v2231, 1.442695
    %v2244 = vpow.pop %v2243
    %v2245 = vmul.f32 %v2232, 1.442695
    %v2246 = vpow.pop %v2245
    %v2247 = vmul.f32 %v2233, 1.442695
    %v2248 = vpow.pop %v2247
    %v2249 = vmul.f32 %v2234, 1.442695
    %v2250 = vpow.pop %v2249
    %v2251 = vmul.f32 %v2235, 1.442695
    %v2252 = vpow.pop %v2251
    %v2253 = vmul.f32 %v2236, 1.442695
    %v2254 = vpow.pop %v2253
    %v2255 = vsel %vm1860, %v2238, 0.0
    %2256 = vadd.xlane.f32.xlu0 %v2255
    %v2257 = vpop.xlane.xlu0 %2256
    %v2258 = vsel %vm1860, %v2240, 0.0
    %2259 = vadd.xlane.f32.xlu0 %v2258
    %v2260 = vpop.xlane.xlu0 %2259
    %v2261 = vsel %vm1860, %v2242, 0.0
    %2262 = vadd.xlane.f32.xlu0 %v2261
    %v2263 = vpop.xlane.xlu0 %2262
    %v2264 = vsel %vm1860, %v2244, 0.0
    %2265 = vadd.xlane.f32.xlu0 %v2264
    %v2266 = vpop.xlane.xlu0 %2265
    %v2267 = vsel %vm1860, %v2246, 0.0
    %2268 = vadd.xlane.f32.xlu0 %v2267
    %v2269 = vpop.xlane.xlu0 %2268
    %v2270 = vsel %vm1860, %v2248, 0.0
    %2271 = vadd.xlane.f32.xlu0 %v2270
    %v2272 = vpop.xlane.xlu0 %2271
    %v2273 = vsel %vm1860, %v2250, 0.0
    %2274 = vadd.xlane.f32.xlu0 %v2273
    %v2275 = vpop.xlane.xlu0 %2274
    %v2276 = vsel %vm1860, %v2252, 0.0
    %2277 = vadd.xlane.f32.xlu0 %v2276
    %v2278 = vpop.xlane.xlu0 %2277
    %v2279 = vsel %vm1860, %v2254, 0.0
    %2280 = vadd.xlane.f32.xlu0 %v2279
    %v2281 = vpop.xlane.xlu0 %2280
    %v2282 = vrcp.pop %v2257
    %v2283 = vrcp.pop %v2260
    %v2284 = vrcp.pop %v2263
    %v2285 = vrcp.pop %v2266
    %v2286 = vrcp.pop %v2269
    %v2287 = vrcp.pop %v2272
    %v2288 = vrcp.pop %v2275
    %v2289 = vrcp.pop %v2278
    %v2290 = vrcp.pop %v2281
    %v2291 = vmul.f32 %v2238, %v2282
    %v2292 = vmul.f32 %v2240, %v2283
    %v2293 = vmul.f32 %v2242, %v2284
    %v2294 = vmul.f32 %v2244, %v2285
    %v2295 = vmul.f32 %v2246, %v2286
    %v2296 = vmul.f32 %v2248, %v2287
    %v2297 = vmul.f32 %v2250, %v2288
    %v2298 = vmul.f32 %v2252, %v2289
    %v2299 = vmul.f32 %v2254, %v2290
    %v2300 = vpack.c.bf16 %v2292, %v2291
    %v2301 = vpack.c.bf16 %v2294, %v2293
    %v2302 = vpack.c.bf16 %v2296, %v2295
    %v2303 = vpack.c.bf16 %v2298, %v2297
    %v2304 = vpack.c.bf16 %v2299, %v2299
    %2310 = vrot.lane.b32.xlu0 %v1719, 96
    %v2311 = vpop.permute.xlu0 %2310
    %2312 = vrot.lane.b32.xlu0 %v1720, 96
    %v2313 = vpop.permute.xlu0 %2312
    %2314 = vrot.lane.b32.xlu0 %v1721, 96
    %v2315 = vpop.permute.xlu0 %2314
    %2316 = vrot.lane.b32.xlu0 %v1722, 96
    %v2317 = vpop.permute.xlu0 %2316
    %2318 = vrot.lane.b32.xlu0 %v1723, 96
    %v2319 = vpop.permute.xlu0 %2318
    %v2325 = vsel %vm1860, %v2300, 0
    %v2328 = vsel %vm1860, %v2301, 0
    %v2331 = vsel %vm1860, %v2302, 0
    %v2334 = vsel %vm1860, %v2303, 0
    %v2337 = vsel %vm1860, %v2304, 0
    %v2340 = vsel %vm1980, %v2319, 0
    %2342 = vmatprep.subr.bf16.mxu0 0
    %2343 = vmatpush1.bf16.msra.mxu0 0
    %2344 = vmatprep.subr.bf16.mxu0 0
    %2345 = vmatpush1.bf16.msra.mxu0 0
    %2346 = vmatprep.subr.bf16.mxu0 0
    %2347 = vmatpush1.bf16.msra.mxu0 0
    %2348 = vmatprep.subr.bf16.mxu0 0
    %2349 = vmatpush1.bf16.msra.mxu0 %v2340
    %2350 = vmatprep.subr.bf16.mxu0 0
    %2351 = vmatpush1.bf16.msra.mxu0 %v2317
    %2352 = vmatprep.subr.bf16.mxu0 0
    %2353 = vmatpush1.bf16.msra.mxu0 %v2315
    %2354 = vmatprep.subr.bf16.mxu0 0
    %2355 = vmatpush1.bf16.msra.mxu0 %v2313
    %2356 = vmatprep.subr.bf16.mxu0 0
    %2357 = vmatpush1.bf16.msra.mxu0 %v2311
    %2358 = vmatprep.subr.bf16.mxu0 0
    %2359 = vmatpush2.bf16.msra.mxu0 0
    %2360 = vmatprep.subr.bf16.mxu0 0
    %2361 = vmatpush2.bf16.msra.mxu0 0
    %2362 = vmatprep.subr.bf16.mxu0 0
    %2363 = vmatpush2.bf16.msra.mxu0 0
    %2364 = vmatprep.subr.bf16.mxu0 0
    %2365 = vmatpush2.bf16.msra.mxu0 0
    %2366 = vmatprep.subr.bf16.mxu0 0
    %2367 = vmatpush2.bf16.msra.mxu0 0
    %2368 = vmatprep.subr.bf16.mxu0 0
    %2369 = vmatpush2.bf16.msra.mxu0 0
    %2370 = vmatprep.subr.bf16.mxu0 0
    %2371 = vmatpush2.bf16.msra.mxu0 0
    %2372 = vmatprep.subr.bf16.mxu0 0
    %2373 = vmatpush2.bf16.msra.mxu0 0
    %2374 = vmatprep.mubr.bf16.mxu0 0
    %2375 = vmatmul.mubr.bf16.gmra.mxu0 %v2325
    %v2376 = vpop.f32.mrf.mxu0
    %v2377 = vadd.f32 0.0, %v2376
    %v2378 = vpop.f32.mrf.mxu0
    %v2379 = vpop.f32.mrf.mxu0
    %v2380 = vadd.f32 0.0, %v2379
    %v2381 = vpop.f32.mrf.mxu0
    %2382 = vmatprep.mubr.bf16.mxu0 0
    %2383 = vmatmul.mubr.bf16.gmra.mxu0 %v2328
    %v2384 = vpop.f32.mrf.mxu0
    %v2385 = vadd.f32 0.0, %v2384
    %v2386 = vpop.f32.mrf.mxu0
    %v2387 = vpop.f32.mrf.mxu0
    %v2388 = vadd.f32 0.0, %v2387
    %v2389 = vpop.f32.mrf.mxu0
    %2390 = vmatprep.mubr.bf16.mxu0 0
    %2391 = vmatmul.mubr.bf16.gmra.mxu0 %v2331
    %v2392 = vpop.f32.mrf.mxu0
    %v2393 = vadd.f32 0.0, %v2392
    %v2394 = vpop.f32.mrf.mxu0
    %v2395 = vpop.f32.mrf.mxu0
    %v2396 = vadd.f32 0.0, %v2395
    %v2397 = vpop.f32.mrf.mxu0
    %2398 = vmatprep.mubr.bf16.mxu0 0
    %2399 = vmatmul.mubr.bf16.gmra.mxu0 %v2334
    %v2400 = vpop.f32.mrf.mxu0
    %v2401 = vadd.f32 0.0, %v2400
    %v2402 = vpop.f32.mrf.mxu0
    %v2403 = vpop.f32.mrf.mxu0
    %v2404 = vadd.f32 0.0, %v2403
    %v2405 = vpop.f32.mrf.mxu0
    %2406 = vmatprep.mubr.bf16.mxu0 0
    %2407 = vmatmul.mubr.bf16.gmra.mxu0 %v2337
    %v2408 = vpop.f32.mrf.mxu0
    %v2409 = vadd.f32 0.0, %v2408
    %v2410 = vpop.f32.mrf.mxu0
    %v2411 = vpop.f32.mrf.mxu0
    %v2412 = vpop.f32.mrf.mxu0
    %2413 = vdwg.mxu0
    %v2414 = vpack.c.bf16 %v2380, %v2377
    %v2415 = vpack.c.bf16 %v2388, %v2385
    %v2416 = vpack.c.bf16 %v2396, %v2393
    %v2417 = vpack.c.bf16 %v2404, %v2401
    %v2418 = vpack.c.bf16 %v2409, %v2409
    %v2423 = vunpack.c.l.b16 %v1108
    %v2424 = vunpack.c.l.b16 %v1109
    %v2425 = vunpack.c.l.b16 %v1110
    %v2426 = vunpack.c.l.b16 %v1111
    %v2427 = vpack.c.b16 %v2424, %v2423
    %v2428 = vpack.c.b16 %v2426, %v2425
    %v2432 = vsel %vm1739, %v2414, 0
    %v2435 = vsel %vm1739, %v2415, 0
    %v2438 = vsel %vm1739, %v2416, 0
    %v2441 = vsel %vm1739, %v2417, 0
    %v2444 = vsel %vm1739, %v2418, 0
    %2446 = vmatprep.subr.bf16.mxu0 0
    %2447 = vmatpush1.bf16.msra.mxu0 0
    %2448 = vmatprep.subr.bf16.mxu0 0
    %2449 = vmatpush1.bf16.msra.mxu0 0
    %2450 = vmatprep.subr.bf16.mxu0 0
    %2451 = vmatpush1.bf16.msra.mxu0 0
    %2452 = vmatprep.subr.bf16.mxu0 0
    %2453 = vmatpush1.bf16.msra.mxu0 0
    %2454 = vmatprep.subr.bf16.mxu0 0
    %2455 = vmatpush1.bf16.msra.mxu0 0
    %2456 = vmatprep.subr.bf16.mxu0 0
    %2457 = vmatpush1.bf16.msra.mxu0 0
    %2458 = vmatprep.subr.bf16.mxu0 0
    %2459 = vmatpush1.bf16.msra.mxu0 %v2428
    %2460 = vmatprep.subr.bf16.mxu0 0
    %2461 = vmatpush1.bf16.msra.mxu0 %v2427
    %2462 = vmatprep.subr.bf16.mxu0 0
    %2463 = vmatpush2.bf16.msra.mxu0 0
    %2464 = vmatprep.subr.bf16.mxu0 0
    %2465 = vmatpush2.bf16.msra.mxu0 0
    %2466 = vmatprep.subr.bf16.mxu0 0
    %2467 = vmatpush2.bf16.msra.mxu0 0
    %2468 = vmatprep.subr.bf16.mxu0 0
    %2469 = vmatpush2.bf16.msra.mxu0 0
    %2470 = vmatprep.subr.bf16.mxu0 0
    %2471 = vmatpush2.bf16.msra.mxu0 0
    %2472 = vmatprep.subr.bf16.mxu0 0
    %2473 = vmatpush2.bf16.msra.mxu0 0
    %2474 = vmatprep.subr.bf16.mxu0 0
    %2475 = vmatpush2.bf16.msra.mxu0 0
    %2476 = vmatprep.subr.bf16.mxu0 0
    %2477 = vmatpush2.bf16.msra.mxu0 0
    %2478 = vmatprep.mubr.bf16.mxu0 0
    %2479 = vmatmul.mubr.bf16.gmra.mxu0 %v2432
    %v2480 = vpop.f32.mrf.mxu0
    %v2481 = vadd.f32 0.0, %v2480
    %v2482 = vpop.f32.mrf.mxu0
    %v2483 = vpop.f32.mrf.mxu0
    %v2484 = vadd.f32 0.0, %v2483
    %v2485 = vpop.f32.mrf.mxu0
    %2486 = vmatprep.mubr.bf16.mxu0 0
    %2487 = vmatmul.mubr.bf16.gmra.mxu0 %v2435
    %v2488 = vpop.f32.mrf.mxu0
    %v2489 = vadd.f32 0.0, %v2488
    %v2490 = vpop.f32.mrf.mxu0
    %v2491 = vpop.f32.mrf.mxu0
    %v2492 = vadd.f32 0.0, %v2491
    %v2493 = vpop.f32.mrf.mxu0
    %2494 = vmatprep.mubr.bf16.mxu0 0
    %2495 = vmatmul.mubr.bf16.gmra.mxu0 %v2438
    %v2496 = vpop.f32.mrf.mxu0
    %v2497 = vadd.f32 0.0, %v2496
    %v2498 = vpop.f32.mrf.mxu0
    %v2499 = vpop.f32.mrf.mxu0
    %v2500 = vadd.f32 0.0, %v2499
    %v2501 = vpop.f32.mrf.mxu0
    %2502 = vmatprep.mubr.bf16.mxu0 0
    %2503 = vmatmul.mubr.bf16.gmra.mxu0 %v2441
    %v2504 = vpop.f32.mrf.mxu0
    %v2505 = vadd.f32 0.0, %v2504
    %v2506 = vpop.f32.mrf.mxu0
    %v2507 = vpop.f32.mrf.mxu0
    %v2508 = vadd.f32 0.0, %v2507
    %v2509 = vpop.f32.mrf.mxu0
    %2510 = vmatprep.mubr.bf16.mxu0 0
    %2511 = vmatmul.mubr.bf16.gmra.mxu0 %v2444
    %v2512 = vpop.f32.mrf.mxu0
    %v2513 = vadd.f32 0.0, %v2512
    %v2514 = vpop.f32.mrf.mxu0
    %v2515 = vpop.f32.mrf.mxu0
    %v2516 = vpop.f32.mrf.mxu0
    %2517 = vdwg.mxu0
    %v2522 = vunpack.c.l.b16 %v1104
    %v2523 = vunpack.c.l.b16 %v1105
    %v2524 = vunpack.c.l.b16 %v1106
    %v2525 = vunpack.c.l.b16 %v1107
    %v2526 = vpack.c.b16 %v2523, %v2522
    %v2527 = vpack.c.b16 %v2525, %v2524
    %v2531 = vsel %vm1739, %v2056, 0
    %v2534 = vsel %vm1739, %v2057, 0
    %v2537 = vsel %vm1739, %v2058, 0
    %v2540 = vsel %vm1739, %v2059, 0
    %v2543 = vsel %vm1739, %v2060, 0
    %2545 = vmatprep.subr.bf16.mxu0 0
    %2546 = vmatpush1.bf16.msra.mxu0 0
    %2547 = vmatprep.subr.bf16.mxu0 0
    %2548 = vmatpush1.bf16.msra.mxu0 0
    %2549 = vmatprep.subr.bf16.mxu0 0
    %2550 = vmatpush1.bf16.msra.mxu0 0
    %2551 = vmatprep.subr.bf16.mxu0 0
    %2552 = vmatpush1.bf16.msra.mxu0 0
    %2553 = vmatprep.subr.bf16.mxu0 0
    %2554 = vmatpush1.bf16.msra.mxu0 0
    %2555 = vmatprep.subr.bf16.mxu0 0
    %2556 = vmatpush1.bf16.msra.mxu0 0
    %2557 = vmatprep.subr.bf16.mxu0 0
    %2558 = vmatpush1.bf16.msra.mxu0 %v2527
    %2559 = vmatprep.subr.bf16.mxu0 0
    %2560 = vmatpush1.bf16.msra.mxu0 %v2526
    %2561 = vmatprep.subr.bf16.mxu0 0
    %2562 = vmatpush2.bf16.msra.mxu0 0
    %2563 = vmatprep.subr.bf16.mxu0 0
    %2564 = vmatpush2.bf16.msra.mxu0 0
    %2565 = vmatprep.subr.bf16.mxu0 0
    %2566 = vmatpush2.bf16.msra.mxu0 0
    %2567 = vmatprep.subr.bf16.mxu0 0
    %2568 = vmatpush2.bf16.msra.mxu0 0
    %2569 = vmatprep.subr.bf16.mxu0 0
    %2570 = vmatpush2.bf16.msra.mxu0 0
    %2571 = vmatprep.subr.bf16.mxu0 0
    %2572 = vmatpush2.bf16.msra.mxu0 0
    %2573 = vmatprep.subr.bf16.mxu0 0
    %2574 = vmatpush2.bf16.msra.mxu0 0
    %2575 = vmatprep.subr.bf16.mxu0 0
    %2576 = vmatpush2.bf16.msra.mxu0 0
    %2577 = vmatprep.mubr.bf16.mxu0 0
    %2578 = vmatmul.mubr.bf16.gmra.mxu0 %v2531
    %v2579 = vpop.f32.mrf.mxu0
    %v2580 = vadd.f32 %v2481, %v2579
    %v2581 = vpop.f32.mrf.mxu0
    %v2582 = vpop.f32.mrf.mxu0
    %v2583 = vadd.f32 %v2484, %v2582
    %v2584 = vpop.f32.mrf.mxu0
    %2585 = vmatprep.mubr.bf16.mxu0 0
    %2586 = vmatmul.mubr.bf16.gmra.mxu0 %v2534
    %v2587 = vpop.f32.mrf.mxu0
    %v2588 = vadd.f32 %v2489, %v2587
    %v2589 = vpop.f32.mrf.mxu0
    %v2590 = vpop.f32.mrf.mxu0
    %v2591 = vadd.f32 %v2492, %v2590
    %v2592 = vpop.f32.mrf.mxu0
    %2593 = vmatprep.mubr.bf16.mxu0 0
    %2594 = vmatmul.mubr.bf16.gmra.mxu0 %v2537
    %v2595 = vpop.f32.mrf.mxu0
    %v2596 = vadd.f32 %v2497, %v2595
    %v2597 = vpop.f32.mrf.mxu0
    %v2598 = vpop.f32.mrf.mxu0
    %v2599 = vadd.f32 %v2500, %v2598
    %v2600 = vpop.f32.mrf.mxu0
    %2601 = vmatprep.mubr.bf16.mxu0 0
    %2602 = vmatmul.mubr.bf16.gmra.mxu0 %v2540
    %v2603 = vpop.f32.mrf.mxu0
    %v2604 = vadd.f32 %v2505, %v2603
    %v2605 = vpop.f32.mrf.mxu0
    %v2606 = vpop.f32.mrf.mxu0
    %v2607 = vadd.f32 %v2508, %v2606
    %v2608 = vpop.f32.mrf.mxu0
    %2609 = vmatprep.mubr.bf16.mxu0 0
    %2610 = vmatmul.mubr.bf16.gmra.mxu0 %v2543
    %v2611 = vpop.f32.mrf.mxu0
    %v2612 = vadd.f32 %v2513, %v2611
    %v2613 = vpop.f32.mrf.mxu0
    %v2614 = vpop.f32.mrf.mxu0
    %v2615 = vpop.f32.mrf.mxu0
    %2616 = vdwg.mxu0
    %v2617 = vpack.c.bf16 %v1676, %v1670
    %v2618 = vpack.c.bf16 %v1686, %v1680
    %v2619 = vpack.c.bf16 %v1696, %v1690
    %v2620 = vpack.c.bf16 %v1706, %v1700
    %v2621 = vpack.c.bf16 %v1710, %v1710
    %v2622 = vpack.c.bf16 %v1678, %v1672
    %v2623 = vpack.c.bf16 %v1688, %v1682
    %v2624 = vpack.c.bf16 %v1698, %v1692
    %v2625 = vpack.c.bf16 %v1708, %v1702
    %v2626 = vpack.c.bf16 %v1712, %v1712
    %2632 = vrot.lane.b32.xlu0 %v2617, 64
    %v2633 = vpop.permute.xlu0 %2632
    %2634 = vrot.lane.b32.xlu0 %v2618, 64
    %v2635 = vpop.permute.xlu0 %2634
    %2636 = vrot.lane.b32.xlu0 %v2619, 64
    %v2637 = vpop.permute.xlu0 %2636
    %2638 = vrot.lane.b32.xlu0 %v2620, 64
    %v2639 = vpop.permute.xlu0 %2638
    %2640 = vrot.lane.b32.xlu0 %v2621, 64
    %v2641 = vpop.permute.xlu0 %2640
    %v2643 = vsel %vm1739, %v2617, 0
    %v2646 = vsel %vm1739, %v2618, 0
    %v2649 = vsel %vm1739, %v2619, 0
    %v2652 = vsel %vm1739, %v2620, 0
    %v2655 = vsel %vm1739, %v2621, 0
    %v2658 = vsel %vm1739, %v2633, 0
    %v2661 = vsel %vm1739, %v2635, 0
    %v2664 = vsel %vm1739, %v2637, 0
    %v2667 = vsel %vm1739, %v2639, 0
    %v2670 = vsel %vm1739, %v2641, 0
    %2672 = vmatprep.subr.bf16.mxu0 0
    %2673 = vmatpush1.bf16.xpose.msra.mxu0 0
    %2674 = vmatprep.subr.bf16.mxu0 0
    %2675 = vmatpush1.bf16.xpose.msra.mxu0 0
    %2676 = vmatprep.subr.bf16.mxu0 0
    %2677 = vmatpush1.bf16.xpose.msra.mxu0 0
    %2678 = vmatprep.subr.bf16.mxu0 0
    %2679 = vmatpush1.bf16.xpose.msra.mxu0 %v2670
    %2680 = vmatprep.subr.bf16.mxu0 0
    %2681 = vmatpush1.bf16.xpose.msra.mxu0 %v2667
    %2682 = vmatprep.subr.bf16.mxu0 0
    %2683 = vmatpush1.bf16.xpose.msra.mxu0 %v2664
    %2684 = vmatprep.subr.bf16.mxu0 0
    %2685 = vmatpush1.bf16.xpose.msra.mxu0 %v2661
    %2686 = vmatprep.subr.bf16.mxu0 0
    %2687 = vmatpush1.bf16.xpose.msra.mxu0 %v2658
    %2688 = vmatprep.subr.bf16.mxu0 0
    %2689 = vmatpush2.bf16.xpose.msra.mxu0 0
    %2690 = vmatprep.subr.bf16.mxu0 0
    %2691 = vmatpush2.bf16.xpose.msra.mxu0 0
    %2692 = vmatprep.subr.bf16.mxu0 0
    %2693 = vmatpush2.bf16.xpose.msra.mxu0 0
    %2694 = vmatprep.subr.bf16.mxu0 0
    %2695 = vmatpush2.bf16.xpose.msra.mxu0 0
    %2696 = vmatprep.subr.bf16.mxu0 0
    %2697 = vmatpush2.bf16.xpose.msra.mxu0 0
    %2698 = vmatprep.subr.bf16.mxu0 0
    %2699 = vmatpush2.bf16.xpose.msra.mxu0 0
    %2700 = vmatprep.subr.bf16.mxu0 0
    %2701 = vmatpush2.bf16.xpose.msra.mxu0 0
    %2702 = vmatprep.subr.bf16.mxu0 0
    %2703 = vmatpush2.bf16.xpose.msra.mxu0 0
    %2704 = vmatprep.mubr.bf16.mxu0 0
    %2705 = vmatmul.mubr.bf16.gmra.mxu0 %v2643
    %v2706 = vpop.f32.mrf.mxu0
    %v2707 = vadd.f32 0.0, %v2706
    %v2708 = vpop.f32.mrf.mxu0
    %v2709 = vpop.f32.mrf.mxu0
    %v2710 = vadd.f32 0.0, %v2709
    %v2711 = vpop.f32.mrf.mxu0
    %2712 = vmatprep.mubr.bf16.mxu0 0
    %2713 = vmatmul.mubr.bf16.gmra.mxu0 %v2646
    %v2714 = vpop.f32.mrf.mxu0
    %v2715 = vadd.f32 0.0, %v2714
    %v2716 = vpop.f32.mrf.mxu0
    %v2717 = vpop.f32.mrf.mxu0
    %v2718 = vadd.f32 0.0, %v2717
    %v2719 = vpop.f32.mrf.mxu0
    %2720 = vmatprep.mubr.bf16.mxu0 0
    %2721 = vmatmul.mubr.bf16.gmra.mxu0 %v2649
    %v2722 = vpop.f32.mrf.mxu0
    %v2723 = vadd.f32 0.0, %v2722
    %v2724 = vpop.f32.mrf.mxu0
    %v2725 = vpop.f32.mrf.mxu0
    %v2726 = vadd.f32 0.0, %v2725
    %v2727 = vpop.f32.mrf.mxu0
    %2728 = vmatprep.mubr.bf16.mxu0 0
    %2729 = vmatmul.mubr.bf16.gmra.mxu0 %v2652
    %v2730 = vpop.f32.mrf.mxu0
    %v2731 = vadd.f32 0.0, %v2730
    %v2732 = vpop.f32.mrf.mxu0
    %v2733 = vpop.f32.mrf.mxu0
    %v2734 = vadd.f32 0.0, %v2733
    %v2735 = vpop.f32.mrf.mxu0
    %2736 = vmatprep.mubr.bf16.mxu0 0
    %2737 = vmatmul.mubr.bf16.gmra.mxu0 %v2655
    %v2738 = vpop.f32.mrf.mxu0
    %v2739 = vadd.f32 0.0, %v2738
    %v2740 = vpop.f32.mrf.mxu0
    %v2741 = vpop.f32.mrf.mxu0
    %v2742 = vpop.f32.mrf.mxu0
    %2743 = vdwg.mxu0
    %v2744 = vmul.f32 %v2707, 0.17677669
    %v2745 = vmul.f32 %v2710, 0.17677669
    %v2746 = vmul.f32 %v2715, 0.17677669
    %v2747 = vmul.f32 %v2718, 0.17677669
    %v2748 = vmul.f32 %v2723, 0.17677669
    %v2749 = vmul.f32 %v2726, 0.17677669
    %v2750 = vmul.f32 %v2731, 0.17677669
    %v2751 = vmul.f32 %v2734, 0.17677669
    %v2752 = vmul.f32 %v2739, 0.17677669
    %v2753 = vadd.f32 %v2744, %v1069
    %v2754 = vadd.f32 %v2745, %v1069
    %v2755 = vadd.f32 %v2746, %v1069
    %v2756 = vadd.f32 %v2747, %v1069
    %v2757 = vadd.f32 %v2748, %v1069
    %v2758 = vadd.f32 %v2749, %v1069
    %v2759 = vadd.f32 %v2750, %v1069
    %v2760 = vadd.f32 %v2751, %v1069
    %v2761 = vadd.f32 %v2752, %v1069
    %v2762 = vsel %vm1860, %v2753, -inf
    %2763 = vmax.xlane.f32.xlu0 %v2762
    %v2764 = vpop.xlane.xlu0 %2763
    %v2765 = vsel %vm1860, %v2754, -inf
    %2766 = vmax.xlane.f32.xlu0 %v2765
    %v2767 = vpop.xlane.xlu0 %2766
    %v2768 = vsel %vm1860, %v2755, -inf
    %2769 = vmax.xlane.f32.xlu0 %v2768
    %v2770 = vpop.xlane.xlu0 %2769
    %v2771 = vsel %vm1860, %v2756, -inf
    %2772 = vmax.xlane.f32.xlu0 %v2771
    %v2773 = vpop.xlane.xlu0 %2772
    %v2774 = vsel %vm1860, %v2757, -inf
    %2775 = vmax.xlane.f32.xlu0 %v2774
    %v2776 = vpop.xlane.xlu0 %2775
    %v2777 = vsel %vm1860, %v2758, -inf
    %2778 = vmax.xlane.f32.xlu0 %v2777
    %v2779 = vpop.xlane.xlu0 %2778
    %v2780 = vsel %vm1860, %v2759, -inf
    %2781 = vmax.xlane.f32.xlu0 %v2780
    %v2782 = vpop.xlane.xlu0 %2781
    %v2783 = vsel %vm1860, %v2760, -inf
    %2784 = vmax.xlane.f32.xlu0 %v2783
    %v2785 = vpop.xlane.xlu0 %2784
    %v2786 = vsel %vm1860, %v2761, -inf
    %2787 = vmax.xlane.f32.xlu0 %v2786
    %v2788 = vpop.xlane.xlu0 %2787
    %v2789 = vsub.f32 %v2753, %v2764
    %v2790 = vsub.f32 %v2754, %v2767
    %v2791 = vsub.f32 %v2755, %v2770
    %v2792 = vsub.f32 %v2756, %v2773
    %v2793 = vsub.f32 %v2757, %v2776
    %v2794 = vsub.f32 %v2758, %v2779
    %v2795 = vsub.f32 %v2759, %v2782
    %v2796 = vsub.f32 %v2760, %v2785
    %v2797 = vsub.f32 %v2761, %v2788
    %v2798 = vmul.f32 %v2789, 1.442695
    %v2799 = vpow.pop %v2798
    %v2800 = vmul.f32 %v2790, 1.442695
    %v2801 = vpow.pop %v2800
    %v2802 = vmul.f32 %v2791, 1.442695
    %v2803 = vpow.pop %v2802
    %v2804 = vmul.f32 %v2792, 1.442695
    %v2805 = vpow.pop %v2804
    %v2806 = vmul.f32 %v2793, 1.442695
    %v2807 = vpow.pop %v2806
    %v2808 = vmul.f32 %v2794, 1.442695
    %v2809 = vpow.pop %v2808
    %v2810 = vmul.f32 %v2795, 1.442695
    %v2811 = vpow.pop %v2810
    %v2812 = vmul.f32 %v2796, 1.442695
    %v2813 = vpow.pop %v2812
    %v2814 = vmul.f32 %v2797, 1.442695
    %v2815 = vpow.pop %v2814
    %v2816 = vsel %vm1860, %v2799, 0.0
    %2817 = vadd.xlane.f32.xlu0 %v2816
    %v2818 = vpop.xlane.xlu0 %2817
    %v2819 = vsel %vm1860, %v2801, 0.0
    %2820 = vadd.xlane.f32.xlu0 %v2819
    %v2821 = vpop.xlane.xlu0 %2820
    %v2822 = vsel %vm1860, %v2803, 0.0
    %2823 = vadd.xlane.f32.xlu0 %v2822
    %v2824 = vpop.xlane.xlu0 %2823
    %v2825 = vsel %vm1860, %v2805, 0.0
    %2826 = vadd.xlane.f32.xlu0 %v2825
    %v2827 = vpop.xlane.xlu0 %2826
    %v2828 = vsel %vm1860, %v2807, 0.0
    %2829 = vadd.xlane.f32.xlu0 %v2828
    %v2830 = vpop.xlane.xlu0 %2829
    %v2831 = vsel %vm1860, %v2809, 0.0
    %2832 = vadd.xlane.f32.xlu0 %v2831
    %v2833 = vpop.xlane.xlu0 %2832
    %v2834 = vsel %vm1860, %v2811, 0.0
    %2835 = vadd.xlane.f32.xlu0 %v2834
    %v2836 = vpop.xlane.xlu0 %2835
    %v2837 = vsel %vm1860, %v2813, 0.0
    %2838 = vadd.xlane.f32.xlu0 %v2837
    %v2839 = vpop.xlane.xlu0 %2838
    %v2840 = vsel %vm1860, %v2815, 0.0
    %2841 = vadd.xlane.f32.xlu0 %v2840
    %v2842 = vpop.xlane.xlu0 %2841
    %v2843 = vrcp.pop %v2818
    %v2844 = vrcp.pop %v2821
    %v2845 = vrcp.pop %v2824
    %v2846 = vrcp.pop %v2827
    %v2847 = vrcp.pop %v2830
    %v2848 = vrcp.pop %v2833
    %v2849 = vrcp.pop %v2836
    %v2850 = vrcp.pop %v2839
    %v2851 = vrcp.pop %v2842
    %v2852 = vmul.f32 %v2799, %v2843
    %v2853 = vmul.f32 %v2801, %v2844
    %v2854 = vmul.f32 %v2803, %v2845
    %v2855 = vmul.f32 %v2805, %v2846
    %v2856 = vmul.f32 %v2807, %v2847
    %v2857 = vmul.f32 %v2809, %v2848
    %v2858 = vmul.f32 %v2811, %v2849
    %v2859 = vmul.f32 %v2813, %v2850
    %v2860 = vmul.f32 %v2815, %v2851
    %v2861 = vpack.c.bf16 %v2853, %v2852
    %v2862 = vpack.c.bf16 %v2855, %v2854
    %v2863 = vpack.c.bf16 %v2857, %v2856
    %v2864 = vpack.c.bf16 %v2859, %v2858
    %v2865 = vpack.c.bf16 %v2860, %v2860
    %v2867 = vsel %vm1860, %v2861, 0
    %v2870 = vsel %vm1860, %v2862, 0
    %v2873 = vsel %vm1860, %v2863, 0
    %v2876 = vsel %vm1860, %v2864, 0
    %v2879 = vsel %vm1860, %v2865, 0
    %v2882 = vsel %vm1980, %v2626, 0
    %2884 = vmatprep.subr.bf16.mxu0 0
    %2885 = vmatpush1.bf16.msra.mxu0 0
    %2886 = vmatprep.subr.bf16.mxu0 0
    %2887 = vmatpush1.bf16.msra.mxu0 0
    %2888 = vmatprep.subr.bf16.mxu0 0
    %2889 = vmatpush1.bf16.msra.mxu0 0
    %2890 = vmatprep.subr.bf16.mxu0 0
    %2891 = vmatpush1.bf16.msra.mxu0 %v2882
    %2892 = vmatprep.subr.bf16.mxu0 0
    %2893 = vmatpush1.bf16.msra.mxu0 %v2625
    %2894 = vmatprep.subr.bf16.mxu0 0
    %2895 = vmatpush1.bf16.msra.mxu0 %v2624
    %2896 = vmatprep.subr.bf16.mxu0 0
    %2897 = vmatpush1.bf16.msra.mxu0 %v2623
    %2898 = vmatprep.subr.bf16.mxu0 0
    %2899 = vmatpush1.bf16.msra.mxu0 %v2622
    %2900 = vmatprep.subr.bf16.mxu0 0
    %2901 = vmatpush2.bf16.msra.mxu0 0
    %2902 = vmatprep.subr.bf16.mxu0 0
    %2903 = vmatpush2.bf16.msra.mxu0 0
    %2904 = vmatprep.subr.bf16.mxu0 0
    %2905 = vmatpush2.bf16.msra.mxu0 0
    %2906 = vmatprep.subr.bf16.mxu0 0
    %2907 = vmatpush2.bf16.msra.mxu0 0
    %2908 = vmatprep.subr.bf16.mxu0 0
    %2909 = vmatpush2.bf16.msra.mxu0 0
    %2910 = vmatprep.subr.bf16.mxu0 0
    %2911 = vmatpush2.bf16.msra.mxu0 0
    %2912 = vmatprep.subr.bf16.mxu0 0
    %2913 = vmatpush2.bf16.msra.mxu0 0
    %2914 = vmatprep.subr.bf16.mxu0 0
    %2915 = vmatpush2.bf16.msra.mxu0 0
    %2916 = vmatprep.mubr.bf16.mxu0 0
    %2917 = vmatmul.mubr.bf16.gmra.mxu0 %v2867
    %v2918 = vpop.f32.mrf.mxu0
    %v2919 = vadd.f32 0.0, %v2918
    %v2920 = vpop.f32.mrf.mxu0
    %v2921 = vpop.f32.mrf.mxu0
    %v2922 = vadd.f32 0.0, %v2921
    %v2923 = vpop.f32.mrf.mxu0
    %2924 = vmatprep.mubr.bf16.mxu0 0
    %2925 = vmatmul.mubr.bf16.gmra.mxu0 %v2870
    %v2926 = vpop.f32.mrf.mxu0
    %v2927 = vadd.f32 0.0, %v2926
    %v2928 = vpop.f32.mrf.mxu0
    %v2929 = vpop.f32.mrf.mxu0
    %v2930 = vadd.f32 0.0, %v2929
    %v2931 = vpop.f32.mrf.mxu0
    %2932 = vmatprep.mubr.bf16.mxu0 0
    %2933 = vmatmul.mubr.bf16.gmra.mxu0 %v2873
    %v2934 = vpop.f32.mrf.mxu0
    %v2935 = vadd.f32 0.0, %v2934
    %v2936 = vpop.f32.mrf.mxu0
    %v2937 = vpop.f32.mrf.mxu0
    %v2938 = vadd.f32 0.0, %v2937
    %v2939 = vpop.f32.mrf.mxu0
    %2940 = vmatprep.mubr.bf16.mxu0 0
    %2941 = vmatmul.mubr.bf16.gmra.mxu0 %v2876
    %v2942 = vpop.f32.mrf.mxu0
    %v2943 = vadd.f32 0.0, %v2942
    %v2944 = vpop.f32.mrf.mxu0
    %v2945 = vpop.f32.mrf.mxu0
    %v2946 = vadd.f32 0.0, %v2945
    %v2947 = vpop.f32.mrf.mxu0
    %2948 = vmatprep.mubr.bf16.mxu0 0
    %2949 = vmatmul.mubr.bf16.gmra.mxu0 %v2879
    %v2950 = vpop.f32.mrf.mxu0
    %v2951 = vadd.f32 0.0, %v2950
    %v2952 = vpop.f32.mrf.mxu0
    %v2953 = vpop.f32.mrf.mxu0
    %v2954 = vpop.f32.mrf.mxu0
    %2955 = vdwg.mxu0
    %v2956 = vpack.c.bf16 %v2922, %v2919
    %v2957 = vpack.c.bf16 %v2930, %v2927
    %v2958 = vpack.c.bf16 %v2938, %v2935
    %v2959 = vpack.c.bf16 %v2946, %v2943
    %v2960 = vpack.c.bf16 %v2951, %v2951
    %2961 = vrot.lane.b32.xlu0 %v2617, 96
    %v2962 = vpop.permute.xlu0 %2961
    %2963 = vrot.lane.b32.xlu0 %v2618, 96
    %v2964 = vpop.permute.xlu0 %2963
    %2965 = vrot.lane.b32.xlu0 %v2619, 96
    %v2966 = vpop.permute.xlu0 %2965
    %2967 = vrot.lane.b32.xlu0 %v2620, 96
    %v2968 = vpop.permute.xlu0 %2967
    %2969 = vrot.lane.b32.xlu0 %v2621, 96
    %v2970 = vpop.permute.xlu0 %2969
    %2971 = vrot.lane.b32.xlu0 %v2617, 32
    %v2972 = vpop.permute.xlu0 %2971
    %2973 = vrot.lane.b32.xlu0 %v2618, 32
    %v2974 = vpop.permute.xlu0 %2973
    %2975 = vrot.lane.b32.xlu0 %v2619, 32
    %v2976 = vpop.permute.xlu0 %2975
    %2977 = vrot.lane.b32.xlu0 %v2620, 32
    %v2978 = vpop.permute.xlu0 %2977
    %2979 = vrot.lane.b32.xlu0 %v2621, 32
    %v2980 = vpop.permute.xlu0 %2979
    %v2982 = vsel %vm1739, %v2962, 0
    %v2985 = vsel %vm1739, %v2964, 0
    %v2988 = vsel %vm1739, %v2966, 0
    %v2991 = vsel %vm1739, %v2968, 0
    %v2994 = vsel %vm1739, %v2970, 0
    %v2997 = vsel %vm1739, %v2972, 0
    %v3000 = vsel %vm1739, %v2974, 0
    %v3003 = vsel %vm1739, %v2976, 0
    %v3006 = vsel %vm1739, %v2978, 0
    %v3009 = vsel %vm1739, %v2980, 0
    %3011 = vmatprep.subr.bf16.mxu0 0
    %3012 = vmatpush1.bf16.xpose.msra.mxu0 0
    %3013 = vmatprep.subr.bf16.mxu0 0
    %3014 = vmatpush1.bf16.xpose.msra.mxu0 0
    %3015 = vmatprep.subr.bf16.mxu0 0
    %3016 = vmatpush1.bf16.xpose.msra.mxu0 0
    %3017 = vmatprep.subr.bf16.mxu0 0
    %3018 = vmatpush1.bf16.xpose.msra.mxu0 %v3009
    %3019 = vmatprep.subr.bf16.mxu0 0
    %3020 = vmatpush1.bf16.xpose.msra.mxu0 %v3006
    %3021 = vmatprep.subr.bf16.mxu0 0
    %3022 = vmatpush1.bf16.xpose.msra.mxu0 %v3003
    %3023 = vmatprep.subr.bf16.mxu0 0
    %3024 = vmatpush1.bf16.xpose.msra.mxu0 %v3000
    %3025 = vmatprep.subr.bf16.mxu0 0
    %3026 = vmatpush1.bf16.xpose.msra.mxu0 %v2997
    %3027 = vmatprep.subr.bf16.mxu0 0
    %3028 = vmatpush2.bf16.xpose.msra.mxu0 0
    %3029 = vmatprep.subr.bf16.mxu0 0
    %3030 = vmatpush2.bf16.xpose.msra.mxu0 0
    %3031 = vmatprep.subr.bf16.mxu0 0
    %3032 = vmatpush2.bf16.xpose.msra.mxu0 0
    %3033 = vmatprep.subr.bf16.mxu0 0
    %3034 = vmatpush2.bf16.xpose.msra.mxu0 0
    %3035 = vmatprep.subr.bf16.mxu0 0
    %3036 = vmatpush2.bf16.xpose.msra.mxu0 0
    %3037 = vmatprep.subr.bf16.mxu0 0
    %3038 = vmatpush2.bf16.xpose.msra.mxu0 0
    %3039 = vmatprep.subr.bf16.mxu0 0
    %3040 = vmatpush2.bf16.xpose.msra.mxu0 0
    %3041 = vmatprep.subr.bf16.mxu0 0
    %3042 = vmatpush2.bf16.xpose.msra.mxu0 0
    %3043 = vmatprep.mubr.bf16.mxu0 0
    %3044 = vmatmul.mubr.bf16.gmra.mxu0 %v2982
    %v3045 = vpop.f32.mrf.mxu0
    %v3046 = vadd.f32 0.0, %v3045
    %v3047 = vpop.f32.mrf.mxu0
    %v3048 = vpop.f32.mrf.mxu0
    %v3049 = vadd.f32 0.0, %v3048
    %v3050 = vpop.f32.mrf.mxu0
    %3051 = vmatprep.mubr.bf16.mxu0 0
    %3052 = vmatmul.mubr.bf16.gmra.mxu0 %v2985
    %v3053 = vpop.f32.mrf.mxu0
    %v3054 = vadd.f32 0.0, %v3053
    %v3055 = vpop.f32.mrf.mxu0
    %v3056 = vpop.f32.mrf.mxu0
    %v3057 = vadd.f32 0.0, %v3056
    %v3058 = vpop.f32.mrf.mxu0
    %3059 = vmatprep.mubr.bf16.mxu0 0
    %3060 = vmatmul.mubr.bf16.gmra.mxu0 %v2988
    %v3061 = vpop.f32.mrf.mxu0
    %v3062 = vadd.f32 0.0, %v3061
    %v3063 = vpop.f32.mrf.mxu0
    %v3064 = vpop.f32.mrf.mxu0
    %v3065 = vadd.f32 0.0, %v3064
    %v3066 = vpop.f32.mrf.mxu0
    %3067 = vmatprep.mubr.bf16.mxu0 0
    %3068 = vmatmul.mubr.bf16.gmra.mxu0 %v2991
    %v3069 = vpop.f32.mrf.mxu0
    %v3070 = vadd.f32 0.0, %v3069
    %v3071 = vpop.f32.mrf.mxu0
    %v3072 = vpop.f32.mrf.mxu0
    %v3073 = vadd.f32 0.0, %v3072
    %v3074 = vpop.f32.mrf.mxu0
    %3075 = vmatprep.mubr.bf16.mxu0 0
    %3076 = vmatmul.mubr.bf16.gmra.mxu0 %v2994
    %v3077 = vpop.f32.mrf.mxu0
    %v3078 = vadd.f32 0.0, %v3077
    %v3079 = vpop.f32.mrf.mxu0
    %v3080 = vpop.f32.mrf.mxu0
    %v3081 = vpop.f32.mrf.mxu0
    %3082 = vdwg.mxu0
    %v3083 = vmul.f32 %v3046, 0.17677669
    %v3084 = vmul.f32 %v3049, 0.17677669
    %v3085 = vmul.f32 %v3054, 0.17677669
    %v3086 = vmul.f32 %v3057, 0.17677669
    %v3087 = vmul.f32 %v3062, 0.17677669
    %v3088 = vmul.f32 %v3065, 0.17677669
    %v3089 = vmul.f32 %v3070, 0.17677669
    %v3090 = vmul.f32 %v3073, 0.17677669
    %v3091 = vmul.f32 %v3078, 0.17677669
    %v3092 = vadd.f32 %v3083, %v1069
    %v3093 = vadd.f32 %v3084, %v1069
    %v3094 = vadd.f32 %v3085, %v1069
    %v3095 = vadd.f32 %v3086, %v1069
    %v3096 = vadd.f32 %v3087, %v1069
    %v3097 = vadd.f32 %v3088, %v1069
    %v3098 = vadd.f32 %v3089, %v1069
    %v3099 = vadd.f32 %v3090, %v1069
    %v3100 = vadd.f32 %v3091, %v1069
    %v3101 = vsel %vm1860, %v3092, -inf
    %3102 = vmax.xlane.f32.xlu0 %v3101
    %v3103 = vpop.xlane.xlu0 %3102
    %v3104 = vsel %vm1860, %v3093, -inf
    %3105 = vmax.xlane.f32.xlu0 %v3104
    %v3106 = vpop.xlane.xlu0 %3105
    %v3107 = vsel %vm1860, %v3094, -inf
    %3108 = vmax.xlane.f32.xlu0 %v3107
    %v3109 = vpop.xlane.xlu0 %3108
    %v3110 = vsel %vm1860, %v3095, -inf
    %3111 = vmax.xlane.f32.xlu0 %v3110
    %v3112 = vpop.xlane.xlu0 %3111
    %v3113 = vsel %vm1860, %v3096, -inf
    %3114 = vmax.xlane.f32.xlu0 %v3113
    %v3115 = vpop.xlane.xlu0 %3114
    %v3116 = vsel %vm1860, %v3097, -inf
    %3117 = vmax.xlane.f32.xlu0 %v3116
    %v3118 = vpop.xlane.xlu0 %3117
    %v3119 = vsel %vm1860, %v3098, -inf
    %3120 = vmax.xlane.f32.xlu0 %v3119
    %v3121 = vpop.xlane.xlu0 %3120
    %v3122 = vsel %vm1860, %v3099, -inf
    %3123 = vmax.xlane.f32.xlu0 %v3122
    %v3124 = vpop.xlane.xlu0 %3123
    %v3125 = vsel %vm1860, %v3100, -inf
    %3126 = vmax.xlane.f32.xlu0 %v3125
    %v3127 = vpop.xlane.xlu0 %3126
    %v3128 = vsub.f32 %v3092, %v3103
    %v3129 = vsub.f32 %v3093, %v3106
    %v3130 = vsub.f32 %v3094, %v3109
    %v3131 = vsub.f32 %v3095, %v3112
    %v3132 = vsub.f32 %v3096, %v3115
    %v3133 = vsub.f32 %v3097, %v3118
    %v3134 = vsub.f32 %v3098, %v3121
    %v3135 = vsub.f32 %v3099, %v3124
    %v3136 = vsub.f32 %v3100, %v3127
    %v3137 = vmul.f32 %v3128, 1.442695
    %v3138 = vpow.pop %v3137
    %v3139 = vmul.f32 %v3129, 1.442695
    %v3140 = vpow.pop %v3139
    %v3141 = vmul.f32 %v3130, 1.442695
    %v3142 = vpow.pop %v3141
    %v3143 = vmul.f32 %v3131, 1.442695
    %v3144 = vpow.pop %v3143
    %v3145 = vmul.f32 %v3132, 1.442695
    %v3146 = vpow.pop %v3145
    %v3147 = vmul.f32 %v3133, 1.442695
    %v3148 = vpow.pop %v3147
    %v3149 = vmul.f32 %v3134, 1.442695
    %v3150 = vpow.pop %v3149
    %v3151 = vmul.f32 %v3135, 1.442695
    %v3152 = vpow.pop %v3151
    %v3153 = vmul.f32 %v3136, 1.442695
    %v3154 = vpow.pop %v3153
    %v3155 = vsel %vm1860, %v3138, 0.0
    %3156 = vadd.xlane.f32.xlu0 %v3155
    %v3157 = vpop.xlane.xlu0 %3156
    %v3158 = vsel %vm1860, %v3140, 0.0
    %3159 = vadd.xlane.f32.xlu0 %v3158
    %v3160 = vpop.xlane.xlu0 %3159
    %v3161 = vsel %vm1860, %v3142, 0.0
    %3162 = vadd.xlane.f32.xlu0 %v3161
    %v3163 = vpop.xlane.xlu0 %3162
    %v3164 = vsel %vm1860, %v3144, 0.0
    %3165 = vadd.xlane.f32.xlu0 %v3164
    %v3166 = vpop.xlane.xlu0 %3165
    %v3167 = vsel %vm1860, %v3146, 0.0
    %3168 = vadd.xlane.f32.xlu0 %v3167
    %v3169 = vpop.xlane.xlu0 %3168
    %v3170 = vsel %vm1860, %v3148, 0.0
    %3171 = vadd.xlane.f32.xlu0 %v3170
    %v3172 = vpop.xlane.xlu0 %3171
    %v3173 = vsel %vm1860, %v3150, 0.0
    %3174 = vadd.xlane.f32.xlu0 %v3173
    %v3175 = vpop.xlane.xlu0 %3174
    %v3176 = vsel %vm1860, %v3152, 0.0
    %3177 = vadd.xlane.f32.xlu0 %v3176
    %v3178 = vpop.xlane.xlu0 %3177
    %v3179 = vsel %vm1860, %v3154, 0.0
    %3180 = vadd.xlane.f32.xlu0 %v3179
    %v3181 = vpop.xlane.xlu0 %3180
    %v3182 = vrcp.pop %v3157
    %v3183 = vrcp.pop %v3160
    %v3184 = vrcp.pop %v3163
    %v3185 = vrcp.pop %v3166
    %v3186 = vrcp.pop %v3169
    %v3187 = vrcp.pop %v3172
    %v3188 = vrcp.pop %v3175
    %v3189 = vrcp.pop %v3178
    %v3190 = vrcp.pop %v3181
    %v3191 = vmul.f32 %v3138, %v3182
    %v3192 = vmul.f32 %v3140, %v3183
    %v3193 = vmul.f32 %v3142, %v3184
    %v3194 = vmul.f32 %v3144, %v3185
    %v3195 = vmul.f32 %v3146, %v3186
    %v3196 = vmul.f32 %v3148, %v3187
    %v3197 = vmul.f32 %v3150, %v3188
    %v3198 = vmul.f32 %v3152, %v3189
    %v3199 = vmul.f32 %v3154, %v3190
    %v3200 = vpack.c.bf16 %v3192, %v3191
    %v3201 = vpack.c.bf16 %v3194, %v3193
    %v3202 = vpack.c.bf16 %v3196, %v3195
    %v3203 = vpack.c.bf16 %v3198, %v3197
    %v3204 = vpack.c.bf16 %v3199, %v3199
    %3210 = vrot.lane.b32.xlu0 %v2622, 96
    %v3211 = vpop.permute.xlu0 %3210
    %3212 = vrot.lane.b32.xlu0 %v2623, 96
    %v3213 = vpop.permute.xlu0 %3212
    %3214 = vrot.lane.b32.xlu0 %v2624, 96
    %v3215 = vpop.permute.xlu0 %3214
    %3216 = vrot.lane.b32.xlu0 %v2625, 96
    %v3217 = vpop.permute.xlu0 %3216
    %3218 = vrot.lane.b32.xlu0 %v2626, 96
    %v3219 = vpop.permute.xlu0 %3218
    %v3225 = vsel %vm1860, %v3200, 0
    %v3228 = vsel %vm1860, %v3201, 0
    %v3231 = vsel %vm1860, %v3202, 0
    %v3234 = vsel %vm1860, %v3203, 0
    %v3237 = vsel %vm1860, %v3204, 0
    %v3240 = vsel %vm1980, %v3219, 0
    %3242 = vmatprep.subr.bf16.mxu0 0
    %3243 = vmatpush1.bf16.msra.mxu0 0
    %3244 = vmatprep.subr.bf16.mxu0 0
    %3245 = vmatpush1.bf16.msra.mxu0 0
    %3246 = vmatprep.subr.bf16.mxu0 0
    %3247 = vmatpush1.bf16.msra.mxu0 0
    %3248 = vmatprep.subr.bf16.mxu0 0
    %3249 = vmatpush1.bf16.msra.mxu0 %v3240
    %3250 = vmatprep.subr.bf16.mxu0 0
    %3251 = vmatpush1.bf16.msra.mxu0 %v3217
    %3252 = vmatprep.subr.bf16.mxu0 0
    %3253 = vmatpush1.bf16.msra.mxu0 %v3215
    %3254 = vmatprep.subr.bf16.mxu0 0
    %3255 = vmatpush1.bf16.msra.mxu0 %v3213
    %3256 = vmatprep.subr.bf16.mxu0 0
    %3257 = vmatpush1.bf16.msra.mxu0 %v3211
    %3258 = vmatprep.subr.bf16.mxu0 0
    %3259 = vmatpush2.bf16.msra.mxu0 0
    %3260 = vmatprep.subr.bf16.mxu0 0
    %3261 = vmatpush2.bf16.msra.mxu0 0
    %3262 = vmatprep.subr.bf16.mxu0 0
    %3263 = vmatpush2.bf16.msra.mxu0 0
    %3264 = vmatprep.subr.bf16.mxu0 0
    %3265 = vmatpush2.bf16.msra.mxu0 0
    %3266 = vmatprep.subr.bf16.mxu0 0
    %3267 = vmatpush2.bf16.msra.mxu0 0
    %3268 = vmatprep.subr.bf16.mxu0 0
    %3269 = vmatpush2.bf16.msra.mxu0 0
    %3270 = vmatprep.subr.bf16.mxu0 0
    %3271 = vmatpush2.bf16.msra.mxu0 0
    %3272 = vmatprep.subr.bf16.mxu0 0
    %3273 = vmatpush2.bf16.msra.mxu0 0
    %3274 = vmatprep.mubr.bf16.mxu0 0
    %3275 = vmatmul.mubr.bf16.gmra.mxu0 %v3225
    %v3276 = vpop.f32.mrf.mxu0
    %v3277 = vadd.f32 0.0, %v3276
    %v3278 = vpop.f32.mrf.mxu0
    %v3279 = vpop.f32.mrf.mxu0
    %v3280 = vadd.f32 0.0, %v3279
    %v3281 = vpop.f32.mrf.mxu0
    %3282 = vmatprep.mubr.bf16.mxu0 0
    %3283 = vmatmul.mubr.bf16.gmra.mxu0 %v3228
    %v3284 = vpop.f32.mrf.mxu0
    %v3285 = vadd.f32 0.0, %v3284
    %v3286 = vpop.f32.mrf.mxu0
    %v3287 = vpop.f32.mrf.mxu0
    %v3288 = vadd.f32 0.0, %v3287
    %v3289 = vpop.f32.mrf.mxu0
    %3290 = vmatprep.mubr.bf16.mxu0 0
    %3291 = vmatmul.mubr.bf16.gmra.mxu0 %v3231
    %v3292 = vpop.f32.mrf.mxu0
    %v3293 = vadd.f32 0.0, %v3292
    %v3294 = vpop.f32.mrf.mxu0
    %v3295 = vpop.f32.mrf.mxu0
    %v3296 = vadd.f32 0.0, %v3295
    %v3297 = vpop.f32.mrf.mxu0
    %3298 = vmatprep.mubr.bf16.mxu0 0
    %3299 = vmatmul.mubr.bf16.gmra.mxu0 %v3234
    %v3300 = vpop.f32.mrf.mxu0
    %v3301 = vadd.f32 0.0, %v3300
    %v3302 = vpop.f32.mrf.mxu0
    %v3303 = vpop.f32.mrf.mxu0
    %v3304 = vadd.f32 0.0, %v3303
    %v3305 = vpop.f32.mrf.mxu0
    %3306 = vmatprep.mubr.bf16.mxu0 0
    %3307 = vmatmul.mubr.bf16.gmra.mxu0 %v3237
    %v3308 = vpop.f32.mrf.mxu0
    %v3309 = vadd.f32 0.0, %v3308
    %v3310 = vpop.f32.mrf.mxu0
    %v3311 = vpop.f32.mrf.mxu0
    %v3312 = vpop.f32.mrf.mxu0
    %3313 = vdwg.mxu0
    %v3314 = vpack.c.bf16 %v3280, %v3277
    %v3315 = vpack.c.bf16 %v3288, %v3285
    %v3316 = vpack.c.bf16 %v3296, %v3293
    %v3317 = vpack.c.bf16 %v3304, %v3301
    %v3318 = vpack.c.bf16 %v3309, %v3309
    %v3320 = vsel %vm1739, %v3314, 0
    %v3323 = vsel %vm1739, %v3315, 0
    %v3326 = vsel %vm1739, %v3316, 0
    %v3329 = vsel %vm1739, %v3317, 0
    %v3332 = vsel %vm1739, %v3318, 0
    %3334 = vmatprep.subr.bf16.mxu0 0
    %3335 = vmatpush1.bf16.msra.mxu0 0
    %3336 = vmatprep.subr.bf16.mxu0 0
    %3337 = vmatpush1.bf16.msra.mxu0 0
    %3338 = vmatprep.subr.bf16.mxu0 0
    %3339 = vmatpush1.bf16.msra.mxu0 0
    %3340 = vmatprep.subr.bf16.mxu0 0
    %3341 = vmatpush1.bf16.msra.mxu0 0
    %3342 = vmatprep.subr.bf16.mxu0 0
    %3343 = vmatpush1.bf16.msra.mxu0 0
    %3344 = vmatprep.subr.bf16.mxu0 0
    %3345 = vmatpush1.bf16.msra.mxu0 0
    %3346 = vmatprep.subr.bf16.mxu0 0
    %3347 = vmatpush1.bf16.msra.mxu0 %v2428
    %3348 = vmatprep.subr.bf16.mxu0 0
    %3349 = vmatpush1.bf16.msra.mxu0 %v2427
    %3350 = vmatprep.subr.bf16.mxu0 0
    %3351 = vmatpush2.bf16.msra.mxu0 0
    %3352 = vmatprep.subr.bf16.mxu0 0
    %3353 = vmatpush2.bf16.msra.mxu0 0
    %3354 = vmatprep.subr.bf16.mxu0 0
    %3355 = vmatpush2.bf16.msra.mxu0 0
    %3356 = vmatprep.subr.bf16.mxu0 0
    %3357 = vmatpush2.bf16.msra.mxu0 0
    %3358 = vmatprep.subr.bf16.mxu0 0
    %3359 = vmatpush2.bf16.msra.mxu0 0
    %3360 = vmatprep.subr.bf16.mxu0 0
    %3361 = vmatpush2.bf16.msra.mxu0 0
    %3362 = vmatprep.subr.bf16.mxu0 0
    %3363 = vmatpush2.bf16.msra.mxu0 0
    %3364 = vmatprep.subr.bf16.mxu0 0
    %3365 = vmatpush2.bf16.msra.mxu0 0
    %3366 = vmatprep.mubr.bf16.mxu0 0
    %3367 = vmatmul.mubr.bf16.gmra.mxu0 %v3320
    %v3368 = vpop.f32.mrf.mxu0
    %v3369 = vadd.f32 0.0, %v3368
    %v3370 = vpop.f32.mrf.mxu0
    %v3371 = vpop.f32.mrf.mxu0
    %v3372 = vadd.f32 0.0, %v3371
    %v3373 = vpop.f32.mrf.mxu0
    %3374 = vmatprep.mubr.bf16.mxu0 0
    %3375 = vmatmul.mubr.bf16.gmra.mxu0 %v3323
    %v3376 = vpop.f32.mrf.mxu0
    %v3377 = vadd.f32 0.0, %v3376
    %v3378 = vpop.f32.mrf.mxu0
    %v3379 = vpop.f32.mrf.mxu0
    %v3380 = vadd.f32 0.0, %v3379
    %v3381 = vpop.f32.mrf.mxu0
    %3382 = vmatprep.mubr.bf16.mxu0 0
    %3383 = vmatmul.mubr.bf16.gmra.mxu0 %v3326
    %v3384 = vpop.f32.mrf.mxu0
    %v3385 = vadd.f32 0.0, %v3384
    %v3386 = vpop.f32.mrf.mxu0
    %v3387 = vpop.f32.mrf.mxu0
    %v3388 = vadd.f32 0.0, %v3387
    %v3389 = vpop.f32.mrf.mxu0
    %3390 = vmatprep.mubr.bf16.mxu0 0
    %3391 = vmatmul.mubr.bf16.gmra.mxu0 %v3329
    %v3392 = vpop.f32.mrf.mxu0
    %v3393 = vadd.f32 0.0, %v3392
    %v3394 = vpop.f32.mrf.mxu0
    %v3395 = vpop.f32.mrf.mxu0
    %v3396 = vadd.f32 0.0, %v3395
    %v3397 = vpop.f32.mrf.mxu0
    %3398 = vmatprep.mubr.bf16.mxu0 0
    %3399 = vmatmul.mubr.bf16.gmra.mxu0 %v3332
    %v3400 = vpop.f32.mrf.mxu0
    %v3401 = vadd.f32 0.0, %v3400
    %v3402 = vpop.f32.mrf.mxu0
    %v3403 = vpop.f32.mrf.mxu0
    %v3404 = vpop.f32.mrf.mxu0
    %3405 = vdwg.mxu0
    %v3407 = vsel %vm1739, %v2956, 0
    %v3410 = vsel %vm1739, %v2957, 0
    %v3413 = vsel %vm1739, %v2958, 0
    %v3416 = vsel %vm1739, %v2959, 0
    %v3419 = vsel %vm1739, %v2960, 0
    %3421 = vmatprep.subr.bf16.mxu0 0
    %3422 = vmatpush1.bf16.msra.mxu0 0
    %3423 = vmatprep.subr.bf16.mxu0 0
    %3424 = vmatpush1.bf16.msra.mxu0 0
    %3425 = vmatprep.subr.bf16.mxu0 0
    %3426 = vmatpush1.bf16.msra.mxu0 0
    %3427 = vmatprep.subr.bf16.mxu0 0
    %3428 = vmatpush1.bf16.msra.mxu0 0
    %3429 = vmatprep.subr.bf16.mxu0 0
    %3430 = vmatpush1.bf16.msra.mxu0 0
    %3431 = vmatprep.subr.bf16.mxu0 0
    %3432 = vmatpush1.bf16.msra.mxu0 0
    %3433 = vmatprep.subr.bf16.mxu0 0
    %3434 = vmatpush1.bf16.msra.mxu0 %v2527
    %3435 = vmatprep.subr.bf16.mxu0 0
    %3436 = vmatpush1.bf16.msra.mxu0 %v2526
    %3437 = vmatprep.subr.bf16.mxu0 0
    %3438 = vmatpush2.bf16.msra.mxu0 0
    %3439 = vmatprep.subr.bf16.mxu0 0
    %3440 = vmatpush2.bf16.msra.mxu0 0
    %3441 = vmatprep.subr.bf16.mxu0 0
    %3442 = vmatpush2.bf16.msra.mxu0 0
    %3443 = vmatprep.subr.bf16.mxu0 0
    %3444 = vmatpush2.bf16.msra.mxu0 0
    %3445 = vmatprep.subr.bf16.mxu0 0
    %3446 = vmatpush2.bf16.msra.mxu0 0
    %3447 = vmatprep.subr.bf16.mxu0 0
    %3448 = vmatpush2.bf16.msra.mxu0 0
    %3449 = vmatprep.subr.bf16.mxu0 0
    %3450 = vmatpush2.bf16.msra.mxu0 0
    %3451 = vmatprep.subr.bf16.mxu0 0
    %3452 = vmatpush2.bf16.msra.mxu0 0
    %3453 = vmatprep.mubr.bf16.mxu0 0
    %3454 = vmatmul.mubr.bf16.gmra.mxu0 %v3407
    %v3455 = vpop.f32.mrf.mxu0
    %v3456 = vadd.f32 %v3369, %v3455
    %v3457 = vpop.f32.mrf.mxu0
    %v3458 = vpop.f32.mrf.mxu0
    %v3459 = vadd.f32 %v3372, %v3458
    %v3460 = vpop.f32.mrf.mxu0
    %3461 = vmatprep.mubr.bf16.mxu0 0
    %3462 = vmatmul.mubr.bf16.gmra.mxu0 %v3410
    %v3463 = vpop.f32.mrf.mxu0
    %v3464 = vadd.f32 %v3377, %v3463
    %v3465 = vpop.f32.mrf.mxu0
    %v3466 = vpop.f32.mrf.mxu0
    %v3467 = vadd.f32 %v3380, %v3466
    %v3468 = vpop.f32.mrf.mxu0
    %3469 = vmatprep.mubr.bf16.mxu0 0
    %3470 = vmatmul.mubr.bf16.gmra.mxu0 %v3413
    %v3471 = vpop.f32.mrf.mxu0
    %v3472 = vadd.f32 %v3385, %v3471
    %v3473 = vpop.f32.mrf.mxu0
    %v3474 = vpop.f32.mrf.mxu0
    %v3475 = vadd.f32 %v3388, %v3474
    %v3476 = vpop.f32.mrf.mxu0
    %3477 = vmatprep.mubr.bf16.mxu0 0
    %3478 = vmatmul.mubr.bf16.gmra.mxu0 %v3416
    %v3479 = vpop.f32.mrf.mxu0
    %v3480 = vadd.f32 %v3393, %v3479
    %v3481 = vpop.f32.mrf.mxu0
    %v3482 = vpop.f32.mrf.mxu0
    %v3483 = vadd.f32 %v3396, %v3482
    %v3484 = vpop.f32.mrf.mxu0
    %3485 = vmatprep.mubr.bf16.mxu0 0
    %3486 = vmatmul.mubr.bf16.gmra.mxu0 %v3419
    %v3487 = vpop.f32.mrf.mxu0
    %v3488 = vadd.f32 %v3401, %v3487
    %v3489 = vpop.f32.mrf.mxu0
    %v3490 = vpop.f32.mrf.mxu0
    %v3491 = vpop.f32.mrf.mxu0
    %3492 = vdwg.mxu0
    %v3493 = vadd.f32 %v1050, %v2580
    %v3494 = vadd.f32 %v1051, %v2583
    %v3495 = vadd.f32 %v1052, %v2588
    %v3496 = vadd.f32 %v1053, %v2591
    %v3497 = vadd.f32 %v1054, %v2596
    %v3498 = vadd.f32 %v1055, %v2599
    %v3499 = vadd.f32 %v1056, %v2604
    %v3500 = vadd.f32 %v1057, %v2607
    %v3501 = vadd.f32 %v1058, %v2612
    %v3502 = vadd.f32 %v1059, %v3456
    %v3503 = vadd.f32 %v1060, %v3459
    %v3504 = vadd.f32 %v1061, %v3464
    %v3505 = vadd.f32 %v1062, %v3467
    %v3506 = vadd.f32 %v1063, %v3472
    %v3507 = vadd.f32 %v1064, %v3475
    %v3508 = vadd.f32 %v1065, %v3480
    %v3509 = vadd.f32 %v1066, %v3483
    %v3510 = vadd.f32 %v1067, %v3488
    %v3511 = vadd.f32 %v3493, %v1074
    %v3512 = vadd.f32 %v3494, %v1074
    %v3513 = vadd.f32 %v3495, %v1074
    %v3514 = vadd.f32 %v3496, %v1074
    %v3515 = vadd.f32 %v3497, %v1074
    %v3516 = vadd.f32 %v3498, %v1074
    %v3517 = vadd.f32 %v3499, %v1074
    %v3518 = vadd.f32 %v3500, %v1074
    %v3519 = vadd.f32 %v3501, %v1074
    %v3520 = vadd.f32 %v3502, %v1074
    %v3521 = vadd.f32 %v3503, %v1074
    %v3522 = vadd.f32 %v3504, %v1074
    %v3523 = vadd.f32 %v3505, %v1074
    %v3524 = vadd.f32 %v3506, %v1074
    %v3525 = vadd.f32 %v3507, %v1074
    %v3526 = vadd.f32 %v3508, %v1074
    %v3527 = vadd.f32 %v3509, %v1074
    %v3528 = vadd.f32 %v3510, %v1074
    %v3529 = vsel %vm1176, %v3511, 0.0
    %3530 = vadd.xlane.f32.xlu0 %v3529
    %v3531 = vpop.xlane.xlu0 %3530
    %v3532 = vsel %vm1176, %v3512, 0.0
    %3533 = vadd.xlane.f32.xlu0 %v3532
    %v3534 = vpop.xlane.xlu0 %3533
    %v3535 = vsel %vm1176, %v3513, 0.0
    %3536 = vadd.xlane.f32.xlu0 %v3535
    %v3537 = vpop.xlane.xlu0 %3536
    %v3538 = vsel %vm1176, %v3514, 0.0
    %3539 = vadd.xlane.f32.xlu0 %v3538
    %v3540 = vpop.xlane.xlu0 %3539
    %v3541 = vsel %vm1176, %v3515, 0.0
    %3542 = vadd.xlane.f32.xlu0 %v3541
    %v3543 = vpop.xlane.xlu0 %3542
    %v3544 = vsel %vm1176, %v3516, 0.0
    %3545 = vadd.xlane.f32.xlu0 %v3544
    %v3546 = vpop.xlane.xlu0 %3545
    %v3547 = vsel %vm1176, %v3517, 0.0
    %3548 = vadd.xlane.f32.xlu0 %v3547
    %v3549 = vpop.xlane.xlu0 %3548
    %v3550 = vsel %vm1176, %v3518, 0.0
    %3551 = vadd.xlane.f32.xlu0 %v3550
    %v3552 = vpop.xlane.xlu0 %3551
    %v3553 = vsel %vm1176, %v3519, 0.0
    %3554 = vadd.xlane.f32.xlu0 %v3553
    %v3555 = vpop.xlane.xlu0 %3554
    %v3556 = vsel %vm1176, %v3520, 0.0
    %3557 = vadd.xlane.f32.xlu0 %v3556
    %v3558 = vpop.xlane.xlu0 %3557
    %v3559 = vsel %vm1176, %v3521, 0.0
    %3560 = vadd.xlane.f32.xlu0 %v3559
    %v3561 = vpop.xlane.xlu0 %3560
    %v3562 = vsel %vm1176, %v3522, 0.0
    %3563 = vadd.xlane.f32.xlu0 %v3562
    %v3564 = vpop.xlane.xlu0 %3563
    %v3565 = vsel %vm1176, %v3523, 0.0
    %3566 = vadd.xlane.f32.xlu0 %v3565
    %v3567 = vpop.xlane.xlu0 %3566
    %v3568 = vsel %vm1176, %v3524, 0.0
    %3569 = vadd.xlane.f32.xlu0 %v3568
    %v3570 = vpop.xlane.xlu0 %3569
    %v3571 = vsel %vm1176, %v3525, 0.0
    %3572 = vadd.xlane.f32.xlu0 %v3571
    %v3573 = vpop.xlane.xlu0 %3572
    %v3574 = vsel %vm1176, %v3526, 0.0
    %3575 = vadd.xlane.f32.xlu0 %v3574
    %v3576 = vpop.xlane.xlu0 %3575
    %v3577 = vsel %vm1176, %v3527, 0.0
    %3578 = vadd.xlane.f32.xlu0 %v3577
    %v3579 = vpop.xlane.xlu0 %3578
    %v3580 = vsel %vm1176, %v3528, 0.0
    %3581 = vadd.xlane.f32.xlu0 %v3580
    %v3582 = vpop.xlane.xlu0 %3581
    %v3583 = vmul.f32 %v3531, %v1231
    %v3584 = vmul.f32 %v3534, %v1231
    %v3585 = vmul.f32 %v3537, %v1231
    %v3586 = vmul.f32 %v3540, %v1231
    %v3587 = vmul.f32 %v3543, %v1231
    %v3588 = vmul.f32 %v3546, %v1231
    %v3589 = vmul.f32 %v3549, %v1231
    %v3590 = vmul.f32 %v3552, %v1231
    %v3591 = vmul.f32 %v3555, %v1231
    %v3592 = vmul.f32 %v3558, %v1231
    %v3593 = vmul.f32 %v3561, %v1231
    %v3594 = vmul.f32 %v3564, %v1231
    %v3595 = vmul.f32 %v3567, %v1231
    %v3596 = vmul.f32 %v3570, %v1231
    %v3597 = vmul.f32 %v3573, %v1231
    %v3598 = vmul.f32 %v3576, %v1231
    %v3599 = vmul.f32 %v3579, %v1231
    %v3600 = vmul.f32 %v3582, %v1231
    %v3601 = vsub.f32 %v3511, %v3583
    %v3602 = vsub.f32 %v3512, %v3584
    %v3603 = vsub.f32 %v3513, %v3585
    %v3604 = vsub.f32 %v3514, %v3586
    %v3605 = vsub.f32 %v3515, %v3587
    %v3606 = vsub.f32 %v3516, %v3588
    %v3607 = vsub.f32 %v3517, %v3589
    %v3608 = vsub.f32 %v3518, %v3590
    %v3609 = vsub.f32 %v3519, %v3591
    %v3610 = vsub.f32 %v3520, %v3592
    %v3611 = vsub.f32 %v3521, %v3593
    %v3612 = vsub.f32 %v3522, %v3594
    %v3613 = vsub.f32 %v3523, %v3595
    %v3614 = vsub.f32 %v3524, %v3596
    %v3615 = vsub.f32 %v3525, %v3597
    %v3616 = vsub.f32 %v3526, %v3598
    %v3617 = vsub.f32 %v3527, %v3599
    %v3618 = vsub.f32 %v3528, %v3600
    %v3619 = vmul.f32 %v3601, %v3601
    %v3620 = vmul.f32 %v3602, %v3602
    %v3621 = vmul.f32 %v3603, %v3603
    %v3622 = vmul.f32 %v3604, %v3604
    %v3623 = vmul.f32 %v3605, %v3605
    %v3624 = vmul.f32 %v3606, %v3606
    %v3625 = vmul.f32 %v3607, %v3607
    %v3626 = vmul.f32 %v3608, %v3608
    %v3627 = vmul.f32 %v3609, %v3609
    %v3628 = vmul.f32 %v3610, %v3610
    %v3629 = vmul.f32 %v3611, %v3611
    %v3630 = vmul.f32 %v3612, %v3612
    %v3631 = vmul.f32 %v3613, %v3613
    %v3632 = vmul.f32 %v3614, %v3614
    %v3633 = vmul.f32 %v3615, %v3615
    %v3634 = vmul.f32 %v3616, %v3616
    %v3635 = vmul.f32 %v3617, %v3617
    %v3636 = vmul.f32 %v3618, %v3618
    %v3637 = vsel %vm1176, %v3619, 0.0
    %3638 = vadd.xlane.f32.xlu0 %v3637
    %v3639 = vpop.xlane.xlu0 %3638
    %v3640 = vsel %vm1176, %v3620, 0.0
    %3641 = vadd.xlane.f32.xlu0 %v3640
    %v3642 = vpop.xlane.xlu0 %3641
    %v3643 = vsel %vm1176, %v3621, 0.0
    %3644 = vadd.xlane.f32.xlu0 %v3643
    %v3645 = vpop.xlane.xlu0 %3644
    %v3646 = vsel %vm1176, %v3622, 0.0
    %3647 = vadd.xlane.f32.xlu0 %v3646
    %v3648 = vpop.xlane.xlu0 %3647
    %v3649 = vsel %vm1176, %v3623, 0.0
    %3650 = vadd.xlane.f32.xlu0 %v3649
    %v3651 = vpop.xlane.xlu0 %3650
    %v3652 = vsel %vm1176, %v3624, 0.0
    %3653 = vadd.xlane.f32.xlu0 %v3652
    %v3654 = vpop.xlane.xlu0 %3653
    %v3655 = vsel %vm1176, %v3625, 0.0
    %3656 = vadd.xlane.f32.xlu0 %v3655
    %v3657 = vpop.xlane.xlu0 %3656
    %v3658 = vsel %vm1176, %v3626, 0.0
    %3659 = vadd.xlane.f32.xlu0 %v3658
    %v3660 = vpop.xlane.xlu0 %3659
    %v3661 = vsel %vm1176, %v3627, 0.0
    %3662 = vadd.xlane.f32.xlu0 %v3661
    %v3663 = vpop.xlane.xlu0 %3662
    %v3664 = vsel %vm1176, %v3628, 0.0
    %3665 = vadd.xlane.f32.xlu0 %v3664
    %v3666 = vpop.xlane.xlu0 %3665
    %v3667 = vsel %vm1176, %v3629, 0.0
    %3668 = vadd.xlane.f32.xlu0 %v3667
    %v3669 = vpop.xlane.xlu0 %3668
    %v3670 = vsel %vm1176, %v3630, 0.0
    %3671 = vadd.xlane.f32.xlu0 %v3670
    %v3672 = vpop.xlane.xlu0 %3671
    %v3673 = vsel %vm1176, %v3631, 0.0
    %3674 = vadd.xlane.f32.xlu0 %v3673
    %v3675 = vpop.xlane.xlu0 %3674
    %v3676 = vsel %vm1176, %v3632, 0.0
    %3677 = vadd.xlane.f32.xlu0 %v3676
    %v3678 = vpop.xlane.xlu0 %3677
    %v3679 = vsel %vm1176, %v3633, 0.0
    %3680 = vadd.xlane.f32.xlu0 %v3679
    %v3681 = vpop.xlane.xlu0 %3680
    %v3682 = vsel %vm1176, %v3634, 0.0
    %3683 = vadd.xlane.f32.xlu0 %v3682
    %v3684 = vpop.xlane.xlu0 %3683
    %v3685 = vsel %vm1176, %v3635, 0.0
    %3686 = vadd.xlane.f32.xlu0 %v3685
    %v3687 = vpop.xlane.xlu0 %3686
    %v3688 = vsel %vm1176, %v3636, 0.0
    %3689 = vadd.xlane.f32.xlu0 %v3688
    %v3690 = vpop.xlane.xlu0 %3689
    %v3691 = vmul.f32 %v3639, %v1231
    %v3692 = vmul.f32 %v3642, %v1231
    %v3693 = vmul.f32 %v3645, %v1231
    %v3694 = vmul.f32 %v3648, %v1231
    %v3695 = vmul.f32 %v3651, %v1231
    %v3696 = vmul.f32 %v3654, %v1231
    %v3697 = vmul.f32 %v3657, %v1231
    %v3698 = vmul.f32 %v3660, %v1231
    %v3699 = vmul.f32 %v3663, %v1231
    %v3700 = vmul.f32 %v3666, %v1231
    %v3701 = vmul.f32 %v3669, %v1231
    %v3702 = vmul.f32 %v3672, %v1231
    %v3703 = vmul.f32 %v3675, %v1231
    %v3704 = vmul.f32 %v3678, %v1231
    %v3705 = vmul.f32 %v3681, %v1231
    %v3706 = vmul.f32 %v3684, %v1231
    %v3707 = vmul.f32 %v3687, %v1231
    %v3708 = vmul.f32 %v3690, %v1231
    %v3709 = vadd.f32 %v3691, 1e-05
    %v3710 = vadd.f32 %v3692, 1e-05
    %v3711 = vadd.f32 %v3693, 1e-05
    %v3712 = vadd.f32 %v3694, 1e-05
    %v3713 = vadd.f32 %v3695, 1e-05
    %v3714 = vadd.f32 %v3696, 1e-05
    %v3715 = vadd.f32 %v3697, 1e-05
    %v3716 = vadd.f32 %v3698, 1e-05
    %v3717 = vadd.f32 %v3699, 1e-05
    %v3718 = vadd.f32 %v3700, 1e-05
    %v3719 = vadd.f32 %v3701, 1e-05
    %v3720 = vadd.f32 %v3702, 1e-05
    %v3721 = vadd.f32 %v3703, 1e-05
    %v3722 = vadd.f32 %v3704, 1e-05
    %v3723 = vadd.f32 %v3705, 1e-05
    %v3724 = vadd.f32 %v3706, 1e-05
    %v3725 = vadd.f32 %v3707, 1e-05
    %v3726 = vadd.f32 %v3708, 1e-05
    %v3727 = vrsqrt.pop %v3709
    %v3728 = vrsqrt.pop %v3710
    %v3729 = vrsqrt.pop %v3711
    %v3730 = vrsqrt.pop %v3712
    %v3731 = vrsqrt.pop %v3713
    %v3732 = vrsqrt.pop %v3714
    %v3733 = vrsqrt.pop %v3715
    %v3734 = vrsqrt.pop %v3716
    %v3735 = vrsqrt.pop %v3717
    %v3736 = vrsqrt.pop %v3718
    %v3737 = vrsqrt.pop %v3719
    %v3738 = vrsqrt.pop %v3720
    %v3739 = vrsqrt.pop %v3721
    %v3740 = vrsqrt.pop %v3722
    %v3741 = vrsqrt.pop %v3723
    %v3742 = vrsqrt.pop %v3724
    %v3743 = vrsqrt.pop %v3725
    %v3744 = vrsqrt.pop %v3726
    %v3745 = vmul.f32 %v3601, %v3727
    %v3746 = vmul.f32 %v3602, %v3728
    %v3747 = vmul.f32 %v3603, %v3729
    %v3748 = vmul.f32 %v3604, %v3730
    %v3749 = vmul.f32 %v3605, %v3731
    %v3750 = vmul.f32 %v3606, %v3732
    %v3751 = vmul.f32 %v3607, %v3733
    %v3752 = vmul.f32 %v3608, %v3734
    %v3753 = vmul.f32 %v3609, %v3735
    %v3754 = vmul.f32 %v3610, %v3736
    %v3755 = vmul.f32 %v3611, %v3737
    %v3756 = vmul.f32 %v3612, %v3738
    %v3757 = vmul.f32 %v3613, %v3739
    %v3758 = vmul.f32 %v3614, %v3740
    %v3759 = vmul.f32 %v3615, %v3741
    %v3760 = vmul.f32 %v3616, %v3742
    %v3761 = vmul.f32 %v3617, %v3743
    %v3762 = vmul.f32 %v3618, %v3744
    %v3763 = vmul.f32 %v3745, %v1075
    %v3764 = vmul.f32 %v3746, %v1075
    %v3765 = vmul.f32 %v3747, %v1075
    %v3766 = vmul.f32 %v3748, %v1075
    %v3767 = vmul.f32 %v3749, %v1075
    %v3768 = vmul.f32 %v3750, %v1075
    %v3769 = vmul.f32 %v3751, %v1075
    %v3770 = vmul.f32 %v3752, %v1075
    %v3771 = vmul.f32 %v3753, %v1075
    %v3772 = vmul.f32 %v3754, %v1075
    %v3773 = vmul.f32 %v3755, %v1075
    %v3774 = vmul.f32 %v3756, %v1075
    %v3775 = vmul.f32 %v3757, %v1075
    %v3776 = vmul.f32 %v3758, %v1075
    %v3777 = vmul.f32 %v3759, %v1075
    %v3778 = vmul.f32 %v3760, %v1075
    %v3779 = vmul.f32 %v3761, %v1075
    %v3780 = vmul.f32 %v3762, %v1075
    %v3781 = vadd.f32 %v3763, %v1076
    %v3782 = vadd.f32 %v3764, %v1076
    %v3783 = vadd.f32 %v3765, %v1076
    %v3784 = vadd.f32 %v3766, %v1076
    %v3785 = vadd.f32 %v3767, %v1076
    %v3786 = vadd.f32 %v3768, %v1076
    %v3787 = vadd.f32 %v3769, %v1076
    %v3788 = vadd.f32 %v3770, %v1076
    %v3789 = vadd.f32 %v3771, %v1076
    %v3790 = vadd.f32 %v3772, %v1076
    %v3791 = vadd.f32 %v3773, %v1076
    %v3792 = vadd.f32 %v3774, %v1076
    %v3793 = vadd.f32 %v3775, %v1076
    %v3794 = vadd.f32 %v3776, %v1076
    %v3795 = vadd.f32 %v3777, %v1076
    %v3796 = vadd.f32 %v3778, %v1076
    %v3797 = vadd.f32 %v3779, %v1076
    %v3798 = vadd.f32 %v3780, %v1076
    %v3799 = vpack.c.bf16 %v3782, %v3781
    %v3800 = vpack.c.bf16 %v3784, %v3783
    %v3801 = vpack.c.bf16 %v3786, %v3785
    %v3802 = vpack.c.bf16 %v3788, %v3787
    %v3803 = vpack.c.bf16 %v3790, %v3789
    %v3804 = vpack.c.bf16 %v3792, %v3791
    %v3805 = vpack.c.bf16 %v3794, %v3793
    %v3806 = vpack.c.bf16 %v3796, %v3795
    %v3807 = vpack.c.bf16 %v3798, %v3797
    %v3809 = vlaneseq
    %v3810 = vshrl.u32 %v3809, 7
    %v3811 = vsub.s32 0, %v3810
    %v3812 = vrot.slane %v1078, %v3811
    %v3813 = vlaneseq
    %v3814 = vshrl.u32 %v3813, 7
    %v3815 = vsub.s32 1, %v3814
    %v3816 = vrot.slane %v1078, %v3815
    %v3851 = vunpack.c.l.b16 %v1112
    %v3852 = vunpack.c.l.b16 %v1113
    %v3853 = vunpack.c.l.b16 %v1114
    %v3854 = vunpack.c.l.b16 %v1115
    %v3855 = vunpack.c.l.b16 %v1116
    %v3856 = vunpack.c.l.b16 %v1117
    %v3857 = vunpack.c.l.b16 %v1118
    %v3858 = vunpack.c.l.b16 %v1119
    %v3859 = vunpack.c.l.b16 %v1120
    %v3860 = vunpack.c.l.b16 %v1121
    %v3861 = vunpack.c.l.b16 %v1122
    %v3862 = vunpack.c.l.b16 %v1123
    %v3863 = vunpack.c.l.b16 %v1124
    %v3864 = vunpack.c.l.b16 %v1125
    %v3865 = vunpack.c.l.b16 %v1126
    %v3866 = vunpack.c.l.b16 %v1127
    %v3867 = vunpack.c.l.b16 %v1128
    %v3868 = vunpack.c.l.b16 %v1129
    %v3869 = vunpack.c.l.b16 %v1130
    %v3870 = vunpack.c.l.b16 %v1131
    %v3871 = vunpack.c.l.b16 %v1132
    %v3872 = vunpack.c.l.b16 %v1133
    %v3873 = vunpack.c.l.b16 %v1134
    %v3874 = vunpack.c.l.b16 %v1135
    %v3875 = vunpack.c.l.b16 %v1136
    %v3876 = vunpack.c.l.b16 %v1137
    %v3877 = vunpack.c.l.b16 %v1138
    %v3878 = vunpack.c.l.b16 %v1139
    %v3879 = vunpack.c.l.b16 %v1140
    %v3880 = vunpack.c.l.b16 %v1141
    %v3881 = vunpack.c.l.b16 %v1142
    %v3882 = vunpack.c.l.b16 %v1143
    %v3883 = vpack.c.b16 %v3852, %v3851
    %v3884 = vpack.c.b16 %v3854, %v3853
    %v3885 = vpack.c.b16 %v3856, %v3855
    %v3886 = vpack.c.b16 %v3858, %v3857
    %v3887 = vpack.c.b16 %v3860, %v3859
    %v3888 = vpack.c.b16 %v3862, %v3861
    %v3889 = vpack.c.b16 %v3864, %v3863
    %v3890 = vpack.c.b16 %v3866, %v3865
    %v3891 = vpack.c.b16 %v3868, %v3867
    %v3892 = vpack.c.b16 %v3870, %v3869
    %v3893 = vpack.c.b16 %v3872, %v3871
    %v3894 = vpack.c.b16 %v3874, %v3873
    %v3895 = vpack.c.b16 %v3876, %v3875
    %v3896 = vpack.c.b16 %v3878, %v3877
    %v3897 = vpack.c.b16 %v3880, %v3879
    %v3898 = vpack.c.b16 %v3882, %v3881
    %v3900 = vsel %vm1176, %v3799, 0
    %v3903 = vsel %vm1176, %v3800, 0
    %v3906 = vsel %vm1176, %v3801, 0
    %v3909 = vsel %vm1176, %v3802, 0
    %v3912 = vsel %vm1176, %v3803, 0
    %v3915 = vsel %vm1176, %v3804, 0
    %v3918 = vsel %vm1176, %v3805, 0
    %v3921 = vsel %vm1176, %v3806, 0
    %v3924 = vsel %vm1176, %v3807, 0
    %v3927 = vsel %vm1176, %v3883, 0
    %v3930 = vsel %vm1176, %v3884, 0
    %v3933 = vsel %vm1176, %v3885, 0
    %v3936 = vsel %vm1176, %v3886, 0
    %v3939 = vsel %vm1176, %v3887, 0
    %v3942 = vsel %vm1176, %v3888, 0
    %v3945 = vsel %vm1176, %v3889, 0
    %v3948 = vsel %vm1176, %v3890, 0
    %v3951 = vsel %vm1176, %v3891, 0
    %v3954 = vsel %vm1176, %v3892, 0
    %v3957 = vsel %vm1176, %v3893, 0
    %v3960 = vsel %vm1176, %v3894, 0
    %v3963 = vsel %vm1176, %v3895, 0
    %v3966 = vsel %vm1176, %v3896, 0
    %v3969 = vsel %vm1176, %v3897, 0
    %v3972 = vsel %vm1176, %v3898, 0
    %3974 = vmatprep.subr.bf16.mxu0 0
    %3975 = vmatpush1.bf16.xpose.msra.mxu0 %v3948
    %3976 = vmatprep.subr.bf16.mxu0 0
    %3977 = vmatpush1.bf16.xpose.msra.mxu0 %v3945
    %3978 = vmatprep.subr.bf16.mxu0 0
    %3979 = vmatpush1.bf16.xpose.msra.mxu0 %v3942
    %3980 = vmatprep.subr.bf16.mxu0 0
    %3981 = vmatpush1.bf16.xpose.msra.mxu0 %v3939
    %3982 = vmatprep.subr.bf16.mxu0 0
    %3983 = vmatpush1.bf16.xpose.msra.mxu0 %v3936
    %3984 = vmatprep.subr.bf16.mxu0 0
    %3985 = vmatpush1.bf16.xpose.msra.mxu0 %v3933
    %3986 = vmatprep.subr.bf16.mxu0 0
    %3987 = vmatpush1.bf16.xpose.msra.mxu0 %v3930
    %3988 = vmatprep.subr.bf16.mxu0 0
    %3989 = vmatpush1.bf16.xpose.msra.mxu0 %v3927
    %3990 = vmatprep.subr.bf16.mxu0 0
    %3991 = vmatpush2.bf16.xpose.msra.mxu0 %v3972
    %3992 = vmatprep.subr.bf16.mxu0 0
    %3993 = vmatpush2.bf16.xpose.msra.mxu0 %v3969
    %3994 = vmatprep.subr.bf16.mxu0 0
    %3995 = vmatpush2.bf16.xpose.msra.mxu0 %v3966
    %3996 = vmatprep.subr.bf16.mxu0 0
    %3997 = vmatpush2.bf16.xpose.msra.mxu0 %v3963
    %3998 = vmatprep.subr.bf16.mxu0 0
    %3999 = vmatpush2.bf16.xpose.msra.mxu0 %v3960
    %4000 = vmatprep.subr.bf16.mxu0 0
    %4001 = vmatpush2.bf16.xpose.msra.mxu0 %v3957
    %4002 = vmatprep.subr.bf16.mxu0 0
    %4003 = vmatpush2.bf16.xpose.msra.mxu0 %v3954
    %4004 = vmatprep.subr.bf16.mxu0 0
    %4005 = vmatpush2.bf16.xpose.msra.mxu0 %v3951
    %4006 = vmatprep.mubr.bf16.mxu0 0
    %4007 = vmatmul.mubr.bf16.gmra.mxu0 %v3900
    %v4008 = vpop.f32.mrf.mxu0
    %v4009 = vadd.f32 %v3812, %v4008
    %v4010 = vpop.f32.mrf.mxu0
    %v4011 = vadd.f32 %v3816, %v4010
    %v4012 = vpop.f32.mrf.mxu0
    %v4013 = vadd.f32 %v3812, %v4012
    %v4014 = vpop.f32.mrf.mxu0
    %v4015 = vadd.f32 %v3816, %v4014
    %4016 = vmatprep.mubr.bf16.mxu0 0
    %4017 = vmatmul.mubr.bf16.gmra.mxu0 %v3903
    %v4018 = vpop.f32.mrf.mxu0
    %v4019 = vadd.f32 %v3812, %v4018
    %v4020 = vpop.f32.mrf.mxu0
    %v4021 = vadd.f32 %v3816, %v4020
    %v4022 = vpop.f32.mrf.mxu0
    %v4023 = vadd.f32 %v3812, %v4022
    %v4024 = vpop.f32.mrf.mxu0
    %v4025 = vadd.f32 %v3816, %v4024
    %4026 = vmatprep.mubr.bf16.mxu0 0
    %4027 = vmatmul.mubr.bf16.gmra.mxu0 %v3906
    %v4028 = vpop.f32.mrf.mxu0
    %v4029 = vadd.f32 %v3812, %v4028
    %v4030 = vpop.f32.mrf.mxu0
    %v4031 = vadd.f32 %v3816, %v4030
    %v4032 = vpop.f32.mrf.mxu0
    %v4033 = vadd.f32 %v3812, %v4032
    %v4034 = vpop.f32.mrf.mxu0
    %v4035 = vadd.f32 %v3816, %v4034
    %4036 = vmatprep.mubr.bf16.mxu0 0
    %4037 = vmatmul.mubr.bf16.gmra.mxu0 %v3909
    %v4038 = vpop.f32.mrf.mxu0
    %v4039 = vadd.f32 %v3812, %v4038
    %v4040 = vpop.f32.mrf.mxu0
    %v4041 = vadd.f32 %v3816, %v4040
    %v4042 = vpop.f32.mrf.mxu0
    %v4043 = vadd.f32 %v3812, %v4042
    %v4044 = vpop.f32.mrf.mxu0
    %v4045 = vadd.f32 %v3816, %v4044
    %4046 = vmatprep.mubr.bf16.mxu0 0
    %4047 = vmatmul.mubr.bf16.gmra.mxu0 %v3912
    %v4048 = vpop.f32.mrf.mxu0
    %v4049 = vadd.f32 %v3812, %v4048
    %v4050 = vpop.f32.mrf.mxu0
    %v4051 = vadd.f32 %v3816, %v4050
    %v4052 = vpop.f32.mrf.mxu0
    %v4053 = vadd.f32 %v3812, %v4052
    %v4054 = vpop.f32.mrf.mxu0
    %v4055 = vadd.f32 %v3816, %v4054
    %4056 = vmatprep.mubr.bf16.mxu0 0
    %4057 = vmatmul.mubr.bf16.gmra.mxu0 %v3915
    %v4058 = vpop.f32.mrf.mxu0
    %v4059 = vadd.f32 %v3812, %v4058
    %v4060 = vpop.f32.mrf.mxu0
    %v4061 = vadd.f32 %v3816, %v4060
    %v4062 = vpop.f32.mrf.mxu0
    %v4063 = vadd.f32 %v3812, %v4062
    %v4064 = vpop.f32.mrf.mxu0
    %v4065 = vadd.f32 %v3816, %v4064
    %4066 = vmatprep.mubr.bf16.mxu0 0
    %4067 = vmatmul.mubr.bf16.gmra.mxu0 %v3918
    %v4068 = vpop.f32.mrf.mxu0
    %v4069 = vadd.f32 %v3812, %v4068
    %v4070 = vpop.f32.mrf.mxu0
    %v4071 = vadd.f32 %v3816, %v4070
    %v4072 = vpop.f32.mrf.mxu0
    %v4073 = vadd.f32 %v3812, %v4072
    %v4074 = vpop.f32.mrf.mxu0
    %v4075 = vadd.f32 %v3816, %v4074
    %4076 = vmatprep.mubr.bf16.mxu0 0
    %4077 = vmatmul.mubr.bf16.gmra.mxu0 %v3921
    %v4078 = vpop.f32.mrf.mxu0
    %v4079 = vadd.f32 %v3812, %v4078
    %v4080 = vpop.f32.mrf.mxu0
    %v4081 = vadd.f32 %v3816, %v4080
    %v4082 = vpop.f32.mrf.mxu0
    %v4083 = vadd.f32 %v3812, %v4082
    %v4084 = vpop.f32.mrf.mxu0
    %v4085 = vadd.f32 %v3816, %v4084
    %4086 = vmatprep.mubr.bf16.mxu0 0
    %4087 = vmatmul.mubr.bf16.gmra.mxu0 %v3924
    %v4088 = vpop.f32.mrf.mxu0
    %v4089 = vadd.f32 %v3812, %v4088
    %v4090 = vpop.f32.mrf.mxu0
    %v4091 = vadd.f32 %v3816, %v4090
    %v4092 = vpop.f32.mrf.mxu0
    %v4093 = vadd.f32 %v3812, %v4092
    %v4094 = vpop.f32.mrf.mxu0
    %v4095 = vadd.f32 %v3816, %v4094
    %4096 = vdwg.mxu0
    %v4097 = vmul.f32 %v4009, %v4009
    %v4098 = vmul.f32 %v4011, %v4011
    %v4099 = vmul.f32 %v4013, %v4013
    %v4100 = vmul.f32 %v4015, %v4015
    %v4101 = vmul.f32 %v4019, %v4019
    %v4102 = vmul.f32 %v4021, %v4021
    %v4103 = vmul.f32 %v4023, %v4023
    %v4104 = vmul.f32 %v4025, %v4025
    %v4105 = vmul.f32 %v4029, %v4029
    %v4106 = vmul.f32 %v4031, %v4031
    %v4107 = vmul.f32 %v4033, %v4033
    %v4108 = vmul.f32 %v4035, %v4035
    %v4109 = vmul.f32 %v4039, %v4039
    %v4110 = vmul.f32 %v4041, %v4041
    %v4111 = vmul.f32 %v4043, %v4043
    %v4112 = vmul.f32 %v4045, %v4045
    %v4113 = vmul.f32 %v4049, %v4049
    %v4114 = vmul.f32 %v4051, %v4051
    %v4115 = vmul.f32 %v4053, %v4053
    %v4116 = vmul.f32 %v4055, %v4055
    %v4117 = vmul.f32 %v4059, %v4059
    %v4118 = vmul.f32 %v4061, %v4061
    %v4119 = vmul.f32 %v4063, %v4063
    %v4120 = vmul.f32 %v4065, %v4065
    %v4121 = vmul.f32 %v4069, %v4069
    %v4122 = vmul.f32 %v4071, %v4071
    %v4123 = vmul.f32 %v4073, %v4073
    %v4124 = vmul.f32 %v4075, %v4075
    %v4125 = vmul.f32 %v4079, %v4079
    %v4126 = vmul.f32 %v4081, %v4081
    %v4127 = vmul.f32 %v4083, %v4083
    %v4128 = vmul.f32 %v4085, %v4085
    %v4129 = vmul.f32 %v4089, %v4089
    %v4130 = vmul.f32 %v4091, %v4091
    %v4131 = vmul.f32 %v4093, %v4093
    %v4132 = vmul.f32 %v4095, %v4095
    %v4133 = vmul.f32 %v4009, %v4097
    %v4134 = vmul.f32 %v4011, %v4098
    %v4135 = vmul.f32 %v4013, %v4099
    %v4136 = vmul.f32 %v4015, %v4100
    %v4137 = vmul.f32 %v4019, %v4101
    %v4138 = vmul.f32 %v4021, %v4102
    %v4139 = vmul.f32 %v4023, %v4103
    %v4140 = vmul.f32 %v4025, %v4104
    %v4141 = vmul.f32 %v4029, %v4105
    %v4142 = vmul.f32 %v4031, %v4106
    %v4143 = vmul.f32 %v4033, %v4107
    %v4144 = vmul.f32 %v4035, %v4108
    %v4145 = vmul.f32 %v4039, %v4109
    %v4146 = vmul.f32 %v4041, %v4110
    %v4147 = vmul.f32 %v4043, %v4111
    %v4148 = vmul.f32 %v4045, %v4112
    %v4149 = vmul.f32 %v4049, %v4113
    %v4150 = vmul.f32 %v4051, %v4114
    %v4151 = vmul.f32 %v4053, %v4115
    %v4152 = vmul.f32 %v4055, %v4116
    %v4153 = vmul.f32 %v4059, %v4117
    %v4154 = vmul.f32 %v4061, %v4118
    %v4155 = vmul.f32 %v4063, %v4119
    %v4156 = vmul.f32 %v4065, %v4120
    %v4157 = vmul.f32 %v4069, %v4121
    %v4158 = vmul.f32 %v4071, %v4122
    %v4159 = vmul.f32 %v4073, %v4123
    %v4160 = vmul.f32 %v4075, %v4124
    %v4161 = vmul.f32 %v4079, %v4125
    %v4162 = vmul.f32 %v4081, %v4126
    %v4163 = vmul.f32 %v4083, %v4127
    %v4164 = vmul.f32 %v4085, %v4128
    %v4165 = vmul.f32 %v4089, %v4129
    %v4166 = vmul.f32 %v4091, %v4130
    %v4167 = vmul.f32 %v4093, %v4131
    %v4168 = vmul.f32 %v4095, %v4132
    %v4169 = vmul.f32 %v4133, 0.044715
    %v4170 = vmul.f32 %v4134, 0.044715
    %v4171 = vmul.f32 %v4135, 0.044715
    %v4172 = vmul.f32 %v4136, 0.044715
    %v4173 = vmul.f32 %v4137, 0.044715
    %v4174 = vmul.f32 %v4138, 0.044715
    %v4175 = vmul.f32 %v4139, 0.044715
    %v4176 = vmul.f32 %v4140, 0.044715
    %v4177 = vmul.f32 %v4141, 0.044715
    %v4178 = vmul.f32 %v4142, 0.044715
    %v4179 = vmul.f32 %v4143, 0.044715
    %v4180 = vmul.f32 %v4144, 0.044715
    %v4181 = vmul.f32 %v4145, 0.044715
    %v4182 = vmul.f32 %v4146, 0.044715
    %v4183 = vmul.f32 %v4147, 0.044715
    %v4184 = vmul.f32 %v4148, 0.044715
    %v4185 = vmul.f32 %v4149, 0.044715
    %v4186 = vmul.f32 %v4150, 0.044715
    %v4187 = vmul.f32 %v4151, 0.044715
    %v4188 = vmul.f32 %v4152, 0.044715
    %v4189 = vmul.f32 %v4153, 0.044715
    %v4190 = vmul.f32 %v4154, 0.044715
    %v4191 = vmul.f32 %v4155, 0.044715
    %v4192 = vmul.f32 %v4156, 0.044715
    %v4193 = vmul.f32 %v4157, 0.044715
    %v4194 = vmul.f32 %v4158, 0.044715
    %v4195 = vmul.f32 %v4159, 0.044715
    %v4196 = vmul.f32 %v4160, 0.044715
    %v4197 = vmul.f32 %v4161, 0.044715
    %v4198 = vmul.f32 %v4162, 0.044715
    %v4199 = vmul.f32 %v4163, 0.044715
    %v4200 = vmul.f32 %v4164, 0.044715
    %v4201 = vmul.f32 %v4165, 0.044715
    %v4202 = vmul.f32 %v4166, 0.044715
    %v4203 = vmul.f32 %v4167, 0.044715
    %v4204 = vmul.f32 %v4168, 0.044715
    %v4205 = vadd.f32 %v4009, %v4169
    %v4206 = vadd.f32 %v4011, %v4170
    %v4207 = vadd.f32 %v4013, %v4171
    %v4208 = vadd.f32 %v4015, %v4172
    %v4209 = vadd.f32 %v4019, %v4173
    %v4210 = vadd.f32 %v4021, %v4174
    %v4211 = vadd.f32 %v4023, %v4175
    %v4212 = vadd.f32 %v4025, %v4176
    %v4213 = vadd.f32 %v4029, %v4177
    %v4214 = vadd.f32 %v4031, %v4178
    %v4215 = vadd.f32 %v4033, %v4179
    %v4216 = vadd.f32 %v4035, %v4180
    %v4217 = vadd.f32 %v4039, %v4181
    %v4218 = vadd.f32 %v4041, %v4182
    %v4219 = vadd.f32 %v4043, %v4183
    %v4220 = vadd.f32 %v4045, %v4184
    %v4221 = vadd.f32 %v4049, %v4185
    %v4222 = vadd.f32 %v4051, %v4186
    %v4223 = vadd.f32 %v4053, %v4187
    %v4224 = vadd.f32 %v4055, %v4188
    %v4225 = vadd.f32 %v4059, %v4189
    %v4226 = vadd.f32 %v4061, %v4190
    %v4227 = vadd.f32 %v4063, %v4191
    %v4228 = vadd.f32 %v4065, %v4192
    %v4229 = vadd.f32 %v4069, %v4193
    %v4230 = vadd.f32 %v4071, %v4194
    %v4231 = vadd.f32 %v4073, %v4195
    %v4232 = vadd.f32 %v4075, %v4196
    %v4233 = vadd.f32 %v4079, %v4197
    %v4234 = vadd.f32 %v4081, %v4198
    %v4235 = vadd.f32 %v4083, %v4199
    %v4236 = vadd.f32 %v4085, %v4200
    %v4237 = vadd.f32 %v4089, %v4201
    %v4238 = vadd.f32 %v4091, %v4202
    %v4239 = vadd.f32 %v4093, %v4203
    %v4240 = vadd.f32 %v4095, %v4204
    %v4241 = vmul.f32 %v4205, 0.7978846
    %v4242 = vmul.f32 %v4206, 0.7978846
    %v4243 = vmul.f32 %v4207, 0.7978846
    %v4244 = vmul.f32 %v4208, 0.7978846
    %v4245 = vmul.f32 %v4209, 0.7978846
    %v4246 = vmul.f32 %v4210, 0.7978846
    %v4247 = vmul.f32 %v4211, 0.7978846
    %v4248 = vmul.f32 %v4212, 0.7978846
    %v4249 = vmul.f32 %v4213, 0.7978846
    %v4250 = vmul.f32 %v4214, 0.7978846
    %v4251 = vmul.f32 %v4215, 0.7978846
    %v4252 = vmul.f32 %v4216, 0.7978846
    %v4253 = vmul.f32 %v4217, 0.7978846
    %v4254 = vmul.f32 %v4218, 0.7978846
    %v4255 = vmul.f32 %v4219, 0.7978846
    %v4256 = vmul.f32 %v4220, 0.7978846
    %v4257 = vmul.f32 %v4221, 0.7978846
    %v4258 = vmul.f32 %v4222, 0.7978846
    %v4259 = vmul.f32 %v4223, 0.7978846
    %v4260 = vmul.f32 %v4224, 0.7978846
    %v4261 = vmul.f32 %v4225, 0.7978846
    %v4262 = vmul.f32 %v4226, 0.7978846
    %v4263 = vmul.f32 %v4227, 0.7978846
    %v4264 = vmul.f32 %v4228, 0.7978846
    %v4265 = vmul.f32 %v4229, 0.7978846
    %v4266 = vmul.f32 %v4230, 0.7978846
    %v4267 = vmul.f32 %v4231, 0.7978846
    %v4268 = vmul.f32 %v4232, 0.7978846
    %v4269 = vmul.f32 %v4233, 0.7978846
    %v4270 = vmul.f32 %v4234, 0.7978846
    %v4271 = vmul.f32 %v4235, 0.7978846
    %v4272 = vmul.f32 %v4236, 0.7978846
    %v4273 = vmul.f32 %v4237, 0.7978846
    %v4274 = vmul.f32 %v4238, 0.7978846
    %v4275 = vmul.f32 %v4239, 0.7978846
    %v4276 = vmul.f32 %v4240, 0.7978846
    %v4277 = vtanh.pop %v4241
    %v4278 = vtanh.pop %v4242
    %v4279 = vtanh.pop %v4243
    %v4280 = vtanh.pop %v4244
    %v4281 = vtanh.pop %v4245
    %v4282 = vtanh.pop %v4246
    %v4283 = vtanh.pop %v4247
    %v4284 = vtanh.pop %v4248
    %v4285 = vtanh.pop %v4249
    %v4286 = vtanh.pop %v4250
    %v4287 = vtanh.pop %v4251
    %v4288 = vtanh.pop %v4252
    %v4289 = vtanh.pop %v4253
    %v4290 = vtanh.pop %v4254
    %v4291 = vtanh.pop %v4255
    %v4292 = vtanh.pop %v4256
    %v4293 = vtanh.pop %v4257
    %v4294 = vtanh.pop %v4258
    %v4295 = vtanh.pop %v4259
    %v4296 = vtanh.pop %v4260
    %v4297 = vtanh.pop %v4261
    %v4298 = vtanh.pop %v4262
    %v4299 = vtanh.pop %v4263
    %v4300 = vtanh.pop %v4264
    %v4301 = vtanh.pop %v4265
    %v4302 = vtanh.pop %v4266
    %v4303 = vtanh.pop %v4267
    %v4304 = vtanh.pop %v4268
    %v4305 = vtanh.pop %v4269
    %v4306 = vtanh.pop %v4270
    %v4307 = vtanh.pop %v4271
    %v4308 = vtanh.pop %v4272
    %v4309 = vtanh.pop %v4273
    %v4310 = vtanh.pop %v4274
    %v4311 = vtanh.pop %v4275
    %v4312 = vtanh.pop %v4276
    %v4313 = vadd.f32 %v4277, 1.0
    %v4314 = vadd.f32 %v4278, 1.0
    %v4315 = vadd.f32 %v4279, 1.0
    %v4316 = vadd.f32 %v4280, 1.0
    %v4317 = vadd.f32 %v4281, 1.0
    %v4318 = vadd.f32 %v4282, 1.0
    %v4319 = vadd.f32 %v4283, 1.0
    %v4320 = vadd.f32 %v4284, 1.0
    %v4321 = vadd.f32 %v4285, 1.0
    %v4322 = vadd.f32 %v4286, 1.0
    %v4323 = vadd.f32 %v4287, 1.0
    %v4324 = vadd.f32 %v4288, 1.0
    %v4325 = vadd.f32 %v4289, 1.0
    %v4326 = vadd.f32 %v4290, 1.0
    %v4327 = vadd.f32 %v4291, 1.0
    %v4328 = vadd.f32 %v4292, 1.0
    %v4329 = vadd.f32 %v4293, 1.0
    %v4330 = vadd.f32 %v4294, 1.0
    %v4331 = vadd.f32 %v4295, 1.0
    %v4332 = vadd.f32 %v4296, 1.0
    %v4333 = vadd.f32 %v4297, 1.0
    %v4334 = vadd.f32 %v4298, 1.0
    %v4335 = vadd.f32 %v4299, 1.0
    %v4336 = vadd.f32 %v4300, 1.0
    %v4337 = vadd.f32 %v4301, 1.0
    %v4338 = vadd.f32 %v4302, 1.0
    %v4339 = vadd.f32 %v4303, 1.0
    %v4340 = vadd.f32 %v4304, 1.0
    %v4341 = vadd.f32 %v4305, 1.0
    %v4342 = vadd.f32 %v4306, 1.0
    %v4343 = vadd.f32 %v4307, 1.0
    %v4344 = vadd.f32 %v4308, 1.0
    %v4345 = vadd.f32 %v4309, 1.0
    %v4346 = vadd.f32 %v4310, 1.0
    %v4347 = vadd.f32 %v4311, 1.0
    %v4348 = vadd.f32 %v4312, 1.0
    %v4349 = vmul.f32 %v4313, 0.5
    %v4350 = vmul.f32 %v4314, 0.5
    %v4351 = vmul.f32 %v4315, 0.5
    %v4352 = vmul.f32 %v4316, 0.5
    %v4353 = vmul.f32 %v4317, 0.5
    %v4354 = vmul.f32 %v4318, 0.5
    %v4355 = vmul.f32 %v4319, 0.5
    %v4356 = vmul.f32 %v4320, 0.5
    %v4357 = vmul.f32 %v4321, 0.5
    %v4358 = vmul.f32 %v4322, 0.5
    %v4359 = vmul.f32 %v4323, 0.5
    %v4360 = vmul.f32 %v4324, 0.5
    %v4361 = vmul.f32 %v4325, 0.5
    %v4362 = vmul.f32 %v4326, 0.5
    %v4363 = vmul.f32 %v4327, 0.5
    %v4364 = vmul.f32 %v4328, 0.5
    %v4365 = vmul.f32 %v4329, 0.5
    %v4366 = vmul.f32 %v4330, 0.5
    %v4367 = vmul.f32 %v4331, 0.5
    %v4368 = vmul.f32 %v4332, 0.5
    %v4369 = vmul.f32 %v4333, 0.5
    %v4370 = vmul.f32 %v4334, 0.5
    %v4371 = vmul.f32 %v4335, 0.5
    %v4372 = vmul.f32 %v4336, 0.5
    %v4373 = vmul.f32 %v4337, 0.5
    %v4374 = vmul.f32 %v4338, 0.5
    %v4375 = vmul.f32 %v4339, 0.5
    %v4376 = vmul.f32 %v4340, 0.5
    %v4377 = vmul.f32 %v4341, 0.5
    %v4378 = vmul.f32 %v4342, 0.5
    %v4379 = vmul.f32 %v4343, 0.5
    %v4380 = vmul.f32 %v4344, 0.5
    %v4381 = vmul.f32 %v4345, 0.5
    %v4382 = vmul.f32 %v4346, 0.5
    %v4383 = vmul.f32 %v4347, 0.5
    %v4384 = vmul.f32 %v4348, 0.5
    %v4385 = vmul.f32 %v4009, %v4349
    %v4386 = vmul.f32 %v4011, %v4350
    %v4387 = vmul.f32 %v4013, %v4351
    %v4388 = vmul.f32 %v4015, %v4352
    %v4389 = vmul.f32 %v4019, %v4353
    %v4390 = vmul.f32 %v4021, %v4354
    %v4391 = vmul.f32 %v4023, %v4355
    %v4392 = vmul.f32 %v4025, %v4356
    %v4393 = vmul.f32 %v4029, %v4357
    %v4394 = vmul.f32 %v4031, %v4358
    %v4395 = vmul.f32 %v4033, %v4359
    %v4396 = vmul.f32 %v4035, %v4360
    %v4397 = vmul.f32 %v4039, %v4361
    %v4398 = vmul.f32 %v4041, %v4362
    %v4399 = vmul.f32 %v4043, %v4363
    %v4400 = vmul.f32 %v4045, %v4364
    %v4401 = vmul.f32 %v4049, %v4365
    %v4402 = vmul.f32 %v4051, %v4366
    %v4403 = vmul.f32 %v4053, %v4367
    %v4404 = vmul.f32 %v4055, %v4368
    %v4405 = vmul.f32 %v4059, %v4369
    %v4406 = vmul.f32 %v4061, %v4370
    %v4407 = vmul.f32 %v4063, %v4371
    %v4408 = vmul.f32 %v4065, %v4372
    %v4409 = vmul.f32 %v4069, %v4373
    %v4410 = vmul.f32 %v4071, %v4374
    %v4411 = vmul.f32 %v4073, %v4375
    %v4412 = vmul.f32 %v4075, %v4376
    %v4413 = vmul.f32 %v4079, %v4377
    %v4414 = vmul.f32 %v4081, %v4378
    %v4415 = vmul.f32 %v4083, %v4379
    %v4416 = vmul.f32 %v4085, %v4380
    %v4417 = vmul.f32 %v4089, %v4381
    %v4418 = vmul.f32 %v4091, %v4382
    %v4419 = vmul.f32 %v4093, %v4383
    %v4420 = vmul.f32 %v4095, %v4384
    %v4421 = vpack.c.bf16 %v4387, %v4385
    %v4422 = vpack.c.bf16 %v4388, %v4386
    %v4423 = vpack.c.bf16 %v4391, %v4389
    %v4424 = vpack.c.bf16 %v4392, %v4390
    %v4425 = vpack.c.bf16 %v4395, %v4393
    %v4426 = vpack.c.bf16 %v4396, %v4394
    %v4427 = vpack.c.bf16 %v4399, %v4397
    %v4428 = vpack.c.bf16 %v4400, %v4398
    %v4429 = vpack.c.bf16 %v4403, %v4401
    %v4430 = vpack.c.bf16 %v4404, %v4402
    %v4431 = vpack.c.bf16 %v4407, %v4405
    %v4432 = vpack.c.bf16 %v4408, %v4406
    %v4433 = vpack.c.bf16 %v4411, %v4409
    %v4434 = vpack.c.bf16 %v4412, %v4410
    %v4435 = vpack.c.bf16 %v4415, %v4413
    %v4436 = vpack.c.bf16 %v4416, %v4414
    %v4437 = vpack.c.bf16 %v4419, %v4417
    %v4438 = vpack.c.bf16 %v4420, %v4418
    %v4471 = vunpack.c.l.b16 %v1144
    %v4472 = vunpack.c.l.b16 %v1145
    %v4473 = vunpack.c.l.b16 %v1146
    %v4474 = vunpack.c.l.b16 %v1147
    %v4475 = vunpack.c.l.b16 %v1148
    %v4476 = vunpack.c.l.b16 %v1149
    %v4477 = vunpack.c.l.b16 %v1150
    %v4478 = vunpack.c.l.b16 %v1151
    %v4479 = vunpack.c.l.b16 %v1152
    %v4480 = vunpack.c.l.b16 %v1153
    %v4481 = vunpack.c.l.b16 %v1154
    %v4482 = vunpack.c.l.b16 %v1155
    %v4483 = vunpack.c.l.b16 %v1156
    %v4484 = vunpack.c.l.b16 %v1157
    %v4485 = vunpack.c.l.b16 %v1158
    %v4486 = vunpack.c.l.b16 %v1159
    %v4487 = vunpack.c.l.b16 %v1160
    %v4488 = vunpack.c.l.b16 %v1161
    %v4489 = vunpack.c.l.b16 %v1162
    %v4490 = vunpack.c.l.b16 %v1163
    %v4491 = vunpack.c.l.b16 %v1164
    %v4492 = vunpack.c.l.b16 %v1165
    %v4493 = vunpack.c.l.b16 %v1166
    %v4494 = vunpack.c.l.b16 %v1167
    %v4495 = vunpack.c.l.b16 %v1168
    %v4496 = vunpack.c.l.b16 %v1169
    %v4497 = vunpack.c.l.b16 %v1170
    %v4498 = vunpack.c.l.b16 %v1171
    %v4499 = vunpack.c.l.b16 %v1172
    %v4500 = vunpack.c.l.b16 %v1173
    %v4501 = vunpack.c.l.b16 %v1174
    %v4502 = vunpack.c.l.b16 %v1175
    %v4503 = vpack.c.b16 %v4472, %v4471
    %v4504 = vpack.c.b16 %v4474, %v4473
    %v4505 = vpack.c.b16 %v4476, %v4475
    %v4506 = vpack.c.b16 %v4478, %v4477
    %v4507 = vpack.c.b16 %v4480, %v4479
    %v4508 = vpack.c.b16 %v4482, %v4481
    %v4509 = vpack.c.b16 %v4484, %v4483
    %v4510 = vpack.c.b16 %v4486, %v4485
    %v4511 = vpack.c.b16 %v4488, %v4487
    %v4512 = vpack.c.b16 %v4490, %v4489
    %v4513 = vpack.c.b16 %v4492, %v4491
    %v4514 = vpack.c.b16 %v4494, %v4493
    %v4515 = vpack.c.b16 %v4496, %v4495
    %v4516 = vpack.c.b16 %v4498, %v4497
    %v4517 = vpack.c.b16 %v4500, %v4499
    %v4518 = vpack.c.b16 %v4502, %v4501
    %4535 = vmatprep.subr.bf16.mxu0 0
    %4536 = vmatpush1.bf16.msra.mxu0 %v4510
    %4537 = vmatprep.subr.bf16.mxu0 0
    %4538 = vmatpush1.bf16.msra.mxu0 %v4509
    %4539 = vmatprep.subr.bf16.mxu0 0
    %4540 = vmatpush1.bf16.msra.mxu0 %v4508
    %4541 = vmatprep.subr.bf16.mxu0 0
    %4542 = vmatpush1.bf16.msra.mxu0 %v4507
    %4543 = vmatprep.subr.bf16.mxu0 0
    %4544 = vmatpush1.bf16.msra.mxu0 %v4506
    %4545 = vmatprep.subr.bf16.mxu0 0
    %4546 = vmatpush1.bf16.msra.mxu0 %v4505
    %4547 = vmatprep.subr.bf16.mxu0 0
    %4548 = vmatpush1.bf16.msra.mxu0 %v4504
    %4549 = vmatprep.subr.bf16.mxu0 0
    %4550 = vmatpush1.bf16.msra.mxu0 %v4503
    %4551 = vmatprep.subr.bf16.mxu0 0
    %4552 = vmatpush2.bf16.msra.mxu0 %v4518
    %4553 = vmatprep.subr.bf16.mxu0 0
    %4554 = vmatpush2.bf16.msra.mxu0 %v4517
    %4555 = vmatprep.subr.bf16.mxu0 0
    %4556 = vmatpush2.bf16.msra.mxu0 %v4516
    %4557 = vmatprep.subr.bf16.mxu0 0
    %4558 = vmatpush2.bf16.msra.mxu0 %v4515
    %4559 = vmatprep.subr.bf16.mxu0 0
    %4560 = vmatpush2.bf16.msra.mxu0 %v4514
    %4561 = vmatprep.subr.bf16.mxu0 0
    %4562 = vmatpush2.bf16.msra.mxu0 %v4513
    %4563 = vmatprep.subr.bf16.mxu0 0
    %4564 = vmatpush2.bf16.msra.mxu0 %v4512
    %4565 = vmatprep.subr.bf16.mxu0 0
    %4566 = vmatpush2.bf16.msra.mxu0 %v4511
    %4567 = vmatprep.mubr.bf16.mxu0 %v4422
    %4568 = vmatmul.mubr.bf16.gmra.mxu0 %v4421
    %v4569 = vpop.f32.mrf.mxu0
    %v4570 = vadd.f32 0.0, %v4569
    %v4571 = vpop.f32.mrf.mxu0
    %v4572 = vpop.f32.mrf.mxu0
    %v4573 = vadd.f32 0.0, %v4572
    %v4574 = vpop.f32.mrf.mxu0
    %4575 = vmatprep.mubr.bf16.mxu0 %v4424
    %4576 = vmatmul.mubr.bf16.gmra.mxu0 %v4423
    %v4577 = vpop.f32.mrf.mxu0
    %v4578 = vadd.f32 0.0, %v4577
    %v4579 = vpop.f32.mrf.mxu0
    %v4580 = vpop.f32.mrf.mxu0
    %v4581 = vadd.f32 0.0, %v4580
    %v4582 = vpop.f32.mrf.mxu0
    %4583 = vmatprep.mubr.bf16.mxu0 %v4426
    %4584 = vmatmul.mubr.bf16.gmra.mxu0 %v4425
    %v4585 = vpop.f32.mrf.mxu0
    %v4586 = vadd.f32 0.0, %v4585
    %v4587 = vpop.f32.mrf.mxu0
    %v4588 = vpop.f32.mrf.mxu0
    %v4589 = vadd.f32 0.0, %v4588
    %v4590 = vpop.f32.mrf.mxu0
    %4591 = vmatprep.mubr.bf16.mxu0 %v4428
    %4592 = vmatmul.mubr.bf16.gmra.mxu0 %v4427
    %v4593 = vpop.f32.mrf.mxu0
    %v4594 = vadd.f32 0.0, %v4593
    %v4595 = vpop.f32.mrf.mxu0
    %v4596 = vpop.f32.mrf.mxu0
    %v4597 = vadd.f32 0.0, %v4596
    %v4598 = vpop.f32.mrf.mxu0
    %4599 = vmatprep.mubr.bf16.mxu0 %v4430
    %4600 = vmatmul.mubr.bf16.gmra.mxu0 %v4429
    %v4601 = vpop.f32.mrf.mxu0
    %v4602 = vadd.f32 0.0, %v4601
    %v4603 = vpop.f32.mrf.mxu0
    %v4604 = vpop.f32.mrf.mxu0
    %v4605 = vadd.f32 0.0, %v4604
    %v4606 = vpop.f32.mrf.mxu0
    %4607 = vmatprep.mubr.bf16.mxu0 %v4432
    %4608 = vmatmul.mubr.bf16.gmra.mxu0 %v4431
    %v4609 = vpop.f32.mrf.mxu0
    %v4610 = vadd.f32 0.0, %v4609
    %v4611 = vpop.f32.mrf.mxu0
    %v4612 = vpop.f32.mrf.mxu0
    %v4613 = vadd.f32 0.0, %v4612
    %v4614 = vpop.f32.mrf.mxu0
    %4615 = vmatprep.mubr.bf16.mxu0 %v4434
    %4616 = vmatmul.mubr.bf16.gmra.mxu0 %v4433
    %v4617 = vpop.f32.mrf.mxu0
    %v4618 = vadd.f32 0.0, %v4617
    %v4619 = vpop.f32.mrf.mxu0
    %v4620 = vpop.f32.mrf.mxu0
    %v4621 = vadd.f32 0.0, %v4620
    %v4622 = vpop.f32.mrf.mxu0
    %4623 = vmatprep.mubr.bf16.mxu0 %v4436
    %4624 = vmatmul.mubr.bf16.gmra.mxu0 %v4435
    %v4625 = vpop.f32.mrf.mxu0
    %v4626 = vadd.f32 0.0, %v4625
    %v4627 = vpop.f32.mrf.mxu0
    %v4628 = vpop.f32.mrf.mxu0
    %v4629 = vadd.f32 0.0, %v4628
    %v4630 = vpop.f32.mrf.mxu0
    %4631 = vmatprep.mubr.bf16.mxu0 %v4438
    %4632 = vmatmul.mubr.bf16.gmra.mxu0 %v4437
    %v4633 = vpop.f32.mrf.mxu0
    %v4634 = vadd.f32 0.0, %v4633
    %v4635 = vpop.f32.mrf.mxu0
    %v4636 = vpop.f32.mrf.mxu0
    %v4637 = vadd.f32 0.0, %v4636
    %v4638 = vpop.f32.mrf.mxu0
    %4639 = vdwg.mxu0
    %v4640 = vadd.f32 %v3511, %v4570
    %v4641 = vadd.f32 %v3512, %v4573
    %v4642 = vadd.f32 %v3513, %v4578
    %v4643 = vadd.f32 %v3514, %v4581
    %v4644 = vadd.f32 %v3515, %v4586
    %v4645 = vadd.f32 %v3516, %v4589
    %v4646 = vadd.f32 %v3517, %v4594
    %v4647 = vadd.f32 %v3518, %v4597
    %v4648 = vadd.f32 %v3519, %v4602
    %v4649 = vadd.f32 %v3520, %v4605
    %v4650 = vadd.f32 %v3521, %v4610
    %v4651 = vadd.f32 %v3522, %v4613
    %v4652 = vadd.f32 %v3523, %v4618
    %v4653 = vadd.f32 %v3524, %v4621
    %v4654 = vadd.f32 %v3525, %v4626
    %v4655 = vadd.f32 %v3526, %v4629
    %v4656 = vadd.f32 %v3527, %v4634
    %v4657 = vadd.f32 %v3528, %v4637
    %v4658 = vadd.f32 %v4640, %v1079
    %v4659 = vadd.f32 %v4641, %v1079
    %v4660 = vadd.f32 %v4642, %v1079
    %v4661 = vadd.f32 %v4643, %v1079
    %v4662 = vadd.f32 %v4644, %v1079
    %v4663 = vadd.f32 %v4645, %v1079
    %v4664 = vadd.f32 %v4646, %v1079
    %v4665 = vadd.f32 %v4647, %v1079
    %v4666 = vadd.f32 %v4648, %v1079
    %v4667 = vadd.f32 %v4649, %v1079
    %v4668 = vadd.f32 %v4650, %v1079
    %v4669 = vadd.f32 %v4651, %v1079
    %v4670 = vadd.f32 %v4652, %v1079
    %v4671 = vadd.f32 %v4653, %v1079
    %v4672 = vadd.f32 %v4654, %v1079
    %v4673 = vadd.f32 %v4655, %v1079
    %v4674 = vadd.f32 %v4656, %v1079
    %v4675 = vadd.f32 %v4657, %v1079
    %v4676 = vld [vmem:[%s3 + $0x10] ss:$0 sm:$0xff]
    %v4677 = vld [vmem:[%s3 + $0x11] ss:$0 sm:$0xff]
    %s4678 = scalar_lea.vmem %s3, 18
    %v4679 = vld [vmem:[%s4678] ss:$8 sm:$0x3]
    %v4680 = vld [vmem:[%s3 + $0x13] ss:$0 sm:$0xff]
    %v4681 = vld [vmem:[%s3 + $0x14] ss:$0 sm:$0xff]
    %v4682 = vld [vmem:[%s3 + $0x15] ss:$0 sm:$0xff]
    %s4683 = scalar_lea.vmem %s3, 22
    %v4684 = vld [vmem:[%s4683] ss:$8 sm:$0x3]
    %v4685 = vld [vmem:[%s3 + $0x17] ss:$0 sm:$0xff]
    %v4686 = vld [vmem:[%s4 + $0x180] sm:$0xf]
    %v4687 = vld [vmem:[%s4 + $0x184] sm:$0xf]
    %v4688 = vld [vmem:[%s4 + $0x188] sm:$0xf]
    %v4689 = vld [vmem:[%s4 + $0x18c] sm:$0xf]
    %v4690 = vld [vmem:[%s4 + $0x190] sm:$0xf]
    %v4691 = vld [vmem:[%s4 + $0x194] sm:$0xf]
    %v4692 = vld [vmem:[%s4 + $0x198] sm:$0xf]
    %v4693 = vld [vmem:[%s4 + $0x19c] sm:$0xf]
    %v4694 = vld [vmem:[%s4 + $0x1a0] sm:$0xf]
    %v4695 = vld [vmem:[%s4 + $0x1a4] sm:$0xf]
    %v4696 = vld [vmem:[%s4 + $0x1a8] sm:$0xf]
    %v4697 = vld [vmem:[%s4 + $0x1ac] sm:$0xf]
    %v4698 = vld [vmem:[%s4 + $0x1b0] sm:$0xf]
    %v4699 = vld [vmem:[%s4 + $0x1b4] sm:$0xf]
    %v4700 = vld [vmem:[%s4 + $0x1b8] sm:$0xf]
    %v4701 = vld [vmem:[%s4 + $0x1bc] sm:$0xf]
    %v4702 = vld [vmem:[%s4 + $0x1c0] sm:$0xf]
    %v4703 = vld [vmem:[%s4 + $0x1c4] sm:$0xf]
    %v4704 = vld [vmem:[%s4 + $0x1c8] sm:$0xf]
    %v4705 = vld [vmem:[%s4 + $0x1cc] sm:$0xf]
    %v4706 = vld [vmem:[%s4 + $0x1d0] sm:$0xf]
    %v4707 = vld [vmem:[%s4 + $0x1d4] sm:$0xf]
    %v4708 = vld [vmem:[%s4 + $0x1d8] sm:$0xf]
    %v4709 = vld [vmem:[%s4 + $0x1dc] sm:$0xf]
    %v4710 = vld [vmem:[%s4 + $0x1e0] sm:$0xf]
    %v4711 = vld [vmem:[%s4 + $0x1e4] sm:$0xf]
    %v4712 = vld [vmem:[%s4 + $0x1e8] sm:$0xf]
    %v4713 = vld [vmem:[%s4 + $0x1ec] sm:$0xf]
    %v4714 = vld [vmem:[%s4 + $0x1f0] sm:$0xf]
    %v4715 = vld [vmem:[%s4 + $0x1f4] sm:$0xf]
    %v4716 = vld [vmem:[%s4 + $0x1f8] sm:$0xf]
    %v4717 = vld [vmem:[%s4 + $0x1fc] sm:$0xf]
    %v4718 = vld [vmem:[%s4 + $0x200] sm:$0xf]
    %v4719 = vld [vmem:[%s4 + $0x204] sm:$0xf]
    %v4720 = vld [vmem:[%s4 + $0x208] sm:$0xf]
    %v4721 = vld [vmem:[%s4 + $0x20c] sm:$0xf]
    %v4722 = vld [vmem:[%s4 + $0x210] sm:$0xf]
    %v4723 = vld [vmem:[%s4 + $0x214] sm:$0xf]
    %v4724 = vld [vmem:[%s4 + $0x218] sm:$0xf]
    %v4725 = vld [vmem:[%s4 + $0x21c] sm:$0xf]
    %v4726 = vld [vmem:[%s4 + $0x220] sm:$0xf]
    %v4727 = vld [vmem:[%s4 + $0x224] sm:$0xf]
    %v4728 = vld [vmem:[%s4 + $0x228] sm:$0xf]
    %v4729 = vld [vmem:[%s4 + $0x22c] sm:$0xf]
    %v4730 = vld [vmem:[%s4 + $0x230] sm:$0xf]
    %v4731 = vld [vmem:[%s4 + $0x234] sm:$0xf]
    %v4732 = vld [vmem:[%s4 + $0x238] sm:$0xf]
    %v4733 = vld [vmem:[%s4 + $0x23c] sm:$0xf]
    %v4734 = vld [vmem:[%s4 + $0x240] sm:$0xf]
    %v4735 = vld [vmem:[%s4 + $0x244] sm:$0xf]
    %v4736 = vld [vmem:[%s4 + $0x248] sm:$0xf]
    %v4737 = vld [vmem:[%s4 + $0x24c] sm:$0xf]
    %v4738 = vld [vmem:[%s4 + $0x250] sm:$0xf]
    %v4739 = vld [vmem:[%s4 + $0x254] sm:$0xf]
    %v4740 = vld [vmem:[%s4 + $0x258] sm:$0xf]
    %v4741 = vld [vmem:[%s4 + $0x25c] sm:$0xf]
    %v4742 = vld [vmem:[%s4 + $0x260] sm:$0xf]
    %v4743 = vld [vmem:[%s4 + $0x264] sm:$0xf]
    %v4744 = vld [vmem:[%s4 + $0x268] sm:$0xf]
    %v4745 = vld [vmem:[%s4 + $0x26c] sm:$0xf]
    %v4746 = vld [vmem:[%s4 + $0x270] sm:$0xf]
    %v4747 = vld [vmem:[%s4 + $0x274] sm:$0xf]
    %v4748 = vld [vmem:[%s4 + $0x278] sm:$0xf]
    %v4749 = vld [vmem:[%s4 + $0x27c] sm:$0xf]
    %v4750 = vld [vmem:[%s4 + $0x280] sm:$0xf]
    %v4751 = vld [vmem:[%s4 + $0x284] sm:$0xf]
    %v4752 = vld [vmem:[%s4 + $0x288] sm:$0xf]
    %v4753 = vld [vmem:[%s4 + $0x28c] sm:$0xf]
    %v4754 = vld [vmem:[%s4 + $0x290] sm:$0xf]
    %v4755 = vld [vmem:[%s4 + $0x294] sm:$0xf]
    %v4756 = vld [vmem:[%s4 + $0x298] sm:$0xf]
    %v4757 = vld [vmem:[%s4 + $0x29c] sm:$0xf]
    %v4758 = vld [vmem:[%s4 + $0x2a0] sm:$0xf]
    %v4759 = vld [vmem:[%s4 + $0x2a4] sm:$0xf]
    %v4760 = vld [vmem:[%s4 + $0x2a8] sm:$0xf]
    %v4761 = vld [vmem:[%s4 + $0x2ac] sm:$0xf]
    %v4762 = vld [vmem:[%s4 + $0x2b0] sm:$0xf]
    %v4763 = vld [vmem:[%s4 + $0x2b4] sm:$0xf]
    %v4764 = vld [vmem:[%s4 + $0x2b8] sm:$0xf]
    %v4765 = vld [vmem:[%s4 + $0x2bc] sm:$0xf]
    %v4766 = vld [vmem:[%s4 + $0x2c0] sm:$0xf]
    %v4767 = vld [vmem:[%s4 + $0x2c4] sm:$0xf]
    %v4768 = vld [vmem:[%s4 + $0x2c8] sm:$0xf]
    %v4769 = vld [vmem:[%s4 + $0x2cc] sm:$0xf]
    %v4770 = vld [vmem:[%s4 + $0x2d0] sm:$0xf]
    %v4771 = vld [vmem:[%s4 + $0x2d4] sm:$0xf]
    %v4772 = vld [vmem:[%s4 + $0x2d8] sm:$0xf]
    %v4773 = vld [vmem:[%s4 + $0x2dc] sm:$0xf]
    %v4774 = vld [vmem:[%s4 + $0x2e0] sm:$0xf]
    %v4775 = vld [vmem:[%s4 + $0x2e4] sm:$0xf]
    %v4776 = vld [vmem:[%s4 + $0x2e8] sm:$0xf]
    %v4777 = vld [vmem:[%s4 + $0x2ec] sm:$0xf]
    %v4778 = vld [vmem:[%s4 + $0x2f0] sm:$0xf]
    %v4779 = vld [vmem:[%s4 + $0x2f4] sm:$0xf]
    %v4780 = vld [vmem:[%s4 + $0x2f8] sm:$0xf]
    %v4781 = vld [vmem:[%s4 + $0x2fc] sm:$0xf]
    %v4782 = vsel %vm1176, %v4658, 0.0
    %4783 = vadd.xlane.f32.xlu0 %v4782
    %v4784 = vpop.xlane.xlu0 %4783
    %v4785 = vsel %vm1176, %v4659, 0.0
    %4786 = vadd.xlane.f32.xlu0 %v4785
    %v4787 = vpop.xlane.xlu0 %4786
    %v4788 = vsel %vm1176, %v4660, 0.0
    %4789 = vadd.xlane.f32.xlu0 %v4788
    %v4790 = vpop.xlane.xlu0 %4789
    %v4791 = vsel %vm1176, %v4661, 0.0
    %4792 = vadd.xlane.f32.xlu0 %v4791
    %v4793 = vpop.xlane.xlu0 %4792
    %v4794 = vsel %vm1176, %v4662, 0.0
    %4795 = vadd.xlane.f32.xlu0 %v4794
    %v4796 = vpop.xlane.xlu0 %4795
    %v4797 = vsel %vm1176, %v4663, 0.0
    %4798 = vadd.xlane.f32.xlu0 %v4797
    %v4799 = vpop.xlane.xlu0 %4798
    %v4800 = vsel %vm1176, %v4664, 0.0
    %4801 = vadd.xlane.f32.xlu0 %v4800
    %v4802 = vpop.xlane.xlu0 %4801
    %v4803 = vsel %vm1176, %v4665, 0.0
    %4804 = vadd.xlane.f32.xlu0 %v4803
    %v4805 = vpop.xlane.xlu0 %4804
    %v4806 = vsel %vm1176, %v4666, 0.0
    %4807 = vadd.xlane.f32.xlu0 %v4806
    %v4808 = vpop.xlane.xlu0 %4807
    %v4809 = vsel %vm1176, %v4667, 0.0
    %4810 = vadd.xlane.f32.xlu0 %v4809
    %v4811 = vpop.xlane.xlu0 %4810
    %v4812 = vsel %vm1176, %v4668, 0.0
    %4813 = vadd.xlane.f32.xlu0 %v4812
    %v4814 = vpop.xlane.xlu0 %4813
    %v4815 = vsel %vm1176, %v4669, 0.0
    %4816 = vadd.xlane.f32.xlu0 %v4815
    %v4817 = vpop.xlane.xlu0 %4816
    %v4818 = vsel %vm1176, %v4670, 0.0
    %4819 = vadd.xlane.f32.xlu0 %v4818
    %v4820 = vpop.xlane.xlu0 %4819
    %v4821 = vsel %vm1176, %v4671, 0.0
    %4822 = vadd.xlane.f32.xlu0 %v4821
    %v4823 = vpop.xlane.xlu0 %4822
    %v4824 = vsel %vm1176, %v4672, 0.0
    %4825 = vadd.xlane.f32.xlu0 %v4824
    %v4826 = vpop.xlane.xlu0 %4825
    %v4827 = vsel %vm1176, %v4673, 0.0
    %4828 = vadd.xlane.f32.xlu0 %v4827
    %v4829 = vpop.xlane.xlu0 %4828
    %v4830 = vsel %vm1176, %v4674, 0.0
    %4831 = vadd.xlane.f32.xlu0 %v4830
    %v4832 = vpop.xlane.xlu0 %4831
    %v4833 = vsel %vm1176, %v4675, 0.0
    %4834 = vadd.xlane.f32.xlu0 %v4833
    %v4835 = vpop.xlane.xlu0 %4834
    %v4836 = vmul.f32 %v4784, %v1231
    %v4837 = vmul.f32 %v4787, %v1231
    %v4838 = vmul.f32 %v4790, %v1231
    %v4839 = vmul.f32 %v4793, %v1231
    %v4840 = vmul.f32 %v4796, %v1231
    %v4841 = vmul.f32 %v4799, %v1231
    %v4842 = vmul.f32 %v4802, %v1231
    %v4843 = vmul.f32 %v4805, %v1231
    %v4844 = vmul.f32 %v4808, %v1231
    %v4845 = vmul.f32 %v4811, %v1231
    %v4846 = vmul.f32 %v4814, %v1231
    %v4847 = vmul.f32 %v4817, %v1231
    %v4848 = vmul.f32 %v4820, %v1231
    %v4849 = vmul.f32 %v4823, %v1231
    %v4850 = vmul.f32 %v4826, %v1231
    %v4851 = vmul.f32 %v4829, %v1231
    %v4852 = vmul.f32 %v4832, %v1231
    %v4853 = vmul.f32 %v4835, %v1231
    %v4854 = vsub.f32 %v4658, %v4836
    %v4855 = vsub.f32 %v4659, %v4837
    %v4856 = vsub.f32 %v4660, %v4838
    %v4857 = vsub.f32 %v4661, %v4839
    %v4858 = vsub.f32 %v4662, %v4840
    %v4859 = vsub.f32 %v4663, %v4841
    %v4860 = vsub.f32 %v4664, %v4842
    %v4861 = vsub.f32 %v4665, %v4843
    %v4862 = vsub.f32 %v4666, %v4844
    %v4863 = vsub.f32 %v4667, %v4845
    %v4864 = vsub.f32 %v4668, %v4846
    %v4865 = vsub.f32 %v4669, %v4847
    %v4866 = vsub.f32 %v4670, %v4848
    %v4867 = vsub.f32 %v4671, %v4849
    %v4868 = vsub.f32 %v4672, %v4850
    %v4869 = vsub.f32 %v4673, %v4851
    %v4870 = vsub.f32 %v4674, %v4852
    %v4871 = vsub.f32 %v4675, %v4853
    %v4872 = vmul.f32 %v4854, %v4854
    %v4873 = vmul.f32 %v4855, %v4855
    %v4874 = vmul.f32 %v4856, %v4856
    %v4875 = vmul.f32 %v4857, %v4857
    %v4876 = vmul.f32 %v4858, %v4858
    %v4877 = vmul.f32 %v4859, %v4859
    %v4878 = vmul.f32 %v4860, %v4860
    %v4879 = vmul.f32 %v4861, %v4861
    %v4880 = vmul.f32 %v4862, %v4862
    %v4881 = vmul.f32 %v4863, %v4863
    %v4882 = vmul.f32 %v4864, %v4864
    %v4883 = vmul.f32 %v4865, %v4865
    %v4884 = vmul.f32 %v4866, %v4866
    %v4885 = vmul.f32 %v4867, %v4867
    %v4886 = vmul.f32 %v4868, %v4868
    %v4887 = vmul.f32 %v4869, %v4869
    %v4888 = vmul.f32 %v4870, %v4870
    %v4889 = vmul.f32 %v4871, %v4871
    %v4890 = vsel %vm1176, %v4872, 0.0
    %4891 = vadd.xlane.f32.xlu0 %v4890
    %v4892 = vpop.xlane.xlu0 %4891
    %v4893 = vsel %vm1176, %v4873, 0.0
    %4894 = vadd.xlane.f32.xlu0 %v4893
    %v4895 = vpop.xlane.xlu0 %4894
    %v4896 = vsel %vm1176, %v4874, 0.0
    %4897 = vadd.xlane.f32.xlu0 %v4896
    %v4898 = vpop.xlane.xlu0 %4897
    %v4899 = vsel %vm1176, %v4875, 0.0
    %4900 = vadd.xlane.f32.xlu0 %v4899
    %v4901 = vpop.xlane.xlu0 %4900
    %v4902 = vsel %vm1176, %v4876, 0.0
    %4903 = vadd.xlane.f32.xlu0 %v4902
    %v4904 = vpop.xlane.xlu0 %4903
    %v4905 = vsel %vm1176, %v4877, 0.0
    %4906 = vadd.xlane.f32.xlu0 %v4905
    %v4907 = vpop.xlane.xlu0 %4906
    %v4908 = vsel %vm1176, %v4878, 0.0
    %4909 = vadd.xlane.f32.xlu0 %v4908
    %v4910 = vpop.xlane.xlu0 %4909
    %v4911 = vsel %vm1176, %v4879, 0.0
    %4912 = vadd.xlane.f32.xlu0 %v4911
    %v4913 = vpop.xlane.xlu0 %4912
    %v4914 = vsel %vm1176, %v4880, 0.0
    %4915 = vadd.xlane.f32.xlu0 %v4914
    %v4916 = vpop.xlane.xlu0 %4915
    %v4917 = vsel %vm1176, %v4881, 0.0
    %4918 = vadd.xlane.f32.xlu0 %v4917
    %v4919 = vpop.xlane.xlu0 %4918
    %v4920 = vsel %vm1176, %v4882, 0.0
    %4921 = vadd.xlane.f32.xlu0 %v4920
    %v4922 = vpop.xlane.xlu0 %4921
    %v4923 = vsel %vm1176, %v4883, 0.0
    %4924 = vadd.xlane.f32.xlu0 %v4923
    %v4925 = vpop.xlane.xlu0 %4924
    %v4926 = vsel %vm1176, %v4884, 0.0
    %4927 = vadd.xlane.f32.xlu0 %v4926
    %v4928 = vpop.xlane.xlu0 %4927
    %v4929 = vsel %vm1176, %v4885, 0.0
    %4930 = vadd.xlane.f32.xlu0 %v4929
    %v4931 = vpop.xlane.xlu0 %4930
    %v4932 = vsel %vm1176, %v4886, 0.0
    %4933 = vadd.xlane.f32.xlu0 %v4932
    %v4934 = vpop.xlane.xlu0 %4933
    %v4935 = vsel %vm1176, %v4887, 0.0
    %4936 = vadd.xlane.f32.xlu0 %v4935
    %v4937 = vpop.xlane.xlu0 %4936
    %v4938 = vsel %vm1176, %v4888, 0.0
    %4939 = vadd.xlane.f32.xlu0 %v4938
    %v4940 = vpop.xlane.xlu0 %4939
    %v4941 = vsel %vm1176, %v4889, 0.0
    %4942 = vadd.xlane.f32.xlu0 %v4941
    %v4943 = vpop.xlane.xlu0 %4942
    %v4944 = vmul.f32 %v4892, %v1231
    %v4945 = vmul.f32 %v4895, %v1231
    %v4946 = vmul.f32 %v4898, %v1231
    %v4947 = vmul.f32 %v4901, %v1231
    %v4948 = vmul.f32 %v4904, %v1231
    %v4949 = vmul.f32 %v4907, %v1231
    %v4950 = vmul.f32 %v4910, %v1231
    %v4951 = vmul.f32 %v4913, %v1231
    %v4952 = vmul.f32 %v4916, %v1231
    %v4953 = vmul.f32 %v4919, %v1231
    %v4954 = vmul.f32 %v4922, %v1231
    %v4955 = vmul.f32 %v4925, %v1231
    %v4956 = vmul.f32 %v4928, %v1231
    %v4957 = vmul.f32 %v4931, %v1231
    %v4958 = vmul.f32 %v4934, %v1231
    %v4959 = vmul.f32 %v4937, %v1231
    %v4960 = vmul.f32 %v4940, %v1231
    %v4961 = vmul.f32 %v4943, %v1231
    %v4962 = vadd.f32 %v4944, 1e-05
    %v4963 = vadd.f32 %v4945, 1e-05
    %v4964 = vadd.f32 %v4946, 1e-05
    %v4965 = vadd.f32 %v4947, 1e-05
    %v4966 = vadd.f32 %v4948, 1e-05
    %v4967 = vadd.f32 %v4949, 1e-05
    %v4968 = vadd.f32 %v4950, 1e-05
    %v4969 = vadd.f32 %v4951, 1e-05
    %v4970 = vadd.f32 %v4952, 1e-05
    %v4971 = vadd.f32 %v4953, 1e-05
    %v4972 = vadd.f32 %v4954, 1e-05
    %v4973 = vadd.f32 %v4955, 1e-05
    %v4974 = vadd.f32 %v4956, 1e-05
    %v4975 = vadd.f32 %v4957, 1e-05
    %v4976 = vadd.f32 %v4958, 1e-05
    %v4977 = vadd.f32 %v4959, 1e-05
    %v4978 = vadd.f32 %v4960, 1e-05
    %v4979 = vadd.f32 %v4961, 1e-05
    %v4980 = vrsqrt.pop %v4962
    %v4981 = vrsqrt.pop %v4963
    %v4982 = vrsqrt.pop %v4964
    %v4983 = vrsqrt.pop %v4965
    %v4984 = vrsqrt.pop %v4966
    %v4985 = vrsqrt.pop %v4967
    %v4986 = vrsqrt.pop %v4968
    %v4987 = vrsqrt.pop %v4969
    %v4988 = vrsqrt.pop %v4970
    %v4989 = vrsqrt.pop %v4971
    %v4990 = vrsqrt.pop %v4972
    %v4991 = vrsqrt.pop %v4973
    %v4992 = vrsqrt.pop %v4974
    %v4993 = vrsqrt.pop %v4975
    %v4994 = vrsqrt.pop %v4976
    %v4995 = vrsqrt.pop %v4977
    %v4996 = vrsqrt.pop %v4978
    %v4997 = vrsqrt.pop %v4979
    %v4998 = vmul.f32 %v4854, %v4980
    %v4999 = vmul.f32 %v4855, %v4981
    %v5000 = vmul.f32 %v4856, %v4982
    %v5001 = vmul.f32 %v4857, %v4983
    %v5002 = vmul.f32 %v4858, %v4984
    %v5003 = vmul.f32 %v4859, %v4985
    %v5004 = vmul.f32 %v4860, %v4986
    %v5005 = vmul.f32 %v4861, %v4987
    %v5006 = vmul.f32 %v4862, %v4988
    %v5007 = vmul.f32 %v4863, %v4989
    %v5008 = vmul.f32 %v4864, %v4990
    %v5009 = vmul.f32 %v4865, %v4991
    %v5010 = vmul.f32 %v4866, %v4992
    %v5011 = vmul.f32 %v4867, %v4993
    %v5012 = vmul.f32 %v4868, %v4994
    %v5013 = vmul.f32 %v4869, %v4995
    %v5014 = vmul.f32 %v4870, %v4996
    %v5015 = vmul.f32 %v4871, %v4997
    %v5016 = vmul.f32 %v4998, %v4676
    %v5017 = vmul.f32 %v4999, %v4676
    %v5018 = vmul.f32 %v5000, %v4676
    %v5019 = vmul.f32 %v5001, %v4676
    %v5020 = vmul.f32 %v5002, %v4676
    %v5021 = vmul.f32 %v5003, %v4676
    %v5022 = vmul.f32 %v5004, %v4676
    %v5023 = vmul.f32 %v5005, %v4676
    %v5024 = vmul.f32 %v5006, %v4676
    %v5025 = vmul.f32 %v5007, %v4676
    %v5026 = vmul.f32 %v5008, %v4676
    %v5027 = vmul.f32 %v5009, %v4676
    %v5028 = vmul.f32 %v5010, %v4676
    %v5029 = vmul.f32 %v5011, %v4676
    %v5030 = vmul.f32 %v5012, %v4676
    %v5031 = vmul.f32 %v5013, %v4676
    %v5032 = vmul.f32 %v5014, %v4676
    %v5033 = vmul.f32 %v5015, %v4676
    %v5034 = vadd.f32 %v5016, %v4677
    %v5035 = vadd.f32 %v5017, %v4677
    %v5036 = vadd.f32 %v5018, %v4677
    %v5037 = vadd.f32 %v5019, %v4677
    %v5038 = vadd.f32 %v5020, %v4677
    %v5039 = vadd.f32 %v5021, %v4677
    %v5040 = vadd.f32 %v5022, %v4677
    %v5041 = vadd.f32 %v5023, %v4677
    %v5042 = vadd.f32 %v5024, %v4677
    %v5043 = vadd.f32 %v5025, %v4677
    %v5044 = vadd.f32 %v5026, %v4677
    %v5045 = vadd.f32 %v5027, %v4677
    %v5046 = vadd.f32 %v5028, %v4677
    %v5047 = vadd.f32 %v5029, %v4677
    %v5048 = vadd.f32 %v5030, %v4677
    %v5049 = vadd.f32 %v5031, %v4677
    %v5050 = vadd.f32 %v5032, %v4677
    %v5051 = vadd.f32 %v5033, %v4677
    %v5052 = vpack.c.bf16 %v5035, %v5034
    %v5053 = vpack.c.bf16 %v5037, %v5036
    %v5054 = vpack.c.bf16 %v5039, %v5038
    %v5055 = vpack.c.bf16 %v5041, %v5040
    %v5056 = vpack.c.bf16 %v5043, %v5042
    %v5057 = vpack.c.bf16 %v5045, %v5044
    %v5058 = vpack.c.bf16 %v5047, %v5046
    %v5059 = vpack.c.bf16 %v5049, %v5048
    %v5060 = vpack.c.bf16 %v5051, %v5050
    %v5062 = vlaneseq
    %v5063 = vshrl.u32 %v5062, 7
    %v5064 = vsub.s32 0, %v5063
    %v5065 = vrot.slane %v4679, %v5064
    %v5066 = vlaneseq
    %v5067 = vshrl.u32 %v5066, 7
    %v5068 = vsub.s32 1, %v5067
    %v5069 = vrot.slane %v4679, %v5068
    %v5096 = vunpack.c.l.b16 %v4686
    %v5097 = vunpack.c.l.b16 %v4687
    %v5098 = vunpack.c.l.b16 %v4688
    %v5099 = vunpack.c.l.b16 %v4689
    %v5100 = vunpack.c.l.b16 %v4690
    %v5101 = vunpack.c.l.b16 %v4691
    %v5102 = vunpack.c.l.b16 %v4692
    %v5103 = vunpack.c.l.b16 %v4693
    %v5104 = vunpack.c.l.b16 %v4694
    %v5105 = vunpack.c.l.b16 %v4695
    %v5106 = vunpack.c.l.b16 %v4696
    %v5107 = vunpack.c.l.b16 %v4697
    %v5108 = vunpack.c.l.b16 %v4698
    %v5109 = vunpack.c.l.b16 %v4699
    %v5110 = vunpack.c.l.b16 %v4700
    %v5111 = vunpack.c.l.b16 %v4701
    %v5112 = vunpack.c.l.b16 %v4702
    %v5113 = vunpack.c.l.b16 %v4703
    %v5114 = vunpack.c.l.b16 %v4704
    %v5115 = vunpack.c.l.b16 %v4705
    %v5116 = vunpack.c.l.b16 %v4706
    %v5117 = vunpack.c.l.b16 %v4707
    %v5118 = vunpack.c.l.b16 %v4708
    %v5119 = vunpack.c.l.b16 %v4709
    %v5120 = vpack.c.b16 %v5097, %v5096
    %v5121 = vpack.c.b16 %v5099, %v5098
    %v5122 = vpack.c.b16 %v5101, %v5100
    %v5123 = vpack.c.b16 %v5103, %v5102
    %v5124 = vpack.c.b16 %v5105, %v5104
    %v5125 = vpack.c.b16 %v5107, %v5106
    %v5126 = vpack.c.b16 %v5109, %v5108
    %v5127 = vpack.c.b16 %v5111, %v5110
    %v5128 = vpack.c.b16 %v5113, %v5112
    %v5129 = vpack.c.b16 %v5115, %v5114
    %v5130 = vpack.c.b16 %v5117, %v5116
    %v5131 = vpack.c.b16 %v5119, %v5118
    %v5133 = vsel %vm1176, %v5052, 0
    %v5136 = vsel %vm1176, %v5053, 0
    %v5139 = vsel %vm1176, %v5054, 0
    %v5142 = vsel %vm1176, %v5055, 0
    %v5145 = vsel %vm1176, %v5056, 0
    %v5148 = vsel %vm1176, %v5057, 0
    %v5151 = vsel %vm1176, %v5058, 0
    %v5154 = vsel %vm1176, %v5059, 0
    %v5157 = vsel %vm1176, %v5060, 0
    %v5160 = vsel %vm1176, %v5120, 0
    %v5163 = vsel %vm1176, %v5121, 0
    %v5166 = vsel %vm1176, %v5122, 0
    %v5169 = vsel %vm1176, %v5123, 0
    %v5172 = vsel %vm1176, %v5124, 0
    %v5175 = vsel %vm1176, %v5125, 0
    %v5178 = vsel %vm1176, %v5126, 0
    %v5181 = vsel %vm1176, %v5127, 0
    %v5184 = vsel %vm1176, %v5128, 0
    %v5187 = vsel %vm1176, %v5129, 0
    %v5190 = vsel %vm1176, %v5130, 0
    %v5193 = vsel %vm1176, %v5131, 0
    %5195 = vmatprep.subr.bf16.mxu0 0
    %5196 = vmatpush1.bf16.xpose.msra.mxu0 %v5181
    %5197 = vmatprep.subr.bf16.mxu0 0
    %5198 = vmatpush1.bf16.xpose.msra.mxu0 %v5178
    %5199 = vmatprep.subr.bf16.mxu0 0
    %5200 = vmatpush1.bf16.xpose.msra.mxu0 %v5175
    %5201 = vmatprep.subr.bf16.mxu0 0
    %5202 = vmatpush1.bf16.xpose.msra.mxu0 %v5172
    %5203 = vmatprep.subr.bf16.mxu0 0
    %5204 = vmatpush1.bf16.xpose.msra.mxu0 %v5169
    %5205 = vmatprep.subr.bf16.mxu0 0
    %5206 = vmatpush1.bf16.xpose.msra.mxu0 %v5166
    %5207 = vmatprep.subr.bf16.mxu0 0
    %5208 = vmatpush1.bf16.xpose.msra.mxu0 %v5163
    %5209 = vmatprep.subr.bf16.mxu0 0
    %5210 = vmatpush1.bf16.xpose.msra.mxu0 %v5160
    %5211 = vmatprep.subr.bf16.mxu0 0
    %5212 = vmatpush2.bf16.xpose.msra.mxu0 0
    %5213 = vmatprep.subr.bf16.mxu0 0
    %5214 = vmatpush2.bf16.xpose.msra.mxu0 0
    %5215 = vmatprep.subr.bf16.mxu0 0
    %5216 = vmatpush2.bf16.xpose.msra.mxu0 0
    %5217 = vmatprep.subr.bf16.mxu0 0
    %5218 = vmatpush2.bf16.xpose.msra.mxu0 0
    %5219 = vmatprep.subr.bf16.mxu0 0
    %5220 = vmatpush2.bf16.xpose.msra.mxu0 %v5193
    %5221 = vmatprep.subr.bf16.mxu0 0
    %5222 = vmatpush2.bf16.xpose.msra.mxu0 %v5190
    %5223 = vmatprep.subr.bf16.mxu0 0
    %5224 = vmatpush2.bf16.xpose.msra.mxu0 %v5187
    %5225 = vmatprep.subr.bf16.mxu0 0
    %5226 = vmatpush2.bf16.xpose.msra.mxu0 %v5184
    %5227 = vmatprep.mubr.bf16.mxu0 0
    %5228 = vmatmul.mubr.bf16.gmra.mxu0 %v5133
    %v5229 = vpop.f32.mrf.mxu0
    %v5230 = vadd.f32 %v5065, %v5229
    %v5231 = vpop.f32.mrf.mxu0
    %v5232 = vadd.f32 %v5069, %v5231
    %v5233 = vpop.f32.mrf.mxu0
    %v5234 = vadd.f32 %v5065, %v5233
    %v5235 = vpop.f32.mrf.mxu0
    %v5236 = vadd.f32 %v5069, %v5235
    %5237 = vmatprep.mubr.bf16.mxu0 0
    %5238 = vmatmul.mubr.bf16.gmra.mxu0 %v5136
    %v5239 = vpop.f32.mrf.mxu0
    %v5240 = vadd.f32 %v5065, %v5239
    %v5241 = vpop.f32.mrf.mxu0
    %v5242 = vadd.f32 %v5069, %v5241
    %v5243 = vpop.f32.mrf.mxu0
    %v5244 = vadd.f32 %v5065, %v5243
    %v5245 = vpop.f32.mrf.mxu0
    %v5246 = vadd.f32 %v5069, %v5245
    %5247 = vmatprep.mubr.bf16.mxu0 0
    %5248 = vmatmul.mubr.bf16.gmra.mxu0 %v5139
    %v5249 = vpop.f32.mrf.mxu0
    %v5250 = vadd.f32 %v5065, %v5249
    %v5251 = vpop.f32.mrf.mxu0
    %v5252 = vadd.f32 %v5069, %v5251
    %v5253 = vpop.f32.mrf.mxu0
    %v5254 = vadd.f32 %v5065, %v5253
    %v5255 = vpop.f32.mrf.mxu0
    %v5256 = vadd.f32 %v5069, %v5255
    %5257 = vmatprep.mubr.bf16.mxu0 0
    %5258 = vmatmul.mubr.bf16.gmra.mxu0 %v5142
    %v5259 = vpop.f32.mrf.mxu0
    %v5260 = vadd.f32 %v5065, %v5259
    %v5261 = vpop.f32.mrf.mxu0
    %v5262 = vadd.f32 %v5069, %v5261
    %v5263 = vpop.f32.mrf.mxu0
    %v5264 = vadd.f32 %v5065, %v5263
    %v5265 = vpop.f32.mrf.mxu0
    %v5266 = vadd.f32 %v5069, %v5265
    %5267 = vmatprep.mubr.bf16.mxu0 0
    %5268 = vmatmul.mubr.bf16.gmra.mxu0 %v5145
    %v5269 = vpop.f32.mrf.mxu0
    %v5270 = vadd.f32 %v5065, %v5269
    %v5271 = vpop.f32.mrf.mxu0
    %v5272 = vadd.f32 %v5069, %v5271
    %v5273 = vpop.f32.mrf.mxu0
    %v5274 = vadd.f32 %v5065, %v5273
    %v5275 = vpop.f32.mrf.mxu0
    %v5276 = vadd.f32 %v5069, %v5275
    %5277 = vmatprep.mubr.bf16.mxu0 0
    %5278 = vmatmul.mubr.bf16.gmra.mxu0 %v5148
    %v5279 = vpop.f32.mrf.mxu0
    %v5280 = vadd.f32 %v5065, %v5279
    %v5281 = vpop.f32.mrf.mxu0
    %v5282 = vadd.f32 %v5069, %v5281
    %v5283 = vpop.f32.mrf.mxu0
    %v5284 = vadd.f32 %v5065, %v5283
    %v5285 = vpop.f32.mrf.mxu0
    %v5286 = vadd.f32 %v5069, %v5285
    %5287 = vmatprep.mubr.bf16.mxu0 0
    %5288 = vmatmul.mubr.bf16.gmra.mxu0 %v5151
    %v5289 = vpop.f32.mrf.mxu0
    %v5290 = vadd.f32 %v5065, %v5289
    %v5291 = vpop.f32.mrf.mxu0
    %v5292 = vadd.f32 %v5069, %v5291
    %v5293 = vpop.f32.mrf.mxu0
    %v5294 = vadd.f32 %v5065, %v5293
    %v5295 = vpop.f32.mrf.mxu0
    %v5296 = vadd.f32 %v5069, %v5295
    %5297 = vmatprep.mubr.bf16.mxu0 0
    %5298 = vmatmul.mubr.bf16.gmra.mxu0 %v5154
    %v5299 = vpop.f32.mrf.mxu0
    %v5300 = vadd.f32 %v5065, %v5299
    %v5301 = vpop.f32.mrf.mxu0
    %v5302 = vadd.f32 %v5069, %v5301
    %v5303 = vpop.f32.mrf.mxu0
    %v5304 = vadd.f32 %v5065, %v5303
    %v5305 = vpop.f32.mrf.mxu0
    %v5306 = vadd.f32 %v5069, %v5305
    %5307 = vmatprep.mubr.bf16.mxu0 0
    %5308 = vmatmul.mubr.bf16.gmra.mxu0 %v5157
    %v5309 = vpop.f32.mrf.mxu0
    %v5310 = vadd.f32 %v5065, %v5309
    %v5311 = vpop.f32.mrf.mxu0
    %v5312 = vadd.f32 %v5069, %v5311
    %v5313 = vpop.f32.mrf.mxu0
    %v5314 = vadd.f32 %v5065, %v5313
    %v5315 = vpop.f32.mrf.mxu0
    %v5316 = vadd.f32 %v5069, %v5315
    %5317 = vdwg.mxu0
    %v5318 = vpack.c.bf16 %v5234, %v5230
    %v5319 = vpack.c.bf16 %v5244, %v5240
    %v5320 = vpack.c.bf16 %v5254, %v5250
    %v5321 = vpack.c.bf16 %v5264, %v5260
    %v5322 = vpack.c.bf16 %v5270, %v5270
    %v5323 = vpack.c.bf16 %v5236, %v5232
    %v5324 = vpack.c.bf16 %v5246, %v5242
    %v5325 = vpack.c.bf16 %v5256, %v5252
    %v5326 = vpack.c.bf16 %v5266, %v5262
    %v5327 = vpack.c.bf16 %v5272, %v5272
    %5333 = vrot.lane.b32.xlu0 %v5318, 64
    %v5334 = vpop.permute.xlu0 %5333
    %5335 = vrot.lane.b32.xlu0 %v5319, 64
    %v5336 = vpop.permute.xlu0 %5335
    %5337 = vrot.lane.b32.xlu0 %v5320, 64
    %v5338 = vpop.permute.xlu0 %5337
    %5339 = vrot.lane.b32.xlu0 %v5321, 64
    %v5340 = vpop.permute.xlu0 %5339
    %5341 = vrot.lane.b32.xlu0 %v5322, 64
    %v5342 = vpop.permute.xlu0 %5341
    %v5344 = vsel %vm1739, %v5318, 0
    %v5347 = vsel %vm1739, %v5319, 0
    %v5350 = vsel %vm1739, %v5320, 0
    %v5353 = vsel %vm1739, %v5321, 0
    %v5356 = vsel %vm1739, %v5322, 0
    %v5359 = vsel %vm1739, %v5334, 0
    %v5362 = vsel %vm1739, %v5336, 0
    %v5365 = vsel %vm1739, %v5338, 0
    %v5368 = vsel %vm1739, %v5340, 0
    %v5371 = vsel %vm1739, %v5342, 0
    %5373 = vmatprep.subr.bf16.mxu0 0
    %5374 = vmatpush1.bf16.xpose.msra.mxu0 0
    %5375 = vmatprep.subr.bf16.mxu0 0
    %5376 = vmatpush1.bf16.xpose.msra.mxu0 0
    %5377 = vmatprep.subr.bf16.mxu0 0
    %5378 = vmatpush1.bf16.xpose.msra.mxu0 0
    %5379 = vmatprep.subr.bf16.mxu0 0
    %5380 = vmatpush1.bf16.xpose.msra.mxu0 %v5371
    %5381 = vmatprep.subr.bf16.mxu0 0
    %5382 = vmatpush1.bf16.xpose.msra.mxu0 %v5368
    %5383 = vmatprep.subr.bf16.mxu0 0
    %5384 = vmatpush1.bf16.xpose.msra.mxu0 %v5365
    %5385 = vmatprep.subr.bf16.mxu0 0
    %5386 = vmatpush1.bf16.xpose.msra.mxu0 %v5362
    %5387 = vmatprep.subr.bf16.mxu0 0
    %5388 = vmatpush1.bf16.xpose.msra.mxu0 %v5359
    %5389 = vmatprep.subr.bf16.mxu0 0
    %5390 = vmatpush2.bf16.xpose.msra.mxu0 0
    %5391 = vmatprep.subr.bf16.mxu0 0
    %5392 = vmatpush2.bf16.xpose.msra.mxu0 0
    %5393 = vmatprep.subr.bf16.mxu0 0
    %5394 = vmatpush2.bf16.xpose.msra.mxu0 0
    %5395 = vmatprep.subr.bf16.mxu0 0
    %5396 = vmatpush2.bf16.xpose.msra.mxu0 0
    %5397 = vmatprep.subr.bf16.mxu0 0
    %5398 = vmatpush2.bf16.xpose.msra.mxu0 0
    %5399 = vmatprep.subr.bf16.mxu0 0
    %5400 = vmatpush2.bf16.xpose.msra.mxu0 0
    %5401 = vmatprep.subr.bf16.mxu0 0
    %5402 = vmatpush2.bf16.xpose.msra.mxu0 0
    %5403 = vmatprep.subr.bf16.mxu0 0
    %5404 = vmatpush2.bf16.xpose.msra.mxu0 0
    %5405 = vmatprep.mubr.bf16.mxu0 0
    %5406 = vmatmul.mubr.bf16.gmra.mxu0 %v5344
    %v5407 = vpop.f32.mrf.mxu0
    %v5408 = vadd.f32 0.0, %v5407
    %v5409 = vpop.f32.mrf.mxu0
    %v5410 = vpop.f32.mrf.mxu0
    %v5411 = vadd.f32 0.0, %v5410
    %v5412 = vpop.f32.mrf.mxu0
    %5413 = vmatprep.mubr.bf16.mxu0 0
    %5414 = vmatmul.mubr.bf16.gmra.mxu0 %v5347
    %v5415 = vpop.f32.mrf.mxu0
    %v5416 = vadd.f32 0.0, %v5415
    %v5417 = vpop.f32.mrf.mxu0
    %v5418 = vpop.f32.mrf.mxu0
    %v5419 = vadd.f32 0.0, %v5418
    %v5420 = vpop.f32.mrf.mxu0
    %5421 = vmatprep.mubr.bf16.mxu0 0
    %5422 = vmatmul.mubr.bf16.gmra.mxu0 %v5350
    %v5423 = vpop.f32.mrf.mxu0
    %v5424 = vadd.f32 0.0, %v5423
    %v5425 = vpop.f32.mrf.mxu0
    %v5426 = vpop.f32.mrf.mxu0
    %v5427 = vadd.f32 0.0, %v5426
    %v5428 = vpop.f32.mrf.mxu0
    %5429 = vmatprep.mubr.bf16.mxu0 0
    %5430 = vmatmul.mubr.bf16.gmra.mxu0 %v5353
    %v5431 = vpop.f32.mrf.mxu0
    %v5432 = vadd.f32 0.0, %v5431
    %v5433 = vpop.f32.mrf.mxu0
    %v5434 = vpop.f32.mrf.mxu0
    %v5435 = vadd.f32 0.0, %v5434
    %v5436 = vpop.f32.mrf.mxu0
    %5437 = vmatprep.mubr.bf16.mxu0 0
    %5438 = vmatmul.mubr.bf16.gmra.mxu0 %v5356
    %v5439 = vpop.f32.mrf.mxu0
    %v5440 = vadd.f32 0.0, %v5439
    %v5441 = vpop.f32.mrf.mxu0
    %v5442 = vpop.f32.mrf.mxu0
    %v5443 = vpop.f32.mrf.mxu0
    %5444 = vdwg.mxu0
    %v5445 = vmul.f32 %v5408, 0.17677669
    %v5446 = vmul.f32 %v5411, 0.17677669
    %v5447 = vmul.f32 %v5416, 0.17677669
    %v5448 = vmul.f32 %v5419, 0.17677669
    %v5449 = vmul.f32 %v5424, 0.17677669
    %v5450 = vmul.f32 %v5427, 0.17677669
    %v5451 = vmul.f32 %v5432, 0.17677669
    %v5452 = vmul.f32 %v5435, 0.17677669
    %v5453 = vmul.f32 %v5440, 0.17677669
    %v5454 = vadd.f32 %v5445, %v1069
    %v5455 = vadd.f32 %v5446, %v1069
    %v5456 = vadd.f32 %v5447, %v1069
    %v5457 = vadd.f32 %v5448, %v1069
    %v5458 = vadd.f32 %v5449, %v1069
    %v5459 = vadd.f32 %v5450, %v1069
    %v5460 = vadd.f32 %v5451, %v1069
    %v5461 = vadd.f32 %v5452, %v1069
    %v5462 = vadd.f32 %v5453, %v1069
    %v5463 = vsel %vm1860, %v5454, -inf
    %5464 = vmax.xlane.f32.xlu0 %v5463
    %v5465 = vpop.xlane.xlu0 %5464
    %v5466 = vsel %vm1860, %v5455, -inf
    %5467 = vmax.xlane.f32.xlu0 %v5466
    %v5468 = vpop.xlane.xlu0 %5467
    %v5469 = vsel %vm1860, %v5456, -inf
    %5470 = vmax.xlane.f32.xlu0 %v5469
    %v5471 = vpop.xlane.xlu0 %5470
    %v5472 = vsel %vm1860, %v5457, -inf
    %5473 = vmax.xlane.f32.xlu0 %v5472
    %v5474 = vpop.xlane.xlu0 %5473
    %v5475 = vsel %vm1860, %v5458, -inf
    %5476 = vmax.xlane.f32.xlu0 %v5475
    %v5477 = vpop.xlane.xlu0 %5476
    %v5478 = vsel %vm1860, %v5459, -inf
    %5479 = vmax.xlane.f32.xlu0 %v5478
    %v5480 = vpop.xlane.xlu0 %5479
    %v5481 = vsel %vm1860, %v5460, -inf
    %5482 = vmax.xlane.f32.xlu0 %v5481
    %v5483 = vpop.xlane.xlu0 %5482
    %v5484 = vsel %vm1860, %v5461, -inf
    %5485 = vmax.xlane.f32.xlu0 %v5484
    %v5486 = vpop.xlane.xlu0 %5485
    %v5487 = vsel %vm1860, %v5462, -inf
    %5488 = vmax.xlane.f32.xlu0 %v5487
    %v5489 = vpop.xlane.xlu0 %5488
    %v5490 = vsub.f32 %v5454, %v5465
    %v5491 = vsub.f32 %v5455, %v5468
    %v5492 = vsub.f32 %v5456, %v5471
    %v5493 = vsub.f32 %v5457, %v5474
    %v5494 = vsub.f32 %v5458, %v5477
    %v5495 = vsub.f32 %v5459, %v5480
    %v5496 = vsub.f32 %v5460, %v5483
    %v5497 = vsub.f32 %v5461, %v5486
    %v5498 = vsub.f32 %v5462, %v5489
    %v5499 = vmul.f32 %v5490, 1.442695
    %v5500 = vpow.pop %v5499
    %v5501 = vmul.f32 %v5491, 1.442695
    %v5502 = vpow.pop %v5501
    %v5503 = vmul.f32 %v5492, 1.442695
    %v5504 = vpow.pop %v5503
    %v5505 = vmul.f32 %v5493, 1.442695
    %v5506 = vpow.pop %v5505
    %v5507 = vmul.f32 %v5494, 1.442695
    %v5508 = vpow.pop %v5507
    %v5509 = vmul.f32 %v5495, 1.442695
    %v5510 = vpow.pop %v5509
    %v5511 = vmul.f32 %v5496, 1.442695
    %v5512 = vpow.pop %v5511
    %v5513 = vmul.f32 %v5497, 1.442695
    %v5514 = vpow.pop %v5513
    %v5515 = vmul.f32 %v5498, 1.442695
    %v5516 = vpow.pop %v5515
    %v5517 = vsel %vm1860, %v5500, 0.0
    %5518 = vadd.xlane.f32.xlu0 %v5517
    %v5519 = vpop.xlane.xlu0 %5518
    %v5520 = vsel %vm1860, %v5502, 0.0
    %5521 = vadd.xlane.f32.xlu0 %v5520
    %v5522 = vpop.xlane.xlu0 %5521
    %v5523 = vsel %vm1860, %v5504, 0.0
    %5524 = vadd.xlane.f32.xlu0 %v5523
    %v5525 = vpop.xlane.xlu0 %5524
    %v5526 = vsel %vm1860, %v5506, 0.0
    %5527 = vadd.xlane.f32.xlu0 %v5526
    %v5528 = vpop.xlane.xlu0 %5527
    %v5529 = vsel %vm1860, %v5508, 0.0
    %5530 = vadd.xlane.f32.xlu0 %v5529
    %v5531 = vpop.xlane.xlu0 %5530
    %v5532 = vsel %vm1860, %v5510, 0.0
    %5533 = vadd.xlane.f32.xlu0 %v5532
    %v5534 = vpop.xlane.xlu0 %5533
    %v5535 = vsel %vm1860, %v5512, 0.0
    %5536 = vadd.xlane.f32.xlu0 %v5535
    %v5537 = vpop.xlane.xlu0 %5536
    %v5538 = vsel %vm1860, %v5514, 0.0
    %5539 = vadd.xlane.f32.xlu0 %v5538
    %v5540 = vpop.xlane.xlu0 %5539
    %v5541 = vsel %vm1860, %v5516, 0.0
    %5542 = vadd.xlane.f32.xlu0 %v5541
    %v5543 = vpop.xlane.xlu0 %5542
    %v5544 = vrcp.pop %v5519
    %v5545 = vrcp.pop %v5522
    %v5546 = vrcp.pop %v5525
    %v5547 = vrcp.pop %v5528
    %v5548 = vrcp.pop %v5531
    %v5549 = vrcp.pop %v5534
    %v5550 = vrcp.pop %v5537
    %v5551 = vrcp.pop %v5540
    %v5552 = vrcp.pop %v5543
    %v5553 = vmul.f32 %v5500, %v5544
    %v5554 = vmul.f32 %v5502, %v5545
    %v5555 = vmul.f32 %v5504, %v5546
    %v5556 = vmul.f32 %v5506, %v5547
    %v5557 = vmul.f32 %v5508, %v5548
    %v5558 = vmul.f32 %v5510, %v5549
    %v5559 = vmul.f32 %v5512, %v5550
    %v5560 = vmul.f32 %v5514, %v5551
    %v5561 = vmul.f32 %v5516, %v5552
    %v5562 = vpack.c.bf16 %v5554, %v5553
    %v5563 = vpack.c.bf16 %v5556, %v5555
    %v5564 = vpack.c.bf16 %v5558, %v5557
    %v5565 = vpack.c.bf16 %v5560, %v5559
    %v5566 = vpack.c.bf16 %v5561, %v5561
    %v5568 = vsel %vm1860, %v5562, 0
    %v5571 = vsel %vm1860, %v5563, 0
    %v5574 = vsel %vm1860, %v5564, 0
    %v5577 = vsel %vm1860, %v5565, 0
    %v5580 = vsel %vm1860, %v5566, 0
    %v5583 = vsel %vm1980, %v5327, 0
    %5585 = vmatprep.subr.bf16.mxu0 0
    %5586 = vmatpush1.bf16.msra.mxu0 0
    %5587 = vmatprep.subr.bf16.mxu0 0
    %5588 = vmatpush1.bf16.msra.mxu0 0
    %5589 = vmatprep.subr.bf16.mxu0 0
    %5590 = vmatpush1.bf16.msra.mxu0 0
    %5591 = vmatprep.subr.bf16.mxu0 0
    %5592 = vmatpush1.bf16.msra.mxu0 %v5583
    %5593 = vmatprep.subr.bf16.mxu0 0
    %5594 = vmatpush1.bf16.msra.mxu0 %v5326
    %5595 = vmatprep.subr.bf16.mxu0 0
    %5596 = vmatpush1.bf16.msra.mxu0 %v5325
    %5597 = vmatprep.subr.bf16.mxu0 0
    %5598 = vmatpush1.bf16.msra.mxu0 %v5324
    %5599 = vmatprep.subr.bf16.mxu0 0
    %5600 = vmatpush1.bf16.msra.mxu0 %v5323
    %5601 = vmatprep.subr.bf16.mxu0 0
    %5602 = vmatpush2.bf16.msra.mxu0 0
    %5603 = vmatprep.subr.bf16.mxu0 0
    %5604 = vmatpush2.bf16.msra.mxu0 0
    %5605 = vmatprep.subr.bf16.mxu0 0
    %5606 = vmatpush2.bf16.msra.mxu0 0
    %5607 = vmatprep.subr.bf16.mxu0 0
    %5608 = vmatpush2.bf16.msra.mxu0 0
    %5609 = vmatprep.subr.bf16.mxu0 0
    %5610 = vmatpush2.bf16.msra.mxu0 0
    %5611 = vmatprep.subr.bf16.mxu0 0
    %5612 = vmatpush2.bf16.msra.mxu0 0
    %5613 = vmatprep.subr.bf16.mxu0 0
    %5614 = vmatpush2.bf16.msra.mxu0 0
    %5615 = vmatprep.subr.bf16.mxu0 0
    %5616 = vmatpush2.bf16.msra.mxu0 0
    %5617 = vmatprep.mubr.bf16.mxu0 0
    %5618 = vmatmul.mubr.bf16.gmra.mxu0 %v5568
    %v5619 = vpop.f32.mrf.mxu0
    %v5620 = vadd.f32 0.0, %v5619
    %v5621 = vpop.f32.mrf.mxu0
    %v5622 = vpop.f32.mrf.mxu0
    %v5623 = vadd.f32 0.0, %v5622
    %v5624 = vpop.f32.mrf.mxu0
    %5625 = vmatprep.mubr.bf16.mxu0 0
    %5626 = vmatmul.mubr.bf16.gmra.mxu0 %v5571
    %v5627 = vpop.f32.mrf.mxu0
    %v5628 = vadd.f32 0.0, %v5627
    %v5629 = vpop.f32.mrf.mxu0
    %v5630 = vpop.f32.mrf.mxu0
    %v5631 = vadd.f32 0.0, %v5630
    %v5632 = vpop.f32.mrf.mxu0
    %5633 = vmatprep.mubr.bf16.mxu0 0
    %5634 = vmatmul.mubr.bf16.gmra.mxu0 %v5574
    %v5635 = vpop.f32.mrf.mxu0
    %v5636 = vadd.f32 0.0, %v5635
    %v5637 = vpop.f32.mrf.mxu0
    %v5638 = vpop.f32.mrf.mxu0
    %v5639 = vadd.f32 0.0, %v5638
    %v5640 = vpop.f32.mrf.mxu0
    %5641 = vmatprep.mubr.bf16.mxu0 0
    %5642 = vmatmul.mubr.bf16.gmra.mxu0 %v5577
    %v5643 = vpop.f32.mrf.mxu0
    %v5644 = vadd.f32 0.0, %v5643
    %v5645 = vpop.f32.mrf.mxu0
    %v5646 = vpop.f32.mrf.mxu0
    %v5647 = vadd.f32 0.0, %v5646
    %v5648 = vpop.f32.mrf.mxu0
    %5649 = vmatprep.mubr.bf16.mxu0 0
    %5650 = vmatmul.mubr.bf16.gmra.mxu0 %v5580
    %v5651 = vpop.f32.mrf.mxu0
    %v5652 = vadd.f32 0.0, %v5651
    %v5653 = vpop.f32.mrf.mxu0
    %v5654 = vpop.f32.mrf.mxu0
    %v5655 = vpop.f32.mrf.mxu0
    %5656 = vdwg.mxu0
    %v5657 = vpack.c.bf16 %v5623, %v5620
    %v5658 = vpack.c.bf16 %v5631, %v5628
    %v5659 = vpack.c.bf16 %v5639, %v5636
    %v5660 = vpack.c.bf16 %v5647, %v5644
    %v5661 = vpack.c.bf16 %v5652, %v5652
    %5662 = vrot.lane.b32.xlu0 %v5318, 96
    %v5663 = vpop.permute.xlu0 %5662
    %5664 = vrot.lane.b32.xlu0 %v5319, 96
    %v5665 = vpop.permute.xlu0 %5664
    %5666 = vrot.lane.b32.xlu0 %v5320, 96
    %v5667 = vpop.permute.xlu0 %5666
    %5668 = vrot.lane.b32.xlu0 %v5321, 96
    %v5669 = vpop.permute.xlu0 %5668
    %5670 = vrot.lane.b32.xlu0 %v5322, 96
    %v5671 = vpop.permute.xlu0 %5670
    %5672 = vrot.lane.b32.xlu0 %v5318, 32
    %v5673 = vpop.permute.xlu0 %5672
    %5674 = vrot.lane.b32.xlu0 %v5319, 32
    %v5675 = vpop.permute.xlu0 %5674
    %5676 = vrot.lane.b32.xlu0 %v5320, 32
    %v5677 = vpop.permute.xlu0 %5676
    %5678 = vrot.lane.b32.xlu0 %v5321, 32
    %v5679 = vpop.permute.xlu0 %5678
    %5680 = vrot.lane.b32.xlu0 %v5322, 32
    %v5681 = vpop.permute.xlu0 %5680
    %v5683 = vsel %vm1739, %v5663, 0
    %v5686 = vsel %vm1739, %v5665, 0
    %v5689 = vsel %vm1739, %v5667, 0
    %v5692 = vsel %vm1739, %v5669, 0
    %v5695 = vsel %vm1739, %v5671, 0
    %v5698 = vsel %vm1739, %v5673, 0
    %v5701 = vsel %vm1739, %v5675, 0
    %v5704 = vsel %vm1739, %v5677, 0
    %v5707 = vsel %vm1739, %v5679, 0
    %v5710 = vsel %vm1739, %v5681, 0
    %5712 = vmatprep.subr.bf16.mxu0 0
    %5713 = vmatpush1.bf16.xpose.msra.mxu0 0
    %5714 = vmatprep.subr.bf16.mxu0 0
    %5715 = vmatpush1.bf16.xpose.msra.mxu0 0
    %5716 = vmatprep.subr.bf16.mxu0 0
    %5717 = vmatpush1.bf16.xpose.msra.mxu0 0
    %5718 = vmatprep.subr.bf16.mxu0 0
    %5719 = vmatpush1.bf16.xpose.msra.mxu0 %v5710
    %5720 = vmatprep.subr.bf16.mxu0 0
    %5721 = vmatpush1.bf16.xpose.msra.mxu0 %v5707
    %5722 = vmatprep.subr.bf16.mxu0 0
    %5723 = vmatpush1.bf16.xpose.msra.mxu0 %v5704
    %5724 = vmatprep.subr.bf16.mxu0 0
    %5725 = vmatpush1.bf16.xpose.msra.mxu0 %v5701
    %5726 = vmatprep.subr.bf16.mxu0 0
    %5727 = vmatpush1.bf16.xpose.msra.mxu0 %v5698
    %5728 = vmatprep.subr.bf16.mxu0 0
    %5729 = vmatpush2.bf16.xpose.msra.mxu0 0
    %5730 = vmatprep.subr.bf16.mxu0 0
    %5731 = vmatpush2.bf16.xpose.msra.mxu0 0
    %5732 = vmatprep.subr.bf16.mxu0 0
    %5733 = vmatpush2.bf16.xpose.msra.mxu0 0
    %5734 = vmatprep.subr.bf16.mxu0 0
    %5735 = vmatpush2.bf16.xpose.msra.mxu0 0
    %5736 = vmatprep.subr.bf16.mxu0 0
    %5737 = vmatpush2.bf16.xpose.msra.mxu0 0
    %5738 = vmatprep.subr.bf16.mxu0 0
    %5739 = vmatpush2.bf16.xpose.msra.mxu0 0
    %5740 = vmatprep.subr.bf16.mxu0 0
    %5741 = vmatpush2.bf16.xpose.msra.mxu0 0
    %5742 = vmatprep.subr.bf16.mxu0 0
    %5743 = vmatpush2.bf16.xpose.msra.mxu0 0
    %5744 = vmatprep.mubr.bf16.mxu0 0
    %5745 = vmatmul.mubr.bf16.gmra.mxu0 %v5683
    %v5746 = vpop.f32.mrf.mxu0
    %v5747 = vadd.f32 0.0, %v5746
    %v5748 = vpop.f32.mrf.mxu0
    %v5749 = vpop.f32.mrf.mxu0
    %v5750 = vadd.f32 0.0, %v5749
    %v5751 = vpop.f32.mrf.mxu0
    %5752 = vmatprep.mubr.bf16.mxu0 0
    %5753 = vmatmul.mubr.bf16.gmra.mxu0 %v5686
    %v5754 = vpop.f32.mrf.mxu0
    %v5755 = vadd.f32 0.0, %v5754
    %v5756 = vpop.f32.mrf.mxu0
    %v5757 = vpop.f32.mrf.mxu0
    %v5758 = vadd.f32 0.0, %v5757
    %v5759 = vpop.f32.mrf.mxu0
    %5760 = vmatprep.mubr.bf16.mxu0 0
    %5761 = vmatmul.mubr.bf16.gmra.mxu0 %v5689
    %v5762 = vpop.f32.mrf.mxu0
    %v5763 = vadd.f32 0.0, %v5762
    %v5764 = vpop.f32.mrf.mxu0
    %v5765 = vpop.f32.mrf.mxu0
    %v5766 = vadd.f32 0.0, %v5765
    %v5767 = vpop.f32.mrf.mxu0
    %5768 = vmatprep.mubr.bf16.mxu0 0
    %5769 = vmatmul.mubr.bf16.gmra.mxu0 %v5692
    %v5770 = vpop.f32.mrf.mxu0
    %v5771 = vadd.f32 0.0, %v5770
    %v5772 = vpop.f32.mrf.mxu0
    %v5773 = vpop.f32.mrf.mxu0
    %v5774 = vadd.f32 0.0, %v5773
    %v5775 = vpop.f32.mrf.mxu0
    %5776 = vmatprep.mubr.bf16.mxu0 0
    %5777 = vmatmul.mubr.bf16.gmra.mxu0 %v5695
    %v5778 = vpop.f32.mrf.mxu0
    %v5779 = vadd.f32 0.0, %v5778
    %v5780 = vpop.f32.mrf.mxu0
    %v5781 = vpop.f32.mrf.mxu0
    %v5782 = vpop.f32.mrf.mxu0
    %5783 = vdwg.mxu0
    %v5784 = vmul.f32 %v5747, 0.17677669
    %v5785 = vmul.f32 %v5750, 0.17677669
    %v5786 = vmul.f32 %v5755, 0.17677669
    %v5787 = vmul.f32 %v5758, 0.17677669
    %v5788 = vmul.f32 %v5763, 0.17677669
    %v5789 = vmul.f32 %v5766, 0.17677669
    %v5790 = vmul.f32 %v5771, 0.17677669
    %v5791 = vmul.f32 %v5774, 0.17677669
    %v5792 = vmul.f32 %v5779, 0.17677669
    %v5793 = vadd.f32 %v5784, %v1069
    %v5794 = vadd.f32 %v5785, %v1069
    %v5795 = vadd.f32 %v5786, %v1069
    %v5796 = vadd.f32 %v5787, %v1069
    %v5797 = vadd.f32 %v5788, %v1069
    %v5798 = vadd.f32 %v5789, %v1069
    %v5799 = vadd.f32 %v5790, %v1069
    %v5800 = vadd.f32 %v5791, %v1069
    %v5801 = vadd.f32 %v5792, %v1069
    %v5802 = vsel %vm1860, %v5793, -inf
    %5803 = vmax.xlane.f32.xlu0 %v5802
    %v5804 = vpop.xlane.xlu0 %5803
    %v5805 = vsel %vm1860, %v5794, -inf
    %5806 = vmax.xlane.f32.xlu0 %v5805
    %v5807 = vpop.xlane.xlu0 %5806
    %v5808 = vsel %vm1860, %v5795, -inf
    %5809 = vmax.xlane.f32.xlu0 %v5808
    %v5810 = vpop.xlane.xlu0 %5809
    %v5811 = vsel %vm1860, %v5796, -inf
    %5812 = vmax.xlane.f32.xlu0 %v5811
    %v5813 = vpop.xlane.xlu0 %5812
    %v5814 = vsel %vm1860, %v5797, -inf
    %5815 = vmax.xlane.f32.xlu0 %v5814
    %v5816 = vpop.xlane.xlu0 %5815
    %v5817 = vsel %vm1860, %v5798, -inf
    %5818 = vmax.xlane.f32.xlu0 %v5817
    %v5819 = vpop.xlane.xlu0 %5818
    %v5820 = vsel %vm1860, %v5799, -inf
    %5821 = vmax.xlane.f32.xlu0 %v5820
    %v5822 = vpop.xlane.xlu0 %5821
    %v5823 = vsel %vm1860, %v5800, -inf
    %5824 = vmax.xlane.f32.xlu0 %v5823
    %v5825 = vpop.xlane.xlu0 %5824
    %v5826 = vsel %vm1860, %v5801, -inf
    %5827 = vmax.xlane.f32.xlu0 %v5826
    %v5828 = vpop.xlane.xlu0 %5827
    %v5829 = vsub.f32 %v5793, %v5804
    %v5830 = vsub.f32 %v5794, %v5807
    %v5831 = vsub.f32 %v5795, %v5810
    %v5832 = vsub.f32 %v5796, %v5813
    %v5833 = vsub.f32 %v5797, %v5816
    %v5834 = vsub.f32 %v5798, %v5819
    %v5835 = vsub.f32 %v5799, %v5822
    %v5836 = vsub.f32 %v5800, %v5825
    %v5837 = vsub.f32 %v5801, %v5828
    %v5838 = vmul.f32 %v5829, 1.442695
    %v5839 = vpow.pop %v5838
    %v5840 = vmul.f32 %v5830, 1.442695
    %v5841 = vpow.pop %v5840
    %v5842 = vmul.f32 %v5831, 1.442695
    %v5843 = vpow.pop %v5842
    %v5844 = vmul.f32 %v5832, 1.442695
    %v5845 = vpow.pop %v5844
    %v5846 = vmul.f32 %v5833, 1.442695
    %v5847 = vpow.pop %v5846
    %v5848 = vmul.f32 %v5834, 1.442695
    %v5849 = vpow.pop %v5848
    %v5850 = vmul.f32 %v5835, 1.442695
    %v5851 = vpow.pop %v5850
    %v5852 = vmul.f32 %v5836, 1.442695
    %v5853 = vpow.pop %v5852
    %v5854 = vmul.f32 %v5837, 1.442695
    %v5855 = vpow.pop %v5854
    %v5856 = vsel %vm1860, %v5839, 0.0
    %5857 = vadd.xlane.f32.xlu0 %v5856
    %v5858 = vpop.xlane.xlu0 %5857
    %v5859 = vsel %vm1860, %v5841, 0.0
    %5860 = vadd.xlane.f32.xlu0 %v5859
    %v5861 = vpop.xlane.xlu0 %5860
    %v5862 = vsel %vm1860, %v5843, 0.0
    %5863 = vadd.xlane.f32.xlu0 %v5862
    %v5864 = vpop.xlane.xlu0 %5863
    %v5865 = vsel %vm1860, %v5845, 0.0
    %5866 = vadd.xlane.f32.xlu0 %v5865
    %v5867 = vpop.xlane.xlu0 %5866
    %v5868 = vsel %vm1860, %v5847, 0.0
    %5869 = vadd.xlane.f32.xlu0 %v5868
    %v5870 = vpop.xlane.xlu0 %5869
    %v5871 = vsel %vm1860, %v5849, 0.0
    %5872 = vadd.xlane.f32.xlu0 %v5871
    %v5873 = vpop.xlane.xlu0 %5872
    %v5874 = vsel %vm1860, %v5851, 0.0
    %5875 = vadd.xlane.f32.xlu0 %v5874
    %v5876 = vpop.xlane.xlu0 %5875
    %v5877 = vsel %vm1860, %v5853, 0.0
    %5878 = vadd.xlane.f32.xlu0 %v5877
    %v5879 = vpop.xlane.xlu0 %5878
    %v5880 = vsel %vm1860, %v5855, 0.0
    %5881 = vadd.xlane.f32.xlu0 %v5880
    %v5882 = vpop.xlane.xlu0 %5881
    %v5883 = vrcp.pop %v5858
    %v5884 = vrcp.pop %v5861
    %v5885 = vrcp.pop %v5864
    %v5886 = vrcp.pop %v5867
    %v5887 = vrcp.pop %v5870
    %v5888 = vrcp.pop %v5873
    %v5889 = vrcp.pop %v5876
    %v5890 = vrcp.pop %v5879
    %v5891 = vrcp.pop %v5882
    %v5892 = vmul.f32 %v5839, %v5883
    %v5893 = vmul.f32 %v5841, %v5884
    %v5894 = vmul.f32 %v5843, %v5885
    %v5895 = vmul.f32 %v5845, %v5886
    %v5896 = vmul.f32 %v5847, %v5887
    %v5897 = vmul.f32 %v5849, %v5888
    %v5898 = vmul.f32 %v5851, %v5889
    %v5899 = vmul.f32 %v5853, %v5890
    %v5900 = vmul.f32 %v5855, %v5891
    %v5901 = vpack.c.bf16 %v5893, %v5892
    %v5902 = vpack.c.bf16 %v5895, %v5894
    %v5903 = vpack.c.bf16 %v5897, %v5896
    %v5904 = vpack.c.bf16 %v5899, %v5898
    %v5905 = vpack.c.bf16 %v5900, %v5900
    %5911 = vrot.lane.b32.xlu0 %v5323, 96
    %v5912 = vpop.permute.xlu0 %5911
    %5913 = vrot.lane.b32.xlu0 %v5324, 96
    %v5914 = vpop.permute.xlu0 %5913
    %5915 = vrot.lane.b32.xlu0 %v5325, 96
    %v5916 = vpop.permute.xlu0 %5915
    %5917 = vrot.lane.b32.xlu0 %v5326, 96
    %v5918 = vpop.permute.xlu0 %5917
    %5919 = vrot.lane.b32.xlu0 %v5327, 96
    %v5920 = vpop.permute.xlu0 %5919
    %v5926 = vsel %vm1860, %v5901, 0
    %v5929 = vsel %vm1860, %v5902, 0
    %v5932 = vsel %vm1860, %v5903, 0
    %v5935 = vsel %vm1860, %v5904, 0
    %v5938 = vsel %vm1860, %v5905, 0
    %v5941 = vsel %vm1980, %v5920, 0
    %5943 = vmatprep.subr.bf16.mxu0 0
    %5944 = vmatpush1.bf16.msra.mxu0 0
    %5945 = vmatprep.subr.bf16.mxu0 0
    %5946 = vmatpush1.bf16.msra.mxu0 0
    %5947 = vmatprep.subr.bf16.mxu0 0
    %5948 = vmatpush1.bf16.msra.mxu0 0
    %5949 = vmatprep.subr.bf16.mxu0 0
    %5950 = vmatpush1.bf16.msra.mxu0 %v5941
    %5951 = vmatprep.subr.bf16.mxu0 0
    %5952 = vmatpush1.bf16.msra.mxu0 %v5918
    %5953 = vmatprep.subr.bf16.mxu0 0
    %5954 = vmatpush1.bf16.msra.mxu0 %v5916
    %5955 = vmatprep.subr.bf16.mxu0 0
    %5956 = vmatpush1.bf16.msra.mxu0 %v5914
    %5957 = vmatprep.subr.bf16.mxu0 0
    %5958 = vmatpush1.bf16.msra.mxu0 %v5912
    %5959 = vmatprep.subr.bf16.mxu0 0
    %5960 = vmatpush2.bf16.msra.mxu0 0
    %5961 = vmatprep.subr.bf16.mxu0 0
    %5962 = vmatpush2.bf16.msra.mxu0 0
    %5963 = vmatprep.subr.bf16.mxu0 0
    %5964 = vmatpush2.bf16.msra.mxu0 0
    %5965 = vmatprep.subr.bf16.mxu0 0
    %5966 = vmatpush2.bf16.msra.mxu0 0
    %5967 = vmatprep.subr.bf16.mxu0 0
    %5968 = vmatpush2.bf16.msra.mxu0 0
    %5969 = vmatprep.subr.bf16.mxu0 0
    %5970 = vmatpush2.bf16.msra.mxu0 0
    %5971 = vmatprep.subr.bf16.mxu0 0
    %5972 = vmatpush2.bf16.msra.mxu0 0
    %5973 = vmatprep.subr.bf16.mxu0 0
    %5974 = vmatpush2.bf16.msra.mxu0 0
    %5975 = vmatprep.mubr.bf16.mxu0 0
    %5976 = vmatmul.mubr.bf16.gmra.mxu0 %v5926
    %v5977 = vpop.f32.mrf.mxu0
    %v5978 = vadd.f32 0.0, %v5977
    %v5979 = vpop.f32.mrf.mxu0
    %v5980 = vpop.f32.mrf.mxu0
    %v5981 = vadd.f32 0.0, %v5980
    %v5982 = vpop.f32.mrf.mxu0
    %5983 = vmatprep.mubr.bf16.mxu0 0
    %5984 = vmatmul.mubr.bf16.gmra.mxu0 %v5929
    %v5985 = vpop.f32.mrf.mxu0
    %v5986 = vadd.f32 0.0, %v5985
    %v5987 = vpop.f32.mrf.mxu0
    %v5988 = vpop.f32.mrf.mxu0
    %v5989 = vadd.f32 0.0, %v5988
    %v5990 = vpop.f32.mrf.mxu0
    %5991 = vmatprep.mubr.bf16.mxu0 0
    %5992 = vmatmul.mubr.bf16.gmra.mxu0 %v5932
    %v5993 = vpop.f32.mrf.mxu0
    %v5994 = vadd.f32 0.0, %v5993
    %v5995 = vpop.f32.mrf.mxu0
    %v5996 = vpop.f32.mrf.mxu0
    %v5997 = vadd.f32 0.0, %v5996
    %v5998 = vpop.f32.mrf.mxu0
    %5999 = vmatprep.mubr.bf16.mxu0 0
    %6000 = vmatmul.mubr.bf16.gmra.mxu0 %v5935
    %v6001 = vpop.f32.mrf.mxu0
    %v6002 = vadd.f32 0.0, %v6001
    %v6003 = vpop.f32.mrf.mxu0
    %v6004 = vpop.f32.mrf.mxu0
    %v6005 = vadd.f32 0.0, %v6004
    %v6006 = vpop.f32.mrf.mxu0
    %6007 = vmatprep.mubr.bf16.mxu0 0
    %6008 = vmatmul.mubr.bf16.gmra.mxu0 %v5938
    %v6009 = vpop.f32.mrf.mxu0
    %v6010 = vadd.f32 0.0, %v6009
    %v6011 = vpop.f32.mrf.mxu0
    %v6012 = vpop.f32.mrf.mxu0
    %v6013 = vpop.f32.mrf.mxu0
    %6014 = vdwg.mxu0
    %v6015 = vpack.c.bf16 %v5981, %v5978
    %v6016 = vpack.c.bf16 %v5989, %v5986
    %v6017 = vpack.c.bf16 %v5997, %v5994
    %v6018 = vpack.c.bf16 %v6005, %v6002
    %v6019 = vpack.c.bf16 %v6010, %v6010
    %v6024 = vunpack.c.l.b16 %v4714
    %v6025 = vunpack.c.l.b16 %v4715
    %v6026 = vunpack.c.l.b16 %v4716
    %v6027 = vunpack.c.l.b16 %v4717
    %v6028 = vpack.c.b16 %v6025, %v6024
    %v6029 = vpack.c.b16 %v6027, %v6026
    %v6033 = vsel %vm1739, %v6015, 0
    %v6036 = vsel %vm1739, %v6016, 0
    %v6039 = vsel %vm1739, %v6017, 0
    %v6042 = vsel %vm1739, %v6018, 0
    %v6045 = vsel %vm1739, %v6019, 0
    %6047 = vmatprep.subr.bf16.mxu0 0
    %6048 = vmatpush1.bf16.msra.mxu0 0
    %6049 = vmatprep.subr.bf16.mxu0 0
    %6050 = vmatpush1.bf16.msra.mxu0 0
    %6051 = vmatprep.subr.bf16.mxu0 0
    %6052 = vmatpush1.bf16.msra.mxu0 0
    %6053 = vmatprep.subr.bf16.mxu0 0
    %6054 = vmatpush1.bf16.msra.mxu0 0
    %6055 = vmatprep.subr.bf16.mxu0 0
    %6056 = vmatpush1.bf16.msra.mxu0 0
    %6057 = vmatprep.subr.bf16.mxu0 0
    %6058 = vmatpush1.bf16.msra.mxu0 0
    %6059 = vmatprep.subr.bf16.mxu0 0
    %6060 = vmatpush1.bf16.msra.mxu0 %v6029
    %6061 = vmatprep.subr.bf16.mxu0 0
    %6062 = vmatpush1.bf16.msra.mxu0 %v6028
    %6063 = vmatprep.subr.bf16.mxu0 0
    %6064 = vmatpush2.bf16.msra.mxu0 0
    %6065 = vmatprep.subr.bf16.mxu0 0
    %6066 = vmatpush2.bf16.msra.mxu0 0
    %6067 = vmatprep.subr.bf16.mxu0 0
    %6068 = vmatpush2.bf16.msra.mxu0 0
    %6069 = vmatprep.subr.bf16.mxu0 0
    %6070 = vmatpush2.bf16.msra.mxu0 0
    %6071 = vmatprep.subr.bf16.mxu0 0
    %6072 = vmatpush2.bf16.msra.mxu0 0
    %6073 = vmatprep.subr.bf16.mxu0 0
    %6074 = vmatpush2.bf16.msra.mxu0 0
    %6075 = vmatprep.subr.bf16.mxu0 0
    %6076 = vmatpush2.bf16.msra.mxu0 0
    %6077 = vmatprep.subr.bf16.mxu0 0
    %6078 = vmatpush2.bf16.msra.mxu0 0
    %6079 = vmatprep.mubr.bf16.mxu0 0
    %6080 = vmatmul.mubr.bf16.gmra.mxu0 %v6033
    %v6081 = vpop.f32.mrf.mxu0
    %v6082 = vadd.f32 0.0, %v6081
    %v6083 = vpop.f32.mrf.mxu0
    %v6084 = vpop.f32.mrf.mxu0
    %v6085 = vadd.f32 0.0, %v6084
    %v6086 = vpop.f32.mrf.mxu0
    %6087 = vmatprep.mubr.bf16.mxu0 0
    %6088 = vmatmul.mubr.bf16.gmra.mxu0 %v6036
    %v6089 = vpop.f32.mrf.mxu0
    %v6090 = vadd.f32 0.0, %v6089
    %v6091 = vpop.f32.mrf.mxu0
    %v6092 = vpop.f32.mrf.mxu0
    %v6093 = vadd.f32 0.0, %v6092
    %v6094 = vpop.f32.mrf.mxu0
    %6095 = vmatprep.mubr.bf16.mxu0 0
    %6096 = vmatmul.mubr.bf16.gmra.mxu0 %v6039
    %v6097 = vpop.f32.mrf.mxu0
    %v6098 = vadd.f32 0.0, %v6097
    %v6099 = vpop.f32.mrf.mxu0
    %v6100 = vpop.f32.mrf.mxu0
    %v6101 = vadd.f32 0.0, %v6100
    %v6102 = vpop.f32.mrf.mxu0
    %6103 = vmatprep.mubr.bf16.mxu0 0
    %6104 = vmatmul.mubr.bf16.gmra.mxu0 %v6042
    %v6105 = vpop.f32.mrf.mxu0
    %v6106 = vadd.f32 0.0, %v6105
    %v6107 = vpop.f32.mrf.mxu0
    %v6108 = vpop.f32.mrf.mxu0
    %v6109 = vadd.f32 0.0, %v6108
    %v6110 = vpop.f32.mrf.mxu0
    %6111 = vmatprep.mubr.bf16.mxu0 0
    %6112 = vmatmul.mubr.bf16.gmra.mxu0 %v6045
    %v6113 = vpop.f32.mrf.mxu0
    %v6114 = vadd.f32 0.0, %v6113
    %v6115 = vpop.f32.mrf.mxu0
    %v6116 = vpop.f32.mrf.mxu0
    %v6117 = vpop.f32.mrf.mxu0
    %6118 = vdwg.mxu0
    %v6123 = vunpack.c.l.b16 %v4710
    %v6124 = vunpack.c.l.b16 %v4711
    %v6125 = vunpack.c.l.b16 %v4712
    %v6126 = vunpack.c.l.b16 %v4713
    %v6127 = vpack.c.b16 %v6124, %v6123
    %v6128 = vpack.c.b16 %v6126, %v6125
    %v6132 = vsel %vm1739, %v5657, 0
    %v6135 = vsel %vm1739, %v5658, 0
    %v6138 = vsel %vm1739, %v5659, 0
    %v6141 = vsel %vm1739, %v5660, 0
    %v6144 = vsel %vm1739, %v5661, 0
    %6146 = vmatprep.subr.bf16.mxu0 0
    %6147 = vmatpush1.bf16.msra.mxu0 0
    %6148 = vmatprep.subr.bf16.mxu0 0
    %6149 = vmatpush1.bf16.msra.mxu0 0
    %6150 = vmatprep.subr.bf16.mxu0 0
    %6151 = vmatpush1.bf16.msra.mxu0 0
    %6152 = vmatprep.subr.bf16.mxu0 0
    %6153 = vmatpush1.bf16.msra.mxu0 0
    %6154 = vmatprep.subr.bf16.mxu0 0
    %6155 = vmatpush1.bf16.msra.mxu0 0
    %6156 = vmatprep.subr.bf16.mxu0 0
    %6157 = vmatpush1.bf16.msra.mxu0 0
    %6158 = vmatprep.subr.bf16.mxu0 0
    %6159 = vmatpush1.bf16.msra.mxu0 %v6128
    %6160 = vmatprep.subr.bf16.mxu0 0
    %6161 = vmatpush1.bf16.msra.mxu0 %v6127
    %6162 = vmatprep.subr.bf16.mxu0 0
    %6163 = vmatpush2.bf16.msra.mxu0 0
    %6164 = vmatprep.subr.bf16.mxu0 0
    %6165 = vmatpush2.bf16.msra.mxu0 0
    %6166 = vmatprep.subr.bf16.mxu0 0
    %6167 = vmatpush2.bf16.msra.mxu0 0
    %6168 = vmatprep.subr.bf16.mxu0 0
    %6169 = vmatpush2.bf16.msra.mxu0 0
    %6170 = vmatprep.subr.bf16.mxu0 0
    %6171 = vmatpush2.bf16.msra.mxu0 0
    %6172 = vmatprep.subr.bf16.mxu0 0
    %6173 = vmatpush2.bf16.msra.mxu0 0
    %6174 = vmatprep.subr.bf16.mxu0 0
    %6175 = vmatpush2.bf16.msra.mxu0 0
    %6176 = vmatprep.subr.bf16.mxu0 0
    %6177 = vmatpush2.bf16.msra.mxu0 0
    %6178 = vmatprep.mubr.bf16.mxu0 0
    %6179 = vmatmul.mubr.bf16.gmra.mxu0 %v6132
    %v6180 = vpop.f32.mrf.mxu0
    %v6181 = vadd.f32 %v6082, %v6180
    %v6182 = vpop.f32.mrf.mxu0
    %v6183 = vpop.f32.mrf.mxu0
    %v6184 = vadd.f32 %v6085, %v6183
    %v6185 = vpop.f32.mrf.mxu0
    %6186 = vmatprep.mubr.bf16.mxu0 0
    %6187 = vmatmul.mubr.bf16.gmra.mxu0 %v6135
    %v6188 = vpop.f32.mrf.mxu0
    %v6189 = vadd.f32 %v6090, %v6188
    %v6190 = vpop.f32.mrf.mxu0
    %v6191 = vpop.f32.mrf.mxu0
    %v6192 = vadd.f32 %v6093, %v6191
    %v6193 = vpop.f32.mrf.mxu0
    %6194 = vmatprep.mubr.bf16.mxu0 0
    %6195 = vmatmul.mubr.bf16.gmra.mxu0 %v6138
    %v6196 = vpop.f32.mrf.mxu0
    %v6197 = vadd.f32 %v6098, %v6196
    %v6198 = vpop.f32.mrf.mxu0
    %v6199 = vpop.f32.mrf.mxu0
    %v6200 = vadd.f32 %v6101, %v6199
    %v6201 = vpop.f32.mrf.mxu0
    %6202 = vmatprep.mubr.bf16.mxu0 0
    %6203 = vmatmul.mubr.bf16.gmra.mxu0 %v6141
    %v6204 = vpop.f32.mrf.mxu0
    %v6205 = vadd.f32 %v6106, %v6204
    %v6206 = vpop.f32.mrf.mxu0
    %v6207 = vpop.f32.mrf.mxu0
    %v6208 = vadd.f32 %v6109, %v6207
    %v6209 = vpop.f32.mrf.mxu0
    %6210 = vmatprep.mubr.bf16.mxu0 0
    %6211 = vmatmul.mubr.bf16.gmra.mxu0 %v6144
    %v6212 = vpop.f32.mrf.mxu0
    %v6213 = vadd.f32 %v6114, %v6212
    %v6214 = vpop.f32.mrf.mxu0
    %v6215 = vpop.f32.mrf.mxu0
    %v6216 = vpop.f32.mrf.mxu0
    %6217 = vdwg.mxu0
    %v6218 = vpack.c.bf16 %v5280, %v5274
    %v6219 = vpack.c.bf16 %v5290, %v5284
    %v6220 = vpack.c.bf16 %v5300, %v5294
    %v6221 = vpack.c.bf16 %v5310, %v5304
    %v6222 = vpack.c.bf16 %v5314, %v5314
    %v6223 = vpack.c.bf16 %v5282, %v5276
    %v6224 = vpack.c.bf16 %v5292, %v5286
    %v6225 = vpack.c.bf16 %v5302, %v5296
    %v6226 = vpack.c.bf16 %v5312, %v5306
    %v6227 = vpack.c.bf16 %v5316, %v5316
    %6233 = vrot.lane.b32.xlu0 %v6218, 64
    %v6234 = vpop.permute.xlu0 %6233
    %6235 = vrot.lane.b32.xlu0 %v6219, 64
    %v6236 = vpop.permute.xlu0 %6235
    %6237 = vrot.lane.b32.xlu0 %v6220, 64
    %v6238 = vpop.permute.xlu0 %6237
    %6239 = vrot.lane.b32.xlu0 %v6221, 64
    %v6240 = vpop.permute.xlu0 %6239
    %6241 = vrot.lane.b32.xlu0 %v6222, 64
    %v6242 = vpop.permute.xlu0 %6241
    %v6244 = vsel %vm1739, %v6218, 0
    %v6247 = vsel %vm1739, %v6219, 0
    %v6250 = vsel %vm1739, %v6220, 0
    %v6253 = vsel %vm1739, %v6221, 0
    %v6256 = vsel %vm1739, %v6222, 0
    %v6259 = vsel %vm1739, %v6234, 0
    %v6262 = vsel %vm1739, %v6236, 0
    %v6265 = vsel %vm1739, %v6238, 0
    %v6268 = vsel %vm1739, %v6240, 0
    %v6271 = vsel %vm1739, %v6242, 0
    %6273 = vmatprep.subr.bf16.mxu0 0
    %6274 = vmatpush1.bf16.xpose.msra.mxu0 0
    %6275 = vmatprep.subr.bf16.mxu0 0
    %6276 = vmatpush1.bf16.xpose.msra.mxu0 0
    %6277 = vmatprep.subr.bf16.mxu0 0
    %6278 = vmatpush1.bf16.xpose.msra.mxu0 0
    %6279 = vmatprep.subr.bf16.mxu0 0
    %6280 = vmatpush1.bf16.xpose.msra.mxu0 %v6271
    %6281 = vmatprep.subr.bf16.mxu0 0
    %6282 = vmatpush1.bf16.xpose.msra.mxu0 %v6268
    %6283 = vmatprep.subr.bf16.mxu0 0
    %6284 = vmatpush1.bf16.xpose.msra.mxu0 %v6265
    %6285 = vmatprep.subr.bf16.mxu0 0
    %6286 = vmatpush1.bf16.xpose.msra.mxu0 %v6262
    %6287 = vmatprep.subr.bf16.mxu0 0
    %6288 = vmatpush1.bf16.xpose.msra.mxu0 %v6259
    %6289 = vmatprep.subr.bf16.mxu0 0
    %6290 = vmatpush2.bf16.xpose.msra.mxu0 0
    %6291 = vmatprep.subr.bf16.mxu0 0
    %6292 = vmatpush2.bf16.xpose.msra.mxu0 0
    %6293 = vmatprep.subr.bf16.mxu0 0
    %6294 = vmatpush2.bf16.xpose.msra.mxu0 0
    %6295 = vmatprep.subr.bf16.mxu0 0
    %6296 = vmatpush2.bf16.xpose.msra.mxu0 0
    %6297 = vmatprep.subr.bf16.mxu0 0
    %6298 = vmatpush2.bf16.xpose.msra.mxu0 0
    %6299 = vmatprep.subr.bf16.mxu0 0
    %6300 = vmatpush2.bf16.xpose.msra.mxu0 0
    %6301 = vmatprep.subr.bf16.mxu0 0
    %6302 = vmatpush2.bf16.xpose.msra.mxu0 0
    %6303 = vmatprep.subr.bf16.mxu0 0
    %6304 = vmatpush2.bf16.xpose.msra.mxu0 0
    %6305 = vmatprep.mubr.bf16.mxu0 0
    %6306 = vmatmul.mubr.bf16.gmra.mxu0 %v6244
    %v6307 = vpop.f32.mrf.mxu0
    %v6308 = vadd.f32 0.0, %v6307
    %v6309 = vpop.f32.mrf.mxu0
    %v6310 = vpop.f32.mrf.mxu0
    %v6311 = vadd.f32 0.0, %v6310
    %v6312 = vpop.f32.mrf.mxu0
    %6313 = vmatprep.mubr.bf16.mxu0 0
    %6314 = vmatmul.mubr.bf16.gmra.mxu0 %v6247
    %v6315 = vpop.f32.mrf.mxu0
    %v6316 = vadd.f32 0.0, %v6315
    %v6317 = vpop.f32.mrf.mxu0
    %v6318 = vpop.f32.mrf.mxu0
    %v6319 = vadd.f32 0.0, %v6318
    %v6320 = vpop.f32.mrf.mxu0
    %6321 = vmatprep.mubr.bf16.mxu0 0
    %6322 = vmatmul.mubr.bf16.gmra.mxu0 %v6250
    %v6323 = vpop.f32.mrf.mxu0
    %v6324 = vadd.f32 0.0, %v6323
    %v6325 = vpop.f32.mrf.mxu0
    %v6326 = vpop.f32.mrf.mxu0
    %v6327 = vadd.f32 0.0, %v6326
    %v6328 = vpop.f32.mrf.mxu0
    %6329 = vmatprep.mubr.bf16.mxu0 0
    %6330 = vmatmul.mubr.bf16.gmra.mxu0 %v6253
    %v6331 = vpop.f32.mrf.mxu0
    %v6332 = vadd.f32 0.0, %v6331
    %v6333 = vpop.f32.mrf.mxu0
    %v6334 = vpop.f32.mrf.mxu0
    %v6335 = vadd.f32 0.0, %v6334
    %v6336 = vpop.f32.mrf.mxu0
    %6337 = vmatprep.mubr.bf16.mxu0 0
    %6338 = vmatmul.mubr.bf16.gmra.mxu0 %v6256
    %v6339 = vpop.f32.mrf.mxu0
    %v6340 = vadd.f32 0.0, %v6339
    %v6341 = vpop.f32.mrf.mxu0
    %v6342 = vpop.f32.mrf.mxu0
    %v6343 = vpop.f32.mrf.mxu0
    %6344 = vdwg.mxu0
    %v6345 = vmul.f32 %v6308, 0.17677669
    %v6346 = vmul.f32 %v6311, 0.17677669
    %v6347 = vmul.f32 %v6316, 0.17677669
    %v6348 = vmul.f32 %v6319, 0.17677669
    %v6349 = vmul.f32 %v6324, 0.17677669
    %v6350 = vmul.f32 %v6327, 0.17677669
    %v6351 = vmul.f32 %v6332, 0.17677669
    %v6352 = vmul.f32 %v6335, 0.17677669
    %v6353 = vmul.f32 %v6340, 0.17677669
    %v6354 = vadd.f32 %v6345, %v1069
    %v6355 = vadd.f32 %v6346, %v1069
    %v6356 = vadd.f32 %v6347, %v1069
    %v6357 = vadd.f32 %v6348, %v1069
    %v6358 = vadd.f32 %v6349, %v1069
    %v6359 = vadd.f32 %v6350, %v1069
    %v6360 = vadd.f32 %v6351, %v1069
    %v6361 = vadd.f32 %v6352, %v1069
    %v6362 = vadd.f32 %v6353, %v1069
    %v6363 = vsel %vm1860, %v6354, -inf
    %6364 = vmax.xlane.f32.xlu0 %v6363
    %v6365 = vpop.xlane.xlu0 %6364
    %v6366 = vsel %vm1860, %v6355, -inf
    %6367 = vmax.xlane.f32.xlu0 %v6366
    %v6368 = vpop.xlane.xlu0 %6367
    %v6369 = vsel %vm1860, %v6356, -inf
    %6370 = vmax.xlane.f32.xlu0 %v6369
    %v6371 = vpop.xlane.xlu0 %6370
    %v6372 = vsel %vm1860, %v6357, -inf
    %6373 = vmax.xlane.f32.xlu0 %v6372
    %v6374 = vpop.xlane.xlu0 %6373
    %v6375 = vsel %vm1860, %v6358, -inf
    %6376 = vmax.xlane.f32.xlu0 %v6375
    %v6377 = vpop.xlane.xlu0 %6376
    %v6378 = vsel %vm1860, %v6359, -inf
    %6379 = vmax.xlane.f32.xlu0 %v6378
    %v6380 = vpop.xlane.xlu0 %6379
    %v6381 = vsel %vm1860, %v6360, -inf
    %6382 = vmax.xlane.f32.xlu0 %v6381
    %v6383 = vpop.xlane.xlu0 %6382
    %v6384 = vsel %vm1860, %v6361, -inf
    %6385 = vmax.xlane.f32.xlu0 %v6384
    %v6386 = vpop.xlane.xlu0 %6385
    %v6387 = vsel %vm1860, %v6362, -inf
    %6388 = vmax.xlane.f32.xlu0 %v6387
    %v6389 = vpop.xlane.xlu0 %6388
    %v6390 = vsub.f32 %v6354, %v6365
    %v6391 = vsub.f32 %v6355, %v6368
    %v6392 = vsub.f32 %v6356, %v6371
    %v6393 = vsub.f32 %v6357, %v6374
    %v6394 = vsub.f32 %v6358, %v6377
    %v6395 = vsub.f32 %v6359, %v6380
    %v6396 = vsub.f32 %v6360, %v6383
    %v6397 = vsub.f32 %v6361, %v6386
    %v6398 = vsub.f32 %v6362, %v6389
    %v6399 = vmul.f32 %v6390, 1.442695
    %v6400 = vpow.pop %v6399
    %v6401 = vmul.f32 %v6391, 1.442695
    %v6402 = vpow.pop %v6401
    %v6403 = vmul.f32 %v6392, 1.442695
    %v6404 = vpow.pop %v6403
    %v6405 = vmul.f32 %v6393, 1.442695
    %v6406 = vpow.pop %v6405
    %v6407 = vmul.f32 %v6394, 1.442695
    %v6408 = vpow.pop %v6407
    %v6409 = vmul.f32 %v6395, 1.442695
    %v6410 = vpow.pop %v6409
    %v6411 = vmul.f32 %v6396, 1.442695
    %v6412 = vpow.pop %v6411
    %v6413 = vmul.f32 %v6397, 1.442695
    %v6414 = vpow.pop %v6413
    %v6415 = vmul.f32 %v6398, 1.442695
    %v6416 = vpow.pop %v6415
    %v6417 = vsel %vm1860, %v6400, 0.0
    %6418 = vadd.xlane.f32.xlu0 %v6417
    %v6419 = vpop.xlane.xlu0 %6418
    %v6420 = vsel %vm1860, %v6402, 0.0
    %6421 = vadd.xlane.f32.xlu0 %v6420
    %v6422 = vpop.xlane.xlu0 %6421
    %v6423 = vsel %vm1860, %v6404, 0.0
    %6424 = vadd.xlane.f32.xlu0 %v6423
    %v6425 = vpop.xlane.xlu0 %6424
    %v6426 = vsel %vm1860, %v6406, 0.0
    %6427 = vadd.xlane.f32.xlu0 %v6426
    %v6428 = vpop.xlane.xlu0 %6427
    %v6429 = vsel %vm1860, %v6408, 0.0
    %6430 = vadd.xlane.f32.xlu0 %v6429
    %v6431 = vpop.xlane.xlu0 %6430
    %v6432 = vsel %vm1860, %v6410, 0.0
    %6433 = vadd.xlane.f32.xlu0 %v6432
    %v6434 = vpop.xlane.xlu0 %6433
    %v6435 = vsel %vm1860, %v6412, 0.0
    %6436 = vadd.xlane.f32.xlu0 %v6435
    %v6437 = vpop.xlane.xlu0 %6436
    %v6438 = vsel %vm1860, %v6414, 0.0
    %6439 = vadd.xlane.f32.xlu0 %v6438
    %v6440 = vpop.xlane.xlu0 %6439
    %v6441 = vsel %vm1860, %v6416, 0.0
    %6442 = vadd.xlane.f32.xlu0 %v6441
    %v6443 = vpop.xlane.xlu0 %6442
    %v6444 = vrcp.pop %v6419
    %v6445 = vrcp.pop %v6422
    %v6446 = vrcp.pop %v6425
    %v6447 = vrcp.pop %v6428
    %v6448 = vrcp.pop %v6431
    %v6449 = vrcp.pop %v6434
    %v6450 = vrcp.pop %v6437
    %v6451 = vrcp.pop %v6440
    %v6452 = vrcp.pop %v6443
    %v6453 = vmul.f32 %v6400, %v6444
    %v6454 = vmul.f32 %v6402, %v6445
    %v6455 = vmul.f32 %v6404, %v6446
    %v6456 = vmul.f32 %v6406, %v6447
    %v6457 = vmul.f32 %v6408, %v6448
    %v6458 = vmul.f32 %v6410, %v6449
    %v6459 = vmul.f32 %v6412, %v6450
    %v6460 = vmul.f32 %v6414, %v6451
    %v6461 = vmul.f32 %v6416, %v6452
    %v6462 = vpack.c.bf16 %v6454, %v6453
    %v6463 = vpack.c.bf16 %v6456, %v6455
    %v6464 = vpack.c.bf16 %v6458, %v6457
    %v6465 = vpack.c.bf16 %v6460, %v6459
    %v6466 = vpack.c.bf16 %v6461, %v6461
    %v6468 = vsel %vm1860, %v6462, 0
    %v6471 = vsel %vm1860, %v6463, 0
    %v6474 = vsel %vm1860, %v6464, 0
    %v6477 = vsel %vm1860, %v6465, 0
    %v6480 = vsel %vm1860, %v6466, 0
    %v6483 = vsel %vm1980, %v6227, 0
    %6485 = vmatprep.subr.bf16.mxu0 0
    %6486 = vmatpush1.bf16.msra.mxu0 0
    %6487 = vmatprep.subr.bf16.mxu0 0
    %6488 = vmatpush1.bf16.msra.mxu0 0
    %6489 = vmatprep.subr.bf16.mxu0 0
    %6490 = vmatpush1.bf16.msra.mxu0 0
    %6491 = vmatprep.subr.bf16.mxu0 0
    %6492 = vmatpush1.bf16.msra.mxu0 %v6483
    %6493 = vmatprep.subr.bf16.mxu0 0
    %6494 = vmatpush1.bf16.msra.mxu0 %v6226
    %6495 = vmatprep.subr.bf16.mxu0 0
    %6496 = vmatpush1.bf16.msra.mxu0 %v6225
    %6497 = vmatprep.subr.bf16.mxu0 0
    %6498 = vmatpush1.bf16.msra.mxu0 %v6224
    %6499 = vmatprep.subr.bf16.mxu0 0
    %6500 = vmatpush1.bf16.msra.mxu0 %v6223
    %6501 = vmatprep.subr.bf16.mxu0 0
    %6502 = vmatpush2.bf16.msra.mxu0 0
    %6503 = vmatprep.subr.bf16.mxu0 0
    %6504 = vmatpush2.bf16.msra.mxu0 0
    %6505 = vmatprep.subr.bf16.mxu0 0
    %6506 = vmatpush2.bf16.msra.mxu0 0
    %6507 = vmatprep.subr.bf16.mxu0 0
    %6508 = vmatpush2.bf16.msra.mxu0 0
    %6509 = vmatprep.subr.bf16.mxu0 0
    %6510 = vmatpush2.bf16.msra.mxu0 0
    %6511 = vmatprep.subr.bf16.mxu0 0
    %6512 = vmatpush2.bf16.msra.mxu0 0
    %6513 = vmatprep.subr.bf16.mxu0 0
    %6514 = vmatpush2.bf16.msra.mxu0 0
    %6515 = vmatprep.subr.bf16.mxu0 0
    %6516 = vmatpush2.bf16.msra.mxu0 0
    %6517 = vmatprep.mubr.bf16.mxu0 0
    %6518 = vmatmul.mubr.bf16.gmra.mxu0 %v6468
    %v6519 = vpop.f32.mrf.mxu0
    %v6520 = vadd.f32 0.0, %v6519
    %v6521 = vpop.f32.mrf.mxu0
    %v6522 = vpop.f32.mrf.mxu0
    %v6523 = vadd.f32 0.0, %v6522
    %v6524 = vpop.f32.mrf.mxu0
    %6525 = vmatprep.mubr.bf16.mxu0 0
    %6526 = vmatmul.mubr.bf16.gmra.mxu0 %v6471
    %v6527 = vpop.f32.mrf.mxu0
    %v6528 = vadd.f32 0.0, %v6527
    %v6529 = vpop.f32.mrf.mxu0
    %v6530 = vpop.f32.mrf.mxu0
    %v6531 = vadd.f32 0.0, %v6530
    %v6532 = vpop.f32.mrf.mxu0
    %6533 = vmatprep.mubr.bf16.mxu0 0
    %6534 = vmatmul.mubr.bf16.gmra.mxu0 %v6474
    %v6535 = vpop.f32.mrf.mxu0
    %v6536 = vadd.f32 0.0, %v6535
    %v6537 = vpop.f32.mrf.mxu0
    %v6538 = vpop.f32.mrf.mxu0
    %v6539 = vadd.f32 0.0, %v6538
    %v6540 = vpop.f32.mrf.mxu0
    %6541 = vmatprep.mubr.bf16.mxu0 0
    %6542 = vmatmul.mubr.bf16.gmra.mxu0 %v6477
    %v6543 = vpop.f32.mrf.mxu0
    %v6544 = vadd.f32 0.0, %v6543
    %v6545 = vpop.f32.mrf.mxu0
    %v6546 = vpop.f32.mrf.mxu0
    %v6547 = vadd.f32 0.0, %v6546
    %v6548 = vpop.f32.mrf.mxu0
    %6549 = vmatprep.mubr.bf16.mxu0 0
    %6550 = vmatmul.mubr.bf16.gmra.mxu0 %v6480
    %v6551 = vpop.f32.mrf.mxu0
    %v6552 = vadd.f32 0.0, %v6551
    %v6553 = vpop.f32.mrf.mxu0
    %v6554 = vpop.f32.mrf.mxu0
    %v6555 = vpop.f32.mrf.mxu0
    %6556 = vdwg.mxu0
    %v6557 = vpack.c.bf16 %v6523, %v6520
    %v6558 = vpack.c.bf16 %v6531, %v6528
    %v6559 = vpack.c.bf16 %v6539, %v6536
    %v6560 = vpack.c.bf16 %v6547, %v6544
    %v6561 = vpack.c.bf16 %v6552, %v6552
    %6562 = vrot.lane.b32.xlu0 %v6218, 96
    %v6563 = vpop.permute.xlu0 %6562
    %6564 = vrot.lane.b32.xlu0 %v6219, 96
    %v6565 = vpop.permute.xlu0 %6564
    %6566 = vrot.lane.b32.xlu0 %v6220, 96
    %v6567 = vpop.permute.xlu0 %6566
    %6568 = vrot.lane.b32.xlu0 %v6221, 96
    %v6569 = vpop.permute.xlu0 %6568
    %6570 = vrot.lane.b32.xlu0 %v6222, 96
    %v6571 = vpop.permute.xlu0 %6570
    %6572 = vrot.lane.b32.xlu0 %v6218, 32
    %v6573 = vpop.permute.xlu0 %6572
    %6574 = vrot.lane.b32.xlu0 %v6219, 32
    %v6575 = vpop.permute.xlu0 %6574
    %6576 = vrot.lane.b32.xlu0 %v6220, 32
    %v6577 = vpop.permute.xlu0 %6576
    %6578 = vrot.lane.b32.xlu0 %v6221, 32
    %v6579 = vpop.permute.xlu0 %6578
    %6580 = vrot.lane.b32.xlu0 %v6222, 32
    %v6581 = vpop.permute.xlu0 %6580
    %v6583 = vsel %vm1739, %v6563, 0
    %v6586 = vsel %vm1739, %v6565, 0
    %v6589 = vsel %vm1739, %v6567, 0
    %v6592 = vsel %vm1739, %v6569, 0
    %v6595 = vsel %vm1739, %v6571, 0
    %v6598 = vsel %vm1739, %v6573, 0
    %v6601 = vsel %vm1739, %v6575, 0
    %v6604 = vsel %vm1739, %v6577, 0
    %v6607 = vsel %vm1739, %v6579, 0
    %v6610 = vsel %vm1739, %v6581, 0
    %6612 = vmatprep.subr.bf16.mxu0 0
    %6613 = vmatpush1.bf16.xpose.msra.mxu0 0
    %6614 = vmatprep.subr.bf16.mxu0 0
    %6615 = vmatpush1.bf16.xpose.msra.mxu0 0
    %6616 = vmatprep.subr.bf16.mxu0 0
    %6617 = vmatpush1.bf16.xpose.msra.mxu0 0
    %6618 = vmatprep.subr.bf16.mxu0 0
    %6619 = vmatpush1.bf16.xpose.msra.mxu0 %v6610
    %6620 = vmatprep.subr.bf16.mxu0 0
    %6621 = vmatpush1.bf16.xpose.msra.mxu0 %v6607
    %6622 = vmatprep.subr.bf16.mxu0 0
    %6623 = vmatpush1.bf16.xpose.msra.mxu0 %v6604
    %6624 = vmatprep.subr.bf16.mxu0 0
    %6625 = vmatpush1.bf16.xpose.msra.mxu0 %v6601
    %6626 = vmatprep.subr.bf16.mxu0 0
    %6627 = vmatpush1.bf16.xpose.msra.mxu0 %v6598
    %6628 = vmatprep.subr.bf16.mxu0 0
    %6629 = vmatpush2.bf16.xpose.msra.mxu0 0
    %6630 = vmatprep.subr.bf16.mxu0 0
    %6631 = vmatpush2.bf16.xpose.msra.mxu0 0
    %6632 = vmatprep.subr.bf16.mxu0 0
    %6633 = vmatpush2.bf16.xpose.msra.mxu0 0
    %6634 = vmatprep.subr.bf16.mxu0 0
    %6635 = vmatpush2.bf16.xpose.msra.mxu0 0
    %6636 = vmatprep.subr.bf16.mxu0 0
    %6637 = vmatpush2.bf16.xpose.msra.mxu0 0
    %6638 = vmatprep.subr.bf16.mxu0 0
    %6639 = vmatpush2.bf16.xpose.msra.mxu0 0
    %6640 = vmatprep.subr.bf16.mxu0 0
    %6641 = vmatpush2.bf16.xpose.msra.mxu0 0
    %6642 = vmatprep.subr.bf16.mxu0 0
    %6643 = vmatpush2.bf16.xpose.msra.mxu0 0
    %6644 = vmatprep.mubr.bf16.mxu0 0
    %6645 = vmatmul.mubr.bf16.gmra.mxu0 %v6583
    %v6646 = vpop.f32.mrf.mxu0
    %v6647 = vadd.f32 0.0, %v6646
    %v6648 = vpop.f32.mrf.mxu0
    %v6649 = vpop.f32.mrf.mxu0
    %v6650 = vadd.f32 0.0, %v6649
    %v6651 = vpop.f32.mrf.mxu0
    %6652 = vmatprep.mubr.bf16.mxu0 0
    %6653 = vmatmul.mubr.bf16.gmra.mxu0 %v6586
    %v6654 = vpop.f32.mrf.mxu0
    %v6655 = vadd.f32 0.0, %v6654
    %v6656 = vpop.f32.mrf.mxu0
    %v6657 = vpop.f32.mrf.mxu0
    %v6658 = vadd.f32 0.0, %v6657
    %v6659 = vpop.f32.mrf.mxu0
    %6660 = vmatprep.mubr.bf16.mxu0 0
    %6661 = vmatmul.mubr.bf16.gmra.mxu0 %v6589
    %v6662 = vpop.f32.mrf.mxu0
    %v6663 = vadd.f32 0.0, %v6662
    %v6664 = vpop.f32.mrf.mxu0
    %v6665 = vpop.f32.mrf.mxu0
    %v6666 = vadd.f32 0.0, %v6665
    %v6667 = vpop.f32.mrf.mxu0
    %6668 = vmatprep.mubr.bf16.mxu0 0
    %6669 = vmatmul.mubr.bf16.gmra.mxu0 %v6592
    %v6670 = vpop.f32.mrf.mxu0
    %v6671 = vadd.f32 0.0, %v6670
    %v6672 = vpop.f32.mrf.mxu0
    %v6673 = vpop.f32.mrf.mxu0
    %v6674 = vadd.f32 0.0, %v6673
    %v6675 = vpop.f32.mrf.mxu0
    %6676 = vmatprep.mubr.bf16.mxu0 0
    %6677 = vmatmul.mubr.bf16.gmra.mxu0 %v6595
    %v6678 = vpop.f32.mrf.mxu0
    %v6679 = vadd.f32 0.0, %v6678
    %v6680 = vpop.f32.mrf.mxu0
    %v6681 = vpop.f32.mrf.mxu0
    %v6682 = vpop.f32.mrf.mxu0
    %6683 = vdwg.mxu0
    %v6684 = vmul.f32 %v6647, 0.17677669
    %v6685 = vmul.f32 %v6650, 0.17677669
    %v6686 = vmul.f32 %v6655, 0.17677669
    %v6687 = vmul.f32 %v6658, 0.17677669
    %v6688 = vmul.f32 %v6663, 0.17677669
    %v6689 = vmul.f32 %v6666, 0.17677669
    %v6690 = vmul.f32 %v6671, 0.17677669
    %v6691 = vmul.f32 %v6674, 0.17677669
    %v6692 = vmul.f32 %v6679, 0.17677669
    %v6693 = vadd.f32 %v6684, %v1069
    %v6694 = vadd.f32 %v6685, %v1069
    %v6695 = vadd.f32 %v6686, %v1069
    %v6696 = vadd.f32 %v6687, %v1069
    %v6697 = vadd.f32 %v6688, %v1069
    %v6698 = vadd.f32 %v6689, %v1069
    %v6699 = vadd.f32 %v6690, %v1069
    %v6700 = vadd.f32 %v6691, %v1069
    %v6701 = vadd.f32 %v6692, %v1069
    %v6702 = vsel %vm1860, %v6693, -inf
    %6703 = vmax.xlane.f32.xlu0 %v6702
    %v6704 = vpop.xlane.xlu0 %6703
    %v6705 = vsel %vm1860, %v6694, -inf
    %6706 = vmax.xlane.f32.xlu0 %v6705
    %v6707 = vpop.xlane.xlu0 %6706
    %v6708 = vsel %vm1860, %v6695, -inf
    %6709 = vmax.xlane.f32.xlu0 %v6708
    %v6710 = vpop.xlane.xlu0 %6709
    %v6711 = vsel %vm1860, %v6696, -inf
    %6712 = vmax.xlane.f32.xlu0 %v6711
    %v6713 = vpop.xlane.xlu0 %6712
    %v6714 = vsel %vm1860, %v6697, -inf
    %6715 = vmax.xlane.f32.xlu0 %v6714
    %v6716 = vpop.xlane.xlu0 %6715
    %v6717 = vsel %vm1860, %v6698, -inf
    %6718 = vmax.xlane.f32.xlu0 %v6717
    %v6719 = vpop.xlane.xlu0 %6718
    %v6720 = vsel %vm1860, %v6699, -inf
    %6721 = vmax.xlane.f32.xlu0 %v6720
    %v6722 = vpop.xlane.xlu0 %6721
    %v6723 = vsel %vm1860, %v6700, -inf
    %6724 = vmax.xlane.f32.xlu0 %v6723
    %v6725 = vpop.xlane.xlu0 %6724
    %v6726 = vsel %vm1860, %v6701, -inf
    %6727 = vmax.xlane.f32.xlu0 %v6726
    %v6728 = vpop.xlane.xlu0 %6727
    %v6729 = vsub.f32 %v6693, %v6704
    %v6730 = vsub.f32 %v6694, %v6707
    %v6731 = vsub.f32 %v6695, %v6710
    %v6732 = vsub.f32 %v6696, %v6713
    %v6733 = vsub.f32 %v6697, %v6716
    %v6734 = vsub.f32 %v6698, %v6719
    %v6735 = vsub.f32 %v6699, %v6722
    %v6736 = vsub.f32 %v6700, %v6725
    %v6737 = vsub.f32 %v6701, %v6728
    %v6738 = vmul.f32 %v6729, 1.442695
    %v6739 = vpow.pop %v6738
    %v6740 = vmul.f32 %v6730, 1.442695
    %v6741 = vpow.pop %v6740
    %v6742 = vmul.f32 %v6731, 1.442695
    %v6743 = vpow.pop %v6742
    %v6744 = vmul.f32 %v6732, 1.442695
    %v6745 = vpow.pop %v6744
    %v6746 = vmul.f32 %v6733, 1.442695
    %v6747 = vpow.pop %v6746
    %v6748 = vmul.f32 %v6734, 1.442695
    %v6749 = vpow.pop %v6748
    %v6750 = vmul.f32 %v6735, 1.442695
    %v6751 = vpow.pop %v6750
    %v6752 = vmul.f32 %v6736, 1.442695
    %v6753 = vpow.pop %v6752
    %v6754 = vmul.f32 %v6737, 1.442695
    %v6755 = vpow.pop %v6754
    %v6756 = vsel %vm1860, %v6739, 0.0
    %6757 = vadd.xlane.f32.xlu0 %v6756
    %v6758 = vpop.xlane.xlu0 %6757
    %v6759 = vsel %vm1860, %v6741, 0.0
    %6760 = vadd.xlane.f32.xlu0 %v6759
    %v6761 = vpop.xlane.xlu0 %6760
    %v6762 = vsel %vm1860, %v6743, 0.0
    %6763 = vadd.xlane.f32.xlu0 %v6762
    %v6764 = vpop.xlane.xlu0 %6763
    %v6765 = vsel %vm1860, %v6745, 0.0
    %6766 = vadd.xlane.f32.xlu0 %v6765
    %v6767 = vpop.xlane.xlu0 %6766
    %v6768 = vsel %vm1860, %v6747, 0.0
    %6769 = vadd.xlane.f32.xlu0 %v6768
    %v6770 = vpop.xlane.xlu0 %6769
    %v6771 = vsel %vm1860, %v6749, 0.0
    %6772 = vadd.xlane.f32.xlu0 %v6771
    %v6773 = vpop.xlane.xlu0 %6772
    %v6774 = vsel %vm1860, %v6751, 0.0
    %6775 = vadd.xlane.f32.xlu0 %v6774
    %v6776 = vpop.xlane.xlu0 %6775
    %v6777 = vsel %vm1860, %v6753, 0.0
    %6778 = vadd.xlane.f32.xlu0 %v6777
    %v6779 = vpop.xlane.xlu0 %6778
    %v6780 = vsel %vm1860, %v6755, 0.0
    %6781 = vadd.xlane.f32.xlu0 %v6780
    %v6782 = vpop.xlane.xlu0 %6781
    %v6783 = vrcp.pop %v6758
    %v6784 = vrcp.pop %v6761
    %v6785 = vrcp.pop %v6764
    %v6786 = vrcp.pop %v6767
    %v6787 = vrcp.pop %v6770
    %v6788 = vrcp.pop %v6773
    %v6789 = vrcp.pop %v6776
    %v6790 = vrcp.pop %v6779
    %v6791 = vrcp.pop %v6782
    %v6792 = vmul.f32 %v6739, %v6783
    %v6793 = vmul.f32 %v6741, %v6784
    %v6794 = vmul.f32 %v6743, %v6785
    %v6795 = vmul.f32 %v6745, %v6786
    %v6796 = vmul.f32 %v6747, %v6787
    %v6797 = vmul.f32 %v6749, %v6788
    %v6798 = vmul.f32 %v6751, %v6789
    %v6799 = vmul.f32 %v6753, %v6790
    %v6800 = vmul.f32 %v6755, %v6791
    %v6801 = vpack.c.bf16 %v6793, %v6792
    %v6802 = vpack.c.bf16 %v6795, %v6794
    %v6803 = vpack.c.bf16 %v6797, %v6796
    %v6804 = vpack.c.bf16 %v6799, %v6798
    %v6805 = vpack.c.bf16 %v6800, %v6800
    %6811 = vrot.lane.b32.xlu0 %v6223, 96
    %v6812 = vpop.permute.xlu0 %6811
    %6813 = vrot.lane.b32.xlu0 %v6224, 96
    %v6814 = vpop.permute.xlu0 %6813
    %6815 = vrot.lane.b32.xlu0 %v6225, 96
    %v6816 = vpop.permute.xlu0 %6815
    %6817 = vrot.lane.b32.xlu0 %v6226, 96
    %v6818 = vpop.permute.xlu0 %6817
    %6819 = vrot.lane.b32.xlu0 %v6227, 96
    %v6820 = vpop.permute.xlu0 %6819
    %v6826 = vsel %vm1860, %v6801, 0
    %v6829 = vsel %vm1860, %v6802, 0
    %v6832 = vsel %vm1860, %v6803, 0
    %v6835 = vsel %vm1860, %v6804, 0
    %v6838 = vsel %vm1860, %v6805, 0
    %v6841 = vsel %vm1980, %v6820, 0
    %6843 = vmatprep.subr.bf16.mxu0 0
    %6844 = vmatpush1.bf16.msra.mxu0 0
    %6845 = vmatprep.subr.bf16.mxu0 0
    %6846 = vmatpush1.bf16.msra.mxu0 0
    %6847 = vmatprep.subr.bf16.mxu0 0
    %6848 = vmatpush1.bf16.msra.mxu0 0
    %6849 = vmatprep.subr.bf16.mxu0 0
    %6850 = vmatpush1.bf16.msra.mxu0 %v6841
    %6851 = vmatprep.subr.bf16.mxu0 0
    %6852 = vmatpush1.bf16.msra.mxu0 %v6818
    %6853 = vmatprep.subr.bf16.mxu0 0
    %6854 = vmatpush1.bf16.msra.mxu0 %v6816
    %6855 = vmatprep.subr.bf16.mxu0 0
    %6856 = vmatpush1.bf16.msra.mxu0 %v6814
    %6857 = vmatprep.subr.bf16.mxu0 0
    %6858 = vmatpush1.bf16.msra.mxu0 %v6812
    %6859 = vmatprep.subr.bf16.mxu0 0
    %6860 = vmatpush2.bf16.msra.mxu0 0
    %6861 = vmatprep.subr.bf16.mxu0 0
    %6862 = vmatpush2.bf16.msra.mxu0 0
    %6863 = vmatprep.subr.bf16.mxu0 0
    %6864 = vmatpush2.bf16.msra.mxu0 0
    %6865 = vmatprep.subr.bf16.mxu0 0
    %6866 = vmatpush2.bf16.msra.mxu0 0
    %6867 = vmatprep.subr.bf16.mxu0 0
    %6868 = vmatpush2.bf16.msra.mxu0 0
    %6869 = vmatprep.subr.bf16.mxu0 0
    %6870 = vmatpush2.bf16.msra.mxu0 0
    %6871 = vmatprep.subr.bf16.mxu0 0
    %6872 = vmatpush2.bf16.msra.mxu0 0
    %6873 = vmatprep.subr.bf16.mxu0 0
    %6874 = vmatpush2.bf16.msra.mxu0 0
    %6875 = vmatprep.mubr.bf16.mxu0 0
    %6876 = vmatmul.mubr.bf16.gmra.mxu0 %v6826
    %v6877 = vpop.f32.mrf.mxu0
    %v6878 = vadd.f32 0.0, %v6877
    %v6879 = vpop.f32.mrf.mxu0
    %v6880 = vpop.f32.mrf.mxu0
    %v6881 = vadd.f32 0.0, %v6880
    %v6882 = vpop.f32.mrf.mxu0
    %6883 = vmatprep.mubr.bf16.mxu0 0
    %6884 = vmatmul.mubr.bf16.gmra.mxu0 %v6829
    %v6885 = vpop.f32.mrf.mxu0
    %v6886 = vadd.f32 0.0, %v6885
    %v6887 = vpop.f32.mrf.mxu0
    %v6888 = vpop.f32.mrf.mxu0
    %v6889 = vadd.f32 0.0, %v6888
    %v6890 = vpop.f32.mrf.mxu0
    %6891 = vmatprep.mubr.bf16.mxu0 0
    %6892 = vmatmul.mubr.bf16.gmra.mxu0 %v6832
    %v6893 = vpop.f32.mrf.mxu0
    %v6894 = vadd.f32 0.0, %v6893
    %v6895 = vpop.f32.mrf.mxu0
    %v6896 = vpop.f32.mrf.mxu0
    %v6897 = vadd.f32 0.0, %v6896
    %v6898 = vpop.f32.mrf.mxu0
    %6899 = vmatprep.mubr.bf16.mxu0 0
    %6900 = vmatmul.mubr.bf16.gmra.mxu0 %v6835
    %v6901 = vpop.f32.mrf.mxu0
    %v6902 = vadd.f32 0.0, %v6901
    %v6903 = vpop.f32.mrf.mxu0
    %v6904 = vpop.f32.mrf.mxu0
    %v6905 = vadd.f32 0.0, %v6904
    %v6906 = vpop.f32.mrf.mxu0
    %6907 = vmatprep.mubr.bf16.mxu0 0
    %6908 = vmatmul.mubr.bf16.gmra.mxu0 %v6838
    %v6909 = vpop.f32.mrf.mxu0
    %v6910 = vadd.f32 0.0, %v6909
    %v6911 = vpop.f32.mrf.mxu0
    %v6912 = vpop.f32.mrf.mxu0
    %v6913 = vpop.f32.mrf.mxu0
    %6914 = vdwg.mxu0
    %v6915 = vpack.c.bf16 %v6881, %v6878
    %v6916 = vpack.c.bf16 %v6889, %v6886
    %v6917 = vpack.c.bf16 %v6897, %v6894
    %v6918 = vpack.c.bf16 %v6905, %v6902
    %v6919 = vpack.c.bf16 %v6910, %v6910
    %v6921 = vsel %vm1739, %v6915, 0
    %v6924 = vsel %vm1739, %v6916, 0
    %v6927 = vsel %vm1739, %v6917, 0
    %v6930 = vsel %vm1739, %v6918, 0
    %v6933 = vsel %vm1739, %v6919, 0
    %6935 = vmatprep.subr.bf16.mxu0 0
    %6936 = vmatpush1.bf16.msra.mxu0 0
    %6937 = vmatprep.subr.bf16.mxu0 0
    %6938 = vmatpush1.bf16.msra.mxu0 0
    %6939 = vmatprep.subr.bf16.mxu0 0
    %6940 = vmatpush1.bf16.msra.mxu0 0
    %6941 = vmatprep.subr.bf16.mxu0 0
    %6942 = vmatpush1.bf16.msra.mxu0 0
    %6943 = vmatprep.subr.bf16.mxu0 0
    %6944 = vmatpush1.bf16.msra.mxu0 0
    %6945 = vmatprep.subr.bf16.mxu0 0
    %6946 = vmatpush1.bf16.msra.mxu0 0
    %6947 = vmatprep.subr.bf16.mxu0 0
    %6948 = vmatpush1.bf16.msra.mxu0 %v6029
    %6949 = vmatprep.subr.bf16.mxu0 0
    %6950 = vmatpush1.bf16.msra.mxu0 %v6028
    %6951 = vmatprep.subr.bf16.mxu0 0
    %6952 = vmatpush2.bf16.msra.mxu0 0
    %6953 = vmatprep.subr.bf16.mxu0 0
    %6954 = vmatpush2.bf16.msra.mxu0 0
    %6955 = vmatprep.subr.bf16.mxu0 0
    %6956 = vmatpush2.bf16.msra.mxu0 0
    %6957 = vmatprep.subr.bf16.mxu0 0
    %6958 = vmatpush2.bf16.msra.mxu0 0
    %6959 = vmatprep.subr.bf16.mxu0 0
    %6960 = vmatpush2.bf16.msra.mxu0 0
    %6961 = vmatprep.subr.bf16.mxu0 0
    %6962 = vmatpush2.bf16.msra.mxu0 0
    %6963 = vmatprep.subr.bf16.mxu0 0
    %6964 = vmatpush2.bf16.msra.mxu0 0
    %6965 = vmatprep.subr.bf16.mxu0 0
    %6966 = vmatpush2.bf16.msra.mxu0 0
    %6967 = vmatprep.mubr.bf16.mxu0 0
    %6968 = vmatmul.mubr.bf16.gmra.mxu0 %v6921
    %v6969 = vpop.f32.mrf.mxu0
    %v6970 = vadd.f32 0.0, %v6969
    %v6971 = vpop.f32.mrf.mxu0
    %v6972 = vpop.f32.mrf.mxu0
    %v6973 = vadd.f32 0.0, %v6972
    %v6974 = vpop.f32.mrf.mxu0
    %6975 = vmatprep.mubr.bf16.mxu0 0
    %6976 = vmatmul.mubr.bf16.gmra.mxu0 %v6924
    %v6977 = vpop.f32.mrf.mxu0
    %v6978 = vadd.f32 0.0, %v6977
    %v6979 = vpop.f32.mrf.mxu0
    %v6980 = vpop.f32.mrf.mxu0
    %v6981 = vadd.f32 0.0, %v6980
    %v6982 = vpop.f32.mrf.mxu0
    %6983 = vmatprep.mubr.bf16.mxu0 0
    %6984 = vmatmul.mubr.bf16.gmra.mxu0 %v6927
    %v6985 = vpop.f32.mrf.mxu0
    %v6986 = vadd.f32 0.0, %v6985
    %v6987 = vpop.f32.mrf.mxu0
    %v6988 = vpop.f32.mrf.mxu0
    %v6989 = vadd.f32 0.0, %v6988
    %v6990 = vpop.f32.mrf.mxu0
    %6991 = vmatprep.mubr.bf16.mxu0 0
    %6992 = vmatmul.mubr.bf16.gmra.mxu0 %v6930
    %v6993 = vpop.f32.mrf.mxu0
    %v6994 = vadd.f32 0.0, %v6993
    %v6995 = vpop.f32.mrf.mxu0
    %v6996 = vpop.f32.mrf.mxu0
    %v6997 = vadd.f32 0.0, %v6996
    %v6998 = vpop.f32.mrf.mxu0
    %6999 = vmatprep.mubr.bf16.mxu0 0
    %7000 = vmatmul.mubr.bf16.gmra.mxu0 %v6933
    %v7001 = vpop.f32.mrf.mxu0
    %v7002 = vadd.f32 0.0, %v7001
    %v7003 = vpop.f32.mrf.mxu0
    %v7004 = vpop.f32.mrf.mxu0
    %v7005 = vpop.f32.mrf.mxu0
    %7006 = vdwg.mxu0
    %v7008 = vsel %vm1739, %v6557, 0
    %v7011 = vsel %vm1739, %v6558, 0
    %v7014 = vsel %vm1739, %v6559, 0
    %v7017 = vsel %vm1739, %v6560, 0
    %v7020 = vsel %vm1739, %v6561, 0
    %7022 = vmatprep.subr.bf16.mxu0 0
    %7023 = vmatpush1.bf16.msra.mxu0 0
    %7024 = vmatprep.subr.bf16.mxu0 0
    %7025 = vmatpush1.bf16.msra.mxu0 0
    %7026 = vmatprep.subr.bf16.mxu0 0
    %7027 = vmatpush1.bf16.msra.mxu0 0
    %7028 = vmatprep.subr.bf16.mxu0 0
    %7029 = vmatpush1.bf16.msra.mxu0 0
    %7030 = vmatprep.subr.bf16.mxu0 0
    %7031 = vmatpush1.bf16.msra.mxu0 0
    %7032 = vmatprep.subr.bf16.mxu0 0
    %7033 = vmatpush1.bf16.msra.mxu0 0
    %7034 = vmatprep.subr.bf16.mxu0 0
    %7035 = vmatpush1.bf16.msra.mxu0 %v6128
    %7036 = vmatprep.subr.bf16.mxu0 0
    %7037 = vmatpush1.bf16.msra.mxu0 %v6127
    %7038 = vmatprep.subr.bf16.mxu0 0
    %7039 = vmatpush2.bf16.msra.mxu0 0
    %7040 = vmatprep.subr.bf16.mxu0 0
    %7041 = vmatpush2.bf16.msra.mxu0 0
    %7042 = vmatprep.subr.bf16.mxu0 0
    %7043 = vmatpush2.bf16.msra.mxu0 0
    %7044 = vmatprep.subr.bf16.mxu0 0
    %7045 = vmatpush2.bf16.msra.mxu0 0
    %7046 = vmatprep.subr.bf16.mxu0 0
    %7047 = vmatpush2.bf16.msra.mxu0 0
    %7048 = vmatprep.subr.bf16.mxu0 0
    %7049 = vmatpush2.bf16.msra.mxu0 0
    %7050 = vmatprep.subr.bf16.mxu0 0
    %7051 = vmatpush2.bf16.msra.mxu0 0
    %7052 = vmatprep.subr.bf16.mxu0 0
    %7053 = vmatpush2.bf16.msra.mxu0 0
    %7054 = vmatprep.mubr.bf16.mxu0 0
    %7055 = vmatmul.mubr.bf16.gmra.mxu0 %v7008
    %v7056 = vpop.f32.mrf.mxu0
    %v7057 = vadd.f32 %v6970, %v7056
    %v7058 = vpop.f32.mrf.mxu0
    %v7059 = vpop.f32.mrf.mxu0
    %v7060 = vadd.f32 %v6973, %v7059
    %v7061 = vpop.f32.mrf.mxu0
    %7062 = vmatprep.mubr.bf16.mxu0 0
    %7063 = vmatmul.mubr.bf16.gmra.mxu0 %v7011
    %v7064 = vpop.f32.mrf.mxu0
    %v7065 = vadd.f32 %v6978, %v7064
    %v7066 = vpop.f32.mrf.mxu0
    %v7067 = vpop.f32.mrf.mxu0
    %v7068 = vadd.f32 %v6981, %v7067
    %v7069 = vpop.f32.mrf.mxu0
    %7070 = vmatprep.mubr.bf16.mxu0 0
    %7071 = vmatmul.mubr.bf16.gmra.mxu0 %v7014
    %v7072 = vpop.f32.mrf.mxu0
    %v7073 = vadd.f32 %v6986, %v7072
    %v7074 = vpop.f32.mrf.mxu0
    %v7075 = vpop.f32.mrf.mxu0
    %v7076 = vadd.f32 %v6989, %v7075
    %v7077 = vpop.f32.mrf.mxu0
    %7078 = vmatprep.mubr.bf16.mxu0 0
    %7079 = vmatmul.mubr.bf16.gmra.mxu0 %v7017
    %v7080 = vpop.f32.mrf.mxu0
    %v7081 = vadd.f32 %v6994, %v7080
    %v7082 = vpop.f32.mrf.mxu0
    %v7083 = vpop.f32.mrf.mxu0
    %v7084 = vadd.f32 %v6997, %v7083
    %v7085 = vpop.f32.mrf.mxu0
    %7086 = vmatprep.mubr.bf16.mxu0 0
    %7087 = vmatmul.mubr.bf16.gmra.mxu0 %v7020
    %v7088 = vpop.f32.mrf.mxu0
    %v7089 = vadd.f32 %v7002, %v7088
    %v7090 = vpop.f32.mrf.mxu0
    %v7091 = vpop.f32.mrf.mxu0
    %v7092 = vpop.f32.mrf.mxu0
    %7093 = vdwg.mxu0
    %v7094 = vadd.f32 %v4658, %v6181
    %v7095 = vadd.f32 %v4659, %v6184
    %v7096 = vadd.f32 %v4660, %v6189
    %v7097 = vadd.f32 %v4661, %v6192
    %v7098 = vadd.f32 %v4662, %v6197
    %v7099 = vadd.f32 %v4663, %v6200
    %v7100 = vadd.f32 %v4664, %v6205
    %v7101 = vadd.f32 %v4665, %v6208
    %v7102 = vadd.f32 %v4666, %v6213
    %v7103 = vadd.f32 %v4667, %v7057
    %v7104 = vadd.f32 %v4668, %v7060
    %v7105 = vadd.f32 %v4669, %v7065
    %v7106 = vadd.f32 %v4670, %v7068
    %v7107 = vadd.f32 %v4671, %v7073
    %v7108 = vadd.f32 %v4672, %v7076
    %v7109 = vadd.f32 %v4673, %v7081
    %v7110 = vadd.f32 %v4674, %v7084
    %v7111 = vadd.f32 %v4675, %v7089
    %v7112 = vadd.f32 %v7094, %v4680
    %v7113 = vadd.f32 %v7095, %v4680
    %v7114 = vadd.f32 %v7096, %v4680
    %v7115 = vadd.f32 %v7097, %v4680
    %v7116 = vadd.f32 %v7098, %v4680
    %v7117 = vadd.f32 %v7099, %v4680
    %v7118 = vadd.f32 %v7100, %v4680
    %v7119 = vadd.f32 %v7101, %v4680
    %v7120 = vadd.f32 %v7102, %v4680
    %v7121 = vadd.f32 %v7103, %v4680
    %v7122 = vadd.f32 %v7104, %v4680
    %v7123 = vadd.f32 %v7105, %v4680
    %v7124 = vadd.f32 %v7106, %v4680
    %v7125 = vadd.f32 %v7107, %v4680
    %v7126 = vadd.f32 %v7108, %v4680
    %v7127 = vadd.f32 %v7109, %v4680
    %v7128 = vadd.f32 %v7110, %v4680
    %v7129 = vadd.f32 %v7111, %v4680
    %v7130 = vsel %vm1176, %v7112, 0.0
    %7131 = vadd.xlane.f32.xlu0 %v7130
    %v7132 = vpop.xlane.xlu0 %7131
    %v7133 = vsel %vm1176, %v7113, 0.0
    %7134 = vadd.xlane.f32.xlu0 %v7133
    %v7135 = vpop.xlane.xlu0 %7134
    %v7136 = vsel %vm1176, %v7114, 0.0
    %7137 = vadd.xlane.f32.xlu0 %v7136
    %v7138 = vpop.xlane.xlu0 %7137
    %v7139 = vsel %vm1176, %v7115, 0.0
    %7140 = vadd.xlane.f32.xlu0 %v7139
    %v7141 = vpop.xlane.xlu0 %7140
    %v7142 = vsel %vm1176, %v7116, 0.0
    %7143 = vadd.xlane.f32.xlu0 %v7142
    %v7144 = vpop.xlane.xlu0 %7143
    %v7145 = vsel %vm1176, %v7117, 0.0
    %7146 = vadd.xlane.f32.xlu0 %v7145
    %v7147 = vpop.xlane.xlu0 %7146
    %v7148 = vsel %vm1176, %v7118, 0.0
    %7149 = vadd.xlane.f32.xlu0 %v7148
    %v7150 = vpop.xlane.xlu0 %7149
    %v7151 = vsel %vm1176, %v7119, 0.0
    %7152 = vadd.xlane.f32.xlu0 %v7151
    %v7153 = vpop.xlane.xlu0 %7152
    %v7154 = vsel %vm1176, %v7120, 0.0
    %7155 = vadd.xlane.f32.xlu0 %v7154
    %v7156 = vpop.xlane.xlu0 %7155
    %v7157 = vsel %vm1176, %v7121, 0.0
    %7158 = vadd.xlane.f32.xlu0 %v7157
    %v7159 = vpop.xlane.xlu0 %7158
    %v7160 = vsel %vm1176, %v7122, 0.0
    %7161 = vadd.xlane.f32.xlu0 %v7160
    %v7162 = vpop.xlane.xlu0 %7161
    %v7163 = vsel %vm1176, %v7123, 0.0
    %7164 = vadd.xlane.f32.xlu0 %v7163
    %v7165 = vpop.xlane.xlu0 %7164
    %v7166 = vsel %vm1176, %v7124, 0.0
    %7167 = vadd.xlane.f32.xlu0 %v7166
    %v7168 = vpop.xlane.xlu0 %7167
    %v7169 = vsel %vm1176, %v7125, 0.0
    %7170 = vadd.xlane.f32.xlu0 %v7169
    %v7171 = vpop.xlane.xlu0 %7170
    %v7172 = vsel %vm1176, %v7126, 0.0
    %7173 = vadd.xlane.f32.xlu0 %v7172
    %v7174 = vpop.xlane.xlu0 %7173
    %v7175 = vsel %vm1176, %v7127, 0.0
    %7176 = vadd.xlane.f32.xlu0 %v7175
    %v7177 = vpop.xlane.xlu0 %7176
    %v7178 = vsel %vm1176, %v7128, 0.0
    %7179 = vadd.xlane.f32.xlu0 %v7178
    %v7180 = vpop.xlane.xlu0 %7179
    %v7181 = vsel %vm1176, %v7129, 0.0
    %7182 = vadd.xlane.f32.xlu0 %v7181
    %v7183 = vpop.xlane.xlu0 %7182
    %v7184 = vmul.f32 %v7132, %v1231
    %v7185 = vmul.f32 %v7135, %v1231
    %v7186 = vmul.f32 %v7138, %v1231
    %v7187 = vmul.f32 %v7141, %v1231
    %v7188 = vmul.f32 %v7144, %v1231
    %v7189 = vmul.f32 %v7147, %v1231
    %v7190 = vmul.f32 %v7150, %v1231
    %v7191 = vmul.f32 %v7153, %v1231
    %v7192 = vmul.f32 %v7156, %v1231
    %v7193 = vmul.f32 %v7159, %v1231
    %v7194 = vmul.f32 %v7162, %v1231
    %v7195 = vmul.f32 %v7165, %v1231
    %v7196 = vmul.f32 %v7168, %v1231
    %v7197 = vmul.f32 %v7171, %v1231
    %v7198 = vmul.f32 %v7174, %v1231
    %v7199 = vmul.f32 %v7177, %v1231
    %v7200 = vmul.f32 %v7180, %v1231
    %v7201 = vmul.f32 %v7183, %v1231
    %v7202 = vsub.f32 %v7112, %v7184
    %v7203 = vsub.f32 %v7113, %v7185
    %v7204 = vsub.f32 %v7114, %v7186
    %v7205 = vsub.f32 %v7115, %v7187
    %v7206 = vsub.f32 %v7116, %v7188
    %v7207 = vsub.f32 %v7117, %v7189
    %v7208 = vsub.f32 %v7118, %v7190
    %v7209 = vsub.f32 %v7119, %v7191
    %v7210 = vsub.f32 %v7120, %v7192
    %v7211 = vsub.f32 %v7121, %v7193
    %v7212 = vsub.f32 %v7122, %v7194
    %v7213 = vsub.f32 %v7123, %v7195
    %v7214 = vsub.f32 %v7124, %v7196
    %v7215 = vsub.f32 %v7125, %v7197
    %v7216 = vsub.f32 %v7126, %v7198
    %v7217 = vsub.f32 %v7127, %v7199
    %v7218 = vsub.f32 %v7128, %v7200
    %v7219 = vsub.f32 %v7129, %v7201
    %v7220 = vmul.f32 %v7202, %v7202
    %v7221 = vmul.f32 %v7203, %v7203
    %v7222 = vmul.f32 %v7204, %v7204
    %v7223 = vmul.f32 %v7205, %v7205
    %v7224 = vmul.f32 %v7206, %v7206
    %v7225 = vmul.f32 %v7207, %v7207
    %v7226 = vmul.f32 %v7208, %v7208
    %v7227 = vmul.f32 %v7209, %v7209
    %v7228 = vmul.f32 %v7210, %v7210
    %v7229 = vmul.f32 %v7211, %v7211
    %v7230 = vmul.f32 %v7212, %v7212
    %v7231 = vmul.f32 %v7213, %v7213
    %v7232 = vmul.f32 %v7214, %v7214
    %v7233 = vmul.f32 %v7215, %v7215
    %v7234 = vmul.f32 %v7216, %v7216
    %v7235 = vmul.f32 %v7217, %v7217
    %v7236 = vmul.f32 %v7218, %v7218
    %v7237 = vmul.f32 %v7219, %v7219
    %v7238 = vsel %vm1176, %v7220, 0.0
    %7239 = vadd.xlane.f32.xlu0 %v7238
    %v7240 = vpop.xlane.xlu0 %7239
    %v7241 = vsel %vm1176, %v7221, 0.0
    %7242 = vadd.xlane.f32.xlu0 %v7241
    %v7243 = vpop.xlane.xlu0 %7242
    %v7244 = vsel %vm1176, %v7222, 0.0
    %7245 = vadd.xlane.f32.xlu0 %v7244
    %v7246 = vpop.xlane.xlu0 %7245
    %v7247 = vsel %vm1176, %v7223, 0.0
    %7248 = vadd.xlane.f32.xlu0 %v7247
    %v7249 = vpop.xlane.xlu0 %7248
    %v7250 = vsel %vm1176, %v7224, 0.0
    %7251 = vadd.xlane.f32.xlu0 %v7250
    %v7252 = vpop.xlane.xlu0 %7251
    %v7253 = vsel %vm1176, %v7225, 0.0
    %7254 = vadd.xlane.f32.xlu0 %v7253
    %v7255 = vpop.xlane.xlu0 %7254
    %v7256 = vsel %vm1176, %v7226, 0.0
    %7257 = vadd.xlane.f32.xlu0 %v7256
    %v7258 = vpop.xlane.xlu0 %7257
    %v7259 = vsel %vm1176, %v7227, 0.0
    %7260 = vadd.xlane.f32.xlu0 %v7259
    %v7261 = vpop.xlane.xlu0 %7260
    %v7262 = vsel %vm1176, %v7228, 0.0
    %7263 = vadd.xlane.f32.xlu0 %v7262
    %v7264 = vpop.xlane.xlu0 %7263
    %v7265 = vsel %vm1176, %v7229, 0.0
    %7266 = vadd.xlane.f32.xlu0 %v7265
    %v7267 = vpop.xlane.xlu0 %7266
    %v7268 = vsel %vm1176, %v7230, 0.0
    %7269 = vadd.xlane.f32.xlu0 %v7268
    %v7270 = vpop.xlane.xlu0 %7269
    %v7271 = vsel %vm1176, %v7231, 0.0
    %7272 = vadd.xlane.f32.xlu0 %v7271
    %v7273 = vpop.xlane.xlu0 %7272
    %v7274 = vsel %vm1176, %v7232, 0.0
    %7275 = vadd.xlane.f32.xlu0 %v7274
    %v7276 = vpop.xlane.xlu0 %7275
    %v7277 = vsel %vm1176, %v7233, 0.0
    %7278 = vadd.xlane.f32.xlu0 %v7277
    %v7279 = vpop.xlane.xlu0 %7278
    %v7280 = vsel %vm1176, %v7234, 0.0
    %7281 = vadd.xlane.f32.xlu0 %v7280
    %v7282 = vpop.xlane.xlu0 %7281
    %v7283 = vsel %vm1176, %v7235, 0.0
    %7284 = vadd.xlane.f32.xlu0 %v7283
    %v7285 = vpop.xlane.xlu0 %7284
    %v7286 = vsel %vm1176, %v7236, 0.0
    %7287 = vadd.xlane.f32.xlu0 %v7286
    %v7288 = vpop.xlane.xlu0 %7287
    %v7289 = vsel %vm1176, %v7237, 0.0
    %7290 = vadd.xlane.f32.xlu0 %v7289
    %v7291 = vpop.xlane.xlu0 %7290
    %v7292 = vmul.f32 %v7240, %v1231
    %v7293 = vmul.f32 %v7243, %v1231
    %v7294 = vmul.f32 %v7246, %v1231
    %v7295 = vmul.f32 %v7249, %v1231
    %v7296 = vmul.f32 %v7252, %v1231
    %v7297 = vmul.f32 %v7255, %v1231
    %v7298 = vmul.f32 %v7258, %v1231
    %v7299 = vmul.f32 %v7261, %v1231
    %v7300 = vmul.f32 %v7264, %v1231
    %v7301 = vmul.f32 %v7267, %v1231
    %v7302 = vmul.f32 %v7270, %v1231
    %v7303 = vmul.f32 %v7273, %v1231
    %v7304 = vmul.f32 %v7276, %v1231
    %v7305 = vmul.f32 %v7279, %v1231
    %v7306 = vmul.f32 %v7282, %v1231
    %v7307 = vmul.f32 %v7285, %v1231
    %v7308 = vmul.f32 %v7288, %v1231
    %v7309 = vmul.f32 %v7291, %v1231
    %v7310 = vadd.f32 %v7292, 1e-05
    %v7311 = vadd.f32 %v7293, 1e-05
    %v7312 = vadd.f32 %v7294, 1e-05
    %v7313 = vadd.f32 %v7295, 1e-05
    %v7314 = vadd.f32 %v7296, 1e-05
    %v7315 = vadd.f32 %v7297, 1e-05
    %v7316 = vadd.f32 %v7298, 1e-05
    %v7317 = vadd.f32 %v7299, 1e-05
    %v7318 = vadd.f32 %v7300, 1e-05
    %v7319 = vadd.f32 %v7301, 1e-05
    %v7320 = vadd.f32 %v7302, 1e-05
    %v7321 = vadd.f32 %v7303, 1e-05
    %v7322 = vadd.f32 %v7304, 1e-05
    %v7323 = vadd.f32 %v7305, 1e-05
    %v7324 = vadd.f32 %v7306, 1e-05
    %v7325 = vadd.f32 %v7307, 1e-05
    %v7326 = vadd.f32 %v7308, 1e-05
    %v7327 = vadd.f32 %v7309, 1e-05
    %v7328 = vrsqrt.pop %v7310
    %v7329 = vrsqrt.pop %v7311
    %v7330 = vrsqrt.pop %v7312
    %v7331 = vrsqrt.pop %v7313
    %v7332 = vrsqrt.pop %v7314
    %v7333 = vrsqrt.pop %v7315
    %v7334 = vrsqrt.pop %v7316
    %v7335 = vrsqrt.pop %v7317
    %v7336 = vrsqrt.pop %v7318
    %v7337 = vrsqrt.pop %v7319
    %v7338 = vrsqrt.pop %v7320
    %v7339 = vrsqrt.pop %v7321
    %v7340 = vrsqrt.pop %v7322
    %v7341 = vrsqrt.pop %v7323
    %v7342 = vrsqrt.pop %v7324
    %v7343 = vrsqrt.pop %v7325
    %v7344 = vrsqrt.pop %v7326
    %v7345 = vrsqrt.pop %v7327
    %v7346 = vmul.f32 %v7202, %v7328
    %v7347 = vmul.f32 %v7203, %v7329
    %v7348 = vmul.f32 %v7204, %v7330
    %v7349 = vmul.f32 %v7205, %v7331
    %v7350 = vmul.f32 %v7206, %v7332
    %v7351 = vmul.f32 %v7207, %v7333
    %v7352 = vmul.f32 %v7208, %v7334
    %v7353 = vmul.f32 %v7209, %v7335
    %v7354 = vmul.f32 %v7210, %v7336
    %v7355 = vmul.f32 %v7211, %v7337
    %v7356 = vmul.f32 %v7212, %v7338
    %v7357 = vmul.f32 %v7213, %v7339
    %v7358 = vmul.f32 %v7214, %v7340
    %v7359 = vmul.f32 %v7215, %v7341
    %v7360 = vmul.f32 %v7216, %v7342
    %v7361 = vmul.f32 %v7217, %v7343
    %v7362 = vmul.f32 %v7218, %v7344
    %v7363 = vmul.f32 %v7219, %v7345
    %v7364 = vmul.f32 %v7346, %v4681
    %v7365 = vmul.f32 %v7347, %v4681
    %v7366 = vmul.f32 %v7348, %v4681
    %v7367 = vmul.f32 %v7349, %v4681
    %v7368 = vmul.f32 %v7350, %v4681
    %v7369 = vmul.f32 %v7351, %v4681
    %v7370 = vmul.f32 %v7352, %v4681
    %v7371 = vmul.f32 %v7353, %v4681
    %v7372 = vmul.f32 %v7354, %v4681
    %v7373 = vmul.f32 %v7355, %v4681
    %v7374 = vmul.f32 %v7356, %v4681
    %v7375 = vmul.f32 %v7357, %v4681
    %v7376 = vmul.f32 %v7358, %v4681
    %v7377 = vmul.f32 %v7359, %v4681
    %v7378 = vmul.f32 %v7360, %v4681
    %v7379 = vmul.f32 %v7361, %v4681
    %v7380 = vmul.f32 %v7362, %v4681
    %v7381 = vmul.f32 %v7363, %v4681
    %v7382 = vadd.f32 %v7364, %v4682
    %v7383 = vadd.f32 %v7365, %v4682
    %v7384 = vadd.f32 %v7366, %v4682
    %v7385 = vadd.f32 %v7367, %v4682
    %v7386 = vadd.f32 %v7368, %v4682
    %v7387 = vadd.f32 %v7369, %v4682
    %v7388 = vadd.f32 %v7370, %v4682
    %v7389 = vadd.f32 %v7371, %v4682
    %v7390 = vadd.f32 %v7372, %v4682
    %v7391 = vadd.f32 %v7373, %v4682
    %v7392 = vadd.f32 %v7374, %v4682
    %v7393 = vadd.f32 %v7375, %v4682
    %v7394 = vadd.f32 %v7376, %v4682
    %v7395 = vadd.f32 %v7377, %v4682
    %v7396 = vadd.f32 %v7378, %v4682
    %v7397 = vadd.f32 %v7379, %v4682
    %v7398 = vadd.f32 %v7380, %v4682
    %v7399 = vadd.f32 %v7381, %v4682
    %v7400 = vpack.c.bf16 %v7383, %v7382
    %v7401 = vpack.c.bf16 %v7385, %v7384
    %v7402 = vpack.c.bf16 %v7387, %v7386
    %v7403 = vpack.c.bf16 %v7389, %v7388
    %v7404 = vpack.c.bf16 %v7391, %v7390
    %v7405 = vpack.c.bf16 %v7393, %v7392
    %v7406 = vpack.c.bf16 %v7395, %v7394
    %v7407 = vpack.c.bf16 %v7397, %v7396
    %v7408 = vpack.c.bf16 %v7399, %v7398
    %v7410 = vlaneseq
    %v7411 = vshrl.u32 %v7410, 7
    %v7412 = vsub.s32 0, %v7411
    %v7413 = vrot.slane %v4684, %v7412
    %v7414 = vlaneseq
    %v7415 = vshrl.u32 %v7414, 7
    %v7416 = vsub.s32 1, %v7415
    %v7417 = vrot.slane %v4684, %v7416
    %v7452 = vunpack.c.l.b16 %v4718
    %v7453 = vunpack.c.l.b16 %v4719
    %v7454 = vunpack.c.l.b16 %v4720
    %v7455 = vunpack.c.l.b16 %v4721
    %v7456 = vunpack.c.l.b16 %v4722
    %v7457 = vunpack.c.l.b16 %v4723
    %v7458 = vunpack.c.l.b16 %v4724
    %v7459 = vunpack.c.l.b16 %v4725
    %v7460 = vunpack.c.l.b16 %v4726
    %v7461 = vunpack.c.l.b16 %v4727
    %v7462 = vunpack.c.l.b16 %v4728
    %v7463 = vunpack.c.l.b16 %v4729
    %v7464 = vunpack.c.l.b16 %v4730
    %v7465 = vunpack.c.l.b16 %v4731
    %v7466 = vunpack.c.l.b16 %v4732
    %v7467 = vunpack.c.l.b16 %v4733
    %v7468 = vunpack.c.l.b16 %v4734
    %v7469 = vunpack.c.l.b16 %v4735
    %v7470 = vunpack.c.l.b16 %v4736
    %v7471 = vunpack.c.l.b16 %v4737
    %v7472 = vunpack.c.l.b16 %v4738
    %v7473 = vunpack.c.l.b16 %v4739
    %v7474 = vunpack.c.l.b16 %v4740
    %v7475 = vunpack.c.l.b16 %v4741
    %v7476 = vunpack.c.l.b16 %v4742
    %v7477 = vunpack.c.l.b16 %v4743
    %v7478 = vunpack.c.l.b16 %v4744
    %v7479 = vunpack.c.l.b16 %v4745
    %v7480 = vunpack.c.l.b16 %v4746
    %v7481 = vunpack.c.l.b16 %v4747
    %v7482 = vunpack.c.l.b16 %v4748
    %v7483 = vunpack.c.l.b16 %v4749
    %v7484 = vpack.c.b16 %v7453, %v7452
    %v7485 = vpack.c.b16 %v7455, %v7454
    %v7486 = vpack.c.b16 %v7457, %v7456
    %v7487 = vpack.c.b16 %v7459, %v7458
    %v7488 = vpack.c.b16 %v7461, %v7460
    %v7489 = vpack.c.b16 %v7463, %v7462
    %v7490 = vpack.c.b16 %v7465, %v7464
    %v7491 = vpack.c.b16 %v7467, %v7466
    %v7492 = vpack.c.b16 %v7469, %v7468
    %v7493 = vpack.c.b16 %v7471, %v7470
    %v7494 = vpack.c.b16 %v7473, %v7472
    %v7495 = vpack.c.b16 %v7475, %v7474
    %v7496 = vpack.c.b16 %v7477, %v7476
    %v7497 = vpack.c.b16 %v7479, %v7478
    %v7498 = vpack.c.b16 %v7481, %v7480
    %v7499 = vpack.c.b16 %v7483, %v7482
    %v7501 = vsel %vm1176, %v7400, 0
    %v7504 = vsel %vm1176, %v7401, 0
    %v7507 = vsel %vm1176, %v7402, 0
    %v7510 = vsel %vm1176, %v7403, 0
    %v7513 = vsel %vm1176, %v7404, 0
    %v7516 = vsel %vm1176, %v7405, 0
    %v7519 = vsel %vm1176, %v7406, 0
    %v7522 = vsel %vm1176, %v7407, 0
    %v7525 = vsel %vm1176, %v7408, 0
    %v7528 = vsel %vm1176, %v7484, 0
    %v7531 = vsel %vm1176, %v7485, 0
    %v7534 = vsel %vm1176, %v7486, 0
    %v7537 = vsel %vm1176, %v7487, 0
    %v7540 = vsel %vm1176, %v7488, 0
    %v7543 = vsel %vm1176, %v7489, 0
    %v7546 = vsel %vm1176, %v7490, 0
    %v7549 = vsel %vm1176, %v7491, 0
    %v7552 = vsel %vm1176, %v7492, 0
    %v7555 = vsel %vm1176, %v7493, 0
    %v7558 = vsel %vm1176, %v7494, 0
    %v7561 = vsel %vm1176, %v7495, 0
    %v7564 = vsel %vm1176, %v7496, 0
    %v7567 = vsel %vm1176, %v7497, 0
    %v7570 = vsel %vm1176, %v7498, 0
    %v7573 = vsel %vm1176, %v7499, 0
    %7575 = vmatprep.subr.bf16.mxu0 0
    %7576 = vmatpush1.bf16.xpose.msra.mxu0 %v7549
    %7577 = vmatprep.subr.bf16.mxu0 0
    %7578 = vmatpush1.bf16.xpose.msra.mxu0 %v7546
    %7579 = vmatprep.subr.bf16.mxu0 0
    %7580 = vmatpush1.bf16.xpose.msra.mxu0 %v7543
    %7581 = vmatprep.subr.bf16.mxu0 0
    %7582 = vmatpush1.bf16.xpose.msra.mxu0 %v7540
    %7583 = vmatprep.subr.bf16.mxu0 0
    %7584 = vmatpush1.bf16.xpose.msra.mxu0 %v7537
    %7585 = vmatprep.subr.bf16.mxu0 0
    %7586 = vmatpush1.bf16.xpose.msra.mxu0 %v7534
    %7587 = vmatprep.subr.bf16.mxu0 0
    %7588 = vmatpush1.bf16.xpose.msra.mxu0 %v7531
    %7589 = vmatprep.subr.bf16.mxu0 0
    %7590 = vmatpush1.bf16.xpose.msra.mxu0 %v7528
    %7591 = vmatprep.subr.bf16.mxu0 0
    %7592 = vmatpush2.bf16.xpose.msra.mxu0 %v7573
    %7593 = vmatprep.subr.bf16.mxu0 0
    %7594 = vmatpush2.bf16.xpose.msra.mxu0 %v7570
    %7595 = vmatprep.subr.bf16.mxu0 0
    %7596 = vmatpush2.bf16.xpose.msra.mxu0 %v7567
    %7597 = vmatprep.subr.bf16.mxu0 0
    %7598 = vmatpush2.bf16.xpose.msra.mxu0 %v7564
    %7599 = vmatprep.subr.bf16.mxu0 0
    %7600 = vmatpush2.bf16.xpose.msra.mxu0 %v7561
    %7601 = vmatprep.subr.bf16.mxu0 0
    %7602 = vmatpush2.bf16.xpose.msra.mxu0 %v7558
    %7603 = vmatprep.subr.bf16.mxu0 0
    %7604 = vmatpush2.bf16.xpose.msra.mxu0 %v7555
    %7605 = vmatprep.subr.bf16.mxu0 0
    %7606 = vmatpush2.bf16.xpose.msra.mxu0 %v7552
    %7607 = vmatprep.mubr.bf16.mxu0 0
    %7608 = vmatmul.mubr.bf16.gmra.mxu0 %v7501
    %v7609 = vpop.f32.mrf.mxu0
    %v7610 = vadd.f32 %v7413, %v7609
    %v7611 = vpop.f32.mrf.mxu0
    %v7612 = vadd.f32 %v7417, %v7611
    %v7613 = vpop.f32.mrf.mxu0
    %v7614 = vadd.f32 %v7413, %v7613
    %v7615 = vpop.f32.mrf.mxu0
    %v7616 = vadd.f32 %v7417, %v7615
    %7617 = vmatprep.mubr.bf16.mxu0 0
    %7618 = vmatmul.mubr.bf16.gmra.mxu0 %v7504
    %v7619 = vpop.f32.mrf.mxu0
    %v7620 = vadd.f32 %v7413, %v7619
    %v7621 = vpop.f32.mrf.mxu0
    %v7622 = vadd.f32 %v7417, %v7621
    %v7623 = vpop.f32.mrf.mxu0
    %v7624 = vadd.f32 %v7413, %v7623
    %v7625 = vpop.f32.mrf.mxu0
    %v7626 = vadd.f32 %v7417, %v7625
    %7627 = vmatprep.mubr.bf16.mxu0 0
    %7628 = vmatmul.mubr.bf16.gmra.mxu0 %v7507
    %v7629 = vpop.f32.mrf.mxu0
    %v7630 = vadd.f32 %v7413, %v7629
    %v7631 = vpop.f32.mrf.mxu0
    %v7632 = vadd.f32 %v7417, %v7631
    %v7633 = vpop.f32.mrf.mxu0
    %v7634 = vadd.f32 %v7413, %v7633
    %v7635 = vpop.f32.mrf.mxu0
    %v7636 = vadd.f32 %v7417, %v7635
    %7637 = vmatprep.mubr.bf16.mxu0 0
    %7638 = vmatmul.mubr.bf16.gmra.mxu0 %v7510
    %v7639 = vpop.f32.mrf.mxu0
    %v7640 = vadd.f32 %v7413, %v7639
    %v7641 = vpop.f32.mrf.mxu0
    %v7642 = vadd.f32 %v7417, %v7641
    %v7643 = vpop.f32.mrf.mxu0
    %v7644 = vadd.f32 %v7413, %v7643
    %v7645 = vpop.f32.mrf.mxu0
    %v7646 = vadd.f32 %v7417, %v7645
    %7647 = vmatprep.mubr.bf16.mxu0 0
    %7648 = vmatmul.mubr.bf16.gmra.mxu0 %v7513
    %v7649 = vpop.f32.mrf.mxu0
    %v7650 = vadd.f32 %v7413, %v7649
    %v7651 = vpop.f32.mrf.mxu0
    %v7652 = vadd.f32 %v7417, %v7651
    %v7653 = vpop.f32.mrf.mxu0
    %v7654 = vadd.f32 %v7413, %v7653
    %v7655 = vpop.f32.mrf.mxu0
    %v7656 = vadd.f32 %v7417, %v7655
    %7657 = vmatprep.mubr.bf16.mxu0 0
    %7658 = vmatmul.mubr.bf16.gmra.mxu0 %v7516
    %v7659 = vpop.f32.mrf.mxu0
    %v7660 = vadd.f32 %v7413, %v7659
    %v7661 = vpop.f32.mrf.mxu0
    %v7662 = vadd.f32 %v7417, %v7661
    %v7663 = vpop.f32.mrf.mxu0
    %v7664 = vadd.f32 %v7413, %v7663
    %v7665 = vpop.f32.mrf.mxu0
    %v7666 = vadd.f32 %v7417, %v7665
    %7667 = vmatprep.mubr.bf16.mxu0 0
    %7668 = vmatmul.mubr.bf16.gmra.mxu0 %v7519
    %v7669 = vpop.f32.mrf.mxu0
    %v7670 = vadd.f32 %v7413, %v7669
    %v7671 = vpop.f32.mrf.mxu0
    %v7672 = vadd.f32 %v7417, %v7671
    %v7673 = vpop.f32.mrf.mxu0
    %v7674 = vadd.f32 %v7413, %v7673
    %v7675 = vpop.f32.mrf.mxu0
    %v7676 = vadd.f32 %v7417, %v7675
    %7677 = vmatprep.mubr.bf16.mxu0 0
    %7678 = vmatmul.mubr.bf16.gmra.mxu0 %v7522
    %v7679 = vpop.f32.mrf.mxu0
    %v7680 = vadd.f32 %v7413, %v7679
    %v7681 = vpop.f32.mrf.mxu0
    %v7682 = vadd.f32 %v7417, %v7681
    %v7683 = vpop.f32.mrf.mxu0
    %v7684 = vadd.f32 %v7413, %v7683
    %v7685 = vpop.f32.mrf.mxu0
    %v7686 = vadd.f32 %v7417, %v7685
    %7687 = vmatprep.mubr.bf16.mxu0 0
    %7688 = vmatmul.mubr.bf16.gmra.mxu0 %v7525
    %v7689 = vpop.f32.mrf.mxu0
    %v7690 = vadd.f32 %v7413, %v7689
    %v7691 = vpop.f32.mrf.mxu0
    %v7692 = vadd.f32 %v7417, %v7691
    %v7693 = vpop.f32.mrf.mxu0
    %v7694 = vadd.f32 %v7413, %v7693
    %v7695 = vpop.f32.mrf.mxu0
    %v7696 = vadd.f32 %v7417, %v7695
    %7697 = vdwg.mxu0
    %v7698 = vmul.f32 %v7610, %v7610
    %v7699 = vmul.f32 %v7612, %v7612
    %v7700 = vmul.f32 %v7614, %v7614
    %v7701 = vmul.f32 %v7616, %v7616
    %v7702 = vmul.f32 %v7620, %v7620
    %v7703 = vmul.f32 %v7622, %v7622
    %v7704 = vmul.f32 %v7624, %v7624
    %v7705 = vmul.f32 %v7626, %v7626
    %v7706 = vmul.f32 %v7630, %v7630
    %v7707 = vmul.f32 %v7632, %v7632
    %v7708 = vmul.f32 %v7634, %v7634
    %v7709 = vmul.f32 %v7636, %v7636
    %v7710 = vmul.f32 %v7640, %v7640
    %v7711 = vmul.f32 %v7642, %v7642
    %v7712 = vmul.f32 %v7644, %v7644
    %v7713 = vmul.f32 %v7646, %v7646
    %v7714 = vmul.f32 %v7650, %v7650
    %v7715 = vmul.f32 %v7652, %v7652
    %v7716 = vmul.f32 %v7654, %v7654
    %v7717 = vmul.f32 %v7656, %v7656
    %v7718 = vmul.f32 %v7660, %v7660
    %v7719 = vmul.f32 %v7662, %v7662
    %v7720 = vmul.f32 %v7664, %v7664
    %v7721 = vmul.f32 %v7666, %v7666
    %v7722 = vmul.f32 %v7670, %v7670
    %v7723 = vmul.f32 %v7672, %v7672
    %v7724 = vmul.f32 %v7674, %v7674
    %v7725 = vmul.f32 %v7676, %v7676
    %v7726 = vmul.f32 %v7680, %v7680
    %v7727 = vmul.f32 %v7682, %v7682
    %v7728 = vmul.f32 %v7684, %v7684
    %v7729 = vmul.f32 %v7686, %v7686
    %v7730 = vmul.f32 %v7690, %v7690
    %v7731 = vmul.f32 %v7692, %v7692
    %v7732 = vmul.f32 %v7694, %v7694
    %v7733 = vmul.f32 %v7696, %v7696
    %v7734 = vmul.f32 %v7610, %v7698
    %v7735 = vmul.f32 %v7612, %v7699
    %v7736 = vmul.f32 %v7614, %v7700
    %v7737 = vmul.f32 %v7616, %v7701
    %v7738 = vmul.f32 %v7620, %v7702
    %v7739 = vmul.f32 %v7622, %v7703
    %v7740 = vmul.f32 %v7624, %v7704
    %v7741 = vmul.f32 %v7626, %v7705
    %v7742 = vmul.f32 %v7630, %v7706
    %v7743 = vmul.f32 %v7632, %v7707
    %v7744 = vmul.f32 %v7634, %v7708
    %v7745 = vmul.f32 %v7636, %v7709
    %v7746 = vmul.f32 %v7640, %v7710
    %v7747 = vmul.f32 %v7642, %v7711
    %v7748 = vmul.f32 %v7644, %v7712
    %v7749 = vmul.f32 %v7646, %v7713
    %v7750 = vmul.f32 %v7650, %v7714
    %v7751 = vmul.f32 %v7652, %v7715
    %v7752 = vmul.f32 %v7654, %v7716
    %v7753 = vmul.f32 %v7656, %v7717
    %v7754 = vmul.f32 %v7660, %v7718
    %v7755 = vmul.f32 %v7662, %v7719
    %v7756 = vmul.f32 %v7664, %v7720
    %v7757 = vmul.f32 %v7666, %v7721
    %v7758 = vmul.f32 %v7670, %v7722
    %v7759 = vmul.f32 %v7672, %v7723
    %v7760 = vmul.f32 %v7674, %v7724
    %v7761 = vmul.f32 %v7676, %v7725
    %v7762 = vmul.f32 %v7680, %v7726
    %v7763 = vmul.f32 %v7682, %v7727
    %v7764 = vmul.f32 %v7684, %v7728
    %v7765 = vmul.f32 %v7686, %v7729
    %v7766 = vmul.f32 %v7690, %v7730
    %v7767 = vmul.f32 %v7692, %v7731
    %v7768 = vmul.f32 %v7694, %v7732
    %v7769 = vmul.f32 %v7696, %v7733
    %v7770 = vmul.f32 %v7734, 0.044715
    %v7771 = vmul.f32 %v7735, 0.044715
    %v7772 = vmul.f32 %v7736, 0.044715
    %v7773 = vmul.f32 %v7737, 0.044715
    %v7774 = vmul.f32 %v7738, 0.044715
    %v7775 = vmul.f32 %v7739, 0.044715
    %v7776 = vmul.f32 %v7740, 0.044715
    %v7777 = vmul.f32 %v7741, 0.044715
    %v7778 = vmul.f32 %v7742, 0.044715
    %v7779 = vmul.f32 %v7743, 0.044715
    %v7780 = vmul.f32 %v7744, 0.044715
    %v7781 = vmul.f32 %v7745, 0.044715
    %v7782 = vmul.f32 %v7746, 0.044715
    %v7783 = vmul.f32 %v7747, 0.044715
    %v7784 = vmul.f32 %v7748, 0.044715
    %v7785 = vmul.f32 %v7749, 0.044715
    %v7786 = vmul.f32 %v7750, 0.044715
    %v7787 = vmul.f32 %v7751, 0.044715
    %v7788 = vmul.f32 %v7752, 0.044715
    %v7789 = vmul.f32 %v7753, 0.044715
    %v7790 = vmul.f32 %v7754, 0.044715
    %v7791 = vmul.f32 %v7755, 0.044715
    %v7792 = vmul.f32 %v7756, 0.044715
    %v7793 = vmul.f32 %v7757, 0.044715
    %v7794 = vmul.f32 %v7758, 0.044715
    %v7795 = vmul.f32 %v7759, 0.044715
    %v7796 = vmul.f32 %v7760, 0.044715
    %v7797 = vmul.f32 %v7761, 0.044715
    %v7798 = vmul.f32 %v7762, 0.044715
    %v7799 = vmul.f32 %v7763, 0.044715
    %v7800 = vmul.f32 %v7764, 0.044715
    %v7801 = vmul.f32 %v7765, 0.044715
    %v7802 = vmul.f32 %v7766, 0.044715
    %v7803 = vmul.f32 %v7767, 0.044715
    %v7804 = vmul.f32 %v7768, 0.044715
    %v7805 = vmul.f32 %v7769, 0.044715
    %v7806 = vadd.f32 %v7610, %v7770
    %v7807 = vadd.f32 %v7612, %v7771
    %v7808 = vadd.f32 %v7614, %v7772
    %v7809 = vadd.f32 %v7616, %v7773
    %v7810 = vadd.f32 %v7620, %v7774
    %v7811 = vadd.f32 %v7622, %v7775
    %v7812 = vadd.f32 %v7624, %v7776
    %v7813 = vadd.f32 %v7626, %v7777
    %v7814 = vadd.f32 %v7630, %v7778
    %v7815 = vadd.f32 %v7632, %v7779
    %v7816 = vadd.f32 %v7634, %v7780
    %v7817 = vadd.f32 %v7636, %v7781
    %v7818 = vadd.f32 %v7640, %v7782
    %v7819 = vadd.f32 %v7642, %v7783
    %v7820 = vadd.f32 %v7644, %v7784
    %v7821 = vadd.f32 %v7646, %v7785
    %v7822 = vadd.f32 %v7650, %v7786
    %v7823 = vadd.f32 %v7652, %v7787
    %v7824 = vadd.f32 %v7654, %v7788
    %v7825 = vadd.f32 %v7656, %v7789
    %v7826 = vadd.f32 %v7660, %v7790
    %v7827 = vadd.f32 %v7662, %v7791
    %v7828 = vadd.f32 %v7664, %v7792
    %v7829 = vadd.f32 %v7666, %v7793
    %v7830 = vadd.f32 %v7670, %v7794
    %v7831 = vadd.f32 %v7672, %v7795
    %v7832 = vadd.f32 %v7674, %v7796
    %v7833 = vadd.f32 %v7676, %v7797
    %v7834 = vadd.f32 %v7680, %v7798
    %v7835 = vadd.f32 %v7682, %v7799
    %v7836 = vadd.f32 %v7684, %v7800
    %v7837 = vadd.f32 %v7686, %v7801
    %v7838 = vadd.f32 %v7690, %v7802
    %v7839 = vadd.f32 %v7692, %v7803
    %v7840 = vadd.f32 %v7694, %v7804
    %v7841 = vadd.f32 %v7696, %v7805
    %v7842 = vmul.f32 %v7806, 0.7978846
    %v7843 = vmul.f32 %v7807, 0.7978846
    %v7844 = vmul.f32 %v7808, 0.7978846
    %v7845 = vmul.f32 %v7809, 0.7978846
    %v7846 = vmul.f32 %v7810, 0.7978846
    %v7847 = vmul.f32 %v7811, 0.7978846
    %v7848 = vmul.f32 %v7812, 0.7978846
    %v7849 = vmul.f32 %v7813, 0.7978846
    %v7850 = vmul.f32 %v7814, 0.7978846
    %v7851 = vmul.f32 %v7815, 0.7978846
    %v7852 = vmul.f32 %v7816, 0.7978846
    %v7853 = vmul.f32 %v7817, 0.7978846
    %v7854 = vmul.f32 %v7818, 0.7978846
    %v7855 = vmul.f32 %v7819, 0.7978846
    %v7856 = vmul.f32 %v7820, 0.7978846
    %v7857 = vmul.f32 %v7821, 0.7978846
    %v7858 = vmul.f32 %v7822, 0.7978846
    %v7859 = vmul.f32 %v7823, 0.7978846
    %v7860 = vmul.f32 %v7824, 0.7978846
    %v7861 = vmul.f32 %v7825, 0.7978846
    %v7862 = vmul.f32 %v7826, 0.7978846
    %v7863 = vmul.f32 %v7827, 0.7978846
    %v7864 = vmul.f32 %v7828, 0.7978846
    %v7865 = vmul.f32 %v7829, 0.7978846
    %v7866 = vmul.f32 %v7830, 0.7978846
    %v7867 = vmul.f32 %v7831, 0.7978846
    %v7868 = vmul.f32 %v7832, 0.7978846
    %v7869 = vmul.f32 %v7833, 0.7978846
    %v7870 = vmul.f32 %v7834, 0.7978846
    %v7871 = vmul.f32 %v7835, 0.7978846
    %v7872 = vmul.f32 %v7836, 0.7978846
    %v7873 = vmul.f32 %v7837, 0.7978846
    %v7874 = vmul.f32 %v7838, 0.7978846
    %v7875 = vmul.f32 %v7839, 0.7978846
    %v7876 = vmul.f32 %v7840, 0.7978846
    %v7877 = vmul.f32 %v7841, 0.7978846
    %v7878 = vtanh.pop %v7842
    %v7879 = vtanh.pop %v7843
    %v7880 = vtanh.pop %v7844
    %v7881 = vtanh.pop %v7845
    %v7882 = vtanh.pop %v7846
    %v7883 = vtanh.pop %v7847
    %v7884 = vtanh.pop %v7848
    %v7885 = vtanh.pop %v7849
    %v7886 = vtanh.pop %v7850
    %v7887 = vtanh.pop %v7851
    %v7888 = vtanh.pop %v7852
    %v7889 = vtanh.pop %v7853
    %v7890 = vtanh.pop %v7854
    %v7891 = vtanh.pop %v7855
    %v7892 = vtanh.pop %v7856
    %v7893 = vtanh.pop %v7857
    %v7894 = vtanh.pop %v7858
    %v7895 = vtanh.pop %v7859
    %v7896 = vtanh.pop %v7860
    %v7897 = vtanh.pop %v7861
    %v7898 = vtanh.pop %v7862
    %v7899 = vtanh.pop %v7863
    %v7900 = vtanh.pop %v7864
    %v7901 = vtanh.pop %v7865
    %v7902 = vtanh.pop %v7866
    %v7903 = vtanh.pop %v7867
    %v7904 = vtanh.pop %v7868
    %v7905 = vtanh.pop %v7869
    %v7906 = vtanh.pop %v7870
    %v7907 = vtanh.pop %v7871
    %v7908 = vtanh.pop %v7872
    %v7909 = vtanh.pop %v7873
    %v7910 = vtanh.pop %v7874
    %v7911 = vtanh.pop %v7875
    %v7912 = vtanh.pop %v7876
    %v7913 = vtanh.pop %v7877
    %v7914 = vadd.f32 %v7878, 1.0
    %v7915 = vadd.f32 %v7879, 1.0
    %v7916 = vadd.f32 %v7880, 1.0
    %v7917 = vadd.f32 %v7881, 1.0
    %v7918 = vadd.f32 %v7882, 1.0
    %v7919 = vadd.f32 %v7883, 1.0
    %v7920 = vadd.f32 %v7884, 1.0
    %v7921 = vadd.f32 %v7885, 1.0
    %v7922 = vadd.f32 %v7886, 1.0
    %v7923 = vadd.f32 %v7887, 1.0
    %v7924 = vadd.f32 %v7888, 1.0
    %v7925 = vadd.f32 %v7889, 1.0
    %v7926 = vadd.f32 %v7890, 1.0
    %v7927 = vadd.f32 %v7891, 1.0
    %v7928 = vadd.f32 %v7892, 1.0
    %v7929 = vadd.f32 %v7893, 1.0
    %v7930 = vadd.f32 %v7894, 1.0
    %v7931 = vadd.f32 %v7895, 1.0
    %v7932 = vadd.f32 %v7896, 1.0
    %v7933 = vadd.f32 %v7897, 1.0
    %v7934 = vadd.f32 %v7898, 1.0
    %v7935 = vadd.f32 %v7899, 1.0
    %v7936 = vadd.f32 %v7900, 1.0
    %v7937 = vadd.f32 %v7901, 1.0
    %v7938 = vadd.f32 %v7902, 1.0
    %v7939 = vadd.f32 %v7903, 1.0
    %v7940 = vadd.f32 %v7904, 1.0
    %v7941 = vadd.f32 %v7905, 1.0
    %v7942 = vadd.f32 %v7906, 1.0
    %v7943 = vadd.f32 %v7907, 1.0
    %v7944 = vadd.f32 %v7908, 1.0
    %v7945 = vadd.f32 %v7909, 1.0
    %v7946 = vadd.f32 %v7910, 1.0
    %v7947 = vadd.f32 %v7911, 1.0
    %v7948 = vadd.f32 %v7912, 1.0
    %v7949 = vadd.f32 %v7913, 1.0
    %v7950 = vmul.f32 %v7914, 0.5
    %v7951 = vmul.f32 %v7915, 0.5
    %v7952 = vmul.f32 %v7916, 0.5
    %v7953 = vmul.f32 %v7917, 0.5
    %v7954 = vmul.f32 %v7918, 0.5
    %v7955 = vmul.f32 %v7919, 0.5
    %v7956 = vmul.f32 %v7920, 0.5
    %v7957 = vmul.f32 %v7921, 0.5
    %v7958 = vmul.f32 %v7922, 0.5
    %v7959 = vmul.f32 %v7923, 0.5
    %v7960 = vmul.f32 %v7924, 0.5
    %v7961 = vmul.f32 %v7925, 0.5
    %v7962 = vmul.f32 %v7926, 0.5
    %v7963 = vmul.f32 %v7927, 0.5
    %v7964 = vmul.f32 %v7928, 0.5
    %v7965 = vmul.f32 %v7929, 0.5
    %v7966 = vmul.f32 %v7930, 0.5
    %v7967 = vmul.f32 %v7931, 0.5
    %v7968 = vmul.f32 %v7932, 0.5
    %v7969 = vmul.f32 %v7933, 0.5
    %v7970 = vmul.f32 %v7934, 0.5
    %v7971 = vmul.f32 %v7935, 0.5
    %v7972 = vmul.f32 %v7936, 0.5
    %v7973 = vmul.f32 %v7937, 0.5
    %v7974 = vmul.f32 %v7938, 0.5
    %v7975 = vmul.f32 %v7939, 0.5
    %v7976 = vmul.f32 %v7940, 0.5
    %v7977 = vmul.f32 %v7941, 0.5
    %v7978 = vmul.f32 %v7942, 0.5
    %v7979 = vmul.f32 %v7943, 0.5
    %v7980 = vmul.f32 %v7944, 0.5
    %v7981 = vmul.f32 %v7945, 0.5
    %v7982 = vmul.f32 %v7946, 0.5
    %v7983 = vmul.f32 %v7947, 0.5
    %v7984 = vmul.f32 %v7948, 0.5
    %v7985 = vmul.f32 %v7949, 0.5
    %v7986 = vmul.f32 %v7610, %v7950
    %v7987 = vmul.f32 %v7612, %v7951
    %v7988 = vmul.f32 %v7614, %v7952
    %v7989 = vmul.f32 %v7616, %v7953
    %v7990 = vmul.f32 %v7620, %v7954
    %v7991 = vmul.f32 %v7622, %v7955
    %v7992 = vmul.f32 %v7624, %v7956
    %v7993 = vmul.f32 %v7626, %v7957
    %v7994 = vmul.f32 %v7630, %v7958
    %v7995 = vmul.f32 %v7632, %v7959
    %v7996 = vmul.f32 %v7634, %v7960
    %v7997 = vmul.f32 %v7636, %v7961
    %v7998 = vmul.f32 %v7640, %v7962
    %v7999 = vmul.f32 %v7642, %v7963
    %v8000 = vmul.f32 %v7644, %v7964
    %v8001 = vmul.f32 %v7646, %v7965
    %v8002 = vmul.f32 %v7650, %v7966
    %v8003 = vmul.f32 %v7652, %v7967
    %v8004 = vmul.f32 %v7654, %v7968
    %v8005 = vmul.f32 %v7656, %v7969
    %v8006 = vmul.f32 %v7660, %v7970
    %v8007 = vmul.f32 %v7662, %v7971
    %v8008 = vmul.f32 %v7664, %v7972
    %v8009 = vmul.f32 %v7666, %v7973
    %v8010 = vmul.f32 %v7670, %v7974
    %v8011 = vmul.f32 %v7672, %v7975
    %v8012 = vmul.f32 %v7674, %v7976
    %v8013 = vmul.f32 %v7676, %v7977
    %v8014 = vmul.f32 %v7680, %v7978
    %v8015 = vmul.f32 %v7682, %v7979
    %v8016 = vmul.f32 %v7684, %v7980
    %v8017 = vmul.f32 %v7686, %v7981
    %v8018 = vmul.f32 %v7690, %v7982
    %v8019 = vmul.f32 %v7692, %v7983
    %v8020 = vmul.f32 %v7694, %v7984
    %v8021 = vmul.f32 %v7696, %v7985
    %v8022 = vpack.c.bf16 %v7988, %v7986
    %v8023 = vpack.c.bf16 %v7989, %v7987
    %v8024 = vpack.c.bf16 %v7992, %v7990
    %v8025 = vpack.c.bf16 %v7993, %v7991
    %v8026 = vpack.c.bf16 %v7996, %v7994
    %v8027 = vpack.c.bf16 %v7997, %v7995
    %v8028 = vpack.c.bf16 %v8000, %v7998
    %v8029 = vpack.c.bf16 %v8001, %v7999
    %v8030 = vpack.c.bf16 %v8004, %v8002
    %v8031 = vpack.c.bf16 %v8005, %v8003
    %v8032 = vpack.c.bf16 %v8008, %v8006
    %v8033 = vpack.c.bf16 %v8009, %v8007
    %v8034 = vpack.c.bf16 %v8012, %v8010
    %v8035 = vpack.c.bf16 %v8013, %v8011
    %v8036 = vpack.c.bf16 %v8016, %v8014
    %v8037 = vpack.c.bf16 %v8017, %v8015
    %v8038 = vpack.c.bf16 %v8020, %v8018
    %v8039 = vpack.c.bf16 %v8021, %v8019
    %v8072 = vunpack.c.l.b16 %v4750
    %v8073 = vunpack.c.l.b16 %v4751
    %v8074 = vunpack.c.l.b16 %v4752
    %v8075 = vunpack.c.l.b16 %v4753
    %v8076 = vunpack.c.l.b16 %v4754
    %v8077 = vunpack.c.l.b16 %v4755
    %v8078 = vunpack.c.l.b16 %v4756
    %v8079 = vunpack.c.l.b16 %v4757
    %v8080 = vunpack.c.l.b16 %v4758
    %v8081 = vunpack.c.l.b16 %v4759
    %v8082 = vunpack.c.l.b16 %v4760
    %v8083 = vunpack.c.l.b16 %v4761
    %v8084 = vunpack.c.l.b16 %v4762
    %v8085 = vunpack.c.l.b16 %v4763
    %v8086 = vunpack.c.l.b16 %v4764
    %v8087 = vunpack.c.l.b16 %v4765
    %v8088 = vunpack.c.l.b16 %v4766
    %v8089 = vunpack.c.l.b16 %v4767
    %v8090 = vunpack.c.l.b16 %v4768
    %v8091 = vunpack.c.l.b16 %v4769
    %v8092 = vunpack.c.l.b16 %v4770
    %v8093 = vunpack.c.l.b16 %v4771
    %v8094 = vunpack.c.l.b16 %v4772
    %v8095 = vunpack.c.l.b16 %v4773
    %v8096 = vunpack.c.l.b16 %v4774
    %v8097 = vunpack.c.l.b16 %v4775
    %v8098 = vunpack.c.l.b16 %v4776
    %v8099 = vunpack.c.l.b16 %v4777
    %v8100 = vunpack.c.l.b16 %v4778
    %v8101 = vunpack.c.l.b16 %v4779
    %v8102 = vunpack.c.l.b16 %v4780
    %v8103 = vunpack.c.l.b16 %v4781
    %v8104 = vpack.c.b16 %v8073, %v8072
    %v8105 = vpack.c.b16 %v8075, %v8074
    %v8106 = vpack.c.b16 %v8077, %v8076
    %v8107 = vpack.c.b16 %v8079, %v8078
    %v8108 = vpack.c.b16 %v8081, %v8080
    %v8109 = vpack.c.b16 %v8083, %v8082
    %v8110 = vpack.c.b16 %v8085, %v8084
    %v8111 = vpack.c.b16 %v8087, %v8086
    %v8112 = vpack.c.b16 %v8089, %v8088
    %v8113 = vpack.c.b16 %v8091, %v8090
    %v8114 = vpack.c.b16 %v8093, %v8092
    %v8115 = vpack.c.b16 %v8095, %v8094
    %v8116 = vpack.c.b16 %v8097, %v8096
    %v8117 = vpack.c.b16 %v8099, %v8098
    %v8118 = vpack.c.b16 %v8101, %v8100
    %v8119 = vpack.c.b16 %v8103, %v8102
    %8136 = vmatprep.subr.bf16.mxu0 0
    %8137 = vmatpush1.bf16.msra.mxu0 %v8111
    %8138 = vmatprep.subr.bf16.mxu0 0
    %8139 = vmatpush1.bf16.msra.mxu0 %v8110
    %8140 = vmatprep.subr.bf16.mxu0 0
    %8141 = vmatpush1.bf16.msra.mxu0 %v8109
    %8142 = vmatprep.subr.bf16.mxu0 0
    %8143 = vmatpush1.bf16.msra.mxu0 %v8108
    %8144 = vmatprep.subr.bf16.mxu0 0
    %8145 = vmatpush1.bf16.msra.mxu0 %v8107
    %8146 = vmatprep.subr.bf16.mxu0 0
    %8147 = vmatpush1.bf16.msra.mxu0 %v8106
    %8148 = vmatprep.subr.bf16.mxu0 0
    %8149 = vmatpush1.bf16.msra.mxu0 %v8105
    %8150 = vmatprep.subr.bf16.mxu0 0
    %8151 = vmatpush1.bf16.msra.mxu0 %v8104
    %8152 = vmatprep.subr.bf16.mxu0 0
    %8153 = vmatpush2.bf16.msra.mxu0 %v8119
    %8154 = vmatprep.subr.bf16.mxu0 0
    %8155 = vmatpush2.bf16.msra.mxu0 %v8118
    %8156 = vmatprep.subr.bf16.mxu0 0
    %8157 = vmatpush2.bf16.msra.mxu0 %v8117
    %8158 = vmatprep.subr.bf16.mxu0 0
    %8159 = vmatpush2.bf16.msra.mxu0 %v8116
    %8160 = vmatprep.subr.bf16.mxu0 0
    %8161 = vmatpush2.bf16.msra.mxu0 %v8115
    %8162 = vmatprep.subr.bf16.mxu0 0
    %8163 = vmatpush2.bf16.msra.mxu0 %v8114
    %8164 = vmatprep.subr.bf16.mxu0 0
    %8165 = vmatpush2.bf16.msra.mxu0 %v8113
    %8166 = vmatprep.subr.bf16.mxu0 0
    %8167 = vmatpush2.bf16.msra.mxu0 %v8112
    %8168 = vmatprep.mubr.bf16.mxu0 %v8023
    %8169 = vmatmul.mubr.bf16.gmra.mxu0 %v8022
    %v8170 = vpop.f32.mrf.mxu0
    %v8171 = vadd.f32 0.0, %v8170
    %v8172 = vpop.f32.mrf.mxu0
    %v8173 = vpop.f32.mrf.mxu0
    %v8174 = vadd.f32 0.0, %v8173
    %v8175 = vpop.f32.mrf.mxu0
    %8176 = vmatprep.mubr.bf16.mxu0 %v8025
    %8177 = vmatmul.mubr.bf16.gmra.mxu0 %v8024
    %v8178 = vpop.f32.mrf.mxu0
    %v8179 = vadd.f32 0.0, %v8178
    %v8180 = vpop.f32.mrf.mxu0
    %v8181 = vpop.f32.mrf.mxu0
    %v8182 = vadd.f32 0.0, %v8181
    %v8183 = vpop.f32.mrf.mxu0
    %8184 = vmatprep.mubr.bf16.mxu0 %v8027
    %8185 = vmatmul.mubr.bf16.gmra.mxu0 %v8026
    %v8186 = vpop.f32.mrf.mxu0
    %v8187 = vadd.f32 0.0, %v8186
    %v8188 = vpop.f32.mrf.mxu0
    %v8189 = vpop.f32.mrf.mxu0
    %v8190 = vadd.f32 0.0, %v8189
    %v8191 = vpop.f32.mrf.mxu0
    %8192 = vmatprep.mubr.bf16.mxu0 %v8029
    %8193 = vmatmul.mubr.bf16.gmra.mxu0 %v8028
    %v8194 = vpop.f32.mrf.mxu0
    %v8195 = vadd.f32 0.0, %v8194
    %v8196 = vpop.f32.mrf.mxu0
    %v8197 = vpop.f32.mrf.mxu0
    %v8198 = vadd.f32 0.0, %v8197
    %v8199 = vpop.f32.mrf.mxu0
    %8200 = vmatprep.mubr.bf16.mxu0 %v8031
    %8201 = vmatmul.mubr.bf16.gmra.mxu0 %v8030
    %v8202 = vpop.f32.mrf.mxu0
    %v8203 = vadd.f32 0.0, %v8202
    %v8204 = vpop.f32.mrf.mxu0
    %v8205 = vpop.f32.mrf.mxu0
    %v8206 = vadd.f32 0.0, %v8205
    %v8207 = vpop.f32.mrf.mxu0
    %8208 = vmatprep.mubr.bf16.mxu0 %v8033
    %8209 = vmatmul.mubr.bf16.gmra.mxu0 %v8032
    %v8210 = vpop.f32.mrf.mxu0
    %v8211 = vadd.f32 0.0, %v8210
    %v8212 = vpop.f32.mrf.mxu0
    %v8213 = vpop.f32.mrf.mxu0
    %v8214 = vadd.f32 0.0, %v8213
    %v8215 = vpop.f32.mrf.mxu0
    %8216 = vmatprep.mubr.bf16.mxu0 %v8035
    %8217 = vmatmul.mubr.bf16.gmra.mxu0 %v8034
    %v8218 = vpop.f32.mrf.mxu0
    %v8219 = vadd.f32 0.0, %v8218
    %v8220 = vpop.f32.mrf.mxu0
    %v8221 = vpop.f32.mrf.mxu0
    %v8222 = vadd.f32 0.0, %v8221
    %v8223 = vpop.f32.mrf.mxu0
    %8224 = vmatprep.mubr.bf16.mxu0 %v8037
    %8225 = vmatmul.mubr.bf16.gmra.mxu0 %v8036
    %v8226 = vpop.f32.mrf.mxu0
    %v8227 = vadd.f32 0.0, %v8226
    %v8228 = vpop.f32.mrf.mxu0
    %v8229 = vpop.f32.mrf.mxu0
    %v8230 = vadd.f32 0.0, %v8229
    %v8231 = vpop.f32.mrf.mxu0
    %8232 = vmatprep.mubr.bf16.mxu0 %v8039
    %8233 = vmatmul.mubr.bf16.gmra.mxu0 %v8038
    %v8234 = vpop.f32.mrf.mxu0
    %v8235 = vadd.f32 0.0, %v8234
    %v8236 = vpop.f32.mrf.mxu0
    %v8237 = vpop.f32.mrf.mxu0
    %v8238 = vadd.f32 0.0, %v8237
    %v8239 = vpop.f32.mrf.mxu0
    %8240 = vdwg.mxu0
    %v8241 = vadd.f32 %v7112, %v8171
    %v8242 = vadd.f32 %v7113, %v8174
    %v8243 = vadd.f32 %v7114, %v8179
    %v8244 = vadd.f32 %v7115, %v8182
    %v8245 = vadd.f32 %v7116, %v8187
    %v8246 = vadd.f32 %v7117, %v8190
    %v8247 = vadd.f32 %v7118, %v8195
    %v8248 = vadd.f32 %v7119, %v8198
    %v8249 = vadd.f32 %v7120, %v8203
    %v8250 = vadd.f32 %v7121, %v8206
    %v8251 = vadd.f32 %v7122, %v8211
    %v8252 = vadd.f32 %v7123, %v8214
    %v8253 = vadd.f32 %v7124, %v8219
    %v8254 = vadd.f32 %v7125, %v8222
    %v8255 = vadd.f32 %v7126, %v8227
    %v8256 = vadd.f32 %v7127, %v8230
    %v8257 = vadd.f32 %v7128, %v8235
    %v8258 = vadd.f32 %v7129, %v8238
    %v8259 = vadd.f32 %v8241, %v4685
    %v8260 = vadd.f32 %v8242, %v4685
    %v8261 = vadd.f32 %v8243, %v4685
    %v8262 = vadd.f32 %v8244, %v4685
    %v8263 = vadd.f32 %v8245, %v4685
    %v8264 = vadd.f32 %v8246, %v4685
    %v8265 = vadd.f32 %v8247, %v4685
    %v8266 = vadd.f32 %v8248, %v4685
    %v8267 = vadd.f32 %v8249, %v4685
    %v8268 = vadd.f32 %v8250, %v4685
    %v8269 = vadd.f32 %v8251, %v4685
    %v8270 = vadd.f32 %v8252, %v4685
    %v8271 = vadd.f32 %v8253, %v4685
    %v8272 = vadd.f32 %v8254, %v4685
    %v8273 = vadd.f32 %v8255, %v4685
    %v8274 = vadd.f32 %v8256, %v4685
    %v8275 = vadd.f32 %v8257, %v4685
    %v8276 = vadd.f32 %v8258, %v4685
    %v8277 = vld [vmem:[%s3 + $0x20] ss:$0 sm:$0xff]
    %v8278 = vld [vmem:[%s3 + $0x21] ss:$0 sm:$0xff]
    %v8279 = vld [vmem:[%s3 + $0x22] ss:$0 sm:$0xff]
    %v8280 = vld [vmem:[%s4 + $0x300] sm:$0xf]
    %v8281 = vld [vmem:[%s4 + $0x304] sm:$0xf]
    %v8282 = vld [vmem:[%s4 + $0x308] sm:$0xf]
    %v8283 = vld [vmem:[%s4 + $0x30c] sm:$0xf]
    %v8284 = vld [vmem:[%s4 + $0x310] sm:$0xf]
    %v8285 = vld [vmem:[%s4 + $0x314] sm:$0xf]
    %v8286 = vld [vmem:[%s4 + $0x318] sm:$0xf]
    %v8287 = vld [vmem:[%s4 + $0x31c] sm:$0xf]
    %v8288 = vld [vmem:[%s4 + $0x320] sm:$0xf]
    %v8289 = vld [vmem:[%s4 + $0x324] sm:$0xf]
    %v8290 = vld [vmem:[%s4 + $0x328] sm:$0xf]
    %v8291 = vld [vmem:[%s4 + $0x32c] sm:$0xf]
    %v8292 = vld [vmem:[%s4 + $0x330] sm:$0xf]
    %v8293 = vld [vmem:[%s4 + $0x334] sm:$0xf]
    %v8294 = vld [vmem:[%s4 + $0x338] sm:$0xf]
    %v8295 = vld [vmem:[%s4 + $0x33c] sm:$0xf]
    %v8296 = vadd.s32 %v342, 128
    %v8297 = vmul.u32 %v763, 72
    %vm8298 = vcmp.eq.s32.totalorder %v342, %v8297
    %vm8299 = vcmp.eq.s32.totalorder %v8296, %v8297
    %v8300 = vsel %vm8298, 1, 0
    %v8301 = vsel %vm8299, 1, 0
    %v8302 = vcvt.s32.f32 %v8300
    %v8303 = vcvt.s32.f32 %v8301
    %v8305 = vsel %vm471, %v8303, 0
    %8307 = vmatprep.subr.mxu0 0.0
    %8308 = vmatpush1.msra.mxu0 %v8274
    %8309 = vmatprep.subr.mxu0 0.0
    %8310 = vmatpush1.msra.mxu0 %v8273
    %8311 = vmatprep.subr.mxu0 0.0
    %8312 = vmatpush1.msra.mxu0 %v8272
    %8313 = vmatprep.subr.mxu0 0.0
    %8314 = vmatpush1.msra.mxu0 %v8271
    %8315 = vmatprep.subr.mxu0 0.0
    %8316 = vmatpush1.msra.mxu0 %v8270
    %8317 = vmatprep.subr.mxu0 0.0
    %8318 = vmatpush1.msra.mxu0 %v8269
    %8319 = vmatprep.subr.mxu0 0.0
    %8320 = vmatpush1.msra.mxu0 %v8268
    %8321 = vmatprep.subr.mxu0 0.0
    %8322 = vmatpush1.msra.mxu0 %v8267
    %8323 = vmatprep.subr.mxu0 0.0
    %8324 = vmatpush1.msra.mxu0 %v8266
    %8325 = vmatprep.subr.mxu0 0.0
    %8326 = vmatpush1.msra.mxu0 %v8265
    %8327 = vmatprep.subr.mxu0 0.0
    %8328 = vmatpush1.msra.mxu0 %v8264
    %8329 = vmatprep.subr.mxu0 0.0
    %8330 = vmatpush1.msra.mxu0 %v8263
    %8331 = vmatprep.subr.mxu0 0.0
    %8332 = vmatpush1.msra.mxu0 %v8262
    %8333 = vmatprep.subr.mxu0 0.0
    %8334 = vmatpush1.msra.mxu0 %v8261
    %8335 = vmatprep.subr.mxu0 0.0
    %8336 = vmatpush1.msra.mxu0 %v8260
    %8337 = vmatprep.subr.mxu0 0.0
    %8338 = vmatpush1.msra.mxu0 %v8259
    %8339 = vmatprep.subr.mxu0 0.0
    %8340 = vmatpush2.msra.mxu0 0.0
    %8341 = vmatprep.subr.mxu0 0.0
    %8342 = vmatpush2.msra.mxu0 0.0
    %8343 = vmatprep.subr.mxu0 0.0
    %8344 = vmatpush2.msra.mxu0 0.0
    %8345 = vmatprep.subr.mxu0 0.0
    %8346 = vmatpush2.msra.mxu0 0.0
    %8347 = vmatprep.subr.mxu0 0.0
    %8348 = vmatpush2.msra.mxu0 0.0
    %8349 = vmatprep.subr.mxu0 0.0
    %8350 = vmatpush2.msra.mxu0 0.0
    %8351 = vmatprep.subr.mxu0 0.0
    %8352 = vmatpush2.msra.mxu0 0.0
    %8353 = vmatprep.subr.mxu0 0.0
    %8354 = vmatpush2.msra.mxu0 0.0
    %8355 = vmatprep.subr.mxu0 0.0
    %8356 = vmatpush2.msra.mxu0 0.0
    %8357 = vmatprep.subr.mxu0 0.0
    %8358 = vmatpush2.msra.mxu0 0.0
    %8359 = vmatprep.subr.mxu0 0.0
    %8360 = vmatpush2.msra.mxu0 0.0
    %8361 = vmatprep.subr.mxu0 0.0
    %8362 = vmatpush2.msra.mxu0 0.0
    %8363 = vmatprep.subr.mxu0 0.0
    %8364 = vmatpush2.msra.mxu0 0.0
    %8365 = vmatprep.subr.mxu0 0.0
    %8366 = vmatpush2.msra.mxu0 0.0
    %8367 = vmatprep.subr.mxu0 0.0
    %8368 = vmatpush2.msra.mxu0 %v8276
    %8369 = vmatprep.subr.mxu0 0.0
    %8370 = vmatpush2.msra.mxu0 %v8275
    %8371 = vmatprep.mubr.f32.mxu0 %v8305
    %8372 = vmatmul.mubr.f32.gmra.mxu0 %v8302
    %v8373 = vpop.f32.mrf.mxu0
    %v8374 = vadd.f32 0.0, %v8373
    %v8375 = vpop.f32.mrf.mxu0
    %8376 = vdwg.mxu0
    %vm8377 = vcmask 517120
    %v8378 = vsel %vm8377, %v8374, 0.0
    %8379 = vadd.xlane.f32.xlu0 %v8378
    %v8380 = vpop.xlane.xlu0 %8379
    %v8381 = vmul.f32 %v8380, %v1231
    %v8382 = vsub.f32 %v8374, %v8381
    %v8383 = vmul.f32 %v8382, %v8382
    %v8384 = vsel %vm8377, %v8383, 0.0
    %8385 = vadd.xlane.f32.xlu0 %v8384
    %v8386 = vpop.xlane.xlu0 %8385
    %v8387 = vmul.f32 %v8386, %v1231
    %v8388 = vadd.f32 %v8387, 1e-05
    %v8389 = vrsqrt.pop %v8388
    %v8390 = vmul.f32 %v8382, %v8389
    %v8391 = vmul.f32 %v8390, %v8277
    %v8392 = vadd.f32 %v8391, %v8278
    %v8393 = vpack.c.bf16 %v8392, %v8392
    %v8410 = vunpack.c.l.b16 %v8280
    %v8411 = vunpack.c.l.b16 %v8281
    %v8412 = vunpack.c.l.b16 %v8282
    %v8413 = vunpack.c.l.b16 %v8283
    %v8414 = vunpack.c.l.b16 %v8284
    %v8415 = vunpack.c.l.b16 %v8285
    %v8416 = vunpack.c.l.b16 %v8286
    %v8417 = vunpack.c.l.b16 %v8287
    %v8418 = vunpack.c.l.b16 %v8288
    %v8419 = vunpack.c.l.b16 %v8289
    %v8420 = vunpack.c.l.b16 %v8290
    %v8421 = vunpack.c.l.b16 %v8291
    %v8422 = vunpack.c.l.b16 %v8292
    %v8423 = vunpack.c.l.b16 %v8293
    %v8424 = vunpack.c.l.b16 %v8294
    %v8425 = vunpack.c.l.b16 %v8295
    %v8426 = vpack.c.b16 %v8411, %v8410
    %v8427 = vpack.c.b16 %v8413, %v8412
    %v8428 = vpack.c.b16 %v8415, %v8414
    %v8429 = vpack.c.b16 %v8417, %v8416
    %v8430 = vpack.c.b16 %v8419, %v8418
    %v8431 = vpack.c.b16 %v8421, %v8420
    %v8432 = vpack.c.b16 %v8423, %v8422
    %v8433 = vpack.c.b16 %v8425, %v8424
    %v8435 = vsel %vm1176, %v8393, 0
    %v8438 = vsel %vm1176, %v8426, 0
    %v8441 = vsel %vm1176, %v8427, 0
    %v8444 = vsel %vm1176, %v8428, 0
    %v8447 = vsel %vm1176, %v8429, 0
    %v8450 = vsel %vm1176, %v8430, 0
    %v8453 = vsel %vm1176, %v8431, 0
    %v8456 = vsel %vm1176, %v8432, 0
    %v8459 = vsel %vm1176, %v8433, 0
    %8461 = vmatprep.subr.bf16.mxu0 0
    %8462 = vmatpush1.bf16.xpose.msra.mxu0 %v8459
    %8463 = vmatprep.subr.bf16.mxu0 0
    %8464 = vmatpush1.bf16.xpose.msra.mxu0 %v8456
    %8465 = vmatprep.subr.bf16.mxu0 0
    %8466 = vmatpush1.bf16.xpose.msra.mxu0 %v8453
    %8467 = vmatprep.subr.bf16.mxu0 0
    %8468 = vmatpush1.bf16.xpose.msra.mxu0 %v8450
    %8469 = vmatprep.subr.bf16.mxu0 0
    %8470 = vmatpush1.bf16.xpose.msra.mxu0 %v8447
    %8471 = vmatprep.subr.bf16.mxu0 0
    %8472 = vmatpush1.bf16.xpose.msra.mxu0 %v8444
    %8473 = vmatprep.subr.bf16.mxu0 0
    %8474 = vmatpush1.bf16.xpose.msra.mxu0 %v8441
    %8475 = vmatprep.subr.bf16.mxu0 0
    %8476 = vmatpush1.bf16.xpose.msra.mxu0 %v8438
    %8477 = vmatprep.subr.bf16.mxu0 0
    %8478 = vmatpush2.bf16.xpose.msra.mxu0 0
    %8479 = vmatprep.subr.bf16.mxu0 0
    %8480 = vmatpush2.bf16.xpose.msra.mxu0 0
    %8481 = vmatprep.subr.bf16.mxu0 0
    %8482 = vmatpush2.bf16.xpose.msra.mxu0 0
    %8483 = vmatprep.subr.bf16.mxu0 0
    %8484 = vmatpush2.bf16.xpose.msra.mxu0 0
    %8485 = vmatprep.subr.bf16.mxu0 0
    %8486 = vmatpush2.bf16.xpose.msra.mxu0 0
    %8487 = vmatprep.subr.bf16.mxu0 0
    %8488 = vmatpush2.bf16.xpose.msra.mxu0 0
    %8489 = vmatprep.subr.bf16.mxu0 0
    %8490 = vmatpush2.bf16.xpose.msra.mxu0 0
    %8491 = vmatprep.subr.bf16.mxu0 0
    %8492 = vmatpush2.bf16.xpose.msra.mxu0 0
    %8493 = vmatprep.mubr.bf16.mxu0 0
    %8494 = vmatmul.mubr.bf16.gmra.mxu0 %v8435
    %v8495 = vpop.f32.mrf.mxu0
    %v8496 = vadd.f32 %v8279, %v8495
    %v8497 = vpop.f32.mrf.mxu0
    %v8498 = vpop.f32.mrf.mxu0
    %v8499 = vpop.f32.mrf.mxu0
    %8500 = vdwg.mxu0
    %v8501 = vmul.f32 %v8496, %v8496
    %v8502 = vmul.f32 %v8496, %v8501
    %v8503 = vmul.f32 %v8502, 0.044715
    %v8504 = vadd.f32 %v8496, %v8503
    %v8505 = vmul.f32 %v8504, 0.7978846
    %v8506 = vtanh.pop %v8505
    %v8507 = vadd.f32 %v8506, 1.0
    %v8508 = vmul.f32 %v8507, 0.5
    %v8509 = vmul.f32 %v8496, %v8508
    %v8510 = vpack.c.bf16 %v8509, %v8509
    %s8511 = smul.u32 4, 16
    %s8512 = smul.u32 %s8511, 16
    %s8513 = sshll.u32 %s8512, 4
    %8514 = dma.done [#allocation3], %s8513
    %v8515 = vld [vmem:[#allocation2] sm:$0xff]
    %v8516 = vld [vmem:[#allocation2 + $0x8] sm:$0xff]
    %v8517 = vld [vmem:[#allocation2 + $0x10] sm:$0xff]
    %v8518 = vld [vmem:[#allocation2 + $0x18] sm:$0xff]
    %v8519 = vld [vmem:[#allocation2 + $0x20] sm:$0xff]
    %v8520 = vld [vmem:[#allocation2 + $0x28] sm:$0xff]
    %v8521 = vld [vmem:[#allocation2 + $0x30] sm:$0xff]
    %v8522 = vld [vmem:[#allocation2 + $0x38] sm:$0xff]
    %v8523 = vld [vmem:[#allocation2 + $0x40] sm:$0xff]
    %v8524 = vld [vmem:[#allocation2 + $0x48] sm:$0xff]
    %v8525 = vld [vmem:[#allocation2 + $0x50] sm:$0xff]
    %v8526 = vld [vmem:[#allocation2 + $0x58] sm:$0xff]
    %v8527 = vld [vmem:[#allocation2 + $0x60] sm:$0xff]
    %v8528 = vld [vmem:[#allocation2 + $0x68] sm:$0xff]
    %v8529 = vld [vmem:[#allocation2 + $0x70] sm:$0xff]
    %v8530 = vld [vmem:[#allocation2 + $0x78] sm:$0xff]
    %v8531 = vld [vmem:[#allocation2 + $0x80] sm:$0xff]
    %v8532 = vld [vmem:[#allocation2 + $0x88] sm:$0xff]
    %v8533 = vld [vmem:[#allocation2 + $0x90] sm:$0xff]
    %v8534 = vld [vmem:[#allocation2 + $0x98] sm:$0xff]
    %v8535 = vld [vmem:[#allocation2 + $0xa0] sm:$0xff]
    %v8536 = vld [vmem:[#allocation2 + $0xa8] sm:$0xff]
    %v8537 = vld [vmem:[#allocation2 + $0xb0] sm:$0xff]
    %v8538 = vld [vmem:[#allocation2 + $0xb8] sm:$0xff]
    %v8539 = vld [vmem:[#allocation2 + $0xc0] sm:$0xff]
    %v8540 = vld [vmem:[#allocation2 + $0xc8] sm:$0xff]
    %v8541 = vld [vmem:[#allocation2 + $0xd0] sm:$0xff]
    %v8542 = vld [vmem:[#allocation2 + $0xd8] sm:$0xff]
    %v8543 = vld [vmem:[#allocation2 + $0xe0] sm:$0xff]
    %v8544 = vld [vmem:[#allocation2 + $0xe8] sm:$0xff]
    %v8545 = vld [vmem:[#allocation2 + $0xf0] sm:$0xff]
    %v8546 = vld [vmem:[#allocation2 + $0xf8] sm:$0xff]
    %v8547 = vld [vmem:[#allocation2 + $0x100] sm:$0xff]
    %v8548 = vld [vmem:[#allocation2 + $0x108] sm:$0xff]
    %v8549 = vld [vmem:[#allocation2 + $0x110] sm:$0xff]
    %v8550 = vld [vmem:[#allocation2 + $0x118] sm:$0xff]
    %v8551 = vld [vmem:[#allocation2 + $0x120] sm:$0xff]
    %v8552 = vld [vmem:[#allocation2 + $0x128] sm:$0xff]
    %v8553 = vld [vmem:[#allocation2 + $0x130] sm:$0xff]
    %v8554 = vld [vmem:[#allocation2 + $0x138] sm:$0xff]
    %v8555 = vld [vmem:[#allocation2 + $0x140] sm:$0xff]
    %v8556 = vld [vmem:[#allocation2 + $0x148] sm:$0xff]
    %v8557 = vld [vmem:[#allocation2 + $0x150] sm:$0xff]
    %v8558 = vld [vmem:[#allocation2 + $0x158] sm:$0xff]
    %v8559 = vld [vmem:[#allocation2 + $0x160] sm:$0xff]
    %v8560 = vld [vmem:[#allocation2 + $0x168] sm:$0xff]
    %v8561 = vld [vmem:[#allocation2 + $0x170] sm:$0xff]
    %v8562 = vld [vmem:[#allocation2 + $0x178] sm:$0xff]
    %v8563 = vld [vmem:[#allocation2 + $0x180] sm:$0xff]
    %v8564 = vld [vmem:[#allocation2 + $0x188] sm:$0xff]
    %v8565 = vld [vmem:[#allocation2 + $0x190] sm:$0xff]
    %v8566 = vld [vmem:[#allocation2 + $0x198] sm:$0xff]
    %v8567 = vld [vmem:[#allocation2 + $0x1a0] sm:$0xff]
    %v8568 = vld [vmem:[#allocation2 + $0x1a8] sm:$0xff]
    %v8569 = vld [vmem:[#allocation2 + $0x1b0] sm:$0xff]
    %v8570 = vld [vmem:[#allocation2 + $0x1b8] sm:$0xff]
    %v8571 = vld [vmem:[#allocation2 + $0x1c0] sm:$0xff]
    %v8572 = vld [vmem:[#allocation2 + $0x1c8] sm:$0xff]
    %v8573 = vld [vmem:[#allocation2 + $0x1d0] sm:$0xff]
    %v8574 = vld [vmem:[#allocation2 + $0x1d8] sm:$0xff]
    %v8575 = vld [vmem:[#allocation2 + $0x1e0] sm:$0xff]
    %v8576 = vld [vmem:[#allocation2 + $0x1e8] sm:$0xff]
    %v8577 = vld [vmem:[#allocation2 + $0x1f0] sm:$0xff]
    %v8578 = vld [vmem:[#allocation2 + $0x1f8] sm:$0xff]
    %v8579 = vld [vmem:[#allocation2 + $0x200] sm:$0xff]
    %v8580 = vld [vmem:[#allocation2 + $0x208] sm:$0xff]
    %v8581 = vld [vmem:[#allocation2 + $0x210] sm:$0xff]
    %v8582 = vld [vmem:[#allocation2 + $0x218] sm:$0xff]
    %v8583 = vld [vmem:[#allocation2 + $0x220] sm:$0xff]
    %v8584 = vld [vmem:[#allocation2 + $0x228] sm:$0xff]
    %v8585 = vld [vmem:[#allocation2 + $0x230] sm:$0xff]
    %v8586 = vld [vmem:[#allocation2 + $0x238] sm:$0xff]
    %v8587 = vld [vmem:[#allocation2 + $0x240] sm:$0xff]
    %v8588 = vld [vmem:[#allocation2 + $0x248] sm:$0xff]
    %v8589 = vld [vmem:[#allocation2 + $0x250] sm:$0xff]
    %v8590 = vld [vmem:[#allocation2 + $0x258] sm:$0xff]
    %v8591 = vld [vmem:[#allocation2 + $0x260] sm:$0xff]
    %v8592 = vld [vmem:[#allocation2 + $0x268] sm:$0xff]
    %v8593 = vld [vmem:[#allocation2 + $0x270] sm:$0xff]
    %v8594 = vld [vmem:[#allocation2 + $0x278] sm:$0xff]
    %v8595 = vld [vmem:[#allocation2 + $0x280] sm:$0xff]
    %v8596 = vld [vmem:[#allocation2 + $0x288] sm:$0xff]
    %v8597 = vld [vmem:[#allocation2 + $0x290] sm:$0xff]
    %v8598 = vld [vmem:[#allocation2 + $0x298] sm:$0xff]
    %v8599 = vld [vmem:[#allocation2 + $0x2a0] sm:$0xff]
    %v8600 = vld [vmem:[#allocation2 + $0x2a8] sm:$0xff]
    %v8601 = vld [vmem:[#allocation2 + $0x2b0] sm:$0xff]
    %v8602 = vld [vmem:[#allocation2 + $0x2b8] sm:$0xff]
    %v8603 = vld [vmem:[#allocation2 + $0x2c0] sm:$0xff]
    %v8604 = vld [vmem:[#allocation2 + $0x2c8] sm:$0xff]
    %v8605 = vld [vmem:[#allocation2 + $0x2d0] sm:$0xff]
    %v8606 = vld [vmem:[#allocation2 + $0x2d8] sm:$0xff]
    %v8607 = vld [vmem:[#allocation2 + $0x2e0] sm:$0xff]
    %v8608 = vld [vmem:[#allocation2 + $0x2e8] sm:$0xff]
    %v8609 = vld [vmem:[#allocation2 + $0x2f0] sm:$0xff]
    %v8610 = vld [vmem:[#allocation2 + $0x2f8] sm:$0xff]
    %v8611 = vld [vmem:[#allocation2 + $0x300] sm:$0xff]
    %v8612 = vld [vmem:[#allocation2 + $0x308] sm:$0xff]
    %v8613 = vld [vmem:[#allocation2 + $0x310] sm:$0xff]
    %v8614 = vld [vmem:[#allocation2 + $0x318] sm:$0xff]
    %v8615 = vld [vmem:[#allocation2 + $0x320] sm:$0xff]
    %v8616 = vld [vmem:[#allocation2 + $0x328] sm:$0xff]
    %v8617 = vld [vmem:[#allocation2 + $0x330] sm:$0xff]
    %v8618 = vld [vmem:[#allocation2 + $0x338] sm:$0xff]
    %v8619 = vld [vmem:[#allocation2 + $0x340] sm:$0xff]
    %v8620 = vld [vmem:[#allocation2 + $0x348] sm:$0xff]
    %v8621 = vld [vmem:[#allocation2 + $0x350] sm:$0xff]
    %v8622 = vld [vmem:[#allocation2 + $0x358] sm:$0xff]
    %v8623 = vld [vmem:[#allocation2 + $0x360] sm:$0xff]
    %v8624 = vld [vmem:[#allocation2 + $0x368] sm:$0xff]
    %v8625 = vld [vmem:[#allocation2 + $0x370] sm:$0xff]
    %v8626 = vld [vmem:[#allocation2 + $0x378] sm:$0xff]
    %v8627 = vld [vmem:[#allocation2 + $0x380] sm:$0xff]
    %v8628 = vld [vmem:[#allocation2 + $0x388] sm:$0xff]
    %v8629 = vld [vmem:[#allocation2 + $0x390] sm:$0xff]
    %v8630 = vld [vmem:[#allocation2 + $0x398] sm:$0xff]
    %v8631 = vld [vmem:[#allocation2 + $0x3a0] sm:$0xff]
    %v8632 = vld [vmem:[#allocation2 + $0x3a8] sm:$0xff]
    %v8633 = vld [vmem:[#allocation2 + $0x3b0] sm:$0xff]
    %v8634 = vld [vmem:[#allocation2 + $0x3b8] sm:$0xff]
    %v8635 = vld [vmem:[#allocation2 + $0x3c0] sm:$0xff]
    %v8636 = vld [vmem:[#allocation2 + $0x3c8] sm:$0xff]
    %v8637 = vld [vmem:[#allocation2 + $0x3d0] sm:$0xff]
    %v8638 = vld [vmem:[#allocation2 + $0x3d8] sm:$0xff]
    %v8639 = vld [vmem:[#allocation2 + $0x3e0] sm:$0xff]
    %v8640 = vld [vmem:[#allocation2 + $0x3e8] sm:$0xff]
    %v8641 = vld [vmem:[#allocation2 + $0x3f0] sm:$0xff]
    %v8642 = vld [vmem:[#allocation2 + $0x3f8] sm:$0xff]
    %v8643 = vld [vmem:[%s5] sm:$0xff]
    %v8644 = vld [vmem:[%s5 + $0x8] sm:$0xff]
    %v8647 = vlaneseq
    %v8648 = vshrl.u32 %v8647, 7
    %v8649 = vsub.s32 0, %v8648
    %v8650 = vrot.slane %v8643, %v8649
    %v8651 = vlaneseq
    %v8652 = vshrl.u32 %v8651, 7
    %v8653 = vsub.s32 1, %v8652
    %v8654 = vrot.slane %v8643, %v8653
    %v8655 = vlaneseq
    %v8656 = vshrl.u32 %v8655, 7
    %v8657 = vsub.s32 2, %v8656
    %v8658 = vrot.slane %v8643, %v8657
    %v8659 = vlaneseq
    %v8660 = vshrl.u32 %v8659, 7
    %v8661 = vsub.s32 3, %v8660
    %v8662 = vrot.slane %v8643, %v8661
    %v8663 = vlaneseq
    %v8664 = vshrl.u32 %v8663, 7
    %v8665 = vsub.s32 4, %v8664
    %v8666 = vrot.slane %v8643, %v8665
    %v8667 = vlaneseq
    %v8668 = vshrl.u32 %v8667, 7
    %v8669 = vsub.s32 5, %v8668
    %v8670 = vrot.slane %v8643, %v8669
    %v8671 = vlaneseq
    %v8672 = vshrl.u32 %v8671, 7
    %v8673 = vsub.s32 6, %v8672
    %v8674 = vrot.slane %v8643, %v8673
    %v8675 = vlaneseq
    %v8676 = vshrl.u32 %v8675, 7
    %v8677 = vsub.s32 7, %v8676
    %v8678 = vrot.slane %v8643, %v8677
    %v8679 = vlaneseq
    %v8680 = vshrl.u32 %v8679, 7
    %v8681 = vsub.s32 0, %v8680
    %v8682 = vrot.slane %v8644, %v8681
    %v8683 = vlaneseq
    %v8684 = vshrl.u32 %v8683, 7
    %v8685 = vsub.s32 1, %v8684
    %v8686 = vrot.slane %v8644, %v8685
    %v8687 = vlaneseq
    %v8688 = vshrl.u32 %v8687, 7
    %v8689 = vsub.s32 2, %v8688
    %v8690 = vrot.slane %v8644, %v8689
    %v8691 = vlaneseq
    %v8692 = vshrl.u32 %v8691, 7
    %v8693 = vsub.s32 3, %v8692
    %v8694 = vrot.slane %v8644, %v8693
    %v8695 = vlaneseq
    %v8696 = vshrl.u32 %v8695, 7
    %v8697 = vsub.s32 4, %v8696
    %v8698 = vrot.slane %v8644, %v8697
    %v8699 = vlaneseq
    %v8700 = vshrl.u32 %v8699, 7
    %v8701 = vsub.s32 5, %v8700
    %v8702 = vrot.slane %v8644, %v8701
    %v8703 = vlaneseq
    %v8704 = vshrl.u32 %v8703, 7
    %v8705 = vsub.s32 6, %v8704
    %v8706 = vrot.slane %v8644, %v8705
    %v8707 = vlaneseq
    %v8708 = vshrl.u32 %v8707, 7
    %v8709 = vsub.s32 7, %v8708
    %v8710 = vrot.slane %v8644, %v8709
    %v8855 = vunpack.c.l.b16 %v8515
    %v8856 = vunpack.c.h.b16 %v8515
    %v8857 = vunpack.c.l.b16 %v8516
    %v8858 = vunpack.c.h.b16 %v8516
    %v8859 = vunpack.c.l.b16 %v8517
    %v8860 = vunpack.c.h.b16 %v8517
    %v8861 = vunpack.c.l.b16 %v8518
    %v8862 = vunpack.c.h.b16 %v8518
    %v8863 = vunpack.c.l.b16 %v8519
    %v8864 = vunpack.c.h.b16 %v8519
    %v8865 = vunpack.c.l.b16 %v8520
    %v8866 = vunpack.c.h.b16 %v8520
    %v8867 = vunpack.c.l.b16 %v8521
    %v8868 = vunpack.c.h.b16 %v8521
    %v8869 = vunpack.c.l.b16 %v8522
    %v8870 = vunpack.c.h.b16 %v8522
    %v8871 = vunpack.c.l.b16 %v8523
    %v8872 = vunpack.c.h.b16 %v8523
    %v8873 = vunpack.c.l.b16 %v8524
    %v8874 = vunpack.c.h.b16 %v8524
    %v8875 = vunpack.c.l.b16 %v8525
    %v8876 = vunpack.c.h.b16 %v8525
    %v8877 = vunpack.c.l.b16 %v8526
    %v8878 = vunpack.c.h.b16 %v8526
    %v8879 = vunpack.c.l.b16 %v8527
    %v8880 = vunpack.c.h.b16 %v8527
    %v8881 = vunpack.c.l.b16 %v8528
    %v8882 = vunpack.c.h.b16 %v8528
    %v8883 = vunpack.c.l.b16 %v8529
    %v8884 = vunpack.c.h.b16 %v8529
    %v8885 = vunpack.c.l.b16 %v8530
    %v8886 = vunpack.c.h.b16 %v8530
    %v8887 = vunpack.c.l.b16 %v8531
    %v8888 = vunpack.c.h.b16 %v8531
    %v8889 = vunpack.c.l.b16 %v8532
    %v8890 = vunpack.c.h.b16 %v8532
    %v8891 = vunpack.c.l.b16 %v8533
    %v8892 = vunpack.c.h.b16 %v8533
    %v8893 = vunpack.c.l.b16 %v8534
    %v8894 = vunpack.c.h.b16 %v8534
    %v8895 = vunpack.c.l.b16 %v8535
    %v8896 = vunpack.c.h.b16 %v8535
    %v8897 = vunpack.c.l.b16 %v8536
    %v8898 = vunpack.c.h.b16 %v8536
    %v8899 = vunpack.c.l.b16 %v8537
    %v8900 = vunpack.c.h.b16 %v8537
    %v8901 = vunpack.c.l.b16 %v8538
    %v8902 = vunpack.c.h.b16 %v8538
    %v8903 = vunpack.c.l.b16 %v8539
    %v8904 = vunpack.c.h.b16 %v8539
    %v8905 = vunpack.c.l.b16 %v8540
    %v8906 = vunpack.c.h.b16 %v8540
    %v8907 = vunpack.c.l.b16 %v8541
    %v8908 = vunpack.c.h.b16 %v8541
    %v8909 = vunpack.c.l.b16 %v8542
    %v8910 = vunpack.c.h.b16 %v8542
    %v8911 = vunpack.c.l.b16 %v8543
    %v8912 = vunpack.c.h.b16 %v8543
    %v8913 = vunpack.c.l.b16 %v8544
    %v8914 = vunpack.c.h.b16 %v8544
    %v8915 = vunpack.c.l.b16 %v8545
    %v8916 = vunpack.c.h.b16 %v8545
    %v8917 = vunpack.c.l.b16 %v8546
    %v8918 = vunpack.c.h.b16 %v8546
    %v8919 = vunpack.c.l.b16 %v8547
    %v8920 = vunpack.c.h.b16 %v8547
    %v8921 = vunpack.c.l.b16 %v8548
    %v8922 = vunpack.c.h.b16 %v8548
    %v8923 = vunpack.c.l.b16 %v8549
    %v8924 = vunpack.c.h.b16 %v8549
    %v8925 = vunpack.c.l.b16 %v8550
    %v8926 = vunpack.c.h.b16 %v8550
    %v8927 = vunpack.c.l.b16 %v8551
    %v8928 = vunpack.c.h.b16 %v8551
    %v8929 = vunpack.c.l.b16 %v8552
    %v8930 = vunpack.c.h.b16 %v8552
    %v8931 = vunpack.c.l.b16 %v8553
    %v8932 = vunpack.c.h.b16 %v8553
    %v8933 = vunpack.c.l.b16 %v8554
    %v8934 = vunpack.c.h.b16 %v8554
    %v8935 = vunpack.c.l.b16 %v8555
    %v8936 = vunpack.c.h.b16 %v8555
    %v8937 = vunpack.c.l.b16 %v8556
    %v8938 = vunpack.c.h.b16 %v8556
    %v8939 = vunpack.c.l.b16 %v8557
    %v8940 = vunpack.c.h.b16 %v8557
    %v8941 = vunpack.c.l.b16 %v8558
    %v8942 = vunpack.c.h.b16 %v8558
    %v8943 = vunpack.c.l.b16 %v8559
    %v8944 = vunpack.c.h.b16 %v8559
    %v8945 = vunpack.c.l.b16 %v8560
    %v8946 = vunpack.c.h.b16 %v8560
    %v8947 = vunpack.c.l.b16 %v8561
    %v8948 = vunpack.c.h.b16 %v8561
    %v8949 = vunpack.c.l.b16 %v8562
    %v8950 = vunpack.c.h.b16 %v8562
    %v8951 = vunpack.c.l.b16 %v8563
    %v8952 = vunpack.c.h.b16 %v8563
    %v8953 = vunpack.c.l.b16 %v8564
    %v8954 = vunpack.c.h.b16 %v8564
    %v8955 = vunpack.c.l.b16 %v8565
    %v8956 = vunpack.c.h.b16 %v8565
    %v8957 = vunpack.c.l.b16 %v8566
    %v8958 = vunpack.c.h.b16 %v8566
    %v8959 = vunpack.c.l.b16 %v8567
    %v8960 = vunpack.c.h.b16 %v8567
    %v8961 = vunpack.c.l.b16 %v8568
    %v8962 = vunpack.c.h.b16 %v8568
    %v8963 = vunpack.c.l.b16 %v8569
    %v8964 = vunpack.c.h.b16 %v8569
    %v8965 = vunpack.c.l.b16 %v8570
    %v8966 = vunpack.c.h.b16 %v8570
    %v8967 = vunpack.c.l.b16 %v8571
    %v8968 = vunpack.c.h.b16 %v8571
    %v8969 = vunpack.c.l.b16 %v8572
    %v8970 = vunpack.c.h.b16 %v8572
    %v8971 = vunpack.c.l.b16 %v8573
    %v8972 = vunpack.c.h.b16 %v8573
    %v8973 = vunpack.c.l.b16 %v8574
    %v8974 = vunpack.c.h.b16 %v8574
    %v8975 = vunpack.c.l.b16 %v8575
    %v8976 = vunpack.c.h.b16 %v8575
    %v8977 = vunpack.c.l.b16 %v8576
    %v8978 = vunpack.c.h.b16 %v8576
    %v8979 = vunpack.c.l.b16 %v8577
    %v8980 = vunpack.c.h.b16 %v8577
    %v8981 = vunpack.c.l.b16 %v8578
    %v8982 = vunpack.c.h.b16 %v8578
    %v8983 = vunpack.c.l.b16 %v8579
    %v8984 = vunpack.c.h.b16 %v8579
    %v8985 = vunpack.c.l.b16 %v8580
    %v8986 = vunpack.c.h.b16 %v8580
    %v8987 = vunpack.c.l.b16 %v8581
    %v8988 = vunpack.c.h.b16 %v8581
    %v8989 = vunpack.c.l.b16 %v8582
    %v8990 = vunpack.c.h.b16 %v8582
    %v8991 = vunpack.c.l.b16 %v8583
    %v8992 = vunpack.c.h.b16 %v8583
    %v8993 = vunpack.c.l.b16 %v8584
    %v8994 = vunpack.c.h.b16 %v8584
    %v8995 = vunpack.c.l.b16 %v8585
    %v8996 = vunpack.c.h.b16 %v8585
    %v8997 = vunpack.c.l.b16 %v8586
    %v8998 = vunpack.c.h.b16 %v8586
    %v8999 = vunpack.c.l.b16 %v8587
    %v9000 = vunpack.c.h.b16 %v8587
    %v9001 = vunpack.c.l.b16 %v8588
    %v9002 = vunpack.c.h.b16 %v8588
    %v9003 = vunpack.c.l.b16 %v8589
    %v9004 = vunpack.c.h.b16 %v8589
    %v9005 = vunpack.c.l.b16 %v8590
    %v9006 = vunpack.c.h.b16 %v8590
    %v9007 = vunpack.c.l.b16 %v8591
    %v9008 = vunpack.c.h.b16 %v8591
    %v9009 = vunpack.c.l.b16 %v8592
    %v9010 = vunpack.c.h.b16 %v8592
    %v9011 = vunpack.c.l.b16 %v8593
    %v9012 = vunpack.c.h.b16 %v8593
    %v9013 = vunpack.c.l.b16 %v8594
    %v9014 = vunpack.c.h.b16 %v8594
    %v9015 = vunpack.c.l.b16 %v8595
    %v9016 = vunpack.c.h.b16 %v8595
    %v9017 = vunpack.c.l.b16 %v8596
    %v9018 = vunpack.c.h.b16 %v8596
    %v9019 = vunpack.c.l.b16 %v8597
    %v9020 = vunpack.c.h.b16 %v8597
    %v9021 = vunpack.c.l.b16 %v8598
    %v9022 = vunpack.c.h.b16 %v8598
    %v9023 = vunpack.c.l.b16 %v8599
    %v9024 = vunpack.c.h.b16 %v8599
    %v9025 = vunpack.c.l.b16 %v8600
    %v9026 = vunpack.c.h.b16 %v8600
    %v9027 = vunpack.c.l.b16 %v8601
    %v9028 = vunpack.c.h.b16 %v8601
    %v9029 = vunpack.c.l.b16 %v8602
    %v9030 = vunpack.c.h.b16 %v8602
    %v9031 = vunpack.c.l.b16 %v8603
    %v9032 = vunpack.c.h.b16 %v8603
    %v9033 = vunpack.c.l.b16 %v8604
    %v9034 = vunpack.c.h.b16 %v8604
    %v9035 = vunpack.c.l.b16 %v8605
    %v9036 = vunpack.c.h.b16 %v8605
    %v9037 = vunpack.c.l.b16 %v8606
    %v9038 = vunpack.c.h.b16 %v8606
    %v9039 = vunpack.c.l.b16 %v8607
    %v9040 = vunpack.c.h.b16 %v8607
    %v9041 = vunpack.c.l.b16 %v8608
    %v9042 = vunpack.c.h.b16 %v8608
    %v9043 = vunpack.c.l.b16 %v8609
    %v9044 = vunpack.c.h.b16 %v8609
    %v9045 = vunpack.c.l.b16 %v8610
    %v9046 = vunpack.c.h.b16 %v8610
    %v9047 = vunpack.c.l.b16 %v8611
    %v9048 = vunpack.c.h.b16 %v8611
    %v9049 = vunpack.c.l.b16 %v8612
    %v9050 = vunpack.c.h.b16 %v8612
    %v9051 = vunpack.c.l.b16 %v8613
    %v9052 = vunpack.c.h.b16 %v8613
    %v9053 = vunpack.c.l.b16 %v8614
    %v9054 = vunpack.c.h.b16 %v8614
    %v9055 = vunpack.c.l.b16 %v8615
    %v9056 = vunpack.c.h.b16 %v8615
    %v9057 = vunpack.c.l.b16 %v8616
    %v9058 = vunpack.c.h.b16 %v8616
    %v9059 = vunpack.c.l.b16 %v8617
    %v9060 = vunpack.c.h.b16 %v8617
    %v9061 = vunpack.c.l.b16 %v8618
    %v9062 = vunpack.c.h.b16 %v8618
    %v9063 = vunpack.c.l.b16 %v8619
    %v9064 = vunpack.c.h.b16 %v8619
    %v9065 = vunpack.c.l.b16 %v8620
    %v9066 = vunpack.c.h.b16 %v8620
    %v9067 = vunpack.c.l.b16 %v8621
    %v9068 = vunpack.c.h.b16 %v8621
    %v9069 = vunpack.c.l.b16 %v8622
    %v9070 = vunpack.c.h.b16 %v8622
    %v9071 = vunpack.c.l.b16 %v8623
    %v9072 = vunpack.c.h.b16 %v8623
    %v9073 = vunpack.c.l.b16 %v8624
    %v9074 = vunpack.c.h.b16 %v8624
    %v9075 = vunpack.c.l.b16 %v8625
    %v9076 = vunpack.c.h.b16 %v8625
    %v9077 = vunpack.c.l.b16 %v8626
    %v9078 = vunpack.c.h.b16 %v8626
    %v9079 = vunpack.c.l.b16 %v8627
    %v9080 = vunpack.c.h.b16 %v8627
    %v9081 = vunpack.c.l.b16 %v8628
    %v9082 = vunpack.c.h.b16 %v8628
    %v9083 = vunpack.c.l.b16 %v8629
    %v9084 = vunpack.c.h.b16 %v8629
    %v9085 = vunpack.c.l.b16 %v8630
    %v9086 = vunpack.c.h.b16 %v8630
    %v9087 = vunpack.c.l.b16 %v8631
    %v9088 = vunpack.c.h.b16 %v8631
    %v9089 = vunpack.c.l.b16 %v8632
    %v9090 = vunpack.c.h.b16 %v8632
    %v9091 = vunpack.c.l.b16 %v8633
    %v9092 = vunpack.c.h.b16 %v8633
    %v9093 = vunpack.c.l.b16 %v8634
    %v9094 = vunpack.c.h.b16 %v8634
    %v9095 = vunpack.c.l.b16 %v8635
    %v9096 = vunpack.c.h.b16 %v8635
    %v9097 = vunpack.c.l.b16 %v8636
    %v9098 = vunpack.c.h.b16 %v8636
    %v9099 = vunpack.c.l.b16 %v8637
    %v9100 = vunpack.c.h.b16 %v8637
    %v9101 = vunpack.c.l.b16 %v8638
    %v9102 = vunpack.c.h.b16 %v8638
    %v9103 = vunpack.c.l.b16 %v8639
    %v9104 = vunpack.c.h.b16 %v8639
    %v9105 = vunpack.c.l.b16 %v8640
    %v9106 = vunpack.c.h.b16 %v8640
    %v9107 = vunpack.c.l.b16 %v8641
    %v9108 = vunpack.c.h.b16 %v8641
    %v9109 = vunpack.c.l.b16 %v8642
    %v9110 = vunpack.c.h.b16 %v8642
    %v9111 = vpack.c.b16 %v8871, %v8855
    %v9112 = vpack.c.b16 %v8872, %v8856
    %v9113 = vpack.c.b16 %v8873, %v8857
    %v9114 = vpack.c.b16 %v8874, %v8858
    %v9115 = vpack.c.b16 %v8875, %v8859
    %v9116 = vpack.c.b16 %v8876, %v8860
    %v9117 = vpack.c.b16 %v8877, %v8861
    %v9118 = vpack.c.b16 %v8878, %v8862
    %v9119 = vpack.c.b16 %v8879, %v8863
    %v9120 = vpack.c.b16 %v8880, %v8864
    %v9121 = vpack.c.b16 %v8881, %v8865
    %v9122 = vpack.c.b16 %v8882, %v8866
    %v9123 = vpack.c.b16 %v8883, %v8867
    %v9124 = vpack.c.b16 %v8884, %v8868
    %v9125 = vpack.c.b16 %v8885, %v8869
    %v9126 = vpack.c.b16 %v8886, %v8870
    %v9127 = vpack.c.b16 %v8903, %v8887
    %v9128 = vpack.c.b16 %v8904, %v8888
    %v9129 = vpack.c.b16 %v8905, %v8889
    %v9130 = vpack.c.b16 %v8906, %v8890
    %v9131 = vpack.c.b16 %v8907, %v8891
    %v9132 = vpack.c.b16 %v8908, %v8892
    %v9133 = vpack.c.b16 %v8909, %v8893
    %v9134 = vpack.c.b16 %v8910, %v8894
    %v9135 = vpack.c.b16 %v8911, %v8895
    %v9136 = vpack.c.b16 %v8912, %v8896
    %v9137 = vpack.c.b16 %v8913, %v8897
    %v9138 = vpack.c.b16 %v8914, %v8898
    %v9139 = vpack.c.b16 %v8915, %v8899
    %v9140 = vpack.c.b16 %v8916, %v8900
    %v9141 = vpack.c.b16 %v8917, %v8901
    %v9142 = vpack.c.b16 %v8918, %v8902
    %v9143 = vpack.c.b16 %v8935, %v8919
    %v9144 = vpack.c.b16 %v8936, %v8920
    %v9145 = vpack.c.b16 %v8937, %v8921
    %v9146 = vpack.c.b16 %v8938, %v8922
    %v9147 = vpack.c.b16 %v8939, %v8923
    %v9148 = vpack.c.b16 %v8940, %v8924
    %v9149 = vpack.c.b16 %v8941, %v8925
    %v9150 = vpack.c.b16 %v8942, %v8926
    %v9151 = vpack.c.b16 %v8943, %v8927
    %v9152 = vpack.c.b16 %v8944, %v8928
    %v9153 = vpack.c.b16 %v8945, %v8929
    %v9154 = vpack.c.b16 %v8946, %v8930
    %v9155 = vpack.c.b16 %v8947, %v8931
    %v9156 = vpack.c.b16 %v8948, %v8932
    %v9157 = vpack.c.b16 %v8949, %v8933
    %v9158 = vpack.c.b16 %v8950, %v8934
    %v9159 = vpack.c.b16 %v8967, %v8951
    %v9160 = vpack.c.b16 %v8968, %v8952
    %v9161 = vpack.c.b16 %v8969, %v8953
    %v9162 = vpack.c.b16 %v8970, %v8954
    %v9163 = vpack.c.b16 %v8971, %v8955
    %v9164 = vpack.c.b16 %v8972, %v8956
    %v9165 = vpack.c.b16 %v8973, %v8957
    %v9166 = vpack.c.b16 %v8974, %v8958
    %v9167 = vpack.c.b16 %v8975, %v8959
    %v9168 = vpack.c.b16 %v8976, %v8960
    %v9169 = vpack.c.b16 %v8977, %v8961
    %v9170 = vpack.c.b16 %v8978, %v8962
    %v9171 = vpack.c.b16 %v8979, %v8963
    %v9172 = vpack.c.b16 %v8980, %v8964
    %v9173 = vpack.c.b16 %v8981, %v8965
    %v9174 = vpack.c.b16 %v8982, %v8966
    %v9175 = vpack.c.b16 %v8999, %v8983
    %v9176 = vpack.c.b16 %v9000, %v8984
    %v9177 = vpack.c.b16 %v9001, %v8985
    %v9178 = vpack.c.b16 %v9002, %v8986
    %v9179 = vpack.c.b16 %v9003, %v8987
    %v9180 = vpack.c.b16 %v9004, %v8988
    %v9181 = vpack.c.b16 %v9005, %v8989
    %v9182 = vpack.c.b16 %v9006, %v8990
    %v9183 = vpack.c.b16 %v9007, %v8991
    %v9184 = vpack.c.b16 %v9008, %v8992
    %v9185 = vpack.c.b16 %v9009, %v8993
    %v9186 = vpack.c.b16 %v9010, %v8994
    %v9187 = vpack.c.b16 %v9011, %v8995
    %v9188 = vpack.c.b16 %v9012, %v8996
    %v9189 = vpack.c.b16 %v9013, %v8997
    %v9190 = vpack.c.b16 %v9014, %v8998
    %v9191 = vpack.c.b16 %v9031, %v9015
    %v9192 = vpack.c.b16 %v9032, %v9016
    %v9193 = vpack.c.b16 %v9033, %v9017
    %v9194 = vpack.c.b16 %v9034, %v9018
    %v9195 = vpack.c.b16 %v9035, %v9019
    %v9196 = vpack.c.b16 %v9036, %v9020
    %v9197 = vpack.c.b16 %v9037, %v9021
    %v9198 = vpack.c.b16 %v9038, %v9022
    %v9199 = vpack.c.b16 %v9039, %v9023
    %v9200 = vpack.c.b16 %v9040, %v9024
    %v9201 = vpack.c.b16 %v9041, %v9025
    %v9202 = vpack.c.b16 %v9042, %v9026
    %v9203 = vpack.c.b16 %v9043, %v9027
    %v9204 = vpack.c.b16 %v9044, %v9028
    %v9205 = vpack.c.b16 %v9045, %v9029
    %v9206 = vpack.c.b16 %v9046, %v9030
    %v9207 = vpack.c.b16 %v9063, %v9047
    %v9208 = vpack.c.b16 %v9064, %v9048
    %v9209 = vpack.c.b16 %v9065, %v9049
    %v9210 = vpack.c.b16 %v9066, %v9050
    %v9211 = vpack.c.b16 %v9067, %v9051
    %v9212 = vpack.c.b16 %v9068, %v9052
    %v9213 = vpack.c.b16 %v9069, %v9053
    %v9214 = vpack.c.b16 %v9070, %v9054
    %v9215 = vpack.c.b16 %v9071, %v9055
    %v9216 = vpack.c.b16 %v9072, %v9056
    %v9217 = vpack.c.b16 %v9073, %v9057
    %v9218 = vpack.c.b16 %v9074, %v9058
    %v9219 = vpack.c.b16 %v9075, %v9059
    %v9220 = vpack.c.b16 %v9076, %v9060
    %v9221 = vpack.c.b16 %v9077, %v9061
    %v9222 = vpack.c.b16 %v9078, %v9062
    %v9223 = vpack.c.b16 %v9095, %v9079
    %v9224 = vpack.c.b16 %v9096, %v9080
    %v9225 = vpack.c.b16 %v9097, %v9081
    %v9226 = vpack.c.b16 %v9098, %v9082
    %v9227 = vpack.c.b16 %v9099, %v9083
    %v9228 = vpack.c.b16 %v9100, %v9084
    %v9229 = vpack.c.b16 %v9101, %v9085
    %v9230 = vpack.c.b16 %v9102, %v9086
    %v9231 = vpack.c.b16 %v9103, %v9087
    %v9232 = vpack.c.b16 %v9104, %v9088
    %v9233 = vpack.c.b16 %v9105, %v9089
    %v9234 = vpack.c.b16 %v9106, %v9090
    %v9235 = vpack.c.b16 %v9107, %v9091
    %v9236 = vpack.c.b16 %v9108, %v9092
    %v9237 = vpack.c.b16 %v9109, %v9093
    %v9238 = vpack.c.b16 %v9110, %v9094
    %9367 = vmatprep.subr.bf16.mxu0 %v9224
    %9368 = vmatpush1.bf16.msra.mxu0 %v9223
    %9369 = vmatprep.subr.bf16.mxu0 %v9208
    %9370 = vmatpush1.bf16.msra.mxu0 %v9207
    %9371 = vmatprep.subr.bf16.mxu0 %v9192
    %9372 = vmatpush1.bf16.msra.mxu0 %v9191
    %9373 = vmatprep.subr.bf16.mxu0 %v9176
    %9374 = vmatpush1.bf16.msra.mxu0 %v9175
    %9375 = vmatprep.subr.bf16.mxu0 %v9160
    %9376 = vmatpush1.bf16.msra.mxu0 %v9159
    %9377 = vmatprep.subr.bf16.mxu0 %v9144
    %9378 = vmatpush1.bf16.msra.mxu0 %v9143
    %9379 = vmatprep.subr.bf16.mxu0 %v9128
    %9380 = vmatpush1.bf16.msra.mxu0 %v9127
    %9381 = vmatprep.subr.bf16.mxu0 %v9112
    %9382 = vmatpush1.bf16.msra.mxu0 %v9111
    %9383 = vmatprep.subr.bf16.mxu0 0
    %9384 = vmatpush2.bf16.msra.mxu0 0
    %9385 = vmatprep.subr.bf16.mxu0 0
    %9386 = vmatpush2.bf16.msra.mxu0 0
    %9387 = vmatprep.subr.bf16.mxu0 0
    %9388 = vmatpush2.bf16.msra.mxu0 0
    %9389 = vmatprep.subr.bf16.mxu0 0
    %9390 = vmatpush2.bf16.msra.mxu0 0
    %9391 = vmatprep.subr.bf16.mxu0 0
    %9392 = vmatpush2.bf16.msra.mxu0 0
    %9393 = vmatprep.subr.bf16.mxu0 0
    %9394 = vmatpush2.bf16.msra.mxu0 0
    %9395 = vmatprep.subr.bf16.mxu0 0
    %9396 = vmatpush2.bf16.msra.mxu0 0
    %9397 = vmatprep.subr.bf16.mxu0 0
    %9398 = vmatpush2.bf16.msra.mxu0 0
    %9399 = vmatprep.mubr.bf16.mxu0 0
    %9400 = vmatmul.mubr.bf16.gmra.mxu0 %v8510
    %v9401 = vpop.f32.mrf.mxu0
    %v9402 = vadd.f32 %v8650, %v9401
    %v9403 = vpop.f32.mrf.mxu0
    %v9404 = vadd.f32 %v8654, %v9403
    %v9405 = vpop.f32.mrf.mxu0
    %v9406 = vpop.f32.mrf.mxu0
    %9407 = vdwg.mxu0
    %9408 = vmatprep.subr.bf16.mxu0 %v9226
    %9409 = vmatpush1.bf16.msra.mxu0 %v9225
    %9410 = vmatprep.subr.bf16.mxu0 %v9210
    %9411 = vmatpush1.bf16.msra.mxu0 %v9209
    %9412 = vmatprep.subr.bf16.mxu0 %v9194
    %9413 = vmatpush1.bf16.msra.mxu0 %v9193
    %9414 = vmatprep.subr.bf16.mxu0 %v9178
    %9415 = vmatpush1.bf16.msra.mxu0 %v9177
    %9416 = vmatprep.subr.bf16.mxu0 %v9162
    %9417 = vmatpush1.bf16.msra.mxu0 %v9161
    %9418 = vmatprep.subr.bf16.mxu0 %v9146
    %9419 = vmatpush1.bf16.msra.mxu0 %v9145
    %9420 = vmatprep.subr.bf16.mxu0 %v9130
    %9421 = vmatpush1.bf16.msra.mxu0 %v9129
    %9422 = vmatprep.subr.bf16.mxu0 %v9114
    %9423 = vmatpush1.bf16.msra.mxu0 %v9113
    %9424 = vmatprep.subr.bf16.mxu0 0
    %9425 = vmatpush2.bf16.msra.mxu0 0
    %9426 = vmatprep.subr.bf16.mxu0 0
    %9427 = vmatpush2.bf16.msra.mxu0 0
    %9428 = vmatprep.subr.bf16.mxu0 0
    %9429 = vmatpush2.bf16.msra.mxu0 0
    %9430 = vmatprep.subr.bf16.mxu0 0
    %9431 = vmatpush2.bf16.msra.mxu0 0
    %9432 = vmatprep.subr.bf16.mxu0 0
    %9433 = vmatpush2.bf16.msra.mxu0 0
    %9434 = vmatprep.subr.bf16.mxu0 0
    %9435 = vmatpush2.bf16.msra.mxu0 0
    %9436 = vmatprep.subr.bf16.mxu0 0
    %9437 = vmatpush2.bf16.msra.mxu0 0
    %9438 = vmatprep.subr.bf16.mxu0 0
    %9439 = vmatpush2.bf16.msra.mxu0 0
    %9440 = vmatprep.mubr.bf16.mxu0 0
    %9441 = vmatmul.mubr.bf16.gmra.mxu0 %v8510
    %v9442 = vpop.f32.mrf.mxu0
    %v9443 = vadd.f32 %v8658, %v9442
    %v9444 = vpop.f32.mrf.mxu0
    %v9445 = vadd.f32 %v8662, %v9444
    %v9446 = vpop.f32.mrf.mxu0
    %v9447 = vpop.f32.mrf.mxu0
    %9448 = vdwg.mxu0
    %9449 = vmatprep.subr.bf16.mxu0 %v9228
    %9450 = vmatpush1.bf16.msra.mxu0 %v9227
    %9451 = vmatprep.subr.bf16.mxu0 %v9212
    %9452 = vmatpush1.bf16.msra.mxu0 %v9211
    %9453 = vmatprep.subr.bf16.mxu0 %v9196
    %9454 = vmatpush1.bf16.msra.mxu0 %v9195
    %9455 = vmatprep.subr.bf16.mxu0 %v9180
    %9456 = vmatpush1.bf16.msra.mxu0 %v9179
    %9457 = vmatprep.subr.bf16.mxu0 %v9164
    %9458 = vmatpush1.bf16.msra.mxu0 %v9163
    %9459 = vmatprep.subr.bf16.mxu0 %v9148
    %9460 = vmatpush1.bf16.msra.mxu0 %v9147
    %9461 = vmatprep.subr.bf16.mxu0 %v9132
    %9462 = vmatpush1.bf16.msra.mxu0 %v9131
    %9463 = vmatprep.subr.bf16.mxu0 %v9116
    %9464 = vmatpush1.bf16.msra.mxu0 %v9115
    %9465 = vmatprep.subr.bf16.mxu0 0
    %9466 = vmatpush2.bf16.msra.mxu0 0
    %9467 = vmatprep.subr.bf16.mxu0 0
    %9468 = vmatpush2.bf16.msra.mxu0 0
    %9469 = vmatprep.subr.bf16.mxu0 0
    %9470 = vmatpush2.bf16.msra.mxu0 0
    %9471 = vmatprep.subr.bf16.mxu0 0
    %9472 = vmatpush2.bf16.msra.mxu0 0
    %9473 = vmatprep.subr.bf16.mxu0 0
    %9474 = vmatpush2.bf16.msra.mxu0 0
    %9475 = vmatprep.subr.bf16.mxu0 0
    %9476 = vmatpush2.bf16.msra.mxu0 0
    %9477 = vmatprep.subr.bf16.mxu0 0
    %9478 = vmatpush2.bf16.msra.mxu0 0
    %9479 = vmatprep.subr.bf16.mxu0 0
    %9480 = vmatpush2.bf16.msra.mxu0 0
    %9481 = vmatprep.mubr.bf16.mxu0 0
    %9482 = vmatmul.mubr.bf16.gmra.mxu0 %v8510
    %v9483 = vpop.f32.mrf.mxu0
    %v9484 = vadd.f32 %v8666, %v9483
    %v9485 = vpop.f32.mrf.mxu0
    %v9486 = vadd.f32 %v8670, %v9485
    %v9487 = vpop.f32.mrf.mxu0
    %v9488 = vpop.f32.mrf.mxu0
    %9489 = vdwg.mxu0
    %9490 = vmatprep.subr.bf16.mxu0 %v9230
    %9491 = vmatpush1.bf16.msra.mxu0 %v9229
    %9492 = vmatprep.subr.bf16.mxu0 %v9214
    %9493 = vmatpush1.bf16.msra.mxu0 %v9213
    %9494 = vmatprep.subr.bf16.mxu0 %v9198
    %9495 = vmatpush1.bf16.msra.mxu0 %v9197
    %9496 = vmatprep.subr.bf16.mxu0 %v9182
    %9497 = vmatpush1.bf16.msra.mxu0 %v9181
    %9498 = vmatprep.subr.bf16.mxu0 %v9166
    %9499 = vmatpush1.bf16.msra.mxu0 %v9165
    %9500 = vmatprep.subr.bf16.mxu0 %v9150
    %9501 = vmatpush1.bf16.msra.mxu0 %v9149
    %9502 = vmatprep.subr.bf16.mxu0 %v9134
    %9503 = vmatpush1.bf16.msra.mxu0 %v9133
    %9504 = vmatprep.subr.bf16.mxu0 %v9118
    %9505 = vmatpush1.bf16.msra.mxu0 %v9117
    %9506 = vmatprep.subr.bf16.mxu0 0
    %9507 = vmatpush2.bf16.msra.mxu0 0
    %9508 = vmatprep.subr.bf16.mxu0 0
    %9509 = vmatpush2.bf16.msra.mxu0 0
    %9510 = vmatprep.subr.bf16.mxu0 0
    %9511 = vmatpush2.bf16.msra.mxu0 0
    %9512 = vmatprep.subr.bf16.mxu0 0
    %9513 = vmatpush2.bf16.msra.mxu0 0
    %9514 = vmatprep.subr.bf16.mxu0 0
    %9515 = vmatpush2.bf16.msra.mxu0 0
    %9516 = vmatprep.subr.bf16.mxu0 0
    %9517 = vmatpush2.bf16.msra.mxu0 0
    %9518 = vmatprep.subr.bf16.mxu0 0
    %9519 = vmatpush2.bf16.msra.mxu0 0
    %9520 = vmatprep.subr.bf16.mxu0 0
    %9521 = vmatpush2.bf16.msra.mxu0 0
    %9522 = vmatprep.mubr.bf16.mxu0 0
    %9523 = vmatmul.mubr.bf16.gmra.mxu0 %v8510
    %v9524 = vpop.f32.mrf.mxu0
    %v9525 = vadd.f32 %v8674, %v9524
    %v9526 = vpop.f32.mrf.mxu0
    %v9527 = vadd.f32 %v8678, %v9526
    %v9528 = vpop.f32.mrf.mxu0
    %v9529 = vpop.f32.mrf.mxu0
    %9530 = vdwg.mxu0
    %9531 = vmatprep.subr.bf16.mxu0 %v9232
    %9532 = vmatpush1.bf16.msra.mxu0 %v9231
    %9533 = vmatprep.subr.bf16.mxu0 %v9216
    %9534 = vmatpush1.bf16.msra.mxu0 %v9215
    %9535 = vmatprep.subr.bf16.mxu0 %v9200
    %9536 = vmatpush1.bf16.msra.mxu0 %v9199
    %9537 = vmatprep.subr.bf16.mxu0 %v9184
    %9538 = vmatpush1.bf16.msra.mxu0 %v9183
    %9539 = vmatprep.subr.bf16.mxu0 %v9168
    %9540 = vmatpush1.bf16.msra.mxu0 %v9167
    %9541 = vmatprep.subr.bf16.mxu0 %v9152
    %9542 = vmatpush1.bf16.msra.mxu0 %v9151
    %9543 = vmatprep.subr.bf16.mxu0 %v9136
    %9544 = vmatpush1.bf16.msra.mxu0 %v9135
    %9545 = vmatprep.subr.bf16.mxu0 %v9120
    %9546 = vmatpush1.bf16.msra.mxu0 %v9119
    %9547 = vmatprep.subr.bf16.mxu0 0
    %9548 = vmatpush2.bf16.msra.mxu0 0
    %9549 = vmatprep.subr.bf16.mxu0 0
    %9550 = vmatpush2.bf16.msra.mxu0 0
    %9551 = vmatprep.subr.bf16.mxu0 0
    %9552 = vmatpush2.bf16.msra.mxu0 0
    %9553 = vmatprep.subr.bf16.mxu0 0
    %9554 = vmatpush2.bf16.msra.mxu0 0
    %9555 = vmatprep.subr.bf16.mxu0 0
    %9556 = vmatpush2.bf16.msra.mxu0 0
    %9557 = vmatprep.subr.bf16.mxu0 0
    %9558 = vmatpush2.bf16.msra.mxu0 0
    %9559 = vmatprep.subr.bf16.mxu0 0
    %9560 = vmatpush2.bf16.msra.mxu0 0
    %9561 = vmatprep.subr.bf16.mxu0 0
    %9562 = vmatpush2.bf16.msra.mxu0 0
    %9563 = vmatprep.mubr.bf16.mxu0 0
    %9564 = vmatmul.mubr.bf16.gmra.mxu0 %v8510
    %v9565 = vpop.f32.mrf.mxu0
    %v9566 = vadd.f32 %v8682, %v9565
    %v9567 = vpop.f32.mrf.mxu0
    %v9568 = vadd.f32 %v8686, %v9567
    %v9569 = vpop.f32.mrf.mxu0
    %v9570 = vpop.f32.mrf.mxu0
    %9571 = vdwg.mxu0
    %9572 = vmatprep.subr.bf16.mxu0 %v9234
    %9573 = vmatpush1.bf16.msra.mxu0 %v9233
    %9574 = vmatprep.subr.bf16.mxu0 %v9218
    %9575 = vmatpush1.bf16.msra.mxu0 %v9217
    %9576 = vmatprep.subr.bf16.mxu0 %v9202
    %9577 = vmatpush1.bf16.msra.mxu0 %v9201
    %9578 = vmatprep.subr.bf16.mxu0 %v9186
    %9579 = vmatpush1.bf16.msra.mxu0 %v9185
    %9580 = vmatprep.subr.bf16.mxu0 %v9170
    %9581 = vmatpush1.bf16.msra.mxu0 %v9169
    %9582 = vmatprep.subr.bf16.mxu0 %v9154
    %9583 = vmatpush1.bf16.msra.mxu0 %v9153
    %9584 = vmatprep.subr.bf16.mxu0 %v9138
    %9585 = vmatpush1.bf16.msra.mxu0 %v9137
    %9586 = vmatprep.subr.bf16.mxu0 %v9122
    %9587 = vmatpush1.bf16.msra.mxu0 %v9121
    %9588 = vmatprep.subr.bf16.mxu0 0
    %9589 = vmatpush2.bf16.msra.mxu0 0
    %9590 = vmatprep.subr.bf16.mxu0 0
    %9591 = vmatpush2.bf16.msra.mxu0 0
    %9592 = vmatprep.subr.bf16.mxu0 0
    %9593 = vmatpush2.bf16.msra.mxu0 0
    %9594 = vmatprep.subr.bf16.mxu0 0
    %9595 = vmatpush2.bf16.msra.mxu0 0
    %9596 = vmatprep.subr.bf16.mxu0 0
    %9597 = vmatpush2.bf16.msra.mxu0 0
    %9598 = vmatprep.subr.bf16.mxu0 0
    %9599 = vmatpush2.bf16.msra.mxu0 0
    %9600 = vmatprep.subr.bf16.mxu0 0
    %9601 = vmatpush2.bf16.msra.mxu0 0
    %9602 = vmatprep.subr.bf16.mxu0 0
    %9603 = vmatpush2.bf16.msra.mxu0 0
    %9604 = vmatprep.mubr.bf16.mxu0 0
    %9605 = vmatmul.mubr.bf16.gmra.mxu0 %v8510
    %v9606 = vpop.f32.mrf.mxu0
    %v9607 = vadd.f32 %v8690, %v9606
    %v9608 = vpop.f32.mrf.mxu0
    %v9609 = vadd.f32 %v8694, %v9608
    %v9610 = vpop.f32.mrf.mxu0
    %v9611 = vpop.f32.mrf.mxu0
    %9612 = vdwg.mxu0
    %9613 = vmatprep.subr.bf16.mxu0 %v9236
    %9614 = vmatpush1.bf16.msra.mxu0 %v9235
    %9615 = vmatprep.subr.bf16.mxu0 %v9220
    %9616 = vmatpush1.bf16.msra.mxu0 %v9219
    %9617 = vmatprep.subr.bf16.mxu0 %v9204
    %9618 = vmatpush1.bf16.msra.mxu0 %v9203
    %9619 = vmatprep.subr.bf16.mxu0 %v9188
    %9620 = vmatpush1.bf16.msra.mxu0 %v9187
    %9621 = vmatprep.subr.bf16.mxu0 %v9172
    %9622 = vmatpush1.bf16.msra.mxu0 %v9171
    %9623 = vmatprep.subr.bf16.mxu0 %v9156
    %9624 = vmatpush1.bf16.msra.mxu0 %v9155
    %9625 = vmatprep.subr.bf16.mxu0 %v9140
    %9626 = vmatpush1.bf16.msra.mxu0 %v9139
    %9627 = vmatprep.subr.bf16.mxu0 %v9124
    %9628 = vmatpush1.bf16.msra.mxu0 %v9123
    %9629 = vmatprep.subr.bf16.mxu0 0
    %9630 = vmatpush2.bf16.msra.mxu0 0
    %9631 = vmatprep.subr.bf16.mxu0 0
    %9632 = vmatpush2.bf16.msra.mxu0 0
    %9633 = vmatprep.subr.bf16.mxu0 0
    %9634 = vmatpush2.bf16.msra.mxu0 0
    %9635 = vmatprep.subr.bf16.mxu0 0
    %9636 = vmatpush2.bf16.msra.mxu0 0
    %9637 = vmatprep.subr.bf16.mxu0 0
    %9638 = vmatpush2.bf16.msra.mxu0 0
    %9639 = vmatprep.subr.bf16.mxu0 0
    %9640 = vmatpush2.bf16.msra.mxu0 0
    %9641 = vmatprep.subr.bf16.mxu0 0
    %9642 = vmatpush2.bf16.msra.mxu0 0
    %9643 = vmatprep.subr.bf16.mxu0 0
    %9644 = vmatpush2.bf16.msra.mxu0 0
    %9645 = vmatprep.mubr.bf16.mxu0 0
    %9646 = vmatmul.mubr.bf16.gmra.mxu0 %v8510
    %v9647 = vpop.f32.mrf.mxu0
    %v9648 = vadd.f32 %v8698, %v9647
    %v9649 = vpop.f32.mrf.mxu0
    %v9650 = vadd.f32 %v8702, %v9649
    %v9651 = vpop.f32.mrf.mxu0
    %v9652 = vpop.f32.mrf.mxu0
    %9653 = vdwg.mxu0
    %9654 = vmatprep.subr.bf16.mxu0 %v9238
    %9655 = vmatpush1.bf16.msra.mxu0 %v9237
    %9656 = vmatprep.subr.bf16.mxu0 %v9222
    %9657 = vmatpush1.bf16.msra.mxu0 %v9221
    %9658 = vmatprep.subr.bf16.mxu0 %v9206
    %9659 = vmatpush1.bf16.msra.mxu0 %v9205
    %9660 = vmatprep.subr.bf16.mxu0 %v9190
    %9661 = vmatpush1.bf16.msra.mxu0 %v9189
    %9662 = vmatprep.subr.bf16.mxu0 %v9174
    %9663 = vmatpush1.bf16.msra.mxu0 %v9173
    %9664 = vmatprep.subr.bf16.mxu0 %v9158
    %9665 = vmatpush1.bf16.msra.mxu0 %v9157
    %9666 = vmatprep.subr.bf16.mxu0 %v9142
    %9667 = vmatpush1.bf16.msra.mxu0 %v9141
    %9668 = vmatprep.subr.bf16.mxu0 %v9126
    %9669 = vmatpush1.bf16.msra.mxu0 %v9125
    %9670 = vmatprep.subr.bf16.mxu0 0
    %9671 = vmatpush2.bf16.msra.mxu0 0
    %9672 = vmatprep.subr.bf16.mxu0 0
    %9673 = vmatpush2.bf16.msra.mxu0 0
    %9674 = vmatprep.subr.bf16.mxu0 0
    %9675 = vmatpush2.bf16.msra.mxu0 0
    %9676 = vmatprep.subr.bf16.mxu0 0
    %9677 = vmatpush2.bf16.msra.mxu0 0
    %9678 = vmatprep.subr.bf16.mxu0 0
    %9679 = vmatpush2.bf16.msra.mxu0 0
    %9680 = vmatprep.subr.bf16.mxu0 0
    %9681 = vmatpush2.bf16.msra.mxu0 0
    %9682 = vmatprep.subr.bf16.mxu0 0
    %9683 = vmatpush2.bf16.msra.mxu0 0
    %9684 = vmatprep.subr.bf16.mxu0 0
    %9685 = vmatpush2.bf16.msra.mxu0 0
    %9686 = vmatprep.mubr.bf16.mxu0 0
    %9687 = vmatmul.mubr.bf16.gmra.mxu0 %v8510
    %v9688 = vpop.f32.mrf.mxu0
    %v9689 = vadd.f32 %v8706, %v9688
    %v9690 = vpop.f32.mrf.mxu0
    %v9691 = vadd.f32 %v8710, %v9690
    %v9692 = vpop.f32.mrf.mxu0
    %v9693 = vpop.f32.mrf.mxu0
    %9694 = vdwg.mxu0
    %v9711 = vcombine.low %v9402, %v9404
    %v9712 = vcombine.low %v9443, %v9445
    %v9714 = vunpack.c.l.s4 1983009808
    %v9715 = vunpack.c.0.s8 %v9714
    %v9716 = vlaneseq
    %v9717 = vshrl.u32 %v9716, 7
    %v9718 = vsub.s32 %v9715, %v9717
    %v9719 = vrot.slane %v9711, %v9718
    %v9721 = vunpack.c.l.s4 1983009808
    %v9722 = vunpack.c.0.s8 %v9721
    %v9723 = vlaneseq
    %v9724 = vshrl.u32 %v9723, 7
    %v9725 = vsub.s32 %v9722, %v9724
    %v9726 = vrot.slane %v9712, %v9725
    %v9727 = vcombine.low %v9719, %v9726
    %v9728 = vcombine.low %v9484, %v9486
    %v9729 = vcombine.low %v9525, %v9527
    %v9731 = vunpack.c.l.s4 1983009808
    %v9732 = vunpack.c.0.s8 %v9731
    %v9733 = vlaneseq
    %v9734 = vshrl.u32 %v9733, 7
    %v9735 = vsub.s32 %v9732, %v9734
    %v9736 = vrot.slane %v9728, %v9735
    %v9738 = vunpack.c.l.s4 1983009808
    %v9739 = vunpack.c.0.s8 %v9738
    %v9740 = vlaneseq
    %v9741 = vshrl.u32 %v9740, 7
    %v9742 = vsub.s32 %v9739, %v9741
    %v9743 = vrot.slane %v9729, %v9742
    %v9744 = vcombine.low %v9736, %v9743
    %v9745 = vcombine.low %v9566, %v9568
    %v9746 = vcombine.low %v9607, %v9609
    %v9748 = vunpack.c.l.s4 1983009808
    %v9749 = vunpack.c.0.s8 %v9748
    %v9750 = vlaneseq
    %v9751 = vshrl.u32 %v9750, 7
    %v9752 = vsub.s32 %v9749, %v9751
    %v9753 = vrot.slane %v9745, %v9752
    %v9755 = vunpack.c.l.s4 1983009808
    %v9756 = vunpack.c.0.s8 %v9755
    %v9757 = vlaneseq
    %v9758 = vshrl.u32 %v9757, 7
    %v9759 = vsub.s32 %v9756, %v9758
    %v9760 = vrot.slane %v9746, %v9759
    %v9761 = vcombine.low %v9753, %v9760
    %v9762 = vcombine.low %v9648, %v9650
    %v9763 = vcombine.low %v9689, %v9691
    %v9765 = vunpack.c.l.s4 1983009808
    %v9766 = vunpack.c.0.s8 %v9765
    %v9767 = vlaneseq
    %v9768 = vshrl.u32 %v9767, 7
    %v9769 = vsub.s32 %v9766, %v9768
    %v9770 = vrot.slane %v9762, %v9769
    %v9772 = vunpack.c.l.s4 1983009808
    %v9773 = vunpack.c.0.s8 %v9772
    %v9774 = vlaneseq
    %v9775 = vshrl.u32 %v9774, 7
    %v9776 = vsub.s32 %v9773, %v9775
    %v9777 = vrot.slane %v9763, %v9776
    %v9778 = vcombine.low %v9770, %v9777
    %9783 = vst [vmem:[#allocation4] sm:$0xff] %v9727
    %9784 = vst [vmem:[#allocation4 + $0x8] sm:$0xff] %v9744
    %9785 = vst [vmem:[#allocation4 + $0x10] sm:$0xff] %v9761
    %9786 = vst [vmem:[#allocation4 + $0x18] sm:$0xff] %v9778
    // Predicated region
    $region60: #{tpu_custom_call.1} parent=1 // pred_check
      _
    $region61: #{tpu_custom_call.1} parent=1 // pred_check_branch
      %9788 = sbr.rel (0) target = $region63
    $region62: #{tpu_custom_call.1} parent=1 // pred_region
      %s9790 = ssub.s32 512, 512
      %9791 = vsyncadd [#allocation5], %s9790
      %s9793 = sshll.u32 [#allocation4], 4
      %s9794 = int_to_ptr.vmem [resolvable:$true] %s9793
      %9796 = dma.vmem_to_hbm [thread:$0]  %s9794, 512, %s7, [#allocation5]
    $region63: #{tpu_custom_call.1} parent=1 // pred_fallthru
      _
    // Predicated region
    $region64: #{tpu_custom_call.1} parent=1 // pred_check
      _
    $region65: #{tpu_custom_call.1} parent=1 // pred_check_branch
      %9798 = sbr.rel (0) target = $region67
    $region66: #{tpu_custom_call.1} parent=1 // pred_region
      %9799 = dma.done [#allocation5], 512
    $region67: #{tpu_custom_call.1} parent=1 // pred_fallthru
      _
    %9800 = vsyncpa [#allocation5], 1
  %9801 = vsyncmov [#allocation3]
  %s9802 = vpop.sfrf %9801
  %p9803 = scmp.eq.s32.totalorder %s9802, 0
  %p9804 = pneg %p9803
  %9806 = shalt.err (%p9804)

</llo_original>
